<compile_context>
chip_gen: v6e
topology: v6e:2x2x1
jax: 0.10.0
libtpu: 0.0.40
codegen_flags: <defaults>
</compile_context>

<pallas_src>
import math

import jax
import jax.numpy as jnp
from jax.experimental import pallas as pl
from jax.experimental.pallas import tpu as pltpu

# ----------------------------- model dimensions -----------------------------
IMG = 16                          # input spatial size (small test shape)
PATCH = 4                         # patch size
C_IN = 3                          # RGB channels (ViT expects 3)
N_PATCH = (IMG // PATCH) ** 2     # 16 patches
SEQ = N_PATCH + 1                 # +1 class token -> 17 real tokens
SEQ_PAD = 32                      # sublane-dense padded sequence length
D = 128                           # hidden width (lane-dense)
NH = 4                            # attention heads
HD = D // NH                      # head dim = 32
D_MLP = 256                       # MLP hidden (multiple of 128)
DEPTH = 2                         # transformer blocks
OUT_DIM = 3                       # classifier classes
OUT_PAD = 128                     # lane-padded classifier width
PATCH_DIM = PATCH * PATCH * C_IN  # 48
PATCH_DIM_PAD = 128               # lane-padded patch feature width

B_TILE = 8                        # images per grid program
TOK = B_TILE * SEQ_PAD            # 256 token rows per program


# ------------------------------ kernel helpers -------------------------------
def _ln(x, g, b, eps=1e-6):
    """LayerNorm over the last (lane) axis, f32.  g/b are (1, W)."""
    mu = jnp.mean(x, axis=-1, keepdims=True)
    xc = x - mu
    var = jnp.mean(xc * xc, axis=-1, keepdims=True)
    return xc * jax.lax.rsqrt(var + eps) * g + b


# --------------------------------- kernel ------------------------------------
def _vit_kernel(tok_in_ref, pos_ref, pw_ref, pb_ref,
                ln1g_ref, ln1b_ref, qkvw_ref, qkvb_ref, projw_ref, projb_ref,
                ln2g_ref, ln2b_ref, w1_ref, b1_ref, w2_ref, b2_ref,
                lnfg_ref, lnfb_ref, fcw_ref, fcb_ref,
                out_ref,
                tok_ref, qkv_ref, cls_ref):
    """ViT forward for B_TILE images; all intermediates stay in VMEM/vregs."""
    f32 = jnp.float32
    bf16 = jnp.bfloat16

    # ---- patch embedding on the whole (TOK, 128) slab (bf16 MXU, f32 acc).
    # Row 0 of each image is a zero "cls" patch; (cls - patch_b) is folded into
    # pos row 0 at init, so adding pos yields cls + pos[0] there.
    emb = jnp.dot(tok_in_ref[...], pw_ref[...], preferred_element_type=f32)
    tok_ref[...] = emb + pb_ref[...] + pos_ref[...]

    # additive key-padding mask: columns >= SEQ never receive attention weight
    col = jax.lax.broadcasted_iota(jnp.int32, (1, SEQ_PAD), 1)
    kmask = jnp.where(col < SEQ, 0.0, -1e30).astype(f32)

    for l in range(DEPTH):                                  # static unroll (2)
        # -------------------- multi-head self-attention --------------------
        h = _ln(tok_ref[...], ln1g_ref[l], ln1b_ref[l])     # (TOK, D) f32
        qkv = jnp.dot(h.astype(bf16), qkvw_ref[l],          # (TOK, 3D) f32
                      preferred_element_type=f32) + qkvb_ref[l]
        qkv_ref[...] = qkv.astype(bf16)                     # cast ONCE / layer

        proj_w = projw_ref[l]          # (D, D) bf16, rows grouped per head
        proj_b = projb_ref[l]          # (1, D) f32

        @pl.loop(0, B_TILE)                                 # per-image attn
        def _(img):
            base = pl.multiple_of(img * SEQ_PAD, SEQ_PAD)
            qkv_i = qkv_ref[pl.ds(base, SEQ_PAD), :]        # (SEQ_PAD, 3D) bf16
            acc = jnp.zeros((SEQ_PAD, D), f32)
            for hh in range(NH):                            # static unroll (4)
                q_h = qkv_i[:, hh * HD:(hh + 1) * HD]
                k_h = qkv_i[:, D + hh * HD:D + (hh + 1) * HD]
                v_h = qkv_i[:, 2 * D + hh * HD:2 * D + (hh + 1) * HD]
                # scores: scale already folded into Q projection at init
                s = jax.lax.dot_general(
                    q_h, k_h, (((1,), (1,)), ((), ())),
                    preferred_element_type=f32)             # (SEQ_PAD, SEQ_PAD)
                s = s + kmask
                s = s - jnp.max(s, axis=-1, keepdims=True)
                e = jnp.exp(s)
                p = e * pl.reciprocal(jnp.sum(e, axis=-1, keepdims=True),
                                      approx=True)
                o = jnp.dot(p.astype(bf16), v_h,            # (SEQ_PAD, HD)
                            preferred_element_type=f32)
                # fold head-concat into the output projection: lane-dense out
                acc = acc + jnp.dot(o.astype(bf16),
                                    proj_w[hh * HD:(hh + 1) * HD, :],
                                    preferred_element_type=f32)
            # residual add for this image's rows
            tok_ref[pl.ds(base, SEQ_PAD), :] = (
                tok_ref[pl.ds(base, SEQ_PAD), :] + acc + proj_b)

        # ------------------------------ MLP ------------------------------
        h = _ln(tok_ref[...], ln2g_ref[l], ln2b_ref[l])
        h = jnp.dot(h.astype(bf16), w1_ref[l],
                    preferred_element_type=f32) + b1_ref[l]
        h = jax.nn.gelu(h)              # tanh approx (see TODO at top)
        h = jnp.dot(h.astype(bf16), w2_ref[l],
                    preferred_element_type=f32) + b2_ref[l]
        tok_ref[...] = tok_ref[...] + h

    # ---- final LayerNorm + classifier head on the class tokens only ----
    for i in range(B_TILE):             # gather cls rows (static, tiny)
        cls_ref[pl.ds(i, 1), :] = tok_ref[pl.ds(i * SEQ_PAD, 1), :]
    c = _ln(cls_ref[...], lnfg_ref[...], lnfb_ref[...])     # (B_TILE, D)
    out_ref[...] = jnp.dot(c.astype(bf16), fcw_ref[...],
                           preferred_element_type=f32) + fcb_ref[...]


# ------------------------------- parameters ----------------------------------
def init_params(key):
    ks = jax.random.split(key, 8)

    def dense(k, shape, fan_in):
        return jax.random.normal(k, shape, jnp.float32) / math.sqrt(float(fan_in))

    cls = 0.02 * jax.random.normal(ks[0], (D,), jnp.float32)
    pos = 0.02 * jax.random.normal(ks[1], (SEQ, D), jnp.float32)

    patch_w = dense(ks[2], (PATCH_DIM, D), PATCH_DIM)
    patch_b = jnp.zeros((D,), jnp.float32)
    # pad contraction dim 48 -> 128 with zero rows (no effect on the matmul)
    patch_w_pad = jnp.zeros((PATCH_DIM_PAD, D), jnp.float32).at[:PATCH_DIM].set(patch_w)

    # pos slab with cls token (and patch bias correction) folded into row 0;
    # padded rows (>= SEQ) stay zero.  Pre-tiled to the (TOK, D) slab shape.
    pos_slab = jnp.zeros((SEQ_PAD, D), jnp.float32)
    pos_slab = pos_slab.at[0].set(pos[0] + cls - patch_b)
    pos_slab = pos_slab.at[1:SEQ].set(pos[1:])
    pos_tiled = jnp.tile(pos_slab, (B_TILE, 1))              # (TOK, D)

    qkv_w = dense(ks[3], (DEPTH, D, 3 * D), D)
    qkv_b = jnp.zeros((DEPTH, 3 * D), jnp.float32)
    # fold the 1/sqrt(head_dim) attention scale into the Q projection
    scale = 1.0 / math.sqrt(HD)
    qkv_w = qkv_w.at[:, :, :D].multiply(scale)
    qkv_b = qkv_b.at[:, :D].multiply(scale)

    proj_w = dense(ks[4], (DEPTH, D, D), D)                  # rows: head-major
    proj_b = jnp.zeros((DEPTH, D), jnp.float32)

    mlp_w1 = dense(ks[5], (DEPTH, D, D_MLP), D)
    mlp_b1 = jnp.zeros((DEPTH, D_MLP), jnp.float32)
    mlp_w2 = dense(ks[6], (DEPTH, D_MLP, D), D_MLP)
    mlp_b2 = jnp.zeros((DEPTH, D), jnp.float32)

    fc_w = dense(ks[7], (D, OUT_DIM), D)
    fc_w_pad = jnp.zeros((D, OUT_PAD), jnp.float32).at[:, :OUT_DIM].set(fc_w)

    bf = lambda a: a.astype(jnp.bfloat16)
    row = lambda a: a.reshape(DEPTH, 1, -1)                  # (DEPTH,W)->(DEPTH,1,W)

    return {
        "pos": pos_tiled,                                    # (TOK, D) f32
        "patch_w": bf(patch_w_pad),                          # (128, D) bf16
        "patch_b": patch_b.reshape(1, D),                    # (1, D) f32
        "ln1_g": jnp.ones((DEPTH, 1, D), jnp.float32),
        "ln1_b": jnp.zeros((DEPTH, 1, D), jnp.float32),
        "qkv_w": bf(qkv_w),                                  # (DEPTH, D, 3D) bf16
        "qkv_b": row(qkv_b),                                 # (DEPTH, 1, 3D) f32
        "proj_w": bf(proj_w),                                # (DEPTH, D, D) bf16
        "proj_b": row(proj_b),                               # (DEPTH, 1, D) f32
        "ln2_g": jnp.ones((DEPTH, 1, D), jnp.float32),
        "ln2_b": jnp.zeros((DEPTH, 1, D), jnp.float32),
        "mlp_w1": bf(mlp_w1),                                # (DEPTH, D, 256) bf16
        "mlp_b1": row(mlp_b1),
        "mlp_w2": bf(mlp_w2),                                # (DEPTH, 256, D) bf16
        "mlp_b2": row(mlp_b2),
        "lnf_g": jnp.ones((1, D), jnp.float32),
        "lnf_b": jnp.zeros((1, D), jnp.float32),
        "fc_w": bf(fc_w_pad),                                # (D, 128) bf16
        "fc_b": jnp.zeros((1, OUT_PAD), jnp.float32),
    }


# ------------------------------- JAX wrapper ----------------------------------
def vit_forward(x_nchw, p):
    """Forward pass. Input NCHW (PyTorch convention), output (N, OUT_DIM)."""
    x = x_nchw.astype(jnp.float32)
    N = x.shape[0]
    npx = IMG // PATCH
    # non-overlapping patchify: pure layout transform, no data duplication
    x = x.reshape(N, C_IN, npx, PATCH, npx, PATCH)
    x = jnp.transpose(x, (0, 2, 4, 3, 5, 1))                # (N,nph,npw,P,P,C)
    patches = x.reshape(N, N_PATCH, PATCH_DIM)

    # token-row slab per image: row 0 = cls placeholder (zeros), rows 1..16 =
    # patches, rows 17..31 = padding; lanes padded 48 -> 128; bf16 for the MXU.
    slab = jnp.zeros((N, SEQ_PAD, PATCH_DIM_PAD), jnp.float32)
    slab = slab.at[:, 1:1 + N_PATCH, :PATCH_DIM].set(patches)

    n_pad = pl.cdiv(N, B_TILE) * B_TILE
    if n_pad != N:
        slab = jnp.pad(slab, ((0, n_pad - N), (0, 0), (0, 0)))
    tok_in = slab.astype(jnp.bfloat16).reshape(n_pad * SEQ_PAD, PATCH_DIM_PAD)

    weights = (p["pos"], p["patch_w"], p["patch_b"],
               p["ln1_g"], p["ln1_b"], p["qkv_w"], p["qkv_b"],
               p["proj_w"], p["proj_b"], p["ln2_g"], p["ln2_b"],
               p["mlp_w1"], p["mlp_b1"], p["mlp_w2"], p["mlp_b2"],
               p["lnf_g"], p["lnf_b"], p["fc_w"], p["fc_b"])

    def full_spec(a):
        # constant index_map -> block index never changes -> weight stays
        # resident in VMEM across grid steps (no per-step re-DMA).
        nd = a.ndim
        return pl.BlockSpec(a.shape, lambda b, _nd=nd: (0,) * _nd)

    in_specs = [pl.BlockSpec((TOK, PATCH_DIM_PAD), lambda b: (b, 0))]
    in_specs += [full_spec(a) for a in weights]

    out = pl.pallas_call(
        _vit_kernel,
        grid=(n_pad // B_TILE,),                            # B_TILE imgs / step
        in_specs=in_specs,
        out_specs=pl.BlockSpec((B_TILE, OUT_PAD), lambda b: (b, 0)),
        out_shape=jax.ShapeDtypeStruct((n_pad, OUT_PAD), jnp.float32),
        scratch_shapes=[
            pltpu.VMEM((TOK, D), jnp.float32),              # token slab
            pltpu.VMEM((TOK, 3 * D), jnp.bfloat16),         # per-layer qkv
            pltpu.VMEM((B_TILE, D), jnp.float32),           # cls tokens
        ],
        compiler_params=pltpu.CompilerParams(
            dimension_semantics=("parallel",)),             # megacore-shardable
    )(tok_in, *weights)

    return out[:N, :OUT_DIM]                                # drop lane padding


if __name__ == "__main__":
    key = jax.random.PRNGKey(0)
    kx, kp = jax.random.split(key)

    # small NCHW image batch; 16 images -> 2 grid programs of 8 (even program
    # count so v7x megacore gets balanced work)
    N = 16
    x = jax.random.normal(kx, (N, C_IN, IMG, IMG), jnp.float32)
    params = init_params(kp)

    out = jax.jit(vit_forward)(x, params)
    out = jax.block_until_ready(out)

    assert out.shape == (N, OUT_DIM), out.shape
    assert bool(jnp.all(jnp.isfinite(out)))
    print("KERNEL_OK")
</pallas_src>

<mosaic_0001>
module attributes {stable_mosaic.version = 11 : i64} {
  func.func @_vit_kernel(%arg0: i32, %arg1: memref<256x128xbf16, #tpu.memory_space<vmem>>, %arg2: memref<256x128xf32, #tpu.memory_space<vmem>>, %arg3: memref<128x128xbf16, #tpu.memory_space<vmem>>, %arg4: memref<1x128xf32, #tpu.memory_space<vmem>>, %arg5: memref<2x1x128xf32, #tpu.memory_space<vmem>>, %arg6: memref<2x1x128xf32, #tpu.memory_space<vmem>>, %arg7: memref<2x128x384xbf16, #tpu.memory_space<vmem>>, %arg8: memref<2x1x384xf32, #tpu.memory_space<vmem>>, %arg9: memref<2x128x128xbf16, #tpu.memory_space<vmem>>, %arg10: memref<2x1x128xf32, #tpu.memory_space<vmem>>, %arg11: memref<2x1x128xf32, #tpu.memory_space<vmem>>, %arg12: memref<2x1x128xf32, #tpu.memory_space<vmem>>, %arg13: memref<2x128x256xbf16, #tpu.memory_space<vmem>>, %arg14: memref<2x1x256xf32, #tpu.memory_space<vmem>>, %arg15: memref<2x256x128xbf16, #tpu.memory_space<vmem>>, %arg16: memref<2x1x128xf32, #tpu.memory_space<vmem>>, %arg17: memref<1x128xf32, #tpu.memory_space<vmem>>, %arg18: memref<1x128xf32, #tpu.memory_space<vmem>>, %arg19: memref<128x128xbf16, #tpu.memory_space<vmem>>, %arg20: memref<1x128xf32, #tpu.memory_space<vmem>>, %arg21: memref<8x128xf32, #tpu.memory_space<vmem>>, %arg22: memref<256x128xf32, #tpu.memory_space<vmem>>, %arg23: memref<256x384xbf16, #tpu.memory_space<vmem>>, %arg24: memref<8x128xf32, #tpu.memory_space<vmem>>) attributes {dimension_semantics = [#tpu.dimension_semantics<parallel>], iteration_bounds = array<i64: 2>, scalar_prefetch = 0 : i64, scratch_operands = 3 : i64, tpu.core_type = #tpu.core_type<tc>, window_params = [{transform_indices = @transform_0, window_bounds = array<i64: 256, 128>}, {pipeline_mode = #tpu.pipeline_mode<synchronous>, transform_indices = @transform_1, window_bounds = array<i64: 256, 128>}, {pipeline_mode = #tpu.pipeline_mode<synchronous>, transform_indices = @transform_2, window_bounds = array<i64: 128, 128>}, {pipeline_mode = #tpu.pipeline_mode<synchronous>, transform_indices = @transform_3, window_bounds = array<i64: 1, 128>}, {pipeline_mode = #tpu.pipeline_mode<synchronous>, transform_indices = @transform_4, window_bounds = array<i64: 2, 1, 128>}, {pipeline_mode = #tpu.pipeline_mode<synchronous>, transform_indices = @transform_5, window_bounds = array<i64: 2, 1, 128>}, {pipeline_mode = #tpu.pipeline_mode<synchronous>, transform_indices = @transform_6, window_bounds = array<i64: 2, 128, 384>}, {pipeline_mode = #tpu.pipeline_mode<synchronous>, transform_indices = @transform_7, window_bounds = array<i64: 2, 1, 384>}, {pipeline_mode = #tpu.pipeline_mode<synchronous>, transform_indices = @transform_8, window_bounds = array<i64: 2, 128, 128>}, {pipeline_mode = #tpu.pipeline_mode<synchronous>, transform_indices = @transform_9, window_bounds = array<i64: 2, 1, 128>}, {pipeline_mode = #tpu.pipeline_mode<synchronous>, transform_indices = @transform_10, window_bounds = array<i64: 2, 1, 128>}, {pipeline_mode = #tpu.pipeline_mode<synchronous>, transform_indices = @transform_11, window_bounds = array<i64: 2, 1, 128>}, {pipeline_mode = #tpu.pipeline_mode<synchronous>, transform_indices = @transform_12, window_bounds = array<i64: 2, 128, 256>}, {pipeline_mode = #tpu.pipeline_mode<synchronous>, transform_indices = @transform_13, window_bounds = array<i64: 2, 1, 256>}, {pipeline_mode = #tpu.pipeline_mode<synchronous>, transform_indices = @transform_14, window_bounds = array<i64: 2, 256, 128>}, {pipeline_mode = #tpu.pipeline_mode<synchronous>, transform_indices = @transform_15, window_bounds = array<i64: 2, 1, 128>}, {pipeline_mode = #tpu.pipeline_mode<synchronous>, transform_indices = @transform_16, window_bounds = array<i64: 1, 128>}, {pipeline_mode = #tpu.pipeline_mode<synchronous>, transform_indices = @transform_17, window_bounds = array<i64: 1, 128>}, {pipeline_mode = #tpu.pipeline_mode<synchronous>, transform_indices = @transform_18, window_bounds = array<i64: 128, 128>}, {pipeline_mode = #tpu.pipeline_mode<synchronous>, transform_indices = @transform_19, window_bounds = array<i64: 1, 128>}, {transform_indices = @transform_20, window_bounds = array<i64: 8, 128>}]} {
    %c0 = arith.constant 0 : index
    %c0_0 = arith.constant 0 : index
    %0 = vector.load %arg1[%c0, %c0_0] : memref<256x128xbf16, #tpu.memory_space<vmem>>, vector<256x128xbf16>
    %c0_1 = arith.constant 0 : index
    %c0_2 = arith.constant 0 : index
    %1 = vector.load %arg3[%c0_1, %c0_2] : memref<128x128xbf16, #tpu.memory_space<vmem>>, vector<128x128xbf16>
    %cst = arith.constant dense<0.000000e+00> : vector<256x128xf32>
    %2 = tpu.matmul %0, %1, %cst {dimension_numbers = #tpu.dot_dimension_numbers<[1], [0], [0], [1], [0, 0, 1, 1], [], []>} : vector<256x128xbf16>, vector<128x128xbf16>, vector<256x128xf32> -> vector<256x128xf32>
    %c0_3 = arith.constant 0 : index
    %c0_4 = arith.constant 0 : index
    %3 = vector.load %arg4[%c0_3, %c0_4] : memref<1x128xf32, #tpu.memory_space<vmem>>, vector<1x128xf32>
    %4 = vector.broadcast %3 : vector<1x128xf32> to vector<256x128xf32>
    %5 = arith.addf %2, %4 : vector<256x128xf32>
    %c0_5 = arith.constant 0 : index
    %c0_6 = arith.constant 0 : index
    %6 = vector.load %arg2[%c0_5, %c0_6] : memref<256x128xf32, #tpu.memory_space<vmem>>, vector<256x128xf32>
    %7 = arith.addf %5, %6 : vector<256x128xf32>
    %c0_7 = arith.constant 0 : index
    %c0_8 = arith.constant 0 : index
    %8 = vector.load %arg22[%c0_7, %c0_8] : memref<256x128xf32, #tpu.memory_space<vmem>>, vector<256x128xf32>
    tpu.vector_store %arg22[%c0_7, %c0_8], %7 {strides = array<i32>} : memref<256x128xf32, #tpu.memory_space<vmem>>, vector<256x128xf32>,
    %9 = tpu.iota {dimensions = array<i32: 1>} : vector<1x32xi32>
    %c17_i32 = arith.constant 17 : i32
    %10 = vector.broadcast %c17_i32 : i32 to vector<1x32xi32>
    %11 = arith.cmpi slt, %9, %10 : vector<1x32xi32>
    %cst_9 = arith.constant 0.000000e+00 : f32
    %cst_10 = arith.constant -1.000000e+30 : f32
    %12 = vector.broadcast %cst_9 : f32 to vector<1x32xf32>
    %13 = vector.broadcast %cst_10 : f32 to vector<1x32xf32>
    %14 = arith.select %11, %12, %13 : vector<1x32xi1>, vector<1x32xf32>
    %c0_11 = arith.constant 0 : index
    %c0_12 = arith.constant 0 : index
    %15 = vector.load %arg22[%c0_11, %c0_12] : memref<256x128xf32, #tpu.memory_space<vmem>>, vector<256x128xf32>
    %c0_13 = arith.constant 0 : index
    %c0_14 = arith.constant 0 : index
    %c0_15 = arith.constant 0 : index
    %16 = vector.load %arg5[%c0_13, %c0_14, %c0_15] : memref<2x1x128xf32, #tpu.memory_space<vmem>>, vector<1x1x128xf32>
    %17 = vector.shape_cast %16 : vector<1x1x128xf32> to vector<1x128xf32>
    %c0_16 = arith.constant 0 : index
    %c0_17 = arith.constant 0 : index
    %c0_18 = arith.constant 0 : index
    %18 = vector.load %arg6[%c0_16, %c0_17, %c0_18] : memref<2x1x128xf32, #tpu.memory_space<vmem>>, vector<1x1x128xf32>
    %19 = vector.shape_cast %18 : vector<1x1x128xf32> to vector<1x128xf32>
    %cst_19 = arith.constant dense<0.000000e+00> : vector<256xf32>
    %20 = vector.multi_reduction <add>, %15, %cst_19 [1] : vector<256x128xf32> to vector<256xf32>
    %21 = vector.shape_cast %20 : vector<256xf32> to vector<256x1xf32>
    %cst_20 = arith.constant 1.280000e+02 : f32
    %22 = vector.broadcast %cst_20 : f32 to vector<256x1xf32>
    %23 = arith.divf %21, %22 : vector<256x1xf32>
    %24 = vector.broadcast %23 : vector<256x1xf32> to vector<256x128xf32>
    %25 = arith.subf %15, %24 : vector<256x128xf32>
    %26 = arith.mulf %25, %25 : vector<256x128xf32>
    %cst_21 = arith.constant dense<0.000000e+00> : vector<256xf32>
    %27 = vector.multi_reduction <add>, %26, %cst_21 [1] : vector<256x128xf32> to vector<256xf32>
    %28 = vector.shape_cast %27 : vector<256xf32> to vector<256x1xf32>
    %cst_22 = arith.constant 1.280000e+02 : f32
    %29 = vector.broadcast %cst_22 : f32 to vector<256x1xf32>
    %30 = arith.divf %28, %29 : vector<256x1xf32>
    %cst_23 = arith.constant 9.99999997E-7 : f32
    %31 = vector.broadcast %cst_23 : f32 to vector<256x1xf32>
    %32 = arith.addf %30, %31 : vector<256x1xf32>
    %33 = math.rsqrt %32 : vector<256x1xf32>
    %34 = vector.broadcast %33 : vector<256x1xf32> to vector<256x128xf32>
    %35 = arith.mulf %25, %34 : vector<256x128xf32>
    %36 = vector.broadcast %17 : vector<1x128xf32> to vector<256x128xf32>
    %37 = arith.mulf %35, %36 : vector<256x128xf32>
    %38 = vector.broadcast %19 : vector<1x128xf32> to vector<256x128xf32>
    %39 = arith.addf %37, %38 : vector<256x128xf32>
    %40 = arith.truncf %39 : vector<256x128xf32> to vector<256x128xbf16>
    %c0_24 = arith.constant 0 : index
    %c0_25 = arith.constant 0 : index
    %c0_26 = arith.constant 0 : index
    %41 = vector.load %arg7[%c0_24, %c0_25, %c0_26] : memref<2x128x384xbf16, #tpu.memory_space<vmem>>, vector<1x128x384xbf16>
    %42 = vector.shape_cast %41 : vector<1x128x384xbf16> to vector<128x384xbf16>
    %cst_27 = arith.constant dense<0.000000e+00> : vector<256x384xf32>
    %43 = tpu.matmul %40, %42, %cst_27 {dimension_numbers = #tpu.dot_dimension_numbers<[1], [0], [0], [1], [0, 0, 1, 1], [], []>} : vector<256x128xbf16>, vector<128x384xbf16>, vector<256x384xf32> -> vector<256x384xf32>
    %c0_28 = arith.constant 0 : index
    %c0_29 = arith.constant 0 : index
    %c0_30 = arith.constant 0 : index
    %44 = vector.load %arg8[%c0_28, %c0_29, %c0_30] : memref<2x1x384xf32, #tpu.memory_space<vmem>>, vector<1x1x384xf32>
    %45 = vector.shape_cast %44 : vector<1x1x384xf32> to vector<1x384xf32>
    %46 = vector.broadcast %45 : vector<1x384xf32> to vector<256x384xf32>
    %47 = arith.addf %43, %46 : vector<256x384xf32>
    %48 = arith.truncf %47 : vector<256x384xf32> to vector<256x384xbf16>
    %c0_31 = arith.constant 0 : index
    %c0_32 = arith.constant 0 : index
    %49 = vector.load %arg23[%c0_31, %c0_32] : memref<256x384xbf16, #tpu.memory_space<vmem>>, vector<256x384xbf16>
    tpu.vector_store %arg23[%c0_31, %c0_32], %48 {strides = array<i32>} : memref<256x384xbf16, #tpu.memory_space<vmem>>, vector<256x384xbf16>,
    %c0_33 = arith.constant 0 : index
    %c0_34 = arith.constant 0 : index
    %c0_35 = arith.constant 0 : index
    %50 = vector.load %arg9[%c0_33, %c0_34, %c0_35] : memref<2x128x128xbf16, #tpu.memory_space<vmem>>, vector<1x128x128xbf16>
    %51 = vector.shape_cast %50 : vector<1x128x128xbf16> to vector<128x128xbf16>
    %c0_36 = arith.constant 0 : index
    %c0_37 = arith.constant 0 : index
    %c0_38 = arith.constant 0 : index
    %52 = vector.load %arg10[%c0_36, %c0_37, %c0_38] : memref<2x1x128xf32, #tpu.memory_space<vmem>>, vector<1x1x128xf32>
    %53 = vector.shape_cast %52 : vector<1x1x128xf32> to vector<1x128xf32>
    %c0_i32 = arith.constant 0 : i32
    %c8_i32 = arith.constant 8 : i32
    %54 = arith.addi %c0_i32, %c8_i32 : i32
    %c1_i32 = arith.constant 1 : i32
    scf.for %arg25 = %c0_i32 to %54 step %c1_i32  : i32 {
      %c1_i32_178 = arith.constant 1 : i32
      %255 = arith.muli %arg25, %c1_i32_178 : i32
      %c0_i32_179 = arith.constant 0 : i32
      %256 = arith.addi %c0_i32_179, %255 : i32
      %c32_i32 = arith.constant 32 : i32
      %257 = arith.muli %256, %c32_i32 : i32
      %258 = tpu.assume_multiple %257, 32 : i32
      %259 = arith.index_cast %258 : i32 to index
      %c0_180 = arith.constant 0 : index
      %260 = vector.load %arg23[%259, %c0_180] : memref<256x384xbf16, #tpu.memory_space<vmem>>, vector<32x384xbf16>
      %cst_181 = arith.constant 0.000000e+00 : f32
      %261 = vector.broadcast %cst_181 : f32 to vector<32x128xf32>
      %262 = vector.extract_strided_slice %260 {offsets = [0, 0], sizes = [32, 32], strides = [1, 1]} : vector<32x384xbf16> to vector<32x32xbf16>
      %263 = vector.extract_strided_slice %260 {offsets = [0, 128], sizes = [32, 32], strides = [1, 1]} : vector<32x384xbf16> to vector<32x32xbf16>
      %264 = vector.extract_strided_slice %260 {offsets = [0, 256], sizes = [32, 32], strides = [1, 1]} : vector<32x384xbf16> to vector<32x32xbf16>
      %cst_182 = arith.constant dense<0.000000e+00> : vector<32x32xf32>
      %265 = tpu.matmul %262, %263, %cst_182 {dimension_numbers = #tpu.dot_dimension_numbers<[1], [1], [0], [0], [0, 0, 1, 0], [], []>} : vector<32x32xbf16>, vector<32x32xbf16>, vector<32x32xf32> -> vector<32x32xf32>
      %266 = vector.broadcast %14 : vector<1x32xf32> to vector<32x32xf32>
      %267 = arith.addf %265, %266 : vector<32x32xf32>
      %cst_183 = arith.constant dense<0xFF800000> : vector<32xf32>
      %268 = vector.multi_reduction <maximumf>, %267, %cst_183 [1] : vector<32x32xf32> to vector<32xf32>
      %269 = vector.shape_cast %268 : vector<32xf32> to vector<32x1xf32>
      %270 = vector.broadcast %269 : vector<32x1xf32> to vector<32x32xf32>
      %271 = arith.subf %267, %270 : vector<32x32xf32>
      %272 = math.exp %271 : vector<32x32xf32>
      %cst_184 = arith.constant dense<0.000000e+00> : vector<32xf32>
      %273 = vector.multi_reduction <add>, %272, %cst_184 [1] : vector<32x32xf32> to vector<32xf32>
      %274 = vector.shape_cast %273 : vector<32xf32> to vector<32x1xf32>
      %275 = tpu.reciprocal %274 {approx = true} : vector<32x1xf32> -> vector<32x1xf32>
      %276 = vector.broadcast %275 : vector<32x1xf32> to vector<32x32xf32>
      %277 = arith.mulf %272, %276 : vector<32x32xf32>
      %278 = arith.truncf %277 : vector<32x32xf32> to vector<32x32xbf16>
      %cst_185 = arith.constant dense<0.000000e+00> : vector<32x32xf32>
      %279 = tpu.matmul %278, %264, %cst_185 {dimension_numbers = #tpu.dot_dimension_numbers<[1], [0], [0], [1], [0, 0, 1, 1], [], []>} : vector<32x32xbf16>, vector<32x32xbf16>, vector<32x32xf32> -> vector<32x32xf32>
      %280 = arith.truncf %279 : vector<32x32xf32> to vector<32x32xbf16>
      %281 = vector.extract_strided_slice %51 {offsets = [0, 0], sizes = [32, 128], strides = [1, 1]} : vector<128x128xbf16> to vector<32x128xbf16>
      %cst_186 = arith.constant dense<0.000000e+00> : vector<32x128xf32>
      %282 = tpu.matmul %280, %281, %cst_186 {dimension_numbers = #tpu.dot_dimension_numbers<[1], [0], [0], [1], [0, 0, 1, 1], [], []>} : vector<32x32xbf16>, vector<32x128xbf16>, vector<32x128xf32> -> vector<32x128xf32>
      %283 = arith.addf %261, %282 : vector<32x128xf32>
      %284 = vector.extract_strided_slice %260 {offsets = [0, 32], sizes = [32, 32], strides = [1, 1]} : vector<32x384xbf16> to vector<32x32xbf16>
      %285 = vector.extract_strided_slice %260 {offsets = [0, 160], sizes = [32, 32], strides = [1, 1]} : vector<32x384xbf16> to vector<32x32xbf16>
      %286 = vector.extract_strided_slice %260 {offsets = [0, 288], sizes = [32, 32], strides = [1, 1]} : vector<32x384xbf16> to vector<32x32xbf16>
      %cst_187 = arith.constant dense<0.000000e+00> : vector<32x32xf32>
      %287 = tpu.matmul %284, %285, %cst_187 {dimension_numbers = #tpu.dot_dimension_numbers<[1], [1], [0], [0], [0, 0, 1, 0], [], []>} : vector<32x32xbf16>, vector<32x32xbf16>, vector<32x32xf32> -> vector<32x32xf32>
      %288 = vector.broadcast %14 : vector<1x32xf32> to vector<32x32xf32>
      %289 = arith.addf %287, %288 : vector<32x32xf32>
      %cst_188 = arith.constant dense<0xFF800000> : vector<32xf32>
      %290 = vector.multi_reduction <maximumf>, %289, %cst_188 [1] : vector<32x32xf32> to vector<32xf32>
      %291 = vector.shape_cast %290 : vector<32xf32> to vector<32x1xf32>
      %292 = vector.broadcast %291 : vector<32x1xf32> to vector<32x32xf32>
      %293 = arith.subf %289, %292 : vector<32x32xf32>
      %294 = math.exp %293 : vector<32x32xf32>
      %cst_189 = arith.constant dense<0.000000e+00> : vector<32xf32>
      %295 = vector.multi_reduction <add>, %294, %cst_189 [1] : vector<32x32xf32> to vector<32xf32>
      %296 = vector.shape_cast %295 : vector<32xf32> to vector<32x1xf32>
      %297 = tpu.reciprocal %296 {approx = true} : vector<32x1xf32> -> vector<32x1xf32>
      %298 = vector.broadcast %297 : vector<32x1xf32> to vector<32x32xf32>
      %299 = arith.mulf %294, %298 : vector<32x32xf32>
      %300 = arith.truncf %299 : vector<32x32xf32> to vector<32x32xbf16>
      %cst_190 = arith.constant dense<0.000000e+00> : vector<32x32xf32>
      %301 = tpu.matmul %300, %286, %cst_190 {dimension_numbers = #tpu.dot_dimension_numbers<[1], [0], [0], [1], [0, 0, 1, 1], [], []>} : vector<32x32xbf16>, vector<32x32xbf16>, vector<32x32xf32> -> vector<32x32xf32>
      %302 = arith.truncf %301 : vector<32x32xf32> to vector<32x32xbf16>
      %303 = vector.extract_strided_slice %51 {offsets = [32, 0], sizes = [32, 128], strides = [1, 1]} : vector<128x128xbf16> to vector<32x128xbf16>
      %cst_191 = arith.constant dense<0.000000e+00> : vector<32x128xf32>
      %304 = tpu.matmul %302, %303, %cst_191 {dimension_numbers = #tpu.dot_dimension_numbers<[1], [0], [0], [1], [0, 0, 1, 1], [], []>} : vector<32x32xbf16>, vector<32x128xbf16>, vector<32x128xf32> -> vector<32x128xf32>
      %305 = arith.addf %283, %304 : vector<32x128xf32>
      %306 = vector.extract_strided_slice %260 {offsets = [0, 64], sizes = [32, 32], strides = [1, 1]} : vector<32x384xbf16> to vector<32x32xbf16>
      %307 = vector.extract_strided_slice %260 {offsets = [0, 192], sizes = [32, 32], strides = [1, 1]} : vector<32x384xbf16> to vector<32x32xbf16>
      %308 = vector.extract_strided_slice %260 {offsets = [0, 320], sizes = [32, 32], strides = [1, 1]} : vector<32x384xbf16> to vector<32x32xbf16>
      %cst_192 = arith.constant dense<0.000000e+00> : vector<32x32xf32>
      %309 = tpu.matmul %306, %307, %cst_192 {dimension_numbers = #tpu.dot_dimension_numbers<[1], [1], [0], [0], [0, 0, 1, 0], [], []>} : vector<32x32xbf16>, vector<32x32xbf16>, vector<32x32xf32> -> vector<32x32xf32>
      %310 = vector.broadcast %14 : vector<1x32xf32> to vector<32x32xf32>
      %311 = arith.addf %309, %310 : vector<32x32xf32>
      %cst_193 = arith.constant dense<0xFF800000> : vector<32xf32>
      %312 = vector.multi_reduction <maximumf>, %311, %cst_193 [1] : vector<32x32xf32> to vector<32xf32>
      %313 = vector.shape_cast %312 : vector<32xf32> to vector<32x1xf32>
      %314 = vector.broadcast %313 : vector<32x1xf32> to vector<32x32xf32>
      %315 = arith.subf %311, %314 : vector<32x32xf32>
      %316 = math.exp %315 : vector<32x32xf32>
      %cst_194 = arith.constant dense<0.000000e+00> : vector<32xf32>
      %317 = vector.multi_reduction <add>, %316, %cst_194 [1] : vector<32x32xf32> to vector<32xf32>
      %318 = vector.shape_cast %317 : vector<32xf32> to vector<32x1xf32>
      %319 = tpu.reciprocal %318 {approx = true} : vector<32x1xf32> -> vector<32x1xf32>
      %320 = vector.broadcast %319 : vector<32x1xf32> to vector<32x32xf32>
      %321 = arith.mulf %316, %320 : vector<32x32xf32>
      %322 = arith.truncf %321 : vector<32x32xf32> to vector<32x32xbf16>
      %cst_195 = arith.constant dense<0.000000e+00> : vector<32x32xf32>
      %323 = tpu.matmul %322, %308, %cst_195 {dimension_numbers = #tpu.dot_dimension_numbers<[1], [0], [0], [1], [0, 0, 1, 1], [], []>} : vector<32x32xbf16>, vector<32x32xbf16>, vector<32x32xf32> -> vector<32x32xf32>
      %324 = arith.truncf %323 : vector<32x32xf32> to vector<32x32xbf16>
      %325 = vector.extract_strided_slice %51 {offsets = [64, 0], sizes = [32, 128], strides = [1, 1]} : vector<128x128xbf16> to vector<32x128xbf16>
      %cst_196 = arith.constant dense<0.000000e+00> : vector<32x128xf32>
      %326 = tpu.matmul %324, %325, %cst_196 {dimension_numbers = #tpu.dot_dimension_numbers<[1], [0], [0], [1], [0, 0, 1, 1], [], []>} : vector<32x32xbf16>, vector<32x128xbf16>, vector<32x128xf32> -> vector<32x128xf32>
      %327 = arith.addf %305, %326 : vector<32x128xf32>
      %328 = vector.extract_strided_slice %260 {offsets = [0, 96], sizes = [32, 32], strides = [1, 1]} : vector<32x384xbf16> to vector<32x32xbf16>
      %329 = vector.extract_strided_slice %260 {offsets = [0, 224], sizes = [32, 32], strides = [1, 1]} : vector<32x384xbf16> to vector<32x32xbf16>
      %330 = vector.extract_strided_slice %260 {offsets = [0, 352], sizes = [32, 32], strides = [1, 1]} : vector<32x384xbf16> to vector<32x32xbf16>
      %cst_197 = arith.constant dense<0.000000e+00> : vector<32x32xf32>
      %331 = tpu.matmul %328, %329, %cst_197 {dimension_numbers = #tpu.dot_dimension_numbers<[1], [1], [0], [0], [0, 0, 1, 0], [], []>} : vector<32x32xbf16>, vector<32x32xbf16>, vector<32x32xf32> -> vector<32x32xf32>
      %332 = vector.broadcast %14 : vector<1x32xf32> to vector<32x32xf32>
      %333 = arith.addf %331, %332 : vector<32x32xf32>
      %cst_198 = arith.constant dense<0xFF800000> : vector<32xf32>
      %334 = vector.multi_reduction <maximumf>, %333, %cst_198 [1] : vector<32x32xf32> to vector<32xf32>
      %335 = vector.shape_cast %334 : vector<32xf32> to vector<32x1xf32>
      %336 = vector.broadcast %335 : vector<32x1xf32> to vector<32x32xf32>
      %337 = arith.subf %333, %336 : vector<32x32xf32>
      %338 = math.exp %337 : vector<32x32xf32>
      %cst_199 = arith.constant dense<0.000000e+00> : vector<32xf32>
      %339 = vector.multi_reduction <add>, %338, %cst_199 [1] : vector<32x32xf32> to vector<32xf32>
      %340 = vector.shape_cast %339 : vector<32xf32> to vector<32x1xf32>
      %341 = tpu.reciprocal %340 {approx = true} : vector<32x1xf32> -> vector<32x1xf32>
      %342 = vector.broadcast %341 : vector<32x1xf32> to vector<32x32xf32>
      %343 = arith.mulf %338, %342 : vector<32x32xf32>
      %344 = arith.truncf %343 : vector<32x32xf32> to vector<32x32xbf16>
      %cst_200 = arith.constant dense<0.000000e+00> : vector<32x32xf32>
      %345 = tpu.matmul %344, %330, %cst_200 {dimension_numbers = #tpu.dot_dimension_numbers<[1], [0], [0], [1], [0, 0, 1, 1], [], []>} : vector<32x32xbf16>, vector<32x32xbf16>, vector<32x32xf32> -> vector<32x32xf32>
      %346 = arith.truncf %345 : vector<32x32xf32> to vector<32x32xbf16>
      %347 = vector.extract_strided_slice %51 {offsets = [96, 0], sizes = [32, 128], strides = [1, 1]} : vector<128x128xbf16> to vector<32x128xbf16>
      %cst_201 = arith.constant dense<0.000000e+00> : vector<32x128xf32>
      %348 = tpu.matmul %346, %347, %cst_201 {dimension_numbers = #tpu.dot_dimension_numbers<[1], [0], [0], [1], [0, 0, 1, 1], [], []>} : vector<32x32xbf16>, vector<32x128xbf16>, vector<32x128xf32> -> vector<32x128xf32>
      %349 = arith.addf %327, %348 : vector<32x128xf32>
      %350 = arith.index_cast %258 : i32 to index
      %c0_202 = arith.constant 0 : index
      %351 = vector.load %arg22[%350, %c0_202] : memref<256x128xf32, #tpu.memory_space<vmem>>, vector<32x128xf32>
      %352 = arith.addf %351, %349 : vector<32x128xf32>
      %353 = vector.broadcast %53 : vector<1x128xf32> to vector<32x128xf32>
      %354 = arith.addf %352, %353 : vector<32x128xf32>
      %355 = arith.index_cast %258 : i32 to index
      %c0_203 = arith.constant 0 : index
      %356 = vector.load %arg22[%355, %c0_203] : memref<256x128xf32, #tpu.memory_space<vmem>>, vector<32x128xf32>
      tpu.vector_store %arg22[%355, %c0_203], %354 {strides = array<i32>} : memref<256x128xf32, #tpu.memory_space<vmem>>, vector<32x128xf32>,
    }
    %c8_i32_39 = arith.constant 8 : i32
    %c0_40 = arith.constant 0 : index
    %c0_41 = arith.constant 0 : index
    %55 = vector.load %arg22[%c0_40, %c0_41] : memref<256x128xf32, #tpu.memory_space<vmem>>, vector<256x128xf32>
    %c0_42 = arith.constant 0 : index
    %c0_43 = arith.constant 0 : index
    %c0_44 = arith.constant 0 : index
    %56 = vector.load %arg11[%c0_42, %c0_43, %c0_44] : memref<2x1x128xf32, #tpu.memory_space<vmem>>, vector<1x1x128xf32>
    %57 = vector.shape_cast %56 : vector<1x1x128xf32> to vector<1x128xf32>
    %c0_45 = arith.constant 0 : index
    %c0_46 = arith.constant 0 : index
    %c0_47 = arith.constant 0 : index
    %58 = vector.load %arg12[%c0_45, %c0_46, %c0_47] : memref<2x1x128xf32, #tpu.memory_space<vmem>>, vector<1x1x128xf32>
    %59 = vector.shape_cast %58 : vector<1x1x128xf32> to vector<1x128xf32>
    %cst_48 = arith.constant dense<0.000000e+00> : vector<256xf32>
    %60 = vector.multi_reduction <add>, %55, %cst_48 [1] : vector<256x128xf32> to vector<256xf32>
    %61 = vector.shape_cast %60 : vector<256xf32> to vector<256x1xf32>
    %cst_49 = arith.constant 1.280000e+02 : f32
    %62 = vector.broadcast %cst_49 : f32 to vector<256x1xf32>
    %63 = arith.divf %61, %62 : vector<256x1xf32>
    %64 = vector.broadcast %63 : vector<256x1xf32> to vector<256x128xf32>
    %65 = arith.subf %55, %64 : vector<256x128xf32>
    %66 = arith.mulf %65, %65 : vector<256x128xf32>
    %cst_50 = arith.constant dense<0.000000e+00> : vector<256xf32>
    %67 = vector.multi_reduction <add>, %66, %cst_50 [1] : vector<256x128xf32> to vector<256xf32>
    %68 = vector.shape_cast %67 : vector<256xf32> to vector<256x1xf32>
    %cst_51 = arith.constant 1.280000e+02 : f32
    %69 = vector.broadcast %cst_51 : f32 to vector<256x1xf32>
    %70 = arith.divf %68, %69 : vector<256x1xf32>
    %cst_52 = arith.constant 9.99999997E-7 : f32
    %71 = vector.broadcast %cst_52 : f32 to vector<256x1xf32>
    %72 = arith.addf %70, %71 : vector<256x1xf32>
    %73 = math.rsqrt %72 : vector<256x1xf32>
    %74 = vector.broadcast %73 : vector<256x1xf32> to vector<256x128xf32>
    %75 = arith.mulf %65, %74 : vector<256x128xf32>
    %76 = vector.broadcast %57 : vector<1x128xf32> to vector<256x128xf32>
    %77 = arith.mulf %75, %76 : vector<256x128xf32>
    %78 = vector.broadcast %59 : vector<1x128xf32> to vector<256x128xf32>
    %79 = arith.addf %77, %78 : vector<256x128xf32>
    %80 = arith.truncf %79 : vector<256x128xf32> to vector<256x128xbf16>
    %c0_53 = arith.constant 0 : index
    %c0_54 = arith.constant 0 : index
    %c0_55 = arith.constant 0 : index
    %81 = vector.load %arg13[%c0_53, %c0_54, %c0_55] : memref<2x128x256xbf16, #tpu.memory_space<vmem>>, vector<1x128x256xbf16>
    %82 = vector.shape_cast %81 : vector<1x128x256xbf16> to vector<128x256xbf16>
    %cst_56 = arith.constant dense<0.000000e+00> : vector<256x256xf32>
    %83 = tpu.matmul %80, %82, %cst_56 {dimension_numbers = #tpu.dot_dimension_numbers<[1], [0], [0], [1], [0, 0, 1, 1], [], []>} : vector<256x128xbf16>, vector<128x256xbf16>, vector<256x256xf32> -> vector<256x256xf32>
    %c0_57 = arith.constant 0 : index
    %c0_58 = arith.constant 0 : index
    %c0_59 = arith.constant 0 : index
    %84 = vector.load %arg14[%c0_57, %c0_58, %c0_59] : memref<2x1x256xf32, #tpu.memory_space<vmem>>, vector<1x1x256xf32>
    %85 = vector.shape_cast %84 : vector<1x1x256xf32> to vector<1x256xf32>
    %86 = vector.broadcast %85 : vector<1x256xf32> to vector<256x256xf32>
    %87 = arith.addf %83, %86 : vector<256x256xf32>
    %88 = arith.mulf %87, %87 : vector<256x256xf32>
    %89 = arith.mulf %87, %88 : vector<256x256xf32>
    %cst_60 = arith.constant 4.471500e-02 : f32
    %90 = vector.broadcast %cst_60 : f32 to vector<256x256xf32>
    %91 = arith.mulf %90, %89 : vector<256x256xf32>
    %92 = arith.addf %87, %91 : vector<256x256xf32>
    %cst_61 = arith.constant 0.797884583 : f32
    %93 = vector.broadcast %cst_61 : f32 to vector<256x256xf32>
    %94 = arith.mulf %93, %92 : vector<256x256xf32>
    %95 = math.tanh %94 : vector<256x256xf32>
    %cst_62 = arith.constant 1.000000e+00 : f32
    %96 = vector.broadcast %cst_62 : f32 to vector<256x256xf32>
    %97 = arith.addf %96, %95 : vector<256x256xf32>
    %cst_63 = arith.constant 5.000000e-01 : f32
    %98 = vector.broadcast %cst_63 : f32 to vector<256x256xf32>
    %99 = arith.mulf %98, %97 : vector<256x256xf32>
    %100 = arith.mulf %87, %99 : vector<256x256xf32>
    %101 = arith.truncf %100 : vector<256x256xf32> to vector<256x256xbf16>
    %c0_64 = arith.constant 0 : index
    %c0_65 = arith.constant 0 : index
    %c0_66 = arith.constant 0 : index
    %102 = vector.load %arg15[%c0_64, %c0_65, %c0_66] : memref<2x256x128xbf16, #tpu.memory_space<vmem>>, vector<1x256x128xbf16>
    %103 = vector.shape_cast %102 : vector<1x256x128xbf16> to vector<256x128xbf16>
    %cst_67 = arith.constant dense<0.000000e+00> : vector<256x128xf32>
    %104 = tpu.matmul %101, %103, %cst_67 {dimension_numbers = #tpu.dot_dimension_numbers<[1], [0], [0], [1], [0, 0, 1, 1], [], []>} : vector<256x256xbf16>, vector<256x128xbf16>, vector<256x128xf32> -> vector<256x128xf32>
    %c0_68 = arith.constant 0 : index
    %c0_69 = arith.constant 0 : index
    %c0_70 = arith.constant 0 : index
    %105 = vector.load %arg16[%c0_68, %c0_69, %c0_70] : memref<2x1x128xf32, #tpu.memory_space<vmem>>, vector<1x1x128xf32>
    %106 = vector.shape_cast %105 : vector<1x1x128xf32> to vector<1x128xf32>
    %107 = vector.broadcast %106 : vector<1x128xf32> to vector<256x128xf32>
    %108 = arith.addf %104, %107 : vector<256x128xf32>
    %c0_71 = arith.constant 0 : index
    %c0_72 = arith.constant 0 : index
    %109 = vector.load %arg22[%c0_71, %c0_72] : memref<256x128xf32, #tpu.memory_space<vmem>>, vector<256x128xf32>
    %110 = arith.addf %109, %108 : vector<256x128xf32>
    %c0_73 = arith.constant 0 : index
    %c0_74 = arith.constant 0 : index
    %111 = vector.load %arg22[%c0_73, %c0_74] : memref<256x128xf32, #tpu.memory_space<vmem>>, vector<256x128xf32>
    tpu.vector_store %arg22[%c0_73, %c0_74], %110 {strides = array<i32>} : memref<256x128xf32, #tpu.memory_space<vmem>>, vector<256x128xf32>,
    %c0_75 = arith.constant 0 : index
    %c0_76 = arith.constant 0 : index
    %112 = vector.load %arg22[%c0_75, %c0_76] : memref<256x128xf32, #tpu.memory_space<vmem>>, vector<256x128xf32>
    %c1 = arith.constant 1 : index
    %c0_77 = arith.constant 0 : index
    %c0_78 = arith.constant 0 : index
    %113 = vector.load %arg5[%c1, %c0_77, %c0_78] : memref<2x1x128xf32, #tpu.memory_space<vmem>>, vector<1x1x128xf32>
    %114 = vector.shape_cast %113 : vector<1x1x128xf32> to vector<1x128xf32>
    %c1_79 = arith.constant 1 : index
    %c0_80 = arith.constant 0 : index
    %c0_81 = arith.constant 0 : index
    %115 = vector.load %arg6[%c1_79, %c0_80, %c0_81] : memref<2x1x128xf32, #tpu.memory_space<vmem>>, vector<1x1x128xf32>
    %116 = vector.shape_cast %115 : vector<1x1x128xf32> to vector<1x128xf32>
    %cst_82 = arith.constant dense<0.000000e+00> : vector<256xf32>
    %117 = vector.multi_reduction <add>, %112, %cst_82 [1] : vector<256x128xf32> to vector<256xf32>
    %118 = vector.shape_cast %117 : vector<256xf32> to vector<256x1xf32>
    %cst_83 = arith.constant 1.280000e+02 : f32
    %119 = vector.broadcast %cst_83 : f32 to vector<256x1xf32>
    %120 = arith.divf %118, %119 : vector<256x1xf32>
    %121 = vector.broadcast %120 : vector<256x1xf32> to vector<256x128xf32>
    %122 = arith.subf %112, %121 : vector<256x128xf32>
    %123 = arith.mulf %122, %122 : vector<256x128xf32>
    %cst_84 = arith.constant dense<0.000000e+00> : vector<256xf32>
    %124 = vector.multi_reduction <add>, %123, %cst_84 [1] : vector<256x128xf32> to vector<256xf32>
    %125 = vector.shape_cast %124 : vector<256xf32> to vector<256x1xf32>
    %cst_85 = arith.constant 1.280000e+02 : f32
    %126 = vector.broadcast %cst_85 : f32 to vector<256x1xf32>
    %127 = arith.divf %125, %126 : vector<256x1xf32>
    %cst_86 = arith.constant 9.99999997E-7 : f32
    %128 = vector.broadcast %cst_86 : f32 to vector<256x1xf32>
    %129 = arith.addf %127, %128 : vector<256x1xf32>
    %130 = math.rsqrt %129 : vector<256x1xf32>
    %131 = vector.broadcast %130 : vector<256x1xf32> to vector<256x128xf32>
    %132 = arith.mulf %122, %131 : vector<256x128xf32>
    %133 = vector.broadcast %114 : vector<1x128xf32> to vector<256x128xf32>
    %134 = arith.mulf %132, %133 : vector<256x128xf32>
    %135 = vector.broadcast %116 : vector<1x128xf32> to vector<256x128xf32>
    %136 = arith.addf %134, %135 : vector<256x128xf32>
    %137 = arith.truncf %136 : vector<256x128xf32> to vector<256x128xbf16>
    %c1_87 = arith.constant 1 : index
    %c0_88 = arith.constant 0 : index
    %c0_89 = arith.constant 0 : index
    %138 = vector.load %arg7[%c1_87, %c0_88, %c0_89] : memref<2x128x384xbf16, #tpu.memory_space<vmem>>, vector<1x128x384xbf16>
    %139 = vector.shape_cast %138 : vector<1x128x384xbf16> to vector<128x384xbf16>
    %cst_90 = arith.constant dense<0.000000e+00> : vector<256x384xf32>
    %140 = tpu.matmul %137, %139, %cst_90 {dimension_numbers = #tpu.dot_dimension_numbers<[1], [0], [0], [1], [0, 0, 1, 1], [], []>} : vector<256x128xbf16>, vector<128x384xbf16>, vector<256x384xf32> -> vector<256x384xf32>
    %c1_91 = arith.constant 1 : index
    %c0_92 = arith.constant 0 : index
    %c0_93 = arith.constant 0 : index
    %141 = vector.load %arg8[%c1_91, %c0_92, %c0_93] : memref<2x1x384xf32, #tpu.memory_space<vmem>>, vector<1x1x384xf32>
    %142 = vector.shape_cast %141 : vector<1x1x384xf32> to vector<1x384xf32>
    %143 = vector.broadcast %142 : vector<1x384xf32> to vector<256x384xf32>
    %144 = arith.addf %140, %143 : vector<256x384xf32>
    %145 = arith.truncf %144 : vector<256x384xf32> to vector<256x384xbf16>
    %c0_94 = arith.constant 0 : index
    %c0_95 = arith.constant 0 : index
    %146 = vector.load %arg23[%c0_94, %c0_95] : memref<256x384xbf16, #tpu.memory_space<vmem>>, vector<256x384xbf16>
    tpu.vector_store %arg23[%c0_94, %c0_95], %145 {strides = array<i32>} : memref<256x384xbf16, #tpu.memory_space<vmem>>, vector<256x384xbf16>,
    %c1_96 = arith.constant 1 : index
    %c0_97 = arith.constant 0 : index
    %c0_98 = arith.constant 0 : index
    %147 = vector.load %arg9[%c1_96, %c0_97, %c0_98] : memref<2x128x128xbf16, #tpu.memory_space<vmem>>, vector<1x128x128xbf16>
    %148 = vector.shape_cast %147 : vector<1x128x128xbf16> to vector<128x128xbf16>
    %c1_99 = arith.constant 1 : index
    %c0_100 = arith.constant 0 : index
    %c0_101 = arith.constant 0 : index
    %149 = vector.load %arg10[%c1_99, %c0_100, %c0_101] : memref<2x1x128xf32, #tpu.memory_space<vmem>>, vector<1x1x128xf32>
    %150 = vector.shape_cast %149 : vector<1x1x128xf32> to vector<1x128xf32>
    %c0_i32_102 = arith.constant 0 : i32
    %c8_i32_103 = arith.constant 8 : i32
    %151 = arith.addi %c0_i32_102, %c8_i32_103 : i32
    %c1_i32_104 = arith.constant 1 : i32
    scf.for %arg25 = %c0_i32_102 to %151 step %c1_i32_104  : i32 {
      %c1_i32_178 = arith.constant 1 : i32
      %255 = arith.muli %arg25, %c1_i32_178 : i32
      %c0_i32_179 = arith.constant 0 : i32
      %256 = arith.addi %c0_i32_179, %255 : i32
      %c32_i32 = arith.constant 32 : i32
      %257 = arith.muli %256, %c32_i32 : i32
      %258 = tpu.assume_multiple %257, 32 : i32
      %259 = arith.index_cast %258 : i32 to index
      %c0_180 = arith.constant 0 : index
      %260 = vector.load %arg23[%259, %c0_180] : memref<256x384xbf16, #tpu.memory_space<vmem>>, vector<32x384xbf16>
      %cst_181 = arith.constant 0.000000e+00 : f32
      %261 = vector.broadcast %cst_181 : f32 to vector<32x128xf32>
      %262 = vector.extract_strided_slice %260 {offsets = [0, 0], sizes = [32, 32], strides = [1, 1]} : vector<32x384xbf16> to vector<32x32xbf16>
      %263 = vector.extract_strided_slice %260 {offsets = [0, 128], sizes = [32, 32], strides = [1, 1]} : vector<32x384xbf16> to vector<32x32xbf16>
      %264 = vector.extract_strided_slice %260 {offsets = [0, 256], sizes = [32, 32], strides = [1, 1]} : vector<32x384xbf16> to vector<32x32xbf16>
      %cst_182 = arith.constant dense<0.000000e+00> : vector<32x32xf32>
      %265 = tpu.matmul %262, %263, %cst_182 {dimension_numbers = #tpu.dot_dimension_numbers<[1], [1], [0], [0], [0, 0, 1, 0], [], []>} : vector<32x32xbf16>, vector<32x32xbf16>, vector<32x32xf32> -> vector<32x32xf32>
      %266 = vector.broadcast %14 : vector<1x32xf32> to vector<32x32xf32>
      %267 = arith.addf %265, %266 : vector<32x32xf32>
      %cst_183 = arith.constant dense<0xFF800000> : vector<32xf32>
      %268 = vector.multi_reduction <maximumf>, %267, %cst_183 [1] : vector<32x32xf32> to vector<32xf32>
      %269 = vector.shape_cast %268 : vector<32xf32> to vector<32x1xf32>
      %270 = vector.broadcast %269 : vector<32x1xf32> to vector<32x32xf32>
      %271 = arith.subf %267, %270 : vector<32x32xf32>
      %272 = math.exp %271 : vector<32x32xf32>
      %cst_184 = arith.constant dense<0.000000e+00> : vector<32xf32>
      %273 = vector.multi_reduction <add>, %272, %cst_184 [1] : vector<32x32xf32> to vector<32xf32>
      %274 = vector.shape_cast %273 : vector<32xf32> to vector<32x1xf32>
      %275 = tpu.reciprocal %274 {approx = true} : vector<32x1xf32> -> vector<32x1xf32>
      %276 = vector.broadcast %275 : vector<32x1xf32> to vector<32x32xf32>
      %277 = arith.mulf %272, %276 : vector<32x32xf32>
      %278 = arith.truncf %277 : vector<32x32xf32> to vector<32x32xbf16>
      %cst_185 = arith.constant dense<0.000000e+00> : vector<32x32xf32>
      %279 = tpu.matmul %278, %264, %cst_185 {dimension_numbers = #tpu.dot_dimension_numbers<[1], [0], [0], [1], [0, 0, 1, 1], [], []>} : vector<32x32xbf16>, vector<32x32xbf16>, vector<32x32xf32> -> vector<32x32xf32>
      %280 = arith.truncf %279 : vector<32x32xf32> to vector<32x32xbf16>
      %281 = vector.extract_strided_slice %148 {offsets = [0, 0], sizes = [32, 128], strides = [1, 1]} : vector<128x128xbf16> to vector<32x128xbf16>
      %cst_186 = arith.constant dense<0.000000e+00> : vector<32x128xf32>
      %282 = tpu.matmul %280, %281, %cst_186 {dimension_numbers = #tpu.dot_dimension_numbers<[1], [0], [0], [1], [0, 0, 1, 1], [], []>} : vector<32x32xbf16>, vector<32x128xbf16>, vector<32x128xf32> -> vector<32x128xf32>
      %283 = arith.addf %261, %282 : vector<32x128xf32>
      %284 = vector.extract_strided_slice %260 {offsets = [0, 32], sizes = [32, 32], strides = [1, 1]} : vector<32x384xbf16> to vector<32x32xbf16>
      %285 = vector.extract_strided_slice %260 {offsets = [0, 160], sizes = [32, 32], strides = [1, 1]} : vector<32x384xbf16> to vector<32x32xbf16>
      %286 = vector.extract_strided_slice %260 {offsets = [0, 288], sizes = [32, 32], strides = [1, 1]} : vector<32x384xbf16> to vector<32x32xbf16>
      %cst_187 = arith.constant dense<0.000000e+00> : vector<32x32xf32>
      %287 = tpu.matmul %284, %285, %cst_187 {dimension_numbers = #tpu.dot_dimension_numbers<[1], [1], [0], [0], [0, 0, 1, 0], [], []>} : vector<32x32xbf16>, vector<32x32xbf16>, vector<32x32xf32> -> vector<32x32xf32>
      %288 = vector.broadcast %14 : vector<1x32xf32> to vector<32x32xf32>
      %289 = arith.addf %287, %288 : vector<32x32xf32>
      %cst_188 = arith.constant dense<0xFF800000> : vector<32xf32>
      %290 = vector.multi_reduction <maximumf>, %289, %cst_188 [1] : vector<32x32xf32> to vector<32xf32>
      %291 = vector.shape_cast %290 : vector<32xf32> to vector<32x1xf32>
      %292 = vector.broadcast %291 : vector<32x1xf32> to vector<32x32xf32>
      %293 = arith.subf %289, %292 : vector<32x32xf32>
      %294 = math.exp %293 : vector<32x32xf32>
      %cst_189 = arith.constant dense<0.000000e+00> : vector<32xf32>
      %295 = vector.multi_reduction <add>, %294, %cst_189 [1] : vector<32x32xf32> to vector<32xf32>
      %296 = vector.shape_cast %295 : vector<32xf32> to vector<32x1xf32>
      %297 = tpu.reciprocal %296 {approx = true} : vector<32x1xf32> -> vector<32x1xf32>
      %298 = vector.broadcast %297 : vector<32x1xf32> to vector<32x32xf32>
      %299 = arith.mulf %294, %298 : vector<32x32xf32>
      %300 = arith.truncf %299 : vector<32x32xf32> to vector<32x32xbf16>
      %cst_190 = arith.constant dense<0.000000e+00> : vector<32x32xf32>
      %301 = tpu.matmul %300, %286, %cst_190 {dimension_numbers = #tpu.dot_dimension_numbers<[1], [0], [0], [1], [0, 0, 1, 1], [], []>} : vector<32x32xbf16>, vector<32x32xbf16>, vector<32x32xf32> -> vector<32x32xf32>
      %302 = arith.truncf %301 : vector<32x32xf32> to vector<32x32xbf16>
      %303 = vector.extract_strided_slice %148 {offsets = [32, 0], sizes = [32, 128], strides = [1, 1]} : vector<128x128xbf16> to vector<32x128xbf16>
      %cst_191 = arith.constant dense<0.000000e+00> : vector<32x128xf32>
      %304 = tpu.matmul %302, %303, %cst_191 {dimension_numbers = #tpu.dot_dimension_numbers<[1], [0], [0], [1], [0, 0, 1, 1], [], []>} : vector<32x32xbf16>, vector<32x128xbf16>, vector<32x128xf32> -> vector<32x128xf32>
      %305 = arith.addf %283, %304 : vector<32x128xf32>
      %306 = vector.extract_strided_slice %260 {offsets = [0, 64], sizes = [32, 32], strides = [1, 1]} : vector<32x384xbf16> to vector<32x32xbf16>
      %307 = vector.extract_strided_slice %260 {offsets = [0, 192], sizes = [32, 32], strides = [1, 1]} : vector<32x384xbf16> to vector<32x32xbf16>
      %308 = vector.extract_strided_slice %260 {offsets = [0, 320], sizes = [32, 32], strides = [1, 1]} : vector<32x384xbf16> to vector<32x32xbf16>
      %cst_192 = arith.constant dense<0.000000e+00> : vector<32x32xf32>
      %309 = tpu.matmul %306, %307, %cst_192 {dimension_numbers = #tpu.dot_dimension_numbers<[1], [1], [0], [0], [0, 0, 1, 0], [], []>} : vector<32x32xbf16>, vector<32x32xbf16>, vector<32x32xf32> -> vector<32x32xf32>
      %310 = vector.broadcast %14 : vector<1x32xf32> to vector<32x32xf32>
      %311 = arith.addf %309, %310 : vector<32x32xf32>
      %cst_193 = arith.constant dense<0xFF800000> : vector<32xf32>
      %312 = vector.multi_reduction <maximumf>, %311, %cst_193 [1] : vector<32x32xf32> to vector<32xf32>
      %313 = vector.shape_cast %312 : vector<32xf32> to vector<32x1xf32>
      %314 = vector.broadcast %313 : vector<32x1xf32> to vector<32x32xf32>
      %315 = arith.subf %311, %314 : vector<32x32xf32>
      %316 = math.exp %315 : vector<32x32xf32>
      %cst_194 = arith.constant dense<0.000000e+00> : vector<32xf32>
      %317 = vector.multi_reduction <add>, %316, %cst_194 [1] : vector<32x32xf32> to vector<32xf32>
      %318 = vector.shape_cast %317 : vector<32xf32> to vector<32x1xf32>
      %319 = tpu.reciprocal %318 {approx = true} : vector<32x1xf32> -> vector<32x1xf32>
      %320 = vector.broadcast %319 : vector<32x1xf32> to vector<32x32xf32>
      %321 = arith.mulf %316, %320 : vector<32x32xf32>
      %322 = arith.truncf %321 : vector<32x32xf32> to vector<32x32xbf16>
      %cst_195 = arith.constant dense<0.000000e+00> : vector<32x32xf32>
      %323 = tpu.matmul %322, %308, %cst_195 {dimension_numbers = #tpu.dot_dimension_numbers<[1], [0], [0], [1], [0, 0, 1, 1], [], []>} : vector<32x32xbf16>, vector<32x32xbf16>, vector<32x32xf32> -> vector<32x32xf32>
      %324 = arith.truncf %323 : vector<32x32xf32> to vector<32x32xbf16>
      %325 = vector.extract_strided_slice %148 {offsets = [64, 0], sizes = [32, 128], strides = [1, 1]} : vector<128x128xbf16> to vector<32x128xbf16>
      %cst_196 = arith.constant dense<0.000000e+00> : vector<32x128xf32>
      %326 = tpu.matmul %324, %325, %cst_196 {dimension_numbers = #tpu.dot_dimension_numbers<[1], [0], [0], [1], [0, 0, 1, 1], [], []>} : vector<32x32xbf16>, vector<32x128xbf16>, vector<32x128xf32> -> vector<32x128xf32>
      %327 = arith.addf %305, %326 : vector<32x128xf32>
      %328 = vector.extract_strided_slice %260 {offsets = [0, 96], sizes = [32, 32], strides = [1, 1]} : vector<32x384xbf16> to vector<32x32xbf16>
      %329 = vector.extract_strided_slice %260 {offsets = [0, 224], sizes = [32, 32], strides = [1, 1]} : vector<32x384xbf16> to vector<32x32xbf16>
      %330 = vector.extract_strided_slice %260 {offsets = [0, 352], sizes = [32, 32], strides = [1, 1]} : vector<32x384xbf16> to vector<32x32xbf16>
      %cst_197 = arith.constant dense<0.000000e+00> : vector<32x32xf32>
      %331 = tpu.matmul %328, %329, %cst_197 {dimension_numbers = #tpu.dot_dimension_numbers<[1], [1], [0], [0], [0, 0, 1, 0], [], []>} : vector<32x32xbf16>, vector<32x32xbf16>, vector<32x32xf32> -> vector<32x32xf32>
      %332 = vector.broadcast %14 : vector<1x32xf32> to vector<32x32xf32>
      %333 = arith.addf %331, %332 : vector<32x32xf32>
      %cst_198 = arith.constant dense<0xFF800000> : vector<32xf32>
      %334 = vector.multi_reduction <maximumf>, %333, %cst_198 [1] : vector<32x32xf32> to vector<32xf32>
      %335 = vector.shape_cast %334 : vector<32xf32> to vector<32x1xf32>
      %336 = vector.broadcast %335 : vector<32x1xf32> to vector<32x32xf32>
      %337 = arith.subf %333, %336 : vector<32x32xf32>
      %338 = math.exp %337 : vector<32x32xf32>
      %cst_199 = arith.constant dense<0.000000e+00> : vector<32xf32>
      %339 = vector.multi_reduction <add>, %338, %cst_199 [1] : vector<32x32xf32> to vector<32xf32>
      %340 = vector.shape_cast %339 : vector<32xf32> to vector<32x1xf32>
      %341 = tpu.reciprocal %340 {approx = true} : vector<32x1xf32> -> vector<32x1xf32>
      %342 = vector.broadcast %341 : vector<32x1xf32> to vector<32x32xf32>
      %343 = arith.mulf %338, %342 : vector<32x32xf32>
      %344 = arith.truncf %343 : vector<32x32xf32> to vector<32x32xbf16>
      %cst_200 = arith.constant dense<0.000000e+00> : vector<32x32xf32>
      %345 = tpu.matmul %344, %330, %cst_200 {dimension_numbers = #tpu.dot_dimension_numbers<[1], [0], [0], [1], [0, 0, 1, 1], [], []>} : vector<32x32xbf16>, vector<32x32xbf16>, vector<32x32xf32> -> vector<32x32xf32>
      %346 = arith.truncf %345 : vector<32x32xf32> to vector<32x32xbf16>
      %347 = vector.extract_strided_slice %148 {offsets = [96, 0], sizes = [32, 128], strides = [1, 1]} : vector<128x128xbf16> to vector<32x128xbf16>
      %cst_201 = arith.constant dense<0.000000e+00> : vector<32x128xf32>
      %348 = tpu.matmul %346, %347, %cst_201 {dimension_numbers = #tpu.dot_dimension_numbers<[1], [0], [0], [1], [0, 0, 1, 1], [], []>} : vector<32x32xbf16>, vector<32x128xbf16>, vector<32x128xf32> -> vector<32x128xf32>
      %349 = arith.addf %327, %348 : vector<32x128xf32>
      %350 = arith.index_cast %258 : i32 to index
      %c0_202 = arith.constant 0 : index
      %351 = vector.load %arg22[%350, %c0_202] : memref<256x128xf32, #tpu.memory_space<vmem>>, vector<32x128xf32>
      %352 = arith.addf %351, %349 : vector<32x128xf32>
      %353 = vector.broadcast %150 : vector<1x128xf32> to vector<32x128xf32>
      %354 = arith.addf %352, %353 : vector<32x128xf32>
      %355 = arith.index_cast %258 : i32 to index
      %c0_203 = arith.constant 0 : index
      %356 = vector.load %arg22[%355, %c0_203] : memref<256x128xf32, #tpu.memory_space<vmem>>, vector<32x128xf32>
      tpu.vector_store %arg22[%355, %c0_203], %354 {strides = array<i32>} : memref<256x128xf32, #tpu.memory_space<vmem>>, vector<32x128xf32>,
    }
    %c8_i32_105 = arith.constant 8 : i32
    %c0_106 = arith.constant 0 : index
    %c0_107 = arith.constant 0 : index
    %152 = vector.load %arg22[%c0_106, %c0_107] : memref<256x128xf32, #tpu.memory_space<vmem>>, vector<256x128xf32>
    %c1_108 = arith.constant 1 : index
    %c0_109 = arith.constant 0 : index
    %c0_110 = arith.constant 0 : index
    %153 = vector.load %arg11[%c1_108, %c0_109, %c0_110] : memref<2x1x128xf32, #tpu.memory_space<vmem>>, vector<1x1x128xf32>
    %154 = vector.shape_cast %153 : vector<1x1x128xf32> to vector<1x128xf32>
    %c1_111 = arith.constant 1 : index
    %c0_112 = arith.constant 0 : index
    %c0_113 = arith.constant 0 : index
    %155 = vector.load %arg12[%c1_111, %c0_112, %c0_113] : memref<2x1x128xf32, #tpu.memory_space<vmem>>, vector<1x1x128xf32>
    %156 = vector.shape_cast %155 : vector<1x1x128xf32> to vector<1x128xf32>
    %cst_114 = arith.constant dense<0.000000e+00> : vector<256xf32>
    %157 = vector.multi_reduction <add>, %152, %cst_114 [1] : vector<256x128xf32> to vector<256xf32>
    %158 = vector.shape_cast %157 : vector<256xf32> to vector<256x1xf32>
    %cst_115 = arith.constant 1.280000e+02 : f32
    %159 = vector.broadcast %cst_115 : f32 to vector<256x1xf32>
    %160 = arith.divf %158, %159 : vector<256x1xf32>
    %161 = vector.broadcast %160 : vector<256x1xf32> to vector<256x128xf32>
    %162 = arith.subf %152, %161 : vector<256x128xf32>
    %163 = arith.mulf %162, %162 : vector<256x128xf32>
    %cst_116 = arith.constant dense<0.000000e+00> : vector<256xf32>
    %164 = vector.multi_reduction <add>, %163, %cst_116 [1] : vector<256x128xf32> to vector<256xf32>
    %165 = vector.shape_cast %164 : vector<256xf32> to vector<256x1xf32>
    %cst_117 = arith.constant 1.280000e+02 : f32
    %166 = vector.broadcast %cst_117 : f32 to vector<256x1xf32>
    %167 = arith.divf %165, %166 : vector<256x1xf32>
    %cst_118 = arith.constant 9.99999997E-7 : f32
    %168 = vector.broadcast %cst_118 : f32 to vector<256x1xf32>
    %169 = arith.addf %167, %168 : vector<256x1xf32>
    %170 = math.rsqrt %169 : vector<256x1xf32>
    %171 = vector.broadcast %170 : vector<256x1xf32> to vector<256x128xf32>
    %172 = arith.mulf %162, %171 : vector<256x128xf32>
    %173 = vector.broadcast %154 : vector<1x128xf32> to vector<256x128xf32>
    %174 = arith.mulf %172, %173 : vector<256x128xf32>
    %175 = vector.broadcast %156 : vector<1x128xf32> to vector<256x128xf32>
    %176 = arith.addf %174, %175 : vector<256x128xf32>
    %177 = arith.truncf %176 : vector<256x128xf32> to vector<256x128xbf16>
    %c1_119 = arith.constant 1 : index
    %c0_120 = arith.constant 0 : index
    %c0_121 = arith.constant 0 : index
    %178 = vector.load %arg13[%c1_119, %c0_120, %c0_121] : memref<2x128x256xbf16, #tpu.memory_space<vmem>>, vector<1x128x256xbf16>
    %179 = vector.shape_cast %178 : vector<1x128x256xbf16> to vector<128x256xbf16>
    %cst_122 = arith.constant dense<0.000000e+00> : vector<256x256xf32>
    %180 = tpu.matmul %177, %179, %cst_122 {dimension_numbers = #tpu.dot_dimension_numbers<[1], [0], [0], [1], [0, 0, 1, 1], [], []>} : vector<256x128xbf16>, vector<128x256xbf16>, vector<256x256xf32> -> vector<256x256xf32>
    %c1_123 = arith.constant 1 : index
    %c0_124 = arith.constant 0 : index
    %c0_125 = arith.constant 0 : index
    %181 = vector.load %arg14[%c1_123, %c0_124, %c0_125] : memref<2x1x256xf32, #tpu.memory_space<vmem>>, vector<1x1x256xf32>
    %182 = vector.shape_cast %181 : vector<1x1x256xf32> to vector<1x256xf32>
    %183 = vector.broadcast %182 : vector<1x256xf32> to vector<256x256xf32>
    %184 = arith.addf %180, %183 : vector<256x256xf32>
    %185 = arith.mulf %184, %184 : vector<256x256xf32>
    %186 = arith.mulf %184, %185 : vector<256x256xf32>
    %cst_126 = arith.constant 4.471500e-02 : f32
    %187 = vector.broadcast %cst_126 : f32 to vector<256x256xf32>
    %188 = arith.mulf %187, %186 : vector<256x256xf32>
    %189 = arith.addf %184, %188 : vector<256x256xf32>
    %cst_127 = arith.constant 0.797884583 : f32
    %190 = vector.broadcast %cst_127 : f32 to vector<256x256xf32>
    %191 = arith.mulf %190, %189 : vector<256x256xf32>
    %192 = math.tanh %191 : vector<256x256xf32>
    %cst_128 = arith.constant 1.000000e+00 : f32
    %193 = vector.broadcast %cst_128 : f32 to vector<256x256xf32>
    %194 = arith.addf %193, %192 : vector<256x256xf32>
    %cst_129 = arith.constant 5.000000e-01 : f32
    %195 = vector.broadcast %cst_129 : f32 to vector<256x256xf32>
    %196 = arith.mulf %195, %194 : vector<256x256xf32>
    %197 = arith.mulf %184, %196 : vector<256x256xf32>
    %198 = arith.truncf %197 : vector<256x256xf32> to vector<256x256xbf16>
    %c1_130 = arith.constant 1 : index
    %c0_131 = arith.constant 0 : index
    %c0_132 = arith.constant 0 : index
    %199 = vector.load %arg15[%c1_130, %c0_131, %c0_132] : memref<2x256x128xbf16, #tpu.memory_space<vmem>>, vector<1x256x128xbf16>
    %200 = vector.shape_cast %199 : vector<1x256x128xbf16> to vector<256x128xbf16>
    %cst_133 = arith.constant dense<0.000000e+00> : vector<256x128xf32>
    %201 = tpu.matmul %198, %200, %cst_133 {dimension_numbers = #tpu.dot_dimension_numbers<[1], [0], [0], [1], [0, 0, 1, 1], [], []>} : vector<256x256xbf16>, vector<256x128xbf16>, vector<256x128xf32> -> vector<256x128xf32>
    %c1_134 = arith.constant 1 : index
    %c0_135 = arith.constant 0 : index
    %c0_136 = arith.constant 0 : index
    %202 = vector.load %arg16[%c1_134, %c0_135, %c0_136] : memref<2x1x128xf32, #tpu.memory_space<vmem>>, vector<1x1x128xf32>
    %203 = vector.shape_cast %202 : vector<1x1x128xf32> to vector<1x128xf32>
    %204 = vector.broadcast %203 : vector<1x128xf32> to vector<256x128xf32>
    %205 = arith.addf %201, %204 : vector<256x128xf32>
    %c0_137 = arith.constant 0 : index
    %c0_138 = arith.constant 0 : index
    %206 = vector.load %arg22[%c0_137, %c0_138] : memref<256x128xf32, #tpu.memory_space<vmem>>, vector<256x128xf32>
    %207 = arith.addf %206, %205 : vector<256x128xf32>
    %c0_139 = arith.constant 0 : index
    %c0_140 = arith.constant 0 : index
    %208 = vector.load %arg22[%c0_139, %c0_140] : memref<256x128xf32, #tpu.memory_space<vmem>>, vector<256x128xf32>
    tpu.vector_store %arg22[%c0_139, %c0_140], %207 {strides = array<i32>} : memref<256x128xf32, #tpu.memory_space<vmem>>, vector<256x128xf32>,
    %c0_141 = arith.constant 0 : index
    %c0_142 = arith.constant 0 : index
    %209 = vector.load %arg22[%c0_141, %c0_142] : memref<256x128xf32, #tpu.memory_space<vmem>>, vector<1x128xf32>
    %c0_143 = arith.constant 0 : index
    %c0_144 = arith.constant 0 : index
    %210 = vector.load %arg24[%c0_143, %c0_144] : memref<8x128xf32, #tpu.memory_space<vmem>>, vector<1x128xf32>
    tpu.vector_store %arg24[%c0_143, %c0_144], %209 {strides = array<i32>} : memref<8x128xf32, #tpu.memory_space<vmem>>, vector<1x128xf32>,
    %c32 = arith.constant 32 : index
    %c0_145 = arith.constant 0 : index
    %211 = vector.load %arg22[%c32, %c0_145] : memref<256x128xf32, #tpu.memory_space<vmem>>, vector<1x128xf32>
    %c1_146 = arith.constant 1 : index
    %c0_147 = arith.constant 0 : index
    %212 = vector.load %arg24[%c1_146, %c0_147] : memref<8x128xf32, #tpu.memory_space<vmem>>, vector<1x128xf32>
    tpu.vector_store %arg24[%c1_146, %c0_147], %211 {strides = array<i32>} : memref<8x128xf32, #tpu.memory_space<vmem>>, vector<1x128xf32>,
    %c64 = arith.constant 64 : index
    %c0_148 = arith.constant 0 : index
    %213 = vector.load %arg22[%c64, %c0_148] : memref<256x128xf32, #tpu.memory_space<vmem>>, vector<1x128xf32>
    %c2 = arith.constant 2 : index
    %c0_149 = arith.constant 0 : index
    %214 = vector.load %arg24[%c2, %c0_149] : memref<8x128xf32, #tpu.memory_space<vmem>>, vector<1x128xf32>
    tpu.vector_store %arg24[%c2, %c0_149], %213 {strides = array<i32>} : memref<8x128xf32, #tpu.memory_space<vmem>>, vector<1x128xf32>,
    %c96 = arith.constant 96 : index
    %c0_150 = arith.constant 0 : index
    %215 = vector.load %arg22[%c96, %c0_150] : memref<256x128xf32, #tpu.memory_space<vmem>>, vector<1x128xf32>
    %c3 = arith.constant 3 : index
    %c0_151 = arith.constant 0 : index
    %216 = vector.load %arg24[%c3, %c0_151] : memref<8x128xf32, #tpu.memory_space<vmem>>, vector<1x128xf32>
    tpu.vector_store %arg24[%c3, %c0_151], %215 {strides = array<i32>} : memref<8x128xf32, #tpu.memory_space<vmem>>, vector<1x128xf32>,
    %c128 = arith.constant 128 : index
    %c0_152 = arith.constant 0 : index
    %217 = vector.load %arg22[%c128, %c0_152] : memref<256x128xf32, #tpu.memory_space<vmem>>, vector<1x128xf32>
    %c4 = arith.constant 4 : index
    %c0_153 = arith.constant 0 : index
    %218 = vector.load %arg24[%c4, %c0_153] : memref<8x128xf32, #tpu.memory_space<vmem>>, vector<1x128xf32>
    tpu.vector_store %arg24[%c4, %c0_153], %217 {strides = array<i32>} : memref<8x128xf32, #tpu.memory_space<vmem>>, vector<1x128xf32>,
    %c160 = arith.constant 160 : index
    %c0_154 = arith.constant 0 : index
    %219 = vector.load %arg22[%c160, %c0_154] : memref<256x128xf32, #tpu.memory_space<vmem>>, vector<1x128xf32>
    %c5 = arith.constant 5 : index
    %c0_155 = arith.constant 0 : index
    %220 = vector.load %arg24[%c5, %c0_155] : memref<8x128xf32, #tpu.memory_space<vmem>>, vector<1x128xf32>
    tpu.vector_store %arg24[%c5, %c0_155], %219 {strides = array<i32>} : memref<8x128xf32, #tpu.memory_space<vmem>>, vector<1x128xf32>,
    %c192 = arith.constant 192 : index
    %c0_156 = arith.constant 0 : index
    %221 = vector.load %arg22[%c192, %c0_156] : memref<256x128xf32, #tpu.memory_space<vmem>>, vector<1x128xf32>
    %c6 = arith.constant 6 : index
    %c0_157 = arith.constant 0 : index
    %222 = vector.load %arg24[%c6, %c0_157] : memref<8x128xf32, #tpu.memory_space<vmem>>, vector<1x128xf32>
    tpu.vector_store %arg24[%c6, %c0_157], %221 {strides = array<i32>} : memref<8x128xf32, #tpu.memory_space<vmem>>, vector<1x128xf32>,
    %c224 = arith.constant 224 : index
    %c0_158 = arith.constant 0 : index
    %223 = vector.load %arg22[%c224, %c0_158] : memref<256x128xf32, #tpu.memory_space<vmem>>, vector<1x128xf32>
    %c7 = arith.constant 7 : index
    %c0_159 = arith.constant 0 : index
    %224 = vector.load %arg24[%c7, %c0_159] : memref<8x128xf32, #tpu.memory_space<vmem>>, vector<1x128xf32>
    tpu.vector_store %arg24[%c7, %c0_159], %223 {strides = array<i32>} : memref<8x128xf32, #tpu.memory_space<vmem>>, vector<1x128xf32>,
    %c0_160 = arith.constant 0 : index
    %c0_161 = arith.constant 0 : index
    %225 = vector.load %arg24[%c0_160, %c0_161] : memref<8x128xf32, #tpu.memory_space<vmem>>, vector<8x128xf32>
    %c0_162 = arith.constant 0 : index
    %c0_163 = arith.constant 0 : index
    %226 = vector.load %arg17[%c0_162, %c0_163] : memref<1x128xf32, #tpu.memory_space<vmem>>, vector<1x128xf32>
    %c0_164 = arith.constant 0 : index
    %c0_165 = arith.constant 0 : index
    %227 = vector.load %arg18[%c0_164, %c0_165] : memref<1x128xf32, #tpu.memory_space<vmem>>, vector<1x128xf32>
    %cst_166 = arith.constant dense<0.000000e+00> : vector<8xf32>
    %228 = vector.multi_reduction <add>, %225, %cst_166 [1] : vector<8x128xf32> to vector<8xf32>
    %229 = vector.shape_cast %228 : vector<8xf32> to vector<8x1xf32>
    %cst_167 = arith.constant 1.280000e+02 : f32
    %230 = vector.broadcast %cst_167 : f32 to vector<8x1xf32>
    %231 = arith.divf %229, %230 : vector<8x1xf32>
    %232 = vector.broadcast %231 : vector<8x1xf32> to vector<8x128xf32>
    %233 = arith.subf %225, %232 : vector<8x128xf32>
    %234 = arith.mulf %233, %233 : vector<8x128xf32>
    %cst_168 = arith.constant dense<0.000000e+00> : vector<8xf32>
    %235 = vector.multi_reduction <add>, %234, %cst_168 [1] : vector<8x128xf32> to vector<8xf32>
    %236 = vector.shape_cast %235 : vector<8xf32> to vector<8x1xf32>
    %cst_169 = arith.constant 1.280000e+02 : f32
    %237 = vector.broadcast %cst_169 : f32 to vector<8x1xf32>
    %238 = arith.divf %236, %237 : vector<8x1xf32>
    %cst_170 = arith.constant 9.99999997E-7 : f32
    %239 = vector.broadcast %cst_170 : f32 to vector<8x1xf32>
    %240 = arith.addf %238, %239 : vector<8x1xf32>
    %241 = math.rsqrt %240 : vector<8x1xf32>
    %242 = vector.broadcast %241 : vector<8x1xf32> to vector<8x128xf32>
    %243 = arith.mulf %233, %242 : vector<8x128xf32>
    %244 = vector.broadcast %226 : vector<1x128xf32> to vector<8x128xf32>
    %245 = arith.mulf %243, %244 : vector<8x128xf32>
    %246 = vector.broadcast %227 : vector<1x128xf32> to vector<8x128xf32>
    %247 = arith.addf %245, %246 : vector<8x128xf32>
    %248 = arith.truncf %247 : vector<8x128xf32> to vector<8x128xbf16>
    %c0_171 = arith.constant 0 : index
    %c0_172 = arith.constant 0 : index
    %249 = vector.load %arg19[%c0_171, %c0_172] : memref<128x128xbf16, #tpu.memory_space<vmem>>, vector<128x128xbf16>
    %cst_173 = arith.constant dense<0.000000e+00> : vector<8x128xf32>
    %250 = tpu.matmul %248, %249, %cst_173 {dimension_numbers = #tpu.dot_dimension_numbers<[1], [0], [0], [1], [0, 0, 1, 1], [], []>} : vector<8x128xbf16>, vector<128x128xbf16>, vector<8x128xf32> -> vector<8x128xf32>
    %c0_174 = arith.constant 0 : index
    %c0_175 = arith.constant 0 : index
    %251 = vector.load %arg20[%c0_174, %c0_175] : memref<1x128xf32, #tpu.memory_space<vmem>>, vector<1x128xf32>
    %252 = vector.broadcast %251 : vector<1x128xf32> to vector<8x128xf32>
    %253 = arith.addf %250, %252 : vector<8x128xf32>
    %c0_176 = arith.constant 0 : index
    %c0_177 = arith.constant 0 : index
    %254 = vector.load %arg21[%c0_176, %c0_177] : memref<8x128xf32, #tpu.memory_space<vmem>>, vector<8x128xf32>
    tpu.vector_store %arg21[%c0_176, %c0_177], %253 {strides = array<i32>} : memref<8x128xf32, #tpu.memory_space<vmem>>, vector<8x128xf32>,
    return
  }
  func.func @transform_0(%arg0: i32) -> (i32, i32) {
    %c0_i32 = arith.constant 0 : i32
    %c0_i32_0 = arith.constant 0 : i32
    return %arg0, %c0_i32 : i32, i32
  }
  func.func @transform_1(%arg0: i32) -> (i32, i32) {
    %c0_i32 = arith.constant 0 : i32
    %c0_i32_0 = arith.constant 0 : i32
    %c0_i32_1 = arith.constant 0 : i32
    return %c0_i32, %c0_i32_0 : i32, i32
  }
  func.func @transform_2(%arg0: i32) -> (i32, i32) {
    %c0_i32 = arith.constant 0 : i32
    %c0_i32_0 = arith.constant 0 : i32
    %c0_i32_1 = arith.constant 0 : i32
    return %c0_i32, %c0_i32_0 : i32, i32
  }
  func.func @transform_3(%arg0: i32) -> (i32, i32) {
    %c0_i32 = arith.constant 0 : i32
    %c0_i32_0 = arith.constant 0 : i32
    %c0_i32_1 = arith.constant 0 : i32
    return %c0_i32, %c0_i32_0 : i32, i32
  }
  func.func @transform_4(%arg0: i32) -> (i32, i32, i32) {
    %c0_i32 = arith.constant 0 : i32
    %c0_i32_0 = arith.constant 0 : i32
    %c0_i32_1 = arith.constant 0 : i32
    %c0_i32_2 = arith.constant 0 : i32
    return %c0_i32, %c0_i32_0, %c0_i32_1 : i32, i32, i32
  }
  func.func @transform_5(%arg0: i32) -> (i32, i32, i32) {
    %c0_i32 = arith.constant 0 : i32
    %c0_i32_0 = arith.constant 0 : i32
    %c0_i32_1 = arith.constant 0 : i32
    %c0_i32_2 = arith.constant 0 : i32
    return %c0_i32, %c0_i32_0, %c0_i32_1 : i32, i32, i32
  }
  func.func @transform_6(%arg0: i32) -> (i32, i32, i32) {
    %c0_i32 = arith.constant 0 : i32
    %c0_i32_0 = arith.constant 0 : i32
    %c0_i32_1 = arith.constant 0 : i32
    %c0_i32_2 = arith.constant 0 : i32
    return %c0_i32, %c0_i32_0, %c0_i32_1 : i32, i32, i32
  }
  func.func @transform_7(%arg0: i32) -> (i32, i32, i32) {
    %c0_i32 = arith.constant 0 : i32
    %c0_i32_0 = arith.constant 0 : i32
    %c0_i32_1 = arith.constant 0 : i32
    %c0_i32_2 = arith.constant 0 : i32
    return %c0_i32, %c0_i32_0, %c0_i32_1 : i32, i32, i32
  }
  func.func @transform_8(%arg0: i32) -> (i32, i32, i32) {
    %c0_i32 = arith.constant 0 : i32
    %c0_i32_0 = arith.constant 0 : i32
    %c0_i32_1 = arith.constant 0 : i32
    %c0_i32_2 = arith.constant 0 : i32
    return %c0_i32, %c0_i32_0, %c0_i32_1 : i32, i32, i32
  }
  func.func @transform_9(%arg0: i32) -> (i32, i32, i32) {
    %c0_i32 = arith.constant 0 : i32
    %c0_i32_0 = arith.constant 0 : i32
    %c0_i32_1 = arith.constant 0 : i32
    %c0_i32_2 = arith.constant 0 : i32
    return %c0_i32, %c0_i32_0, %c0_i32_1 : i32, i32, i32
  }
  func.func @transform_10(%arg0: i32) -> (i32, i32, i32) {
    %c0_i32 = arith.constant 0 : i32
    %c0_i32_0 = arith.constant 0 : i32
    %c0_i32_1 = arith.constant 0 : i32
    %c0_i32_2 = arith.constant 0 : i32
    return %c0_i32, %c0_i32_0, %c0_i32_1 : i32, i32, i32
  }
  func.func @transform_11(%arg0: i32) -> (i32, i32, i32) {
    %c0_i32 = arith.constant 0 : i32
    %c0_i32_0 = arith.constant 0 : i32
    %c0_i32_1 = arith.constant 0 : i32
    %c0_i32_2 = arith.constant 0 : i32
    return %c0_i32, %c0_i32_0, %c0_i32_1 : i32, i32, i32
  }
  func.func @transform_12(%arg0: i32) -> (i32, i32, i32) {
    %c0_i32 = arith.constant 0 : i32
    %c0_i32_0 = arith.constant 0 : i32
    %c0_i32_1 = arith.constant 0 : i32
    %c0_i32_2 = arith.constant 0 : i32
    return %c0_i32, %c0_i32_0, %c0_i32_1 : i32, i32, i32
  }
  func.func @transform_13(%arg0: i32) -> (i32, i32, i32) {
    %c0_i32 = arith.constant 0 : i32
    %c0_i32_0 = arith.constant 0 : i32
    %c0_i32_1 = arith.constant 0 : i32
    %c0_i32_2 = arith.constant 0 : i32
    return %c0_i32, %c0_i32_0, %c0_i32_1 : i32, i32, i32
  }
  func.func @transform_14(%arg0: i32) -> (i32, i32, i32) {
    %c0_i32 = arith.constant 0 : i32
    %c0_i32_0 = arith.constant 0 : i32
    %c0_i32_1 = arith.constant 0 : i32
    %c0_i32_2 = arith.constant 0 : i32
    return %c0_i32, %c0_i32_0, %c0_i32_1 : i32, i32, i32
  }
  func.func @transform_15(%arg0: i32) -> (i32, i32, i32) {
    %c0_i32 = arith.constant 0 : i32
    %c0_i32_0 = arith.constant 0 : i32
    %c0_i32_1 = arith.constant 0 : i32
    %c0_i32_2 = arith.constant 0 : i32
    return %c0_i32, %c0_i32_0, %c0_i32_1 : i32, i32, i32
  }
  func.func @transform_16(%arg0: i32) -> (i32, i32) {
    %c0_i32 = arith.constant 0 : i32
    %c0_i32_0 = arith.constant 0 : i32
    %c0_i32_1 = arith.constant 0 : i32
    return %c0_i32, %c0_i32_0 : i32, i32
  }
  func.func @transform_17(%arg0: i32) -> (i32, i32) {
    %c0_i32 = arith.constant 0 : i32
    %c0_i32_0 = arith.constant 0 : i32
    %c0_i32_1 = arith.constant 0 : i32
    return %c0_i32, %c0_i32_0 : i32, i32
  }
  func.func @transform_18(%arg0: i32) -> (i32, i32) {
    %c0_i32 = arith.constant 0 : i32
    %c0_i32_0 = arith.constant 0 : i32
    %c0_i32_1 = arith.constant 0 : i32
    return %c0_i32, %c0_i32_0 : i32, i32
  }
  func.func @transform_19(%arg0: i32) -> (i32, i32) {
    %c0_i32 = arith.constant 0 : i32
    %c0_i32_0 = arith.constant 0 : i32
    %c0_i32_1 = arith.constant 0 : i32
    return %c0_i32, %c0_i32_0 : i32, i32
  }
  func.func @transform_20(%arg0: i32) -> (i32, i32) {
    %c0_i32 = arith.constant 0 : i32
    %c0_i32_0 = arith.constant 0 : i32
    return %arg0, %c0_i32 : i32, i32
  }
}

</mosaic_0001>

<llo_original>
// kernel: vit_forward.1
$region0: #{vit_forward.1}
  #allocation0 [shape = 'u32[]', space=smem, size = 0x4, offset = 0x4, fixed_abs, tag = 'smem constant byte address 0x4 - core index']
  #allocation1 [shape = 'u32[144,128]{1,0:T(1,128)}', space=vmem, size = 0x12000, scoped, tag = 'internal scratch']
  #allocation2 [shape = 'f32[256,128]{1,0:T(8,128)}', space=vmem, size = 0x20000, scoped, tag = 'scratch operand']
  #allocation3 [shape = 'bf16[256,384]{1,0:T(8,128)(2,1)}', space=vmem, size = 0x30000, scoped, tag = 'scratch operand']
  #allocation4 [shape = 'f32[8,128]{1,0:T(8,128)}', space=vmem, size = 0x1000, scoped, tag = 'scratch operand']
  %s0 = inlined_call_operand.vmem [shape: bf16[512,128], index: 0, kind: input, shape index: {}]
  %s1 = inlined_call_operand.vmem [shape: f32[256,128], index: 1, kind: input, shape index: {}]
  %s2 = inlined_call_operand.vmem [shape: bf16[128,128], index: 2, kind: input, shape index: {}]
  %s3 = inlined_call_operand.vmem [shape: f32[1,128], index: 3, kind: input, shape index: {}]
  %s4 = inlined_call_operand.vmem [shape: f32[2,1,128], index: 4, kind: input, shape index: {}]
  %s5 = inlined_call_operand.vmem [shape: f32[2,1,128], index: 5, kind: input, shape index: {}]
  %s6 = inlined_call_operand.vmem [shape: bf16[2,128,384], index: 6, kind: input, shape index: {}]
  %s7 = inlined_call_operand.vmem [shape: f32[2,1,384], index: 7, kind: input, shape index: {}]
  %s8 = inlined_call_operand.vmem [shape: bf16[2,128,128], index: 8, kind: input, shape index: {}]
  %s9 = inlined_call_operand.vmem [shape: f32[2,1,128], index: 9, kind: input, shape index: {}]
  %s10 = inlined_call_operand.vmem [shape: f32[2,1,128], index: 10, kind: input, shape index: {}]
  %s11 = inlined_call_operand.vmem [shape: f32[2,1,128], index: 11, kind: input, shape index: {}]
  %s12 = inlined_call_operand.vmem [shape: bf16[2,128,256], index: 12, kind: input, shape index: {}]
  %s13 = inlined_call_operand.vmem [shape: f32[2,1,256], index: 13, kind: input, shape index: {}]
  %s14 = inlined_call_operand.vmem [shape: bf16[2,256,128], index: 14, kind: input, shape index: {}]
  %s15 = inlined_call_operand.vmem [shape: f32[2,1,128], index: 15, kind: input, shape index: {}]
  %s16 = inlined_call_operand.vmem [shape: f32[1,128], index: 16, kind: input, shape index: {}]
  %s17 = inlined_call_operand.vmem [shape: f32[1,128], index: 17, kind: input, shape index: {}]
  %s18 = inlined_call_operand.vmem [shape: bf16[128,128], index: 18, kind: input, shape index: {}]
  %s19 = inlined_call_operand.vmem [shape: f32[1,128], index: 19, kind: input, shape index: {}]
  %s20 = inlined_call_operand.vmem [shape: f32[16,128], index: 20, kind: output, shape index: {}]
  %s21 = sld [smem:[#allocation0]]
  $region127: #{vit_forward.1} parent=0
    _
  %s23 = ssub.s32 1, %s21
  %s24 = scalar_select 0, %s23, %s21
  loop: start=0, step=1, limit=4
  $region2: #{vit_forward.1} parent=0 // loop_pre_header
    _
  $region3: #{vit_forward.1} parent=0 // loop_header
    %s26 = sphi 0, %s30
    %p27 = scmp.ge.s32.totalorder %s26, 4
    %s36 = sphi 0, %s38
    %s39 = sphi 0, %s36
    %s40 = sphi 0, %s39
    %s56 = sphi 0, %s40
    %s60 = sphi 0, %s60
    %s62 = sphi 0, %s60
    %s63 = sphi 0, %s62
    %s77 = sphi 0, %s63
    %s81 = sphi 0, %s81
    %s83 = sphi 0, %s81
    %s84 = sphi 0, %s83
    %s98 = sphi 0, %s84
    %s102 = sphi 0, %s102
    %s104 = sphi 0, %s102
    %s105 = sphi 0, %s104
    %s119 = sphi 0, %s105
    %s123 = sphi 0, %s123
    %s125 = sphi 0, %s123
    %s126 = sphi 0, %s125
    %s140 = sphi 0, %s126
    %s144 = sphi 0, %s144
    %s146 = sphi 0, %s144
    %s147 = sphi 0, %s146
    %s161 = sphi 0, %s147
    %s165 = sphi 0, %s165
    %s167 = sphi 0, %s165
    %s168 = sphi 0, %s167
    %s182 = sphi 0, %s168
    %s186 = sphi 0, %s186
    %s188 = sphi 0, %s186
    %s189 = sphi 0, %s188
    %s203 = sphi 0, %s189
    %s207 = sphi 0, %s207
    %s209 = sphi 0, %s207
    %s210 = sphi 0, %s209
    %s224 = sphi 0, %s210
    %s228 = sphi 0, %s228
    %s230 = sphi 0, %s228
    %s231 = sphi 0, %s230
    %s245 = sphi 0, %s231
    %s249 = sphi 0, %s249
    %s251 = sphi 0, %s249
    %s252 = sphi 0, %s251
    %s266 = sphi 0, %s252
    %s270 = sphi 0, %s270
    %s272 = sphi 0, %s270
    %s273 = sphi 0, %s272
    %s287 = sphi 0, %s273
    %s291 = sphi 0, %s291
    %s293 = sphi 0, %s291
    %s294 = sphi 0, %s293
    %s308 = sphi 0, %s294
    %s312 = sphi 0, %s312
    %s314 = sphi 0, %s312
    %s315 = sphi 0, %s314
    %s329 = sphi 0, %s315
    %s333 = sphi 0, %s333
    %s335 = sphi 0, %s333
    %s336 = sphi 0, %s335
    %s350 = sphi 0, %s336
    %s354 = sphi 0, %s354
    %s356 = sphi 0, %s354
    %s357 = sphi 0, %s356
    %s371 = sphi 0, %s357
    %s375 = sphi 0, %s375
    %s377 = sphi 0, %s375
    %s378 = sphi 0, %s377
    %s392 = sphi 0, %s378
    %s396 = sphi 0, %s396
    %s398 = sphi 0, %s396
    %s399 = sphi 0, %s398
    %s413 = sphi 0, %s399
    %s417 = sphi 0, %s417
    %s419 = sphi 0, %s417
    %s420 = sphi 0, %s419
    %s434 = sphi 0, %s420
    %s438 = sphi 0, %s438
    %s440 = sphi 0, %s438
    %s441 = sphi 0, %s440
    %s455 = sphi 0, %s441
    %s461 = sphi 0, %s463
    %s464 = sphi 0, %s461
    %s465 = sphi 0, %s464
    %s481 = sphi 0, %s465
  $region4: #{vit_forward.1} parent=0 // loop_header_branch
    %29 = sbr.rel (%p27) target = $region8
  $region5: #{vit_forward.1} parent=0 // loop_body
    %s31 = ssub.s32 %s26, 1
    %s32 = ssub.s32 %s26, 2
    %s33 = sadd.s32 %s26, 1
    %s34 = ssub.s32 %s26, %s33
    %p35 = scmp.eq.s32.totalorder %s34, 0
    %s37 = sadd.s32 %s36, 1
    %s38 = scalar_select %p35, %s36, %s37
    %p41 = pneg %p35
    %p42 = scmp.eq.s32.totalorder %s26, 1
    %p43 = por %p41, %p42
    %p44 = scmp.ne.s32.totalorder %s36, %s39
    %p45 = scmp.eq.s32.totalorder %s26, 0
    %p46 = por %p44, %p45
    %p47 = scmp.ne.s32.totalorder %s36, %s39
    %p48 = scmp.eq.s32.totalorder %s31, 1
    %p49 = por %p47, %p48
    %p50 = scmp.ne.s32.totalorder %s39, %s40
    %p51 = scmp.eq.s32.totalorder %s31, 0
    %p52 = por %p50, %p51
    %p53 = scmp.ne.s32.totalorder %s39, %s40
    %p54 = scmp.eq.s32.totalorder %s32, 1
    %p55 = por %p53, %p54
    %p57 = scmp.ne.s32.totalorder %s40, %s56
    %p58 = scmp.eq.s32.totalorder %s32, 0
    %p59 = por %p57, %p58
    %s61 = sadd.s32 %s60, 1
    %p64 = scmp.eq.s32.totalorder %s26, 1
    %p65 = scmp.ne.s32.totalorder %s60, %s62
    %p66 = scmp.eq.s32.totalorder %s26, 0
    %p67 = por %p65, %p66
    %p68 = scmp.ne.s32.totalorder %s60, %s62
    %p69 = scmp.eq.s32.totalorder %s31, 1
    %p70 = por %p68, %p69
    %p71 = scmp.ne.s32.totalorder %s62, %s63
    %p72 = scmp.eq.s32.totalorder %s31, 0
    %p73 = por %p71, %p72
    %p74 = scmp.ne.s32.totalorder %s62, %s63
    %p75 = scmp.eq.s32.totalorder %s32, 1
    %p76 = por %p74, %p75
    %p78 = scmp.ne.s32.totalorder %s63, %s77
    %p79 = scmp.eq.s32.totalorder %s32, 0
    %p80 = por %p78, %p79
    %s82 = sadd.s32 %s81, 1
    %p85 = scmp.eq.s32.totalorder %s26, 1
    %p86 = scmp.ne.s32.totalorder %s81, %s83
    %p87 = scmp.eq.s32.totalorder %s26, 0
    %p88 = por %p86, %p87
    %p89 = scmp.ne.s32.totalorder %s81, %s83
    %p90 = scmp.eq.s32.totalorder %s31, 1
    %p91 = por %p89, %p90
    %p92 = scmp.ne.s32.totalorder %s83, %s84
    %p93 = scmp.eq.s32.totalorder %s31, 0
    %p94 = por %p92, %p93
    %p95 = scmp.ne.s32.totalorder %s83, %s84
    %p96 = scmp.eq.s32.totalorder %s32, 1
    %p97 = por %p95, %p96
    %p99 = scmp.ne.s32.totalorder %s84, %s98
    %p100 = scmp.eq.s32.totalorder %s32, 0
    %p101 = por %p99, %p100
    %s103 = sadd.s32 %s102, 1
    %p106 = scmp.eq.s32.totalorder %s26, 1
    %p107 = scmp.ne.s32.totalorder %s102, %s104
    %p108 = scmp.eq.s32.totalorder %s26, 0
    %p109 = por %p107, %p108
    %p110 = scmp.ne.s32.totalorder %s102, %s104
    %p111 = scmp.eq.s32.totalorder %s31, 1
    %p112 = por %p110, %p111
    %p113 = scmp.ne.s32.totalorder %s104, %s105
    %p114 = scmp.eq.s32.totalorder %s31, 0
    %p115 = por %p113, %p114
    %p116 = scmp.ne.s32.totalorder %s104, %s105
    %p117 = scmp.eq.s32.totalorder %s32, 1
    %p118 = por %p116, %p117
    %p120 = scmp.ne.s32.totalorder %s105, %s119
    %p121 = scmp.eq.s32.totalorder %s32, 0
    %p122 = por %p120, %p121
    %s124 = sadd.s32 %s123, 1
    %p127 = scmp.eq.s32.totalorder %s26, 1
    %p128 = scmp.ne.s32.totalorder %s123, %s125
    %p129 = scmp.eq.s32.totalorder %s26, 0
    %p130 = por %p128, %p129
    %p131 = scmp.ne.s32.totalorder %s123, %s125
    %p132 = scmp.eq.s32.totalorder %s31, 1
    %p133 = por %p131, %p132
    %p134 = scmp.ne.s32.totalorder %s125, %s126
    %p135 = scmp.eq.s32.totalorder %s31, 0
    %p136 = por %p134, %p135
    %p137 = scmp.ne.s32.totalorder %s125, %s126
    %p138 = scmp.eq.s32.totalorder %s32, 1
    %p139 = por %p137, %p138
    %p141 = scmp.ne.s32.totalorder %s126, %s140
    %p142 = scmp.eq.s32.totalorder %s32, 0
    %p143 = por %p141, %p142
    %s145 = sadd.s32 %s144, 1
    %p148 = scmp.eq.s32.totalorder %s26, 1
    %p149 = scmp.ne.s32.totalorder %s144, %s146
    %p150 = scmp.eq.s32.totalorder %s26, 0
    %p151 = por %p149, %p150
    %p152 = scmp.ne.s32.totalorder %s144, %s146
    %p153 = scmp.eq.s32.totalorder %s31, 1
    %p154 = por %p152, %p153
    %p155 = scmp.ne.s32.totalorder %s146, %s147
    %p156 = scmp.eq.s32.totalorder %s31, 0
    %p157 = por %p155, %p156
    %p158 = scmp.ne.s32.totalorder %s146, %s147
    %p159 = scmp.eq.s32.totalorder %s32, 1
    %p160 = por %p158, %p159
    %p162 = scmp.ne.s32.totalorder %s147, %s161
    %p163 = scmp.eq.s32.totalorder %s32, 0
    %p164 = por %p162, %p163
    %s166 = sadd.s32 %s165, 1
    %p169 = scmp.eq.s32.totalorder %s26, 1
    %p170 = scmp.ne.s32.totalorder %s165, %s167
    %p171 = scmp.eq.s32.totalorder %s26, 0
    %p172 = por %p170, %p171
    %p173 = scmp.ne.s32.totalorder %s165, %s167
    %p174 = scmp.eq.s32.totalorder %s31, 1
    %p175 = por %p173, %p174
    %p176 = scmp.ne.s32.totalorder %s167, %s168
    %p177 = scmp.eq.s32.totalorder %s31, 0
    %p178 = por %p176, %p177
    %p179 = scmp.ne.s32.totalorder %s167, %s168
    %p180 = scmp.eq.s32.totalorder %s32, 1
    %p181 = por %p179, %p180
    %p183 = scmp.ne.s32.totalorder %s168, %s182
    %p184 = scmp.eq.s32.totalorder %s32, 0
    %p185 = por %p183, %p184
    %s187 = sadd.s32 %s186, 1
    %p190 = scmp.eq.s32.totalorder %s26, 1
    %p191 = scmp.ne.s32.totalorder %s186, %s188
    %p192 = scmp.eq.s32.totalorder %s26, 0
    %p193 = por %p191, %p192
    %p194 = scmp.ne.s32.totalorder %s186, %s188
    %p195 = scmp.eq.s32.totalorder %s31, 1
    %p196 = por %p194, %p195
    %p197 = scmp.ne.s32.totalorder %s188, %s189
    %p198 = scmp.eq.s32.totalorder %s31, 0
    %p199 = por %p197, %p198
    %p200 = scmp.ne.s32.totalorder %s188, %s189
    %p201 = scmp.eq.s32.totalorder %s32, 1
    %p202 = por %p200, %p201
    %p204 = scmp.ne.s32.totalorder %s189, %s203
    %p205 = scmp.eq.s32.totalorder %s32, 0
    %p206 = por %p204, %p205
    %s208 = sadd.s32 %s207, 1
    %p211 = scmp.eq.s32.totalorder %s26, 1
    %p212 = scmp.ne.s32.totalorder %s207, %s209
    %p213 = scmp.eq.s32.totalorder %s26, 0
    %p214 = por %p212, %p213
    %p215 = scmp.ne.s32.totalorder %s207, %s209
    %p216 = scmp.eq.s32.totalorder %s31, 1
    %p217 = por %p215, %p216
    %p218 = scmp.ne.s32.totalorder %s209, %s210
    %p219 = scmp.eq.s32.totalorder %s31, 0
    %p220 = por %p218, %p219
    %p221 = scmp.ne.s32.totalorder %s209, %s210
    %p222 = scmp.eq.s32.totalorder %s32, 1
    %p223 = por %p221, %p222
    %p225 = scmp.ne.s32.totalorder %s210, %s224
    %p226 = scmp.eq.s32.totalorder %s32, 0
    %p227 = por %p225, %p226
    %s229 = sadd.s32 %s228, 1
    %p232 = scmp.eq.s32.totalorder %s26, 1
    %p233 = scmp.ne.s32.totalorder %s228, %s230
    %p234 = scmp.eq.s32.totalorder %s26, 0
    %p235 = por %p233, %p234
    %p236 = scmp.ne.s32.totalorder %s228, %s230
    %p237 = scmp.eq.s32.totalorder %s31, 1
    %p238 = por %p236, %p237
    %p239 = scmp.ne.s32.totalorder %s230, %s231
    %p240 = scmp.eq.s32.totalorder %s31, 0
    %p241 = por %p239, %p240
    %p242 = scmp.ne.s32.totalorder %s230, %s231
    %p243 = scmp.eq.s32.totalorder %s32, 1
    %p244 = por %p242, %p243
    %p246 = scmp.ne.s32.totalorder %s231, %s245
    %p247 = scmp.eq.s32.totalorder %s32, 0
    %p248 = por %p246, %p247
    %s250 = sadd.s32 %s249, 1
    %p253 = scmp.eq.s32.totalorder %s26, 1
    %p254 = scmp.ne.s32.totalorder %s249, %s251
    %p255 = scmp.eq.s32.totalorder %s26, 0
    %p256 = por %p254, %p255
    %p257 = scmp.ne.s32.totalorder %s249, %s251
    %p258 = scmp.eq.s32.totalorder %s31, 1
    %p259 = por %p257, %p258
    %p260 = scmp.ne.s32.totalorder %s251, %s252
    %p261 = scmp.eq.s32.totalorder %s31, 0
    %p262 = por %p260, %p261
    %p263 = scmp.ne.s32.totalorder %s251, %s252
    %p264 = scmp.eq.s32.totalorder %s32, 1
    %p265 = por %p263, %p264
    %p267 = scmp.ne.s32.totalorder %s252, %s266
    %p268 = scmp.eq.s32.totalorder %s32, 0
    %p269 = por %p267, %p268
    %s271 = sadd.s32 %s270, 1
    %p274 = scmp.eq.s32.totalorder %s26, 1
    %p275 = scmp.ne.s32.totalorder %s270, %s272
    %p276 = scmp.eq.s32.totalorder %s26, 0
    %p277 = por %p275, %p276
    %p278 = scmp.ne.s32.totalorder %s270, %s272
    %p279 = scmp.eq.s32.totalorder %s31, 1
    %p280 = por %p278, %p279
    %p281 = scmp.ne.s32.totalorder %s272, %s273
    %p282 = scmp.eq.s32.totalorder %s31, 0
    %p283 = por %p281, %p282
    %p284 = scmp.ne.s32.totalorder %s272, %s273
    %p285 = scmp.eq.s32.totalorder %s32, 1
    %p286 = por %p284, %p285
    %p288 = scmp.ne.s32.totalorder %s273, %s287
    %p289 = scmp.eq.s32.totalorder %s32, 0
    %p290 = por %p288, %p289
    %s292 = sadd.s32 %s291, 1
    %p295 = scmp.eq.s32.totalorder %s26, 1
    %p296 = scmp.ne.s32.totalorder %s291, %s293
    %p297 = scmp.eq.s32.totalorder %s26, 0
    %p298 = por %p296, %p297
    %p299 = scmp.ne.s32.totalorder %s291, %s293
    %p300 = scmp.eq.s32.totalorder %s31, 1
    %p301 = por %p299, %p300
    %p302 = scmp.ne.s32.totalorder %s293, %s294
    %p303 = scmp.eq.s32.totalorder %s31, 0
    %p304 = por %p302, %p303
    %p305 = scmp.ne.s32.totalorder %s293, %s294
    %p306 = scmp.eq.s32.totalorder %s32, 1
    %p307 = por %p305, %p306
    %p309 = scmp.ne.s32.totalorder %s294, %s308
    %p310 = scmp.eq.s32.totalorder %s32, 0
    %p311 = por %p309, %p310
    %s313 = sadd.s32 %s312, 1
    %p316 = scmp.eq.s32.totalorder %s26, 1
    %p317 = scmp.ne.s32.totalorder %s312, %s314
    %p318 = scmp.eq.s32.totalorder %s26, 0
    %p319 = por %p317, %p318
    %p320 = scmp.ne.s32.totalorder %s312, %s314
    %p321 = scmp.eq.s32.totalorder %s31, 1
    %p322 = por %p320, %p321
    %p323 = scmp.ne.s32.totalorder %s314, %s315
    %p324 = scmp.eq.s32.totalorder %s31, 0
    %p325 = por %p323, %p324
    %p326 = scmp.ne.s32.totalorder %s314, %s315
    %p327 = scmp.eq.s32.totalorder %s32, 1
    %p328 = por %p326, %p327
    %p330 = scmp.ne.s32.totalorder %s315, %s329
    %p331 = scmp.eq.s32.totalorder %s32, 0
    %p332 = por %p330, %p331
    %s334 = sadd.s32 %s333, 1
    %p337 = scmp.eq.s32.totalorder %s26, 1
    %p338 = scmp.ne.s32.totalorder %s333, %s335
    %p339 = scmp.eq.s32.totalorder %s26, 0
    %p340 = por %p338, %p339
    %p341 = scmp.ne.s32.totalorder %s333, %s335
    %p342 = scmp.eq.s32.totalorder %s31, 1
    %p343 = por %p341, %p342
    %p344 = scmp.ne.s32.totalorder %s335, %s336
    %p345 = scmp.eq.s32.totalorder %s31, 0
    %p346 = por %p344, %p345
    %p347 = scmp.ne.s32.totalorder %s335, %s336
    %p348 = scmp.eq.s32.totalorder %s32, 1
    %p349 = por %p347, %p348
    %p351 = scmp.ne.s32.totalorder %s336, %s350
    %p352 = scmp.eq.s32.totalorder %s32, 0
    %p353 = por %p351, %p352
    %s355 = sadd.s32 %s354, 1
    %p358 = scmp.eq.s32.totalorder %s26, 1
    %p359 = scmp.ne.s32.totalorder %s354, %s356
    %p360 = scmp.eq.s32.totalorder %s26, 0
    %p361 = por %p359, %p360
    %p362 = scmp.ne.s32.totalorder %s354, %s356
    %p363 = scmp.eq.s32.totalorder %s31, 1
    %p364 = por %p362, %p363
    %p365 = scmp.ne.s32.totalorder %s356, %s357
    %p366 = scmp.eq.s32.totalorder %s31, 0
    %p367 = por %p365, %p366
    %p368 = scmp.ne.s32.totalorder %s356, %s357
    %p369 = scmp.eq.s32.totalorder %s32, 1
    %p370 = por %p368, %p369
    %p372 = scmp.ne.s32.totalorder %s357, %s371
    %p373 = scmp.eq.s32.totalorder %s32, 0
    %p374 = por %p372, %p373
    %s376 = sadd.s32 %s375, 1
    %p379 = scmp.eq.s32.totalorder %s26, 1
    %p380 = scmp.ne.s32.totalorder %s375, %s377
    %p381 = scmp.eq.s32.totalorder %s26, 0
    %p382 = por %p380, %p381
    %p383 = scmp.ne.s32.totalorder %s375, %s377
    %p384 = scmp.eq.s32.totalorder %s31, 1
    %p385 = por %p383, %p384
    %p386 = scmp.ne.s32.totalorder %s377, %s378
    %p387 = scmp.eq.s32.totalorder %s31, 0
    %p388 = por %p386, %p387
    %p389 = scmp.ne.s32.totalorder %s377, %s378
    %p390 = scmp.eq.s32.totalorder %s32, 1
    %p391 = por %p389, %p390
    %p393 = scmp.ne.s32.totalorder %s378, %s392
    %p394 = scmp.eq.s32.totalorder %s32, 0
    %p395 = por %p393, %p394
    %s397 = sadd.s32 %s396, 1
    %p400 = scmp.eq.s32.totalorder %s26, 1
    %p401 = scmp.ne.s32.totalorder %s396, %s398
    %p402 = scmp.eq.s32.totalorder %s26, 0
    %p403 = por %p401, %p402
    %p404 = scmp.ne.s32.totalorder %s396, %s398
    %p405 = scmp.eq.s32.totalorder %s31, 1
    %p406 = por %p404, %p405
    %p407 = scmp.ne.s32.totalorder %s398, %s399
    %p408 = scmp.eq.s32.totalorder %s31, 0
    %p409 = por %p407, %p408
    %p410 = scmp.ne.s32.totalorder %s398, %s399
    %p411 = scmp.eq.s32.totalorder %s32, 1
    %p412 = por %p410, %p411
    %p414 = scmp.ne.s32.totalorder %s399, %s413
    %p415 = scmp.eq.s32.totalorder %s32, 0
    %p416 = por %p414, %p415
    %s418 = sadd.s32 %s417, 1
    %p421 = scmp.eq.s32.totalorder %s26, 1
    %p422 = scmp.ne.s32.totalorder %s417, %s419
    %p423 = scmp.eq.s32.totalorder %s26, 0
    %p424 = por %p422, %p423
    %p425 = scmp.ne.s32.totalorder %s417, %s419
    %p426 = scmp.eq.s32.totalorder %s31, 1
    %p427 = por %p425, %p426
    %p428 = scmp.ne.s32.totalorder %s419, %s420
    %p429 = scmp.eq.s32.totalorder %s31, 0
    %p430 = por %p428, %p429
    %p431 = scmp.ne.s32.totalorder %s419, %s420
    %p432 = scmp.eq.s32.totalorder %s32, 1
    %p433 = por %p431, %p432
    %p435 = scmp.ne.s32.totalorder %s420, %s434
    %p436 = scmp.eq.s32.totalorder %s32, 0
    %p437 = por %p435, %p436
    %s439 = sadd.s32 %s438, 1
    %p442 = scmp.eq.s32.totalorder %s26, 1
    %p443 = scmp.ne.s32.totalorder %s438, %s440
    %p444 = scmp.eq.s32.totalorder %s26, 0
    %p445 = por %p443, %p444
    %p446 = scmp.ne.s32.totalorder %s438, %s440
    %p447 = scmp.eq.s32.totalorder %s31, 1
    %p448 = por %p446, %p447
    %p449 = scmp.ne.s32.totalorder %s440, %s441
    %p450 = scmp.eq.s32.totalorder %s31, 0
    %p451 = por %p449, %p450
    %p452 = scmp.ne.s32.totalorder %s440, %s441
    %p453 = scmp.eq.s32.totalorder %s32, 1
    %p454 = por %p452, %p453
    %p456 = scmp.ne.s32.totalorder %s441, %s455
    %p457 = scmp.eq.s32.totalorder %s32, 0
    %p458 = por %p456, %p457
    %s459 = ssub.s32 %s26, %s33
    %p460 = scmp.eq.s32.totalorder %s459, 0
    %s462 = sadd.s32 %s461, 1
    %s463 = scalar_select %p460, %s461, %s462
    %p466 = pneg %p460
    %p467 = scmp.eq.s32.totalorder %s26, 1
    %p468 = por %p466, %p467
    %p469 = scmp.ne.s32.totalorder %s461, %s464
    %p470 = scmp.eq.s32.totalorder %s26, 0
    %p471 = por %p469, %p470
    %p472 = scmp.ne.s32.totalorder %s461, %s464
    %p473 = scmp.eq.s32.totalorder %s31, 1
    %p474 = por %p472, %p473
    %p475 = scmp.ne.s32.totalorder %s464, %s465
    %p476 = scmp.eq.s32.totalorder %s31, 0
    %p477 = por %p475, %p476
    %p478 = scmp.ne.s32.totalorder %s464, %s465
    %p479 = scmp.eq.s32.totalorder %s32, 1
    %p480 = por %p478, %p479
    %p482 = scmp.ne.s32.totalorder %s465, %s481
    %p483 = scmp.eq.s32.totalorder %s32, 0
    %p484 = por %p482, %p483
    %p485 = scmp.le.s32.totalorder 1, %s26
    %p486 = scmp.lt.s32.totalorder %s26, 3
    %p487 = pnand %p485, %p486
    %p488 = pneg %p487
    // Predicated region
    $region9: #{vit_forward.1} parent=5 // pred_check
      _
    $region10: #{vit_forward.1} parent=5 // pred_check_branch
      %490 = sbr.rel (%p487) target = $region12
    $region11: #{vit_forward.1} parent=5 // pred_region
      %s491 = ssub.s32 %s26, 1
      // Predicated region
      $region13: #{vit_forward.1} parent=11 // pred_check
        %p492 = pneg %p73
      $region14: #{vit_forward.1} parent=11 // pred_check_branch
        %494 = sbr.rel (%p492) target = $region16
      $region15: #{vit_forward.1} parent=11 // pred_region
        _
      $region16: #{vit_forward.1} parent=11 // pred_fallthru
        _
      // Predicated region
      $region17: #{vit_forward.1} parent=11 // pred_check
        %p495 = pneg %p94
      $region18: #{vit_forward.1} parent=11 // pred_check_branch
        %497 = sbr.rel (%p495) target = $region20
      $region19: #{vit_forward.1} parent=11 // pred_region
        _
      $region20: #{vit_forward.1} parent=11 // pred_fallthru
        _
      // Predicated region
      $region21: #{vit_forward.1} parent=11 // pred_check
        %p498 = pneg %p115
      $region22: #{vit_forward.1} parent=11 // pred_check_branch
        %500 = sbr.rel (%p498) target = $region24
      $region23: #{vit_forward.1} parent=11 // pred_region
        _
      $region24: #{vit_forward.1} parent=11 // pred_fallthru
        _
      // Predicated region
      $region25: #{vit_forward.1} parent=11 // pred_check
        %p501 = pneg %p136
      $region26: #{vit_forward.1} parent=11 // pred_check_branch
        %503 = sbr.rel (%p501) target = $region28
      $region27: #{vit_forward.1} parent=11 // pred_region
        _
      $region28: #{vit_forward.1} parent=11 // pred_fallthru
        _
      // Predicated region
      $region29: #{vit_forward.1} parent=11 // pred_check
        %p504 = pneg %p157
      $region30: #{vit_forward.1} parent=11 // pred_check_branch
        %506 = sbr.rel (%p504) target = $region32
      $region31: #{vit_forward.1} parent=11 // pred_region
        _
      $region32: #{vit_forward.1} parent=11 // pred_fallthru
        _
      // Predicated region
      $region33: #{vit_forward.1} parent=11 // pred_check
        %p507 = pneg %p178
      $region34: #{vit_forward.1} parent=11 // pred_check_branch
        %509 = sbr.rel (%p507) target = $region36
      $region35: #{vit_forward.1} parent=11 // pred_region
        _
      $region36: #{vit_forward.1} parent=11 // pred_fallthru
        _
      // Predicated region
      $region37: #{vit_forward.1} parent=11 // pred_check
        %p510 = pneg %p199
      $region38: #{vit_forward.1} parent=11 // pred_check_branch
        %512 = sbr.rel (%p510) target = $region40
      $region39: #{vit_forward.1} parent=11 // pred_region
        _
      $region40: #{vit_forward.1} parent=11 // pred_fallthru
        _
      // Predicated region
      $region41: #{vit_forward.1} parent=11 // pred_check
        %p513 = pneg %p220
      $region42: #{vit_forward.1} parent=11 // pred_check_branch
        %515 = sbr.rel (%p513) target = $region44
      $region43: #{vit_forward.1} parent=11 // pred_region
        _
      $region44: #{vit_forward.1} parent=11 // pred_fallthru
        _
      // Predicated region
      $region45: #{vit_forward.1} parent=11 // pred_check
        %p516 = pneg %p241
      $region46: #{vit_forward.1} parent=11 // pred_check_branch
        %518 = sbr.rel (%p516) target = $region48
      $region47: #{vit_forward.1} parent=11 // pred_region
        _
      $region48: #{vit_forward.1} parent=11 // pred_fallthru
        _
      // Predicated region
      $region49: #{vit_forward.1} parent=11 // pred_check
        %p519 = pneg %p262
      $region50: #{vit_forward.1} parent=11 // pred_check_branch
        %521 = sbr.rel (%p519) target = $region52
      $region51: #{vit_forward.1} parent=11 // pred_region
        _
      $region52: #{vit_forward.1} parent=11 // pred_fallthru
        _
      // Predicated region
      $region53: #{vit_forward.1} parent=11 // pred_check
        %p522 = pneg %p283
      $region54: #{vit_forward.1} parent=11 // pred_check_branch
        %524 = sbr.rel (%p522) target = $region56
      $region55: #{vit_forward.1} parent=11 // pred_region
        _
      $region56: #{vit_forward.1} parent=11 // pred_fallthru
        _
      // Predicated region
      $region57: #{vit_forward.1} parent=11 // pred_check
        %p525 = pneg %p304
      $region58: #{vit_forward.1} parent=11 // pred_check_branch
        %527 = sbr.rel (%p525) target = $region60
      $region59: #{vit_forward.1} parent=11 // pred_region
        _
      $region60: #{vit_forward.1} parent=11 // pred_fallthru
        _
      // Predicated region
      $region61: #{vit_forward.1} parent=11 // pred_check
        %p528 = pneg %p325
      $region62: #{vit_forward.1} parent=11 // pred_check_branch
        %530 = sbr.rel (%p528) target = $region64
      $region63: #{vit_forward.1} parent=11 // pred_region
        _
      $region64: #{vit_forward.1} parent=11 // pred_fallthru
        _
      // Predicated region
      $region65: #{vit_forward.1} parent=11 // pred_check
        %p531 = pneg %p346
      $region66: #{vit_forward.1} parent=11 // pred_check_branch
        %533 = sbr.rel (%p531) target = $region68
      $region67: #{vit_forward.1} parent=11 // pred_region
        _
      $region68: #{vit_forward.1} parent=11 // pred_fallthru
        _
      // Predicated region
      $region69: #{vit_forward.1} parent=11 // pred_check
        %p534 = pneg %p367
      $region70: #{vit_forward.1} parent=11 // pred_check_branch
        %536 = sbr.rel (%p534) target = $region72
      $region71: #{vit_forward.1} parent=11 // pred_region
        _
      $region72: #{vit_forward.1} parent=11 // pred_fallthru
        _
      // Predicated region
      $region73: #{vit_forward.1} parent=11 // pred_check
        %p537 = pneg %p388
      $region74: #{vit_forward.1} parent=11 // pred_check_branch
        %539 = sbr.rel (%p537) target = $region76
      $region75: #{vit_forward.1} parent=11 // pred_region
        _
      $region76: #{vit_forward.1} parent=11 // pred_fallthru
        _
      // Predicated region
      $region77: #{vit_forward.1} parent=11 // pred_check
        %p540 = pneg %p409
      $region78: #{vit_forward.1} parent=11 // pred_check_branch
        %542 = sbr.rel (%p540) target = $region80
      $region79: #{vit_forward.1} parent=11 // pred_region
        _
      $region80: #{vit_forward.1} parent=11 // pred_fallthru
        _
      // Predicated region
      $region81: #{vit_forward.1} parent=11 // pred_check
        %p543 = pneg %p430
      $region82: #{vit_forward.1} parent=11 // pred_check_branch
        %545 = sbr.rel (%p543) target = $region84
      $region83: #{vit_forward.1} parent=11 // pred_region
        _
      $region84: #{vit_forward.1} parent=11 // pred_fallthru
        _
      // Predicated region
      $region85: #{vit_forward.1} parent=11 // pred_check
        %p546 = pneg %p451
      $region86: #{vit_forward.1} parent=11 // pred_check_branch
        %548 = sbr.rel (%p546) target = $region88
      $region87: #{vit_forward.1} parent=11 // pred_region
        _
      $region88: #{vit_forward.1} parent=11 // pred_fallthru
        _
    $region12: #{vit_forward.1} parent=5 // pred_fallthru
      _
    %p549 = scmp.lt.s32.totalorder %s26, 2
    // Predicated region
    $region89: #{vit_forward.1} parent=5 // pred_check
      %p550 = pneg %p549
    $region90: #{vit_forward.1} parent=5 // pred_check_branch
      %552 = sbr.rel (%p550) target = $region92
    $region91: #{vit_forward.1} parent=5 // pred_region
      // Predicated region
      $region93: #{vit_forward.1} parent=91 // pred_check
        %p553 = pneg %p46
      $region94: #{vit_forward.1} parent=91 // pred_check_branch
        %555 = sbr.rel (%p553) target = $region96
      $region95: #{vit_forward.1} parent=91 // pred_region
        %s556 = smul.u32 32, %s26
        %p557 = scmp.lt.s32.totalorder %s556, 63
        %s558 = scalar_select %p557, %s556, 63
        %s559 = smul.addr %s558, 4
        %s560 = scalar_lea.vmem %s0, %s559
        %s561 = smul.u32 32, %s26
      $region96: #{vit_forward.1} parent=91 // pred_fallthru
        _
    $region92: #{vit_forward.1} parent=5 // pred_fallthru
      _
    %p562 = scmp.le.s32.totalorder 1, %s26
    %p563 = scmp.lt.s32.totalorder %s26, 3
    %p564 = pnand %p562, %p563
    %p565 = pneg %p564
    // Predicated region
    $region97: #{vit_forward.1} parent=5 // pred_check
      _
    $region98: #{vit_forward.1} parent=5 // pred_check_branch
      %567 = sbr.rel (%p564) target = $region100
    $region99: #{vit_forward.1} parent=5 // pred_region
      %s568 = ssub.s32 %s26, 1
      %s569 = smul.u32 32, %s31
      %p570 = scmp.lt.s32.totalorder %s569, 63
      %s571 = scalar_select %p570, %s569, 63
      %s572 = smul.addr %s571, 4
      %s573 = scalar_lea.vmem %s0, %s572
      %p574 = pneg %p52
      %p575 = pneg %p49
      %p576 = pneg %p73
      %p577 = pneg %p70
      %p578 = pneg %p94
      %p579 = pneg %p91
      %p580 = pneg %p115
      %p581 = pneg %p112
      %p582 = pneg %p136
      %p583 = pneg %p133
      %p584 = pneg %p157
      %p585 = pneg %p154
      %p586 = pneg %p178
      %p587 = pneg %p175
      %p588 = pneg %p199
      %p589 = pneg %p196
      %p590 = pneg %p220
      %p591 = pneg %p217
      %p592 = pneg %p241
      %p593 = pneg %p238
      %p594 = pneg %p262
      %p595 = pneg %p259
      %p596 = pneg %p283
      %p597 = pneg %p280
      %p598 = pneg %p304
      %p599 = pneg %p301
      %p600 = pneg %p325
      %p601 = pneg %p322
      %p602 = pneg %p346
      %p603 = pneg %p343
      %p604 = pneg %p367
      %p605 = pneg %p364
      %p606 = pneg %p388
      %p607 = pneg %p385
      %p608 = pneg %p409
      %p609 = pneg %p406
      %p610 = pneg %p430
      %p611 = pneg %p427
      %p612 = pneg %p451
      %p613 = pneg %p448
      %p614 = pneg %p477
      %p615 = pneg %p474
      %p616 = scmp.lt.s32.totalorder %s31, 1
      %s617 = scalar_select %p616, %s31, 1
      %s618 = smul.addr %s617, 8
      %s619 = scalar_lea.vmem %s20, %s618
      %s620 = smul.u32 32, %s31
      %p621 = scmp.lt.s32.totalorder %s620, 63
      %s622 = scalar_select %p621, %s620, 63
      %s623 = smul.addr %s622, 4
      %s624 = scalar_lea.vmem %s0, %s623
      %s625 = smul.u32 32, %s31
      %p626 = scmp.lt.s32.totalorder %s31, 1
      %s627 = scalar_select %p626, %s31, 1
      %s628 = smul.addr %s627, 8
      %s629 = scalar_lea.vmem %s20, %s628
      %v631 = vld [vmem:[%s624] sm:$0xf]
      %v632 = vld [vmem:[%s624 + $0x4] sm:$0xf]
      %v633 = vld [vmem:[%s624 + $0x8] sm:$0xf]
      %v634 = vld [vmem:[%s624 + $0xc] sm:$0xf]
      %v635 = vld [vmem:[%s624 + $0x10] sm:$0xf]
      %v636 = vld [vmem:[%s624 + $0x14] sm:$0xf]
      %v637 = vld [vmem:[%s624 + $0x18] sm:$0xf]
      %v638 = vld [vmem:[%s624 + $0x1c] sm:$0xf]
      %v639 = vld [vmem:[%s624 + $0x20] sm:$0xf]
      %v640 = vld [vmem:[%s624 + $0x24] sm:$0xf]
      %v641 = vld [vmem:[%s624 + $0x28] sm:$0xf]
      %v642 = vld [vmem:[%s624 + $0x2c] sm:$0xf]
      %v643 = vld [vmem:[%s624 + $0x30] sm:$0xf]
      %v644 = vld [vmem:[%s624 + $0x34] sm:$0xf]
      %v645 = vld [vmem:[%s624 + $0x38] sm:$0xf]
      %v646 = vld [vmem:[%s624 + $0x3c] sm:$0xf]
      %v647 = vld [vmem:[%s624 + $0x40] sm:$0xf]
      %v648 = vld [vmem:[%s624 + $0x44] sm:$0xf]
      %v649 = vld [vmem:[%s624 + $0x48] sm:$0xf]
      %v650 = vld [vmem:[%s624 + $0x4c] sm:$0xf]
      %v651 = vld [vmem:[%s624 + $0x50] sm:$0xf]
      %v652 = vld [vmem:[%s624 + $0x54] sm:$0xf]
      %v653 = vld [vmem:[%s624 + $0x58] sm:$0xf]
      %v654 = vld [vmem:[%s624 + $0x5c] sm:$0xf]
      %v655 = vld [vmem:[%s624 + $0x60] sm:$0xf]
      %v656 = vld [vmem:[%s624 + $0x64] sm:$0xf]
      %v657 = vld [vmem:[%s624 + $0x68] sm:$0xf]
      %v658 = vld [vmem:[%s624 + $0x6c] sm:$0xf]
      %v659 = vld [vmem:[%s624 + $0x70] sm:$0xf]
      %v660 = vld [vmem:[%s624 + $0x74] sm:$0xf]
      %v661 = vld [vmem:[%s624 + $0x78] sm:$0xf]
      %v662 = vld [vmem:[%s624 + $0x7c] sm:$0xf]
      %v663 = vld [vmem:[%s2] sm:$0xf]
      %v664 = vld [vmem:[%s2 + $0x4] sm:$0xf]
      %v665 = vld [vmem:[%s2 + $0x8] sm:$0xf]
      %v666 = vld [vmem:[%s2 + $0xc] sm:$0xf]
      %v667 = vld [vmem:[%s2 + $0x10] sm:$0xf]
      %v668 = vld [vmem:[%s2 + $0x14] sm:$0xf]
      %v669 = vld [vmem:[%s2 + $0x18] sm:$0xf]
      %v670 = vld [vmem:[%s2 + $0x1c] sm:$0xf]
      %v671 = vld [vmem:[%s2 + $0x20] sm:$0xf]
      %v672 = vld [vmem:[%s2 + $0x24] sm:$0xf]
      %v673 = vld [vmem:[%s2 + $0x28] sm:$0xf]
      %v674 = vld [vmem:[%s2 + $0x2c] sm:$0xf]
      %v675 = vld [vmem:[%s2 + $0x30] sm:$0xf]
      %v676 = vld [vmem:[%s2 + $0x34] sm:$0xf]
      %v677 = vld [vmem:[%s2 + $0x38] sm:$0xf]
      %v678 = vld [vmem:[%s2 + $0x3c] sm:$0xf]
      %v679 = vld [vmem:[%s3] sm:$0x1]
      %v681 = vlaneseq
      %v682 = vshrl.u32 %v681, 7
      %v683 = vsub.s32 0, %v682
      %v684 = vrot.slane %v679, %v683
      %v718 = vunpack.c.l.b16 %v631
      %v719 = vunpack.c.l.b16 %v632
      %v720 = vunpack.c.l.b16 %v633
      %v721 = vunpack.c.l.b16 %v634
      %v722 = vunpack.c.l.b16 %v635
      %v723 = vunpack.c.l.b16 %v636
      %v724 = vunpack.c.l.b16 %v637
      %v725 = vunpack.c.l.b16 %v638
      %v726 = vunpack.c.l.b16 %v639
      %v727 = vunpack.c.l.b16 %v640
      %v728 = vunpack.c.l.b16 %v641
      %v729 = vunpack.c.l.b16 %v642
      %v730 = vunpack.c.l.b16 %v643
      %v731 = vunpack.c.l.b16 %v644
      %v732 = vunpack.c.l.b16 %v645
      %v733 = vunpack.c.l.b16 %v646
      %v734 = vunpack.c.l.b16 %v647
      %v735 = vunpack.c.l.b16 %v648
      %v736 = vunpack.c.l.b16 %v649
      %v737 = vunpack.c.l.b16 %v650
      %v738 = vunpack.c.l.b16 %v651
      %v739 = vunpack.c.l.b16 %v652
      %v740 = vunpack.c.l.b16 %v653
      %v741 = vunpack.c.l.b16 %v654
      %v742 = vunpack.c.l.b16 %v655
      %v743 = vunpack.c.l.b16 %v656
      %v744 = vunpack.c.l.b16 %v657
      %v745 = vunpack.c.l.b16 %v658
      %v746 = vunpack.c.l.b16 %v659
      %v747 = vunpack.c.l.b16 %v660
      %v748 = vunpack.c.l.b16 %v661
      %v749 = vunpack.c.l.b16 %v662
      %v750 = vpack.c.b16 %v719, %v718
      %v751 = vpack.c.b16 %v721, %v720
      %v752 = vpack.c.b16 %v723, %v722
      %v753 = vpack.c.b16 %v725, %v724
      %v754 = vpack.c.b16 %v727, %v726
      %v755 = vpack.c.b16 %v729, %v728
      %v756 = vpack.c.b16 %v731, %v730
      %v757 = vpack.c.b16 %v733, %v732
      %v758 = vpack.c.b16 %v735, %v734
      %v759 = vpack.c.b16 %v737, %v736
      %v760 = vpack.c.b16 %v739, %v738
      %v761 = vpack.c.b16 %v741, %v740
      %v762 = vpack.c.b16 %v743, %v742
      %v763 = vpack.c.b16 %v745, %v744
      %v764 = vpack.c.b16 %v747, %v746
      %v765 = vpack.c.b16 %v749, %v748
      %v798 = vunpack.c.l.b16 %v663
      %v799 = vunpack.c.l.b16 %v664
      %v800 = vunpack.c.l.b16 %v665
      %v801 = vunpack.c.l.b16 %v666
      %v802 = vunpack.c.l.b16 %v667
      %v803 = vunpack.c.l.b16 %v668
      %v804 = vunpack.c.l.b16 %v669
      %v805 = vunpack.c.l.b16 %v670
      %v806 = vunpack.c.l.b16 %v671
      %v807 = vunpack.c.l.b16 %v672
      %v808 = vunpack.c.l.b16 %v673
      %v809 = vunpack.c.l.b16 %v674
      %v810 = vunpack.c.l.b16 %v675
      %v811 = vunpack.c.l.b16 %v676
      %v812 = vunpack.c.l.b16 %v677
      %v813 = vunpack.c.l.b16 %v678
      %v814 = vpack.c.b16 %v799, %v798
      %v815 = vpack.c.b16 %v801, %v800
      %v816 = vpack.c.b16 %v803, %v802
      %v817 = vpack.c.b16 %v805, %v804
      %v818 = vpack.c.b16 %v807, %v806
      %v819 = vpack.c.b16 %v809, %v808
      %v820 = vpack.c.b16 %v811, %v810
      %v821 = vpack.c.b16 %v813, %v812
      %830 = vmatprep.subr.bf16.mxu0 0
      %831 = vmatpush1.bf16.msra.mxu0 %v821
      %832 = vmatprep.subr.bf16.mxu0 0
      %833 = vmatpush1.bf16.msra.mxu0 %v820
      %834 = vmatprep.subr.bf16.mxu0 0
      %835 = vmatpush1.bf16.msra.mxu0 %v819
      %836 = vmatprep.subr.bf16.mxu0 0
      %837 = vmatpush1.bf16.msra.mxu0 %v818
      %838 = vmatprep.subr.bf16.mxu0 0
      %839 = vmatpush1.bf16.msra.mxu0 %v817
      %840 = vmatprep.subr.bf16.mxu0 0
      %841 = vmatpush1.bf16.msra.mxu0 %v816
      %842 = vmatprep.subr.bf16.mxu0 0
      %843 = vmatpush1.bf16.msra.mxu0 %v815
      %844 = vmatprep.subr.bf16.mxu0 0
      %845 = vmatpush1.bf16.msra.mxu0 %v814
      %846 = vmatprep.subr.bf16.mxu0 0
      %847 = vmatpush2.bf16.msra.mxu0 0
      %848 = vmatprep.subr.bf16.mxu0 0
      %849 = vmatpush2.bf16.msra.mxu0 0
      %850 = vmatprep.subr.bf16.mxu0 0
      %851 = vmatpush2.bf16.msra.mxu0 0
      %852 = vmatprep.subr.bf16.mxu0 0
      %853 = vmatpush2.bf16.msra.mxu0 0
      %854 = vmatprep.subr.bf16.mxu0 0
      %855 = vmatpush2.bf16.msra.mxu0 0
      %856 = vmatprep.subr.bf16.mxu0 0
      %857 = vmatpush2.bf16.msra.mxu0 0
      %858 = vmatprep.subr.bf16.mxu0 0
      %859 = vmatpush2.bf16.msra.mxu0 0
      %860 = vmatprep.subr.bf16.mxu0 0
      %861 = vmatpush2.bf16.msra.mxu0 0
      %862 = vmatprep.mubr.bf16.mxu0 0
      %863 = vmatmul.mubr.bf16.gmra.mxu0 %v750
      %v864 = vpop.f32.mrf.mxu0
      %v865 = vadd.f32 %v684, %v864
      %v866 = vpop.f32.mrf.mxu0
      %v867 = vpop.f32.mrf.mxu0
      %v868 = vadd.f32 %v684, %v867
      %v869 = vpop.f32.mrf.mxu0
      %870 = vmatprep.mubr.bf16.mxu0 0
      %871 = vmatmul.mubr.bf16.gmra.mxu0 %v751
      %v872 = vpop.f32.mrf.mxu0
      %v873 = vadd.f32 %v684, %v872
      %v874 = vpop.f32.mrf.mxu0
      %v875 = vpop.f32.mrf.mxu0
      %v876 = vadd.f32 %v684, %v875
      %v877 = vpop.f32.mrf.mxu0
      %878 = vmatprep.mubr.bf16.mxu0 0
      %879 = vmatmul.mubr.bf16.gmra.mxu0 %v752
      %v880 = vpop.f32.mrf.mxu0
      %v881 = vadd.f32 %v684, %v880
      %v882 = vpop.f32.mrf.mxu0
      %v883 = vpop.f32.mrf.mxu0
      %v884 = vadd.f32 %v684, %v883
      %v885 = vpop.f32.mrf.mxu0
      %886 = vmatprep.mubr.bf16.mxu0 0
      %887 = vmatmul.mubr.bf16.gmra.mxu0 %v753
      %v888 = vpop.f32.mrf.mxu0
      %v889 = vadd.f32 %v684, %v888
      %v890 = vpop.f32.mrf.mxu0
      %v891 = vpop.f32.mrf.mxu0
      %v892 = vadd.f32 %v684, %v891
      %v893 = vpop.f32.mrf.mxu0
      %894 = vmatprep.mubr.bf16.mxu0 0
      %895 = vmatmul.mubr.bf16.gmra.mxu0 %v754
      %v896 = vpop.f32.mrf.mxu0
      %v897 = vadd.f32 %v684, %v896
      %v898 = vpop.f32.mrf.mxu0
      %v899 = vpop.f32.mrf.mxu0
      %v900 = vadd.f32 %v684, %v899
      %v901 = vpop.f32.mrf.mxu0
      %902 = vmatprep.mubr.bf16.mxu0 0
      %903 = vmatmul.mubr.bf16.gmra.mxu0 %v755
      %v904 = vpop.f32.mrf.mxu0
      %v905 = vadd.f32 %v684, %v904
      %v906 = vpop.f32.mrf.mxu0
      %v907 = vpop.f32.mrf.mxu0
      %v908 = vadd.f32 %v684, %v907
      %v909 = vpop.f32.mrf.mxu0
      %910 = vmatprep.mubr.bf16.mxu0 0
      %911 = vmatmul.mubr.bf16.gmra.mxu0 %v756
      %v912 = vpop.f32.mrf.mxu0
      %v913 = vadd.f32 %v684, %v912
      %v914 = vpop.f32.mrf.mxu0
      %v915 = vpop.f32.mrf.mxu0
      %v916 = vadd.f32 %v684, %v915
      %v917 = vpop.f32.mrf.mxu0
      %918 = vmatprep.mubr.bf16.mxu0 0
      %919 = vmatmul.mubr.bf16.gmra.mxu0 %v757
      %v920 = vpop.f32.mrf.mxu0
      %v921 = vadd.f32 %v684, %v920
      %v922 = vpop.f32.mrf.mxu0
      %v923 = vpop.f32.mrf.mxu0
      %v924 = vadd.f32 %v684, %v923
      %v925 = vpop.f32.mrf.mxu0
      %926 = vmatprep.mubr.bf16.mxu0 0
      %927 = vmatmul.mubr.bf16.gmra.mxu0 %v758
      %v928 = vpop.f32.mrf.mxu0
      %v929 = vadd.f32 %v684, %v928
      %v930 = vpop.f32.mrf.mxu0
      %v931 = vpop.f32.mrf.mxu0
      %v932 = vadd.f32 %v684, %v931
      %v933 = vpop.f32.mrf.mxu0
      %934 = vmatprep.mubr.bf16.mxu0 0
      %935 = vmatmul.mubr.bf16.gmra.mxu0 %v759
      %v936 = vpop.f32.mrf.mxu0
      %v937 = vadd.f32 %v684, %v936
      %v938 = vpop.f32.mrf.mxu0
      %v939 = vpop.f32.mrf.mxu0
      %v940 = vadd.f32 %v684, %v939
      %v941 = vpop.f32.mrf.mxu0
      %942 = vmatprep.mubr.bf16.mxu0 0
      %943 = vmatmul.mubr.bf16.gmra.mxu0 %v760
      %v944 = vpop.f32.mrf.mxu0
      %v945 = vadd.f32 %v684, %v944
      %v946 = vpop.f32.mrf.mxu0
      %v947 = vpop.f32.mrf.mxu0
      %v948 = vadd.f32 %v684, %v947
      %v949 = vpop.f32.mrf.mxu0
      %950 = vmatprep.mubr.bf16.mxu0 0
      %951 = vmatmul.mubr.bf16.gmra.mxu0 %v761
      %v952 = vpop.f32.mrf.mxu0
      %v953 = vadd.f32 %v684, %v952
      %v954 = vpop.f32.mrf.mxu0
      %v955 = vpop.f32.mrf.mxu0
      %v956 = vadd.f32 %v684, %v955
      %v957 = vpop.f32.mrf.mxu0
      %958 = vmatprep.mubr.bf16.mxu0 0
      %959 = vmatmul.mubr.bf16.gmra.mxu0 %v762
      %v960 = vpop.f32.mrf.mxu0
      %v961 = vadd.f32 %v684, %v960
      %v962 = vpop.f32.mrf.mxu0
      %v963 = vpop.f32.mrf.mxu0
      %v964 = vadd.f32 %v684, %v963
      %v965 = vpop.f32.mrf.mxu0
      %966 = vmatprep.mubr.bf16.mxu0 0
      %967 = vmatmul.mubr.bf16.gmra.mxu0 %v763
      %v968 = vpop.f32.mrf.mxu0
      %v969 = vadd.f32 %v684, %v968
      %v970 = vpop.f32.mrf.mxu0
      %v971 = vpop.f32.mrf.mxu0
      %v972 = vadd.f32 %v684, %v971
      %v973 = vpop.f32.mrf.mxu0
      %974 = vmatprep.mubr.bf16.mxu0 0
      %975 = vmatmul.mubr.bf16.gmra.mxu0 %v764
      %v976 = vpop.f32.mrf.mxu0
      %v977 = vadd.f32 %v684, %v976
      %v978 = vpop.f32.mrf.mxu0
      %v979 = vpop.f32.mrf.mxu0
      %v980 = vadd.f32 %v684, %v979
      %v981 = vpop.f32.mrf.mxu0
      %982 = vmatprep.mubr.bf16.mxu0 0
      %983 = vmatmul.mubr.bf16.gmra.mxu0 %v765
      %v984 = vpop.f32.mrf.mxu0
      %v985 = vadd.f32 %v684, %v984
      %v986 = vpop.f32.mrf.mxu0
      %v987 = vpop.f32.mrf.mxu0
      %v988 = vadd.f32 %v684, %v987
      %v989 = vpop.f32.mrf.mxu0
      %990 = vdwg.mxu0
      %v991 = vld [vmem:[%s1] sm:$0xff]
      %v992 = vld [vmem:[%s1 + $0x8] sm:$0xff]
      %v993 = vld [vmem:[%s1 + $0x10] sm:$0xff]
      %v994 = vld [vmem:[%s1 + $0x18] sm:$0xff]
      %v995 = vld [vmem:[%s1 + $0x20] sm:$0xff]
      %v996 = vld [vmem:[%s1 + $0x28] sm:$0xff]
      %v997 = vld [vmem:[%s1 + $0x30] sm:$0xff]
      %v998 = vld [vmem:[%s1 + $0x38] sm:$0xff]
      %v999 = vld [vmem:[%s1 + $0x40] sm:$0xff]
      %v1000 = vld [vmem:[%s1 + $0x48] sm:$0xff]
      %v1001 = vld [vmem:[%s1 + $0x50] sm:$0xff]
      %v1002 = vld [vmem:[%s1 + $0x58] sm:$0xff]
      %v1003 = vld [vmem:[%s1 + $0x60] sm:$0xff]
      %v1004 = vld [vmem:[%s1 + $0x68] sm:$0xff]
      %v1005 = vld [vmem:[%s1 + $0x70] sm:$0xff]
      %v1006 = vld [vmem:[%s1 + $0x78] sm:$0xff]
      %v1007 = vld [vmem:[%s1 + $0x80] sm:$0xff]
      %v1008 = vld [vmem:[%s1 + $0x88] sm:$0xff]
      %v1009 = vld [vmem:[%s1 + $0x90] sm:$0xff]
      %v1010 = vld [vmem:[%s1 + $0x98] sm:$0xff]
      %v1011 = vld [vmem:[%s1 + $0xa0] sm:$0xff]
      %v1012 = vld [vmem:[%s1 + $0xa8] sm:$0xff]
      %v1013 = vld [vmem:[%s1 + $0xb0] sm:$0xff]
      %v1014 = vld [vmem:[%s1 + $0xb8] sm:$0xff]
      %v1015 = vld [vmem:[%s1 + $0xc0] sm:$0xff]
      %v1016 = vld [vmem:[%s1 + $0xc8] sm:$0xff]
      %v1017 = vld [vmem:[%s1 + $0xd0] sm:$0xff]
      %v1018 = vld [vmem:[%s1 + $0xd8] sm:$0xff]
      %v1019 = vld [vmem:[%s1 + $0xe0] sm:$0xff]
      %v1020 = vld [vmem:[%s1 + $0xe8] sm:$0xff]
      %v1021 = vld [vmem:[%s1 + $0xf0] sm:$0xff]
      %v1022 = vld [vmem:[%s1 + $0xf8] sm:$0xff]
      %v1023 = vadd.f32 %v865, %v991
      %v1024 = vadd.f32 %v868, %v992
      %v1025 = vadd.f32 %v873, %v993
      %v1026 = vadd.f32 %v876, %v994
      %v1027 = vadd.f32 %v881, %v995
      %v1028 = vadd.f32 %v884, %v996
      %v1029 = vadd.f32 %v889, %v997
      %v1030 = vadd.f32 %v892, %v998
      %v1031 = vadd.f32 %v897, %v999
      %v1032 = vadd.f32 %v900, %v1000
      %v1033 = vadd.f32 %v905, %v1001
      %v1034 = vadd.f32 %v908, %v1002
      %v1035 = vadd.f32 %v913, %v1003
      %v1036 = vadd.f32 %v916, %v1004
      %v1037 = vadd.f32 %v921, %v1005
      %v1038 = vadd.f32 %v924, %v1006
      %v1039 = vadd.f32 %v929, %v1007
      %v1040 = vadd.f32 %v932, %v1008
      %v1041 = vadd.f32 %v937, %v1009
      %v1042 = vadd.f32 %v940, %v1010
      %v1043 = vadd.f32 %v945, %v1011
      %v1044 = vadd.f32 %v948, %v1012
      %v1045 = vadd.f32 %v953, %v1013
      %v1046 = vadd.f32 %v956, %v1014
      %v1047 = vadd.f32 %v961, %v1015
      %v1048 = vadd.f32 %v964, %v1016
      %v1049 = vadd.f32 %v969, %v1017
      %v1050 = vadd.f32 %v972, %v1018
      %v1051 = vadd.f32 %v977, %v1019
      %v1052 = vadd.f32 %v980, %v1020
      %v1053 = vadd.f32 %v985, %v1021
      %v1054 = vadd.f32 %v988, %v1022
      %1055 = vst [vmem:[#allocation2] sm:$0xff] %v1023
      %1056 = vst [vmem:[#allocation2 + $0x8] sm:$0xff] %v1024
      %1057 = vst [vmem:[#allocation2 + $0x10] sm:$0xff] %v1025
      %1058 = vst [vmem:[#allocation2 + $0x18] sm:$0xff] %v1026
      %1059 = vst [vmem:[#allocation2 + $0x20] sm:$0xff] %v1027
      %1060 = vst [vmem:[#allocation2 + $0x28] sm:$0xff] %v1028
      %1061 = vst [vmem:[#allocation2 + $0x30] sm:$0xff] %v1029
      %1062 = vst [vmem:[#allocation2 + $0x38] sm:$0xff] %v1030
      %1063 = vst [vmem:[#allocation2 + $0x40] sm:$0xff] %v1031
      %1064 = vst [vmem:[#allocation2 + $0x48] sm:$0xff] %v1032
      %1065 = vst [vmem:[#allocation2 + $0x50] sm:$0xff] %v1033
      %1066 = vst [vmem:[#allocation2 + $0x58] sm:$0xff] %v1034
      %1067 = vst [vmem:[#allocation2 + $0x60] sm:$0xff] %v1035
      %1068 = vst [vmem:[#allocation2 + $0x68] sm:$0xff] %v1036
      %1069 = vst [vmem:[#allocation2 + $0x70] sm:$0xff] %v1037
      %1070 = vst [vmem:[#allocation2 + $0x78] sm:$0xff] %v1038
      %1071 = vst [vmem:[#allocation2 + $0x80] sm:$0xff] %v1039
      %1072 = vst [vmem:[#allocation2 + $0x88] sm:$0xff] %v1040
      %1073 = vst [vmem:[#allocation2 + $0x90] sm:$0xff] %v1041
      %1074 = vst [vmem:[#allocation2 + $0x98] sm:$0xff] %v1042
      %1075 = vst [vmem:[#allocation2 + $0xa0] sm:$0xff] %v1043
      %1076 = vst [vmem:[#allocation2 + $0xa8] sm:$0xff] %v1044
      %1077 = vst [vmem:[#allocation2 + $0xb0] sm:$0xff] %v1045
      %1078 = vst [vmem:[#allocation2 + $0xb8] sm:$0xff] %v1046
      %1079 = vst [vmem:[#allocation2 + $0xc0] sm:$0xff] %v1047
      %1080 = vst [vmem:[#allocation2 + $0xc8] sm:$0xff] %v1048
      %1081 = vst [vmem:[#allocation2 + $0xd0] sm:$0xff] %v1049
      %1082 = vst [vmem:[#allocation2 + $0xd8] sm:$0xff] %v1050
      %1083 = vst [vmem:[#allocation2 + $0xe0] sm:$0xff] %v1051
      %1084 = vst [vmem:[#allocation2 + $0xe8] sm:$0xff] %v1052
      %1085 = vst [vmem:[#allocation2 + $0xf0] sm:$0xff] %v1053
      %1086 = vst [vmem:[#allocation2 + $0xf8] sm:$0xff] %v1054
      %v1087 = vlaneseq
      %v1088 = vand.u32 %v1087, 127
      %vm1089 = vcmp.lt.s32.totalorder %v1088, 17
      %v1090 = vsel %vm1089, 0.0, -1e+30
      %v1091 = vld [vmem:[#allocation2] sm:$0xff]
      %v1092 = vld [vmem:[#allocation2 + $0x8] sm:$0xff]
      %v1093 = vld [vmem:[#allocation2 + $0x10] sm:$0xff]
      %v1094 = vld [vmem:[#allocation2 + $0x18] sm:$0xff]
      %v1095 = vld [vmem:[#allocation2 + $0x20] sm:$0xff]
      %v1096 = vld [vmem:[#allocation2 + $0x28] sm:$0xff]
      %v1097 = vld [vmem:[#allocation2 + $0x30] sm:$0xff]
      %v1098 = vld [vmem:[#allocation2 + $0x38] sm:$0xff]
      %v1099 = vld [vmem:[#allocation2 + $0x40] sm:$0xff]
      %v1100 = vld [vmem:[#allocation2 + $0x48] sm:$0xff]
      %v1101 = vld [vmem:[#allocation2 + $0x50] sm:$0xff]
      %v1102 = vld [vmem:[#allocation2 + $0x58] sm:$0xff]
      %v1103 = vld [vmem:[#allocation2 + $0x60] sm:$0xff]
      %v1104 = vld [vmem:[#allocation2 + $0x68] sm:$0xff]
      %v1105 = vld [vmem:[#allocation2 + $0x70] sm:$0xff]
      %v1106 = vld [vmem:[#allocation2 + $0x78] sm:$0xff]
      %v1107 = vld [vmem:[#allocation2 + $0x80] sm:$0xff]
      %v1108 = vld [vmem:[#allocation2 + $0x88] sm:$0xff]
      %v1109 = vld [vmem:[#allocation2 + $0x90] sm:$0xff]
      %v1110 = vld [vmem:[#allocation2 + $0x98] sm:$0xff]
      %v1111 = vld [vmem:[#allocation2 + $0xa0] sm:$0xff]
      %v1112 = vld [vmem:[#allocation2 + $0xa8] sm:$0xff]
      %v1113 = vld [vmem:[#allocation2 + $0xb0] sm:$0xff]
      %v1114 = vld [vmem:[#allocation2 + $0xb8] sm:$0xff]
      %v1115 = vld [vmem:[#allocation2 + $0xc0] sm:$0xff]
      %v1116 = vld [vmem:[#allocation2 + $0xc8] sm:$0xff]
      %v1117 = vld [vmem:[#allocation2 + $0xd0] sm:$0xff]
      %v1118 = vld [vmem:[#allocation2 + $0xd8] sm:$0xff]
      %v1119 = vld [vmem:[#allocation2 + $0xe0] sm:$0xff]
      %v1120 = vld [vmem:[#allocation2 + $0xe8] sm:$0xff]
      %v1121 = vld [vmem:[#allocation2 + $0xf0] sm:$0xff]
      %v1122 = vld [vmem:[#allocation2 + $0xf8] sm:$0xff]
      %v1123 = vld [vmem:[%s4] sm:$0x1]
      %v1124 = vld [vmem:[%s5] sm:$0x1]
      %1125 = vadd.xlane.f32.xlu0 %v1091
      %v1126 = vpop.xlane.xlu0 %1125
      %1127 = vadd.xlane.f32.xlu0 %v1092
      %v1128 = vpop.xlane.xlu0 %1127
      %1129 = vadd.xlane.f32.xlu0 %v1093
      %v1130 = vpop.xlane.xlu0 %1129
      %1131 = vadd.xlane.f32.xlu0 %v1094
      %v1132 = vpop.xlane.xlu0 %1131
      %1133 = vadd.xlane.f32.xlu0 %v1095
      %v1134 = vpop.xlane.xlu0 %1133
      %1135 = vadd.xlane.f32.xlu0 %v1096
      %v1136 = vpop.xlane.xlu0 %1135
      %1137 = vadd.xlane.f32.xlu0 %v1097
      %v1138 = vpop.xlane.xlu0 %1137
      %1139 = vadd.xlane.f32.xlu0 %v1098
      %v1140 = vpop.xlane.xlu0 %1139
      %1141 = vadd.xlane.f32.xlu0 %v1099
      %v1142 = vpop.xlane.xlu0 %1141
      %1143 = vadd.xlane.f32.xlu0 %v1100
      %v1144 = vpop.xlane.xlu0 %1143
      %1145 = vadd.xlane.f32.xlu0 %v1101
      %v1146 = vpop.xlane.xlu0 %1145
      %1147 = vadd.xlane.f32.xlu0 %v1102
      %v1148 = vpop.xlane.xlu0 %1147
      %1149 = vadd.xlane.f32.xlu0 %v1103
      %v1150 = vpop.xlane.xlu0 %1149
      %1151 = vadd.xlane.f32.xlu0 %v1104
      %v1152 = vpop.xlane.xlu0 %1151
      %1153 = vadd.xlane.f32.xlu0 %v1105
      %v1154 = vpop.xlane.xlu0 %1153
      %1155 = vadd.xlane.f32.xlu0 %v1106
      %v1156 = vpop.xlane.xlu0 %1155
      %1157 = vadd.xlane.f32.xlu0 %v1107
      %v1158 = vpop.xlane.xlu0 %1157
      %1159 = vadd.xlane.f32.xlu0 %v1108
      %v1160 = vpop.xlane.xlu0 %1159
      %1161 = vadd.xlane.f32.xlu0 %v1109
      %v1162 = vpop.xlane.xlu0 %1161
      %1163 = vadd.xlane.f32.xlu0 %v1110
      %v1164 = vpop.xlane.xlu0 %1163
      %1165 = vadd.xlane.f32.xlu0 %v1111
      %v1166 = vpop.xlane.xlu0 %1165
      %1167 = vadd.xlane.f32.xlu0 %v1112
      %v1168 = vpop.xlane.xlu0 %1167
      %1169 = vadd.xlane.f32.xlu0 %v1113
      %v1170 = vpop.xlane.xlu0 %1169
      %1171 = vadd.xlane.f32.xlu0 %v1114
      %v1172 = vpop.xlane.xlu0 %1171
      %1173 = vadd.xlane.f32.xlu0 %v1115
      %v1174 = vpop.xlane.xlu0 %1173
      %1175 = vadd.xlane.f32.xlu0 %v1116
      %v1176 = vpop.xlane.xlu0 %1175
      %1177 = vadd.xlane.f32.xlu0 %v1117
      %v1178 = vpop.xlane.xlu0 %1177
      %1179 = vadd.xlane.f32.xlu0 %v1118
      %v1180 = vpop.xlane.xlu0 %1179
      %1181 = vadd.xlane.f32.xlu0 %v1119
      %v1182 = vpop.xlane.xlu0 %1181
      %1183 = vadd.xlane.f32.xlu0 %v1120
      %v1184 = vpop.xlane.xlu0 %1183
      %1185 = vadd.xlane.f32.xlu0 %v1121
      %v1186 = vpop.xlane.xlu0 %1185
      %1187 = vadd.xlane.f32.xlu0 %v1122
      %v1188 = vpop.xlane.xlu0 %1187
      %v1189 = vrcp.pop 128.0
      %v1190 = vmul.f32 %v1126, %v1189
      %v1191 = vmul.f32 %v1128, %v1189
      %v1192 = vmul.f32 %v1130, %v1189
      %v1193 = vmul.f32 %v1132, %v1189
      %v1194 = vmul.f32 %v1134, %v1189
      %v1195 = vmul.f32 %v1136, %v1189
      %v1196 = vmul.f32 %v1138, %v1189
      %v1197 = vmul.f32 %v1140, %v1189
      %v1198 = vmul.f32 %v1142, %v1189
      %v1199 = vmul.f32 %v1144, %v1189
      %v1200 = vmul.f32 %v1146, %v1189
      %v1201 = vmul.f32 %v1148, %v1189
      %v1202 = vmul.f32 %v1150, %v1189
      %v1203 = vmul.f32 %v1152, %v1189
      %v1204 = vmul.f32 %v1154, %v1189
      %v1205 = vmul.f32 %v1156, %v1189
      %v1206 = vmul.f32 %v1158, %v1189
      %v1207 = vmul.f32 %v1160, %v1189
      %v1208 = vmul.f32 %v1162, %v1189
      %v1209 = vmul.f32 %v1164, %v1189
      %v1210 = vmul.f32 %v1166, %v1189
      %v1211 = vmul.f32 %v1168, %v1189
      %v1212 = vmul.f32 %v1170, %v1189
      %v1213 = vmul.f32 %v1172, %v1189
      %v1214 = vmul.f32 %v1174, %v1189
      %v1215 = vmul.f32 %v1176, %v1189
      %v1216 = vmul.f32 %v1178, %v1189
      %v1217 = vmul.f32 %v1180, %v1189
      %v1218 = vmul.f32 %v1182, %v1189
      %v1219 = vmul.f32 %v1184, %v1189
      %v1220 = vmul.f32 %v1186, %v1189
      %v1221 = vmul.f32 %v1188, %v1189
      %v1222 = vsub.f32 %v1091, %v1190
      %v1223 = vsub.f32 %v1092, %v1191
      %v1224 = vsub.f32 %v1093, %v1192
      %v1225 = vsub.f32 %v1094, %v1193
      %v1226 = vsub.f32 %v1095, %v1194
      %v1227 = vsub.f32 %v1096, %v1195
      %v1228 = vsub.f32 %v1097, %v1196
      %v1229 = vsub.f32 %v1098, %v1197
      %v1230 = vsub.f32 %v1099, %v1198
      %v1231 = vsub.f32 %v1100, %v1199
      %v1232 = vsub.f32 %v1101, %v1200
      %v1233 = vsub.f32 %v1102, %v1201
      %v1234 = vsub.f32 %v1103, %v1202
      %v1235 = vsub.f32 %v1104, %v1203
      %v1236 = vsub.f32 %v1105, %v1204
      %v1237 = vsub.f32 %v1106, %v1205
      %v1238 = vsub.f32 %v1107, %v1206
      %v1239 = vsub.f32 %v1108, %v1207
      %v1240 = vsub.f32 %v1109, %v1208
      %v1241 = vsub.f32 %v1110, %v1209
      %v1242 = vsub.f32 %v1111, %v1210
      %v1243 = vsub.f32 %v1112, %v1211
      %v1244 = vsub.f32 %v1113, %v1212
      %v1245 = vsub.f32 %v1114, %v1213
      %v1246 = vsub.f32 %v1115, %v1214
      %v1247 = vsub.f32 %v1116, %v1215
      %v1248 = vsub.f32 %v1117, %v1216
      %v1249 = vsub.f32 %v1118, %v1217
      %v1250 = vsub.f32 %v1119, %v1218
      %v1251 = vsub.f32 %v1120, %v1219
      %v1252 = vsub.f32 %v1121, %v1220
      %v1253 = vsub.f32 %v1122, %v1221
      %v1254 = vmul.f32 %v1222, %v1222
      %v1255 = vmul.f32 %v1223, %v1223
      %v1256 = vmul.f32 %v1224, %v1224
      %v1257 = vmul.f32 %v1225, %v1225
      %v1258 = vmul.f32 %v1226, %v1226
      %v1259 = vmul.f32 %v1227, %v1227
      %v1260 = vmul.f32 %v1228, %v1228
      %v1261 = vmul.f32 %v1229, %v1229
      %v1262 = vmul.f32 %v1230, %v1230
      %v1263 = vmul.f32 %v1231, %v1231
      %v1264 = vmul.f32 %v1232, %v1232
      %v1265 = vmul.f32 %v1233, %v1233
      %v1266 = vmul.f32 %v1234, %v1234
      %v1267 = vmul.f32 %v1235, %v1235
      %v1268 = vmul.f32 %v1236, %v1236
      %v1269 = vmul.f32 %v1237, %v1237
      %v1270 = vmul.f32 %v1238, %v1238
      %v1271 = vmul.f32 %v1239, %v1239
      %v1272 = vmul.f32 %v1240, %v1240
      %v1273 = vmul.f32 %v1241, %v1241
      %v1274 = vmul.f32 %v1242, %v1242
      %v1275 = vmul.f32 %v1243, %v1243
      %v1276 = vmul.f32 %v1244, %v1244
      %v1277 = vmul.f32 %v1245, %v1245
      %v1278 = vmul.f32 %v1246, %v1246
      %v1279 = vmul.f32 %v1247, %v1247
      %v1280 = vmul.f32 %v1248, %v1248
      %v1281 = vmul.f32 %v1249, %v1249
      %v1282 = vmul.f32 %v1250, %v1250
      %v1283 = vmul.f32 %v1251, %v1251
      %v1284 = vmul.f32 %v1252, %v1252
      %v1285 = vmul.f32 %v1253, %v1253
      %1286 = vadd.xlane.f32.xlu0 %v1254
      %v1287 = vpop.xlane.xlu0 %1286
      %1288 = vadd.xlane.f32.xlu0 %v1255
      %v1289 = vpop.xlane.xlu0 %1288
      %1290 = vadd.xlane.f32.xlu0 %v1256
      %v1291 = vpop.xlane.xlu0 %1290
      %1292 = vadd.xlane.f32.xlu0 %v1257
      %v1293 = vpop.xlane.xlu0 %1292
      %1294 = vadd.xlane.f32.xlu0 %v1258
      %v1295 = vpop.xlane.xlu0 %1294
      %1296 = vadd.xlane.f32.xlu0 %v1259
      %v1297 = vpop.xlane.xlu0 %1296
      %1298 = vadd.xlane.f32.xlu0 %v1260
      %v1299 = vpop.xlane.xlu0 %1298
      %1300 = vadd.xlane.f32.xlu0 %v1261
      %v1301 = vpop.xlane.xlu0 %1300
      %1302 = vadd.xlane.f32.xlu0 %v1262
      %v1303 = vpop.xlane.xlu0 %1302
      %1304 = vadd.xlane.f32.xlu0 %v1263
      %v1305 = vpop.xlane.xlu0 %1304
      %1306 = vadd.xlane.f32.xlu0 %v1264
      %v1307 = vpop.xlane.xlu0 %1306
      %1308 = vadd.xlane.f32.xlu0 %v1265
      %v1309 = vpop.xlane.xlu0 %1308
      %1310 = vadd.xlane.f32.xlu0 %v1266
      %v1311 = vpop.xlane.xlu0 %1310
      %1312 = vadd.xlane.f32.xlu0 %v1267
      %v1313 = vpop.xlane.xlu0 %1312
      %1314 = vadd.xlane.f32.xlu0 %v1268
      %v1315 = vpop.xlane.xlu0 %1314
      %1316 = vadd.xlane.f32.xlu0 %v1269
      %v1317 = vpop.xlane.xlu0 %1316
      %1318 = vadd.xlane.f32.xlu0 %v1270
      %v1319 = vpop.xlane.xlu0 %1318
      %1320 = vadd.xlane.f32.xlu0 %v1271
      %v1321 = vpop.xlane.xlu0 %1320
      %1322 = vadd.xlane.f32.xlu0 %v1272
      %v1323 = vpop.xlane.xlu0 %1322
      %1324 = vadd.xlane.f32.xlu0 %v1273
      %v1325 = vpop.xlane.xlu0 %1324
      %1326 = vadd.xlane.f32.xlu0 %v1274
      %v1327 = vpop.xlane.xlu0 %1326
      %1328 = vadd.xlane.f32.xlu0 %v1275
      %v1329 = vpop.xlane.xlu0 %1328
      %1330 = vadd.xlane.f32.xlu0 %v1276
      %v1331 = vpop.xlane.xlu0 %1330
      %1332 = vadd.xlane.f32.xlu0 %v1277
      %v1333 = vpop.xlane.xlu0 %1332
      %1334 = vadd.xlane.f32.xlu0 %v1278
      %v1335 = vpop.xlane.xlu0 %1334
      %1336 = vadd.xlane.f32.xlu0 %v1279
      %v1337 = vpop.xlane.xlu0 %1336
      %1338 = vadd.xlane.f32.xlu0 %v1280
      %v1339 = vpop.xlane.xlu0 %1338
      %1340 = vadd.xlane.f32.xlu0 %v1281
      %v1341 = vpop.xlane.xlu0 %1340
      %1342 = vadd.xlane.f32.xlu0 %v1282
      %v1343 = vpop.xlane.xlu0 %1342
      %1344 = vadd.xlane.f32.xlu0 %v1283
      %v1345 = vpop.xlane.xlu0 %1344
      %1346 = vadd.xlane.f32.xlu0 %v1284
      %v1347 = vpop.xlane.xlu0 %1346
      %1348 = vadd.xlane.f32.xlu0 %v1285
      %v1349 = vpop.xlane.xlu0 %1348
      %v1350 = vmul.f32 %v1287, %v1189
      %v1351 = vmul.f32 %v1289, %v1189
      %v1352 = vmul.f32 %v1291, %v1189
      %v1353 = vmul.f32 %v1293, %v1189
      %v1354 = vmul.f32 %v1295, %v1189
      %v1355 = vmul.f32 %v1297, %v1189
      %v1356 = vmul.f32 %v1299, %v1189
      %v1357 = vmul.f32 %v1301, %v1189
      %v1358 = vmul.f32 %v1303, %v1189
      %v1359 = vmul.f32 %v1305, %v1189
      %v1360 = vmul.f32 %v1307, %v1189
      %v1361 = vmul.f32 %v1309, %v1189
      %v1362 = vmul.f32 %v1311, %v1189
      %v1363 = vmul.f32 %v1313, %v1189
      %v1364 = vmul.f32 %v1315, %v1189
      %v1365 = vmul.f32 %v1317, %v1189
      %v1366 = vmul.f32 %v1319, %v1189
      %v1367 = vmul.f32 %v1321, %v1189
      %v1368 = vmul.f32 %v1323, %v1189
      %v1369 = vmul.f32 %v1325, %v1189
      %v1370 = vmul.f32 %v1327, %v1189
      %v1371 = vmul.f32 %v1329, %v1189
      %v1372 = vmul.f32 %v1331, %v1189
      %v1373 = vmul.f32 %v1333, %v1189
      %v1374 = vmul.f32 %v1335, %v1189
      %v1375 = vmul.f32 %v1337, %v1189
      %v1376 = vmul.f32 %v1339, %v1189
      %v1377 = vmul.f32 %v1341, %v1189
      %v1378 = vmul.f32 %v1343, %v1189
      %v1379 = vmul.f32 %v1345, %v1189
      %v1380 = vmul.f32 %v1347, %v1189
      %v1381 = vmul.f32 %v1349, %v1189
      %v1382 = vadd.f32 %v1350, 1e-06
      %v1383 = vadd.f32 %v1351, 1e-06
      %v1384 = vadd.f32 %v1352, 1e-06
      %v1385 = vadd.f32 %v1353, 1e-06
      %v1386 = vadd.f32 %v1354, 1e-06
      %v1387 = vadd.f32 %v1355, 1e-06
      %v1388 = vadd.f32 %v1356, 1e-06
      %v1389 = vadd.f32 %v1357, 1e-06
      %v1390 = vadd.f32 %v1358, 1e-06
      %v1391 = vadd.f32 %v1359, 1e-06
      %v1392 = vadd.f32 %v1360, 1e-06
      %v1393 = vadd.f32 %v1361, 1e-06
      %v1394 = vadd.f32 %v1362, 1e-06
      %v1395 = vadd.f32 %v1363, 1e-06
      %v1396 = vadd.f32 %v1364, 1e-06
      %v1397 = vadd.f32 %v1365, 1e-06
      %v1398 = vadd.f32 %v1366, 1e-06
      %v1399 = vadd.f32 %v1367, 1e-06
      %v1400 = vadd.f32 %v1368, 1e-06
      %v1401 = vadd.f32 %v1369, 1e-06
      %v1402 = vadd.f32 %v1370, 1e-06
      %v1403 = vadd.f32 %v1371, 1e-06
      %v1404 = vadd.f32 %v1372, 1e-06
      %v1405 = vadd.f32 %v1373, 1e-06
      %v1406 = vadd.f32 %v1374, 1e-06
      %v1407 = vadd.f32 %v1375, 1e-06
      %v1408 = vadd.f32 %v1376, 1e-06
      %v1409 = vadd.f32 %v1377, 1e-06
      %v1410 = vadd.f32 %v1378, 1e-06
      %v1411 = vadd.f32 %v1379, 1e-06
      %v1412 = vadd.f32 %v1380, 1e-06
      %v1413 = vadd.f32 %v1381, 1e-06
      %v1414 = vrsqrt.pop %v1382
      %v1415 = vrsqrt.pop %v1383
      %v1416 = vrsqrt.pop %v1384
      %v1417 = vrsqrt.pop %v1385
      %v1418 = vrsqrt.pop %v1386
      %v1419 = vrsqrt.pop %v1387
      %v1420 = vrsqrt.pop %v1388
      %v1421 = vrsqrt.pop %v1389
      %v1422 = vrsqrt.pop %v1390
      %v1423 = vrsqrt.pop %v1391
      %v1424 = vrsqrt.pop %v1392
      %v1425 = vrsqrt.pop %v1393
      %v1426 = vrsqrt.pop %v1394
      %v1427 = vrsqrt.pop %v1395
      %v1428 = vrsqrt.pop %v1396
      %v1429 = vrsqrt.pop %v1397
      %v1430 = vrsqrt.pop %v1398
      %v1431 = vrsqrt.pop %v1399
      %v1432 = vrsqrt.pop %v1400
      %v1433 = vrsqrt.pop %v1401
      %v1434 = vrsqrt.pop %v1402
      %v1435 = vrsqrt.pop %v1403
      %v1436 = vrsqrt.pop %v1404
      %v1437 = vrsqrt.pop %v1405
      %v1438 = vrsqrt.pop %v1406
      %v1439 = vrsqrt.pop %v1407
      %v1440 = vrsqrt.pop %v1408
      %v1441 = vrsqrt.pop %v1409
      %v1442 = vrsqrt.pop %v1410
      %v1443 = vrsqrt.pop %v1411
      %v1444 = vrsqrt.pop %v1412
      %v1445 = vrsqrt.pop %v1413
      %v1446 = vmul.f32 %v1222, %v1414
      %v1447 = vmul.f32 %v1223, %v1415
      %v1448 = vmul.f32 %v1224, %v1416
      %v1449 = vmul.f32 %v1225, %v1417
      %v1450 = vmul.f32 %v1226, %v1418
      %v1451 = vmul.f32 %v1227, %v1419
      %v1452 = vmul.f32 %v1228, %v1420
      %v1453 = vmul.f32 %v1229, %v1421
      %v1454 = vmul.f32 %v1230, %v1422
      %v1455 = vmul.f32 %v1231, %v1423
      %v1456 = vmul.f32 %v1232, %v1424
      %v1457 = vmul.f32 %v1233, %v1425
      %v1458 = vmul.f32 %v1234, %v1426
      %v1459 = vmul.f32 %v1235, %v1427
      %v1460 = vmul.f32 %v1236, %v1428
      %v1461 = vmul.f32 %v1237, %v1429
      %v1462 = vmul.f32 %v1238, %v1430
      %v1463 = vmul.f32 %v1239, %v1431
      %v1464 = vmul.f32 %v1240, %v1432
      %v1465 = vmul.f32 %v1241, %v1433
      %v1466 = vmul.f32 %v1242, %v1434
      %v1467 = vmul.f32 %v1243, %v1435
      %v1468 = vmul.f32 %v1244, %v1436
      %v1469 = vmul.f32 %v1245, %v1437
      %v1470 = vmul.f32 %v1246, %v1438
      %v1471 = vmul.f32 %v1247, %v1439
      %v1472 = vmul.f32 %v1248, %v1440
      %v1473 = vmul.f32 %v1249, %v1441
      %v1474 = vmul.f32 %v1250, %v1442
      %v1475 = vmul.f32 %v1251, %v1443
      %v1476 = vmul.f32 %v1252, %v1444
      %v1477 = vmul.f32 %v1253, %v1445
      %v1479 = vlaneseq
      %v1480 = vshrl.u32 %v1479, 7
      %v1481 = vsub.s32 0, %v1480
      %v1482 = vrot.slane %v1123, %v1481
      %v1484 = vmul.f32 %v1446, %v1482
      %v1485 = vmul.f32 %v1447, %v1482
      %v1486 = vmul.f32 %v1448, %v1482
      %v1487 = vmul.f32 %v1449, %v1482
      %v1488 = vmul.f32 %v1450, %v1482
      %v1489 = vmul.f32 %v1451, %v1482
      %v1490 = vmul.f32 %v1452, %v1482
      %v1491 = vmul.f32 %v1453, %v1482
      %v1492 = vmul.f32 %v1454, %v1482
      %v1493 = vmul.f32 %v1455, %v1482
      %v1494 = vmul.f32 %v1456, %v1482
      %v1495 = vmul.f32 %v1457, %v1482
      %v1496 = vmul.f32 %v1458, %v1482
      %v1497 = vmul.f32 %v1459, %v1482
      %v1498 = vmul.f32 %v1460, %v1482
      %v1499 = vmul.f32 %v1461, %v1482
      %v1500 = vmul.f32 %v1462, %v1482
      %v1501 = vmul.f32 %v1463, %v1482
      %v1502 = vmul.f32 %v1464, %v1482
      %v1503 = vmul.f32 %v1465, %v1482
      %v1504 = vmul.f32 %v1466, %v1482
      %v1505 = vmul.f32 %v1467, %v1482
      %v1506 = vmul.f32 %v1468, %v1482
      %v1507 = vmul.f32 %v1469, %v1482
      %v1508 = vmul.f32 %v1470, %v1482
      %v1509 = vmul.f32 %v1471, %v1482
      %v1510 = vmul.f32 %v1472, %v1482
      %v1511 = vmul.f32 %v1473, %v1482
      %v1512 = vmul.f32 %v1474, %v1482
      %v1513 = vmul.f32 %v1475, %v1482
      %v1514 = vmul.f32 %v1476, %v1482
      %v1515 = vmul.f32 %v1477, %v1482
      %v1517 = vlaneseq
      %v1518 = vshrl.u32 %v1517, 7
      %v1519 = vsub.s32 0, %v1518
      %v1520 = vrot.slane %v1124, %v1519
      %v1522 = vadd.f32 %v1484, %v1520
      %v1523 = vadd.f32 %v1485, %v1520
      %v1524 = vadd.f32 %v1486, %v1520
      %v1525 = vadd.f32 %v1487, %v1520
      %v1526 = vadd.f32 %v1488, %v1520
      %v1527 = vadd.f32 %v1489, %v1520
      %v1528 = vadd.f32 %v1490, %v1520
      %v1529 = vadd.f32 %v1491, %v1520
      %v1530 = vadd.f32 %v1492, %v1520
      %v1531 = vadd.f32 %v1493, %v1520
      %v1532 = vadd.f32 %v1494, %v1520
      %v1533 = vadd.f32 %v1495, %v1520
      %v1534 = vadd.f32 %v1496, %v1520
      %v1535 = vadd.f32 %v1497, %v1520
      %v1536 = vadd.f32 %v1498, %v1520
      %v1537 = vadd.f32 %v1499, %v1520
      %v1538 = vadd.f32 %v1500, %v1520
      %v1539 = vadd.f32 %v1501, %v1520
      %v1540 = vadd.f32 %v1502, %v1520
      %v1541 = vadd.f32 %v1503, %v1520
      %v1542 = vadd.f32 %v1504, %v1520
      %v1543 = vadd.f32 %v1505, %v1520
      %v1544 = vadd.f32 %v1506, %v1520
      %v1545 = vadd.f32 %v1507, %v1520
      %v1546 = vadd.f32 %v1508, %v1520
      %v1547 = vadd.f32 %v1509, %v1520
      %v1548 = vadd.f32 %v1510, %v1520
      %v1549 = vadd.f32 %v1511, %v1520
      %v1550 = vadd.f32 %v1512, %v1520
      %v1551 = vadd.f32 %v1513, %v1520
      %v1552 = vadd.f32 %v1514, %v1520
      %v1553 = vadd.f32 %v1515, %v1520
      %v1554 = vpack.c.bf16 %v1523, %v1522
      %v1555 = vpack.c.bf16 %v1525, %v1524
      %v1556 = vpack.c.bf16 %v1527, %v1526
      %v1557 = vpack.c.bf16 %v1529, %v1528
      %v1558 = vpack.c.bf16 %v1531, %v1530
      %v1559 = vpack.c.bf16 %v1533, %v1532
      %v1560 = vpack.c.bf16 %v1535, %v1534
      %v1561 = vpack.c.bf16 %v1537, %v1536
      %v1562 = vpack.c.bf16 %v1539, %v1538
      %v1563 = vpack.c.bf16 %v1541, %v1540
      %v1564 = vpack.c.bf16 %v1543, %v1542
      %v1565 = vpack.c.bf16 %v1545, %v1544
      %v1566 = vpack.c.bf16 %v1547, %v1546
      %v1567 = vpack.c.bf16 %v1549, %v1548
      %v1568 = vpack.c.bf16 %v1551, %v1550
      %v1569 = vpack.c.bf16 %v1553, %v1552
      %v1570 = vld [vmem:[%s6] sm:$0xff]
      %v1571 = vld [vmem:[%s6 + $0x8] sm:$0xf]
      %v1572 = vld [vmem:[%s6 + $0xc] sm:$0xff]
      %v1573 = vld [vmem:[%s6 + $0x14] sm:$0xf]
      %v1574 = vld [vmem:[%s6 + $0x18] sm:$0xff]
      %v1575 = vld [vmem:[%s6 + $0x20] sm:$0xf]
      %v1576 = vld [vmem:[%s6 + $0x24] sm:$0xff]
      %v1577 = vld [vmem:[%s6 + $0x2c] sm:$0xf]
      %v1578 = vld [vmem:[%s6 + $0x30] sm:$0xff]
      %v1579 = vld [vmem:[%s6 + $0x38] sm:$0xf]
      %v1580 = vld [vmem:[%s6 + $0x3c] sm:$0xff]
      %v1581 = vld [vmem:[%s6 + $0x44] sm:$0xf]
      %v1582 = vld [vmem:[%s6 + $0x48] sm:$0xff]
      %v1583 = vld [vmem:[%s6 + $0x50] sm:$0xf]
      %v1584 = vld [vmem:[%s6 + $0x54] sm:$0xff]
      %v1585 = vld [vmem:[%s6 + $0x5c] sm:$0xf]
      %v1586 = vld [vmem:[%s6 + $0x60] sm:$0xff]
      %v1587 = vld [vmem:[%s6 + $0x68] sm:$0xf]
      %v1588 = vld [vmem:[%s6 + $0x6c] sm:$0xff]
      %v1589 = vld [vmem:[%s6 + $0x74] sm:$0xf]
      %v1590 = vld [vmem:[%s6 + $0x78] sm:$0xff]
      %v1591 = vld [vmem:[%s6 + $0x80] sm:$0xf]
      %v1592 = vld [vmem:[%s6 + $0x84] sm:$0xff]
      %v1593 = vld [vmem:[%s6 + $0x8c] sm:$0xf]
      %v1594 = vld [vmem:[%s6 + $0x90] sm:$0xff]
      %v1595 = vld [vmem:[%s6 + $0x98] sm:$0xf]
      %v1596 = vld [vmem:[%s6 + $0x9c] sm:$0xff]
      %v1597 = vld [vmem:[%s6 + $0xa4] sm:$0xf]
      %v1598 = vld [vmem:[%s6 + $0xa8] sm:$0xff]
      %v1599 = vld [vmem:[%s6 + $0xb0] sm:$0xf]
      %v1600 = vld [vmem:[%s6 + $0xb4] sm:$0xff]
      %v1601 = vld [vmem:[%s6 + $0xbc] sm:$0xf]
      %v1602 = vld [vmem:[%s7] sm:$0x7]
      %v1604 = vlaneseq
      %v1605 = vshrl.u32 %v1604, 7
      %v1606 = vsub.s32 0, %v1605
      %v1607 = vrot.slane %v1602, %v1606
      %v1608 = vlaneseq
      %v1609 = vshrl.u32 %v1608, 7
      %v1610 = vsub.s32 1, %v1609
      %v1611 = vrot.slane %v1602, %v1610
      %v1612 = vlaneseq
      %v1613 = vshrl.u32 %v1612, 7
      %v1614 = vsub.s32 2, %v1613
      %v1615 = vrot.slane %v1602, %v1614
      %v1651 = vunpack.c.l.b16 %v1570
      %v1652 = vunpack.c.h.b16 %v1570
      %v1653 = vunpack.c.l.b16 %v1571
      %v1654 = vunpack.c.l.b16 %v1572
      %v1655 = vunpack.c.h.b16 %v1572
      %v1656 = vunpack.c.l.b16 %v1573
      %v1657 = vunpack.c.l.b16 %v1574
      %v1658 = vunpack.c.h.b16 %v1574
      %v1659 = vunpack.c.l.b16 %v1575
      %v1660 = vunpack.c.l.b16 %v1576
      %v1661 = vunpack.c.h.b16 %v1576
      %v1662 = vunpack.c.l.b16 %v1577
      %v1663 = vunpack.c.l.b16 %v1578
      %v1664 = vunpack.c.h.b16 %v1578
      %v1665 = vunpack.c.l.b16 %v1579
      %v1666 = vunpack.c.l.b16 %v1580
      %v1667 = vunpack.c.h.b16 %v1580
      %v1668 = vunpack.c.l.b16 %v1581
      %v1669 = vunpack.c.l.b16 %v1582
      %v1670 = vunpack.c.h.b16 %v1582
      %v1671 = vunpack.c.l.b16 %v1583
      %v1672 = vunpack.c.l.b16 %v1584
      %v1673 = vunpack.c.h.b16 %v1584
      %v1674 = vunpack.c.l.b16 %v1585
      %v1675 = vunpack.c.l.b16 %v1586
      %v1676 = vunpack.c.h.b16 %v1586
      %v1677 = vunpack.c.l.b16 %v1587
      %v1678 = vunpack.c.l.b16 %v1588
      %v1679 = vunpack.c.h.b16 %v1588
      %v1680 = vunpack.c.l.b16 %v1589
      %v1681 = vunpack.c.l.b16 %v1590
      %v1682 = vunpack.c.h.b16 %v1590
      %v1683 = vunpack.c.l.b16 %v1591
      %v1684 = vunpack.c.l.b16 %v1592
      %v1685 = vunpack.c.h.b16 %v1592
      %v1686 = vunpack.c.l.b16 %v1593
      %v1687 = vunpack.c.l.b16 %v1594
      %v1688 = vunpack.c.h.b16 %v1594
      %v1689 = vunpack.c.l.b16 %v1595
      %v1690 = vunpack.c.l.b16 %v1596
      %v1691 = vunpack.c.h.b16 %v1596
      %v1692 = vunpack.c.l.b16 %v1597
      %v1693 = vunpack.c.l.b16 %v1598
      %v1694 = vunpack.c.h.b16 %v1598
      %v1695 = vunpack.c.l.b16 %v1599
      %v1696 = vunpack.c.l.b16 %v1600
      %v1697 = vunpack.c.h.b16 %v1600
      %v1698 = vunpack.c.l.b16 %v1601
      %v1699 = vpack.c.b16 %v1654, %v1651
      %v1700 = vpack.c.b16 %v1655, %v1652
      %v1701 = vpack.c.b16 %v1656, %v1653
      %v1702 = vpack.c.b16 %v1660, %v1657
      %v1703 = vpack.c.b16 %v1661, %v1658
      %v1704 = vpack.c.b16 %v1662, %v1659
      %v1705 = vpack.c.b16 %v1666, %v1663
      %v1706 = vpack.c.b16 %v1667, %v1664
      %v1707 = vpack.c.b16 %v1668, %v1665
      %v1708 = vpack.c.b16 %v1672, %v1669
      %v1709 = vpack.c.b16 %v1673, %v1670
      %v1710 = vpack.c.b16 %v1674, %v1671
      %v1711 = vpack.c.b16 %v1678, %v1675
      %v1712 = vpack.c.b16 %v1679, %v1676
      %v1713 = vpack.c.b16 %v1680, %v1677
      %v1714 = vpack.c.b16 %v1684, %v1681
      %v1715 = vpack.c.b16 %v1685, %v1682
      %v1716 = vpack.c.b16 %v1686, %v1683
      %v1717 = vpack.c.b16 %v1690, %v1687
      %v1718 = vpack.c.b16 %v1691, %v1688
      %v1719 = vpack.c.b16 %v1692, %v1689
      %v1720 = vpack.c.b16 %v1696, %v1693
      %v1721 = vpack.c.b16 %v1697, %v1694
      %v1722 = vpack.c.b16 %v1698, %v1695
      %1747 = vmatprep.subr.bf16.mxu0 %v1721
      %1748 = vmatpush1.bf16.msra.mxu0 %v1720
      %1749 = vmatprep.subr.bf16.mxu0 %v1718
      %1750 = vmatpush1.bf16.msra.mxu0 %v1717
      %1751 = vmatprep.subr.bf16.mxu0 %v1715
      %1752 = vmatpush1.bf16.msra.mxu0 %v1714
      %1753 = vmatprep.subr.bf16.mxu0 %v1712
      %1754 = vmatpush1.bf16.msra.mxu0 %v1711
      %1755 = vmatprep.subr.bf16.mxu0 %v1709
      %1756 = vmatpush1.bf16.msra.mxu0 %v1708
      %1757 = vmatprep.subr.bf16.mxu0 %v1706
      %1758 = vmatpush1.bf16.msra.mxu0 %v1705
      %1759 = vmatprep.subr.bf16.mxu0 %v1703
      %1760 = vmatpush1.bf16.msra.mxu0 %v1702
      %1761 = vmatprep.subr.bf16.mxu0 %v1700
      %1762 = vmatpush1.bf16.msra.mxu0 %v1699
      %1763 = vmatprep.subr.bf16.mxu0 0
      %1764 = vmatpush2.bf16.msra.mxu0 0
      %1765 = vmatprep.subr.bf16.mxu0 0
      %1766 = vmatpush2.bf16.msra.mxu0 0
      %1767 = vmatprep.subr.bf16.mxu0 0
      %1768 = vmatpush2.bf16.msra.mxu0 0
      %1769 = vmatprep.subr.bf16.mxu0 0
      %1770 = vmatpush2.bf16.msra.mxu0 0
      %1771 = vmatprep.subr.bf16.mxu0 0
      %1772 = vmatpush2.bf16.msra.mxu0 0
      %1773 = vmatprep.subr.bf16.mxu0 0
      %1774 = vmatpush2.bf16.msra.mxu0 0
      %1775 = vmatprep.subr.bf16.mxu0 0
      %1776 = vmatpush2.bf16.msra.mxu0 0
      %1777 = vmatprep.subr.bf16.mxu0 0
      %1778 = vmatpush2.bf16.msra.mxu0 0
      %1779 = vmatprep.mubr.bf16.mxu0 0
      %1780 = vmatmul.mubr.bf16.gmra.mxu0 %v1554
      %v1781 = vpop.f32.mrf.mxu0
      %v1782 = vadd.f32 %v1607, %v1781
      %v1783 = vpop.f32.mrf.mxu0
      %v1784 = vadd.f32 %v1611, %v1783
      %v1785 = vpop.f32.mrf.mxu0
      %v1786 = vadd.f32 %v1607, %v1785
      %v1787 = vpop.f32.mrf.mxu0
      %v1788 = vadd.f32 %v1611, %v1787
      %1789 = vmatprep.mubr.bf16.mxu0 0
      %1790 = vmatmul.mubr.bf16.gmra.mxu0 %v1555
      %v1791 = vpop.f32.mrf.mxu0
      %v1792 = vadd.f32 %v1607, %v1791
      %v1793 = vpop.f32.mrf.mxu0
      %v1794 = vadd.f32 %v1611, %v1793
      %v1795 = vpop.f32.mrf.mxu0
      %v1796 = vadd.f32 %v1607, %v1795
      %v1797 = vpop.f32.mrf.mxu0
      %v1798 = vadd.f32 %v1611, %v1797
      %1799 = vmatprep.mubr.bf16.mxu0 0
      %1800 = vmatmul.mubr.bf16.gmra.mxu0 %v1556
      %v1801 = vpop.f32.mrf.mxu0
      %v1802 = vadd.f32 %v1607, %v1801
      %v1803 = vpop.f32.mrf.mxu0
      %v1804 = vadd.f32 %v1611, %v1803
      %v1805 = vpop.f32.mrf.mxu0
      %v1806 = vadd.f32 %v1607, %v1805
      %v1807 = vpop.f32.mrf.mxu0
      %v1808 = vadd.f32 %v1611, %v1807
      %1809 = vmatprep.mubr.bf16.mxu0 0
      %1810 = vmatmul.mubr.bf16.gmra.mxu0 %v1557
      %v1811 = vpop.f32.mrf.mxu0
      %v1812 = vadd.f32 %v1607, %v1811
      %v1813 = vpop.f32.mrf.mxu0
      %v1814 = vadd.f32 %v1611, %v1813
      %v1815 = vpop.f32.mrf.mxu0
      %v1816 = vadd.f32 %v1607, %v1815
      %v1817 = vpop.f32.mrf.mxu0
      %v1818 = vadd.f32 %v1611, %v1817
      %1819 = vmatprep.mubr.bf16.mxu0 0
      %1820 = vmatmul.mubr.bf16.gmra.mxu0 %v1558
      %v1821 = vpop.f32.mrf.mxu0
      %v1822 = vadd.f32 %v1607, %v1821
      %v1823 = vpop.f32.mrf.mxu0
      %v1824 = vadd.f32 %v1611, %v1823
      %v1825 = vpop.f32.mrf.mxu0
      %v1826 = vadd.f32 %v1607, %v1825
      %v1827 = vpop.f32.mrf.mxu0
      %v1828 = vadd.f32 %v1611, %v1827
      %1829 = vmatprep.mubr.bf16.mxu0 0
      %1830 = vmatmul.mubr.bf16.gmra.mxu0 %v1559
      %v1831 = vpop.f32.mrf.mxu0
      %v1832 = vadd.f32 %v1607, %v1831
      %v1833 = vpop.f32.mrf.mxu0
      %v1834 = vadd.f32 %v1611, %v1833
      %v1835 = vpop.f32.mrf.mxu0
      %v1836 = vadd.f32 %v1607, %v1835
      %v1837 = vpop.f32.mrf.mxu0
      %v1838 = vadd.f32 %v1611, %v1837
      %1839 = vmatprep.mubr.bf16.mxu0 0
      %1840 = vmatmul.mubr.bf16.gmra.mxu0 %v1560
      %v1841 = vpop.f32.mrf.mxu0
      %v1842 = vadd.f32 %v1607, %v1841
      %v1843 = vpop.f32.mrf.mxu0
      %v1844 = vadd.f32 %v1611, %v1843
      %v1845 = vpop.f32.mrf.mxu0
      %v1846 = vadd.f32 %v1607, %v1845
      %v1847 = vpop.f32.mrf.mxu0
      %v1848 = vadd.f32 %v1611, %v1847
      %1849 = vmatprep.mubr.bf16.mxu0 0
      %1850 = vmatmul.mubr.bf16.gmra.mxu0 %v1561
      %v1851 = vpop.f32.mrf.mxu0
      %v1852 = vadd.f32 %v1607, %v1851
      %v1853 = vpop.f32.mrf.mxu0
      %v1854 = vadd.f32 %v1611, %v1853
      %v1855 = vpop.f32.mrf.mxu0
      %v1856 = vadd.f32 %v1607, %v1855
      %v1857 = vpop.f32.mrf.mxu0
      %v1858 = vadd.f32 %v1611, %v1857
      %1859 = vmatprep.mubr.bf16.mxu0 0
      %1860 = vmatmul.mubr.bf16.gmra.mxu0 %v1562
      %v1861 = vpop.f32.mrf.mxu0
      %v1862 = vadd.f32 %v1607, %v1861
      %v1863 = vpop.f32.mrf.mxu0
      %v1864 = vadd.f32 %v1611, %v1863
      %v1865 = vpop.f32.mrf.mxu0
      %v1866 = vadd.f32 %v1607, %v1865
      %v1867 = vpop.f32.mrf.mxu0
      %v1868 = vadd.f32 %v1611, %v1867
      %1869 = vmatprep.mubr.bf16.mxu0 0
      %1870 = vmatmul.mubr.bf16.gmra.mxu0 %v1563
      %v1871 = vpop.f32.mrf.mxu0
      %v1872 = vadd.f32 %v1607, %v1871
      %v1873 = vpop.f32.mrf.mxu0
      %v1874 = vadd.f32 %v1611, %v1873
      %v1875 = vpop.f32.mrf.mxu0
      %v1876 = vadd.f32 %v1607, %v1875
      %v1877 = vpop.f32.mrf.mxu0
      %v1878 = vadd.f32 %v1611, %v1877
      %1879 = vmatprep.mubr.bf16.mxu0 0
      %1880 = vmatmul.mubr.bf16.gmra.mxu0 %v1564
      %v1881 = vpop.f32.mrf.mxu0
      %v1882 = vadd.f32 %v1607, %v1881
      %v1883 = vpop.f32.mrf.mxu0
      %v1884 = vadd.f32 %v1611, %v1883
      %v1885 = vpop.f32.mrf.mxu0
      %v1886 = vadd.f32 %v1607, %v1885
      %v1887 = vpop.f32.mrf.mxu0
      %v1888 = vadd.f32 %v1611, %v1887
      %1889 = vmatprep.mubr.bf16.mxu0 0
      %1890 = vmatmul.mubr.bf16.gmra.mxu0 %v1565
      %v1891 = vpop.f32.mrf.mxu0
      %v1892 = vadd.f32 %v1607, %v1891
      %v1893 = vpop.f32.mrf.mxu0
      %v1894 = vadd.f32 %v1611, %v1893
      %v1895 = vpop.f32.mrf.mxu0
      %v1896 = vadd.f32 %v1607, %v1895
      %v1897 = vpop.f32.mrf.mxu0
      %v1898 = vadd.f32 %v1611, %v1897
      %1899 = vmatprep.mubr.bf16.mxu0 0
      %1900 = vmatmul.mubr.bf16.gmra.mxu0 %v1566
      %v1901 = vpop.f32.mrf.mxu0
      %v1902 = vadd.f32 %v1607, %v1901
      %v1903 = vpop.f32.mrf.mxu0
      %v1904 = vadd.f32 %v1611, %v1903
      %v1905 = vpop.f32.mrf.mxu0
      %v1906 = vadd.f32 %v1607, %v1905
      %v1907 = vpop.f32.mrf.mxu0
      %v1908 = vadd.f32 %v1611, %v1907
      %1909 = vmatprep.mubr.bf16.mxu0 0
      %1910 = vmatmul.mubr.bf16.gmra.mxu0 %v1567
      %v1911 = vpop.f32.mrf.mxu0
      %v1912 = vadd.f32 %v1607, %v1911
      %v1913 = vpop.f32.mrf.mxu0
      %v1914 = vadd.f32 %v1611, %v1913
      %v1915 = vpop.f32.mrf.mxu0
      %v1916 = vadd.f32 %v1607, %v1915
      %v1917 = vpop.f32.mrf.mxu0
      %v1918 = vadd.f32 %v1611, %v1917
      %1919 = vmatprep.mubr.bf16.mxu0 0
      %1920 = vmatmul.mubr.bf16.gmra.mxu0 %v1568
      %v1921 = vpop.f32.mrf.mxu0
      %v1922 = vadd.f32 %v1607, %v1921
      %v1923 = vpop.f32.mrf.mxu0
      %v1924 = vadd.f32 %v1611, %v1923
      %v1925 = vpop.f32.mrf.mxu0
      %v1926 = vadd.f32 %v1607, %v1925
      %v1927 = vpop.f32.mrf.mxu0
      %v1928 = vadd.f32 %v1611, %v1927
      %1929 = vmatprep.mubr.bf16.mxu0 0
      %1930 = vmatmul.mubr.bf16.gmra.mxu0 %v1569
      %v1931 = vpop.f32.mrf.mxu0
      %v1932 = vadd.f32 %v1607, %v1931
      %v1933 = vpop.f32.mrf.mxu0
      %v1934 = vadd.f32 %v1611, %v1933
      %v1935 = vpop.f32.mrf.mxu0
      %v1936 = vadd.f32 %v1607, %v1935
      %v1937 = vpop.f32.mrf.mxu0
      %v1938 = vadd.f32 %v1611, %v1937
      %1939 = vdwg.mxu0
      %1940 = vmatprep.subr.bf16.mxu0 0
      %1941 = vmatpush1.bf16.msra.mxu0 %v1722
      %1942 = vmatprep.subr.bf16.mxu0 0
      %1943 = vmatpush1.bf16.msra.mxu0 %v1719
      %1944 = vmatprep.subr.bf16.mxu0 0
      %1945 = vmatpush1.bf16.msra.mxu0 %v1716
      %1946 = vmatprep.subr.bf16.mxu0 0
      %1947 = vmatpush1.bf16.msra.mxu0 %v1713
      %1948 = vmatprep.subr.bf16.mxu0 0
      %1949 = vmatpush1.bf16.msra.mxu0 %v1710
      %1950 = vmatprep.subr.bf16.mxu0 0
      %1951 = vmatpush1.bf16.msra.mxu0 %v1707
      %1952 = vmatprep.subr.bf16.mxu0 0
      %1953 = vmatpush1.bf16.msra.mxu0 %v1704
      %1954 = vmatprep.subr.bf16.mxu0 0
      %1955 = vmatpush1.bf16.msra.mxu0 %v1701
      %1956 = vmatprep.subr.bf16.mxu0 0
      %1957 = vmatpush2.bf16.msra.mxu0 0
      %1958 = vmatprep.subr.bf16.mxu0 0
      %1959 = vmatpush2.bf16.msra.mxu0 0
      %1960 = vmatprep.subr.bf16.mxu0 0
      %1961 = vmatpush2.bf16.msra.mxu0 0
      %1962 = vmatprep.subr.bf16.mxu0 0
      %1963 = vmatpush2.bf16.msra.mxu0 0
      %1964 = vmatprep.subr.bf16.mxu0 0
      %1965 = vmatpush2.bf16.msra.mxu0 0
      %1966 = vmatprep.subr.bf16.mxu0 0
      %1967 = vmatpush2.bf16.msra.mxu0 0
      %1968 = vmatprep.subr.bf16.mxu0 0
      %1969 = vmatpush2.bf16.msra.mxu0 0
      %1970 = vmatprep.subr.bf16.mxu0 0
      %1971 = vmatpush2.bf16.msra.mxu0 0
      %1972 = vmatprep.mubr.bf16.mxu0 0
      %1973 = vmatmul.mubr.bf16.gmra.mxu0 %v1554
      %v1974 = vpop.f32.mrf.mxu0
      %v1975 = vadd.f32 %v1615, %v1974
      %v1976 = vpop.f32.mrf.mxu0
      %v1977 = vpop.f32.mrf.mxu0
      %v1978 = vadd.f32 %v1615, %v1977
      %v1979 = vpop.f32.mrf.mxu0
      %1980 = vmatprep.mubr.bf16.mxu0 0
      %1981 = vmatmul.mubr.bf16.gmra.mxu0 %v1555
      %v1982 = vpop.f32.mrf.mxu0
      %v1983 = vadd.f32 %v1615, %v1982
      %v1984 = vpop.f32.mrf.mxu0
      %v1985 = vpop.f32.mrf.mxu0
      %v1986 = vadd.f32 %v1615, %v1985
      %v1987 = vpop.f32.mrf.mxu0
      %1988 = vmatprep.mubr.bf16.mxu0 0
      %1989 = vmatmul.mubr.bf16.gmra.mxu0 %v1556
      %v1990 = vpop.f32.mrf.mxu0
      %v1991 = vadd.f32 %v1615, %v1990
      %v1992 = vpop.f32.mrf.mxu0
      %v1993 = vpop.f32.mrf.mxu0
      %v1994 = vadd.f32 %v1615, %v1993
      %v1995 = vpop.f32.mrf.mxu0
      %1996 = vmatprep.mubr.bf16.mxu0 0
      %1997 = vmatmul.mubr.bf16.gmra.mxu0 %v1557
      %v1998 = vpop.f32.mrf.mxu0
      %v1999 = vadd.f32 %v1615, %v1998
      %v2000 = vpop.f32.mrf.mxu0
      %v2001 = vpop.f32.mrf.mxu0
      %v2002 = vadd.f32 %v1615, %v2001
      %v2003 = vpop.f32.mrf.mxu0
      %2004 = vmatprep.mubr.bf16.mxu0 0
      %2005 = vmatmul.mubr.bf16.gmra.mxu0 %v1558
      %v2006 = vpop.f32.mrf.mxu0
      %v2007 = vadd.f32 %v1615, %v2006
      %v2008 = vpop.f32.mrf.mxu0
      %v2009 = vpop.f32.mrf.mxu0
      %v2010 = vadd.f32 %v1615, %v2009
      %v2011 = vpop.f32.mrf.mxu0
      %2012 = vmatprep.mubr.bf16.mxu0 0
      %2013 = vmatmul.mubr.bf16.gmra.mxu0 %v1559
      %v2014 = vpop.f32.mrf.mxu0
      %v2015 = vadd.f32 %v1615, %v2014
      %v2016 = vpop.f32.mrf.mxu0
      %v2017 = vpop.f32.mrf.mxu0
      %v2018 = vadd.f32 %v1615, %v2017
      %v2019 = vpop.f32.mrf.mxu0
      %2020 = vmatprep.mubr.bf16.mxu0 0
      %2021 = vmatmul.mubr.bf16.gmra.mxu0 %v1560
      %v2022 = vpop.f32.mrf.mxu0
      %v2023 = vadd.f32 %v1615, %v2022
      %v2024 = vpop.f32.mrf.mxu0
      %v2025 = vpop.f32.mrf.mxu0
      %v2026 = vadd.f32 %v1615, %v2025
      %v2027 = vpop.f32.mrf.mxu0
      %2028 = vmatprep.mubr.bf16.mxu0 0
      %2029 = vmatmul.mubr.bf16.gmra.mxu0 %v1561
      %v2030 = vpop.f32.mrf.mxu0
      %v2031 = vadd.f32 %v1615, %v2030
      %v2032 = vpop.f32.mrf.mxu0
      %v2033 = vpop.f32.mrf.mxu0
      %v2034 = vadd.f32 %v1615, %v2033
      %v2035 = vpop.f32.mrf.mxu0
      %2036 = vmatprep.mubr.bf16.mxu0 0
      %2037 = vmatmul.mubr.bf16.gmra.mxu0 %v1562
      %v2038 = vpop.f32.mrf.mxu0
      %v2039 = vadd.f32 %v1615, %v2038
      %v2040 = vpop.f32.mrf.mxu0
      %v2041 = vpop.f32.mrf.mxu0
      %v2042 = vadd.f32 %v1615, %v2041
      %v2043 = vpop.f32.mrf.mxu0
      %2044 = vmatprep.mubr.bf16.mxu0 0
      %2045 = vmatmul.mubr.bf16.gmra.mxu0 %v1563
      %v2046 = vpop.f32.mrf.mxu0
      %v2047 = vadd.f32 %v1615, %v2046
      %v2048 = vpop.f32.mrf.mxu0
      %v2049 = vpop.f32.mrf.mxu0
      %v2050 = vadd.f32 %v1615, %v2049
      %v2051 = vpop.f32.mrf.mxu0
      %2052 = vmatprep.mubr.bf16.mxu0 0
      %2053 = vmatmul.mubr.bf16.gmra.mxu0 %v1564
      %v2054 = vpop.f32.mrf.mxu0
      %v2055 = vadd.f32 %v1615, %v2054
      %v2056 = vpop.f32.mrf.mxu0
      %v2057 = vpop.f32.mrf.mxu0
      %v2058 = vadd.f32 %v1615, %v2057
      %v2059 = vpop.f32.mrf.mxu0
      %2060 = vmatprep.mubr.bf16.mxu0 0
      %2061 = vmatmul.mubr.bf16.gmra.mxu0 %v1565
      %v2062 = vpop.f32.mrf.mxu0
      %v2063 = vadd.f32 %v1615, %v2062
      %v2064 = vpop.f32.mrf.mxu0
      %v2065 = vpop.f32.mrf.mxu0
      %v2066 = vadd.f32 %v1615, %v2065
      %v2067 = vpop.f32.mrf.mxu0
      %2068 = vmatprep.mubr.bf16.mxu0 0
      %2069 = vmatmul.mubr.bf16.gmra.mxu0 %v1566
      %v2070 = vpop.f32.mrf.mxu0
      %v2071 = vadd.f32 %v1615, %v2070
      %v2072 = vpop.f32.mrf.mxu0
      %v2073 = vpop.f32.mrf.mxu0
      %v2074 = vadd.f32 %v1615, %v2073
      %v2075 = vpop.f32.mrf.mxu0
      %2076 = vmatprep.mubr.bf16.mxu0 0
      %2077 = vmatmul.mubr.bf16.gmra.mxu0 %v1567
      %v2078 = vpop.f32.mrf.mxu0
      %v2079 = vadd.f32 %v1615, %v2078
      %v2080 = vpop.f32.mrf.mxu0
      %v2081 = vpop.f32.mrf.mxu0
      %v2082 = vadd.f32 %v1615, %v2081
      %v2083 = vpop.f32.mrf.mxu0
      %2084 = vmatprep.mubr.bf16.mxu0 0
      %2085 = vmatmul.mubr.bf16.gmra.mxu0 %v1568
      %v2086 = vpop.f32.mrf.mxu0
      %v2087 = vadd.f32 %v1615, %v2086
      %v2088 = vpop.f32.mrf.mxu0
      %v2089 = vpop.f32.mrf.mxu0
      %v2090 = vadd.f32 %v1615, %v2089
      %v2091 = vpop.f32.mrf.mxu0
      %2092 = vmatprep.mubr.bf16.mxu0 0
      %2093 = vmatmul.mubr.bf16.gmra.mxu0 %v1569
      %v2094 = vpop.f32.mrf.mxu0
      %v2095 = vadd.f32 %v1615, %v2094
      %v2096 = vpop.f32.mrf.mxu0
      %v2097 = vpop.f32.mrf.mxu0
      %v2098 = vadd.f32 %v1615, %v2097
      %v2099 = vpop.f32.mrf.mxu0
      %2100 = vdwg.mxu0
      %v2101 = vpack.c.bf16 %v1786, %v1782
      %v2102 = vpack.c.bf16 %v1788, %v1784
      %v2103 = vpack.c.bf16 %v1978, %v1975
      %v2104 = vpack.c.bf16 %v1796, %v1792
      %v2105 = vpack.c.bf16 %v1798, %v1794
      %v2106 = vpack.c.bf16 %v1986, %v1983
      %v2107 = vpack.c.bf16 %v1806, %v1802
      %v2108 = vpack.c.bf16 %v1808, %v1804
      %v2109 = vpack.c.bf16 %v1994, %v1991
      %v2110 = vpack.c.bf16 %v1816, %v1812
      %v2111 = vpack.c.bf16 %v1818, %v1814
      %v2112 = vpack.c.bf16 %v2002, %v1999
      %v2113 = vpack.c.bf16 %v1826, %v1822
      %v2114 = vpack.c.bf16 %v1828, %v1824
      %v2115 = vpack.c.bf16 %v2010, %v2007
      %v2116 = vpack.c.bf16 %v1836, %v1832
      %v2117 = vpack.c.bf16 %v1838, %v1834
      %v2118 = vpack.c.bf16 %v2018, %v2015
      %v2119 = vpack.c.bf16 %v1846, %v1842
      %v2120 = vpack.c.bf16 %v1848, %v1844
      %v2121 = vpack.c.bf16 %v2026, %v2023
      %v2122 = vpack.c.bf16 %v1856, %v1852
      %v2123 = vpack.c.bf16 %v1858, %v1854
      %v2124 = vpack.c.bf16 %v2034, %v2031
      %v2125 = vpack.c.bf16 %v1866, %v1862
      %v2126 = vpack.c.bf16 %v1868, %v1864
      %v2127 = vpack.c.bf16 %v2042, %v2039
      %v2128 = vpack.c.bf16 %v1876, %v1872
      %v2129 = vpack.c.bf16 %v1878, %v1874
      %v2130 = vpack.c.bf16 %v2050, %v2047
      %v2131 = vpack.c.bf16 %v1886, %v1882
      %v2132 = vpack.c.bf16 %v1888, %v1884
      %v2133 = vpack.c.bf16 %v2058, %v2055
      %v2134 = vpack.c.bf16 %v1896, %v1892
      %v2135 = vpack.c.bf16 %v1898, %v1894
      %v2136 = vpack.c.bf16 %v2066, %v2063
      %v2137 = vpack.c.bf16 %v1906, %v1902
      %v2138 = vpack.c.bf16 %v1908, %v1904
      %v2139 = vpack.c.bf16 %v2074, %v2071
      %v2140 = vpack.c.bf16 %v1916, %v1912
      %v2141 = vpack.c.bf16 %v1918, %v1914
      %v2142 = vpack.c.bf16 %v2082, %v2079
      %v2143 = vpack.c.bf16 %v1926, %v1922
      %v2144 = vpack.c.bf16 %v1928, %v1924
      %v2145 = vpack.c.bf16 %v2090, %v2087
      %v2146 = vpack.c.bf16 %v1936, %v1932
      %v2147 = vpack.c.bf16 %v1938, %v1934
      %v2148 = vpack.c.bf16 %v2098, %v2095
      %v2197 = vunpack.c.l.b16 %v2101
      %v2198 = vunpack.c.l.b16 %v2102
      %v2199 = vunpack.c.l.b16 %v2103
      %v2200 = vunpack.c.h.b16 %v2101
      %v2201 = vunpack.c.h.b16 %v2102
      %v2202 = vunpack.c.h.b16 %v2103
      %v2203 = vunpack.c.l.b16 %v2104
      %v2204 = vunpack.c.l.b16 %v2105
      %v2205 = vunpack.c.l.b16 %v2106
      %v2206 = vunpack.c.h.b16 %v2104
      %v2207 = vunpack.c.h.b16 %v2105
      %v2208 = vunpack.c.h.b16 %v2106
      %v2209 = vunpack.c.l.b16 %v2107
      %v2210 = vunpack.c.l.b16 %v2108
      %v2211 = vunpack.c.l.b16 %v2109
      %v2212 = vunpack.c.h.b16 %v2107
      %v2213 = vunpack.c.h.b16 %v2108
      %v2214 = vunpack.c.h.b16 %v2109
      %v2215 = vunpack.c.l.b16 %v2110
      %v2216 = vunpack.c.l.b16 %v2111
      %v2217 = vunpack.c.l.b16 %v2112
      %v2218 = vunpack.c.h.b16 %v2110
      %v2219 = vunpack.c.h.b16 %v2111
      %v2220 = vunpack.c.h.b16 %v2112
      %v2221 = vunpack.c.l.b16 %v2113
      %v2222 = vunpack.c.l.b16 %v2114
      %v2223 = vunpack.c.l.b16 %v2115
      %v2224 = vunpack.c.h.b16 %v2113
      %v2225 = vunpack.c.h.b16 %v2114
      %v2226 = vunpack.c.h.b16 %v2115
      %v2227 = vunpack.c.l.b16 %v2116
      %v2228 = vunpack.c.l.b16 %v2117
      %v2229 = vunpack.c.l.b16 %v2118
      %v2230 = vunpack.c.h.b16 %v2116
      %v2231 = vunpack.c.h.b16 %v2117
      %v2232 = vunpack.c.h.b16 %v2118
      %v2233 = vunpack.c.l.b16 %v2119
      %v2234 = vunpack.c.l.b16 %v2120
      %v2235 = vunpack.c.l.b16 %v2121
      %v2236 = vunpack.c.h.b16 %v2119
      %v2237 = vunpack.c.h.b16 %v2120
      %v2238 = vunpack.c.h.b16 %v2121
      %v2239 = vunpack.c.l.b16 %v2122
      %v2240 = vunpack.c.l.b16 %v2123
      %v2241 = vunpack.c.l.b16 %v2124
      %v2242 = vunpack.c.h.b16 %v2122
      %v2243 = vunpack.c.h.b16 %v2123
      %v2244 = vunpack.c.h.b16 %v2124
      %v2245 = vunpack.c.l.b16 %v2125
      %v2246 = vunpack.c.l.b16 %v2126
      %v2247 = vunpack.c.l.b16 %v2127
      %v2248 = vunpack.c.h.b16 %v2125
      %v2249 = vunpack.c.h.b16 %v2126
      %v2250 = vunpack.c.h.b16 %v2127
      %v2251 = vunpack.c.l.b16 %v2128
      %v2252 = vunpack.c.l.b16 %v2129
      %v2253 = vunpack.c.l.b16 %v2130
      %v2254 = vunpack.c.h.b16 %v2128
      %v2255 = vunpack.c.h.b16 %v2129
      %v2256 = vunpack.c.h.b16 %v2130
      %v2257 = vunpack.c.l.b16 %v2131
      %v2258 = vunpack.c.l.b16 %v2132
      %v2259 = vunpack.c.l.b16 %v2133
      %v2260 = vunpack.c.h.b16 %v2131
      %v2261 = vunpack.c.h.b16 %v2132
      %v2262 = vunpack.c.h.b16 %v2133
      %v2263 = vunpack.c.l.b16 %v2134
      %v2264 = vunpack.c.l.b16 %v2135
      %v2265 = vunpack.c.l.b16 %v2136
      %v2266 = vunpack.c.h.b16 %v2134
      %v2267 = vunpack.c.h.b16 %v2135
      %v2268 = vunpack.c.h.b16 %v2136
      %v2269 = vunpack.c.l.b16 %v2137
      %v2270 = vunpack.c.l.b16 %v2138
      %v2271 = vunpack.c.l.b16 %v2139
      %v2272 = vunpack.c.h.b16 %v2137
      %v2273 = vunpack.c.h.b16 %v2138
      %v2274 = vunpack.c.h.b16 %v2139
      %v2275 = vunpack.c.l.b16 %v2140
      %v2276 = vunpack.c.l.b16 %v2141
      %v2277 = vunpack.c.l.b16 %v2142
      %v2278 = vunpack.c.h.b16 %v2140
      %v2279 = vunpack.c.h.b16 %v2141
      %v2280 = vunpack.c.h.b16 %v2142
      %v2281 = vunpack.c.l.b16 %v2143
      %v2282 = vunpack.c.l.b16 %v2144
      %v2283 = vunpack.c.l.b16 %v2145
      %v2284 = vunpack.c.h.b16 %v2143
      %v2285 = vunpack.c.h.b16 %v2144
      %v2286 = vunpack.c.h.b16 %v2145
      %v2287 = vunpack.c.l.b16 %v2146
      %v2288 = vunpack.c.l.b16 %v2147
      %v2289 = vunpack.c.l.b16 %v2148
      %v2290 = vunpack.c.h.b16 %v2146
      %v2291 = vunpack.c.h.b16 %v2147
      %v2292 = vunpack.c.h.b16 %v2148
      %v2293 = vpack.c.b16 %v2198, %v2197
      %v2294 = vpack.c.b16 %v2199, %v2199
      %v2295 = vpack.c.b16 %v2201, %v2200
      %v2296 = vpack.c.b16 %v2202, %v2202
      %v2297 = vpack.c.b16 %v2204, %v2203
      %v2298 = vpack.c.b16 %v2205, %v2205
      %v2299 = vpack.c.b16 %v2207, %v2206
      %v2300 = vpack.c.b16 %v2208, %v2208
      %v2301 = vpack.c.b16 %v2210, %v2209
      %v2302 = vpack.c.b16 %v2211, %v2211
      %v2303 = vpack.c.b16 %v2213, %v2212
      %v2304 = vpack.c.b16 %v2214, %v2214
      %v2305 = vpack.c.b16 %v2216, %v2215
      %v2306 = vpack.c.b16 %v2217, %v2217
      %v2307 = vpack.c.b16 %v2219, %v2218
      %v2308 = vpack.c.b16 %v2220, %v2220
      %v2309 = vpack.c.b16 %v2222, %v2221
      %v2310 = vpack.c.b16 %v2223, %v2223
      %v2311 = vpack.c.b16 %v2225, %v2224
      %v2312 = vpack.c.b16 %v2226, %v2226
      %v2313 = vpack.c.b16 %v2228, %v2227
      %v2314 = vpack.c.b16 %v2229, %v2229
      %v2315 = vpack.c.b16 %v2231, %v2230
      %v2316 = vpack.c.b16 %v2232, %v2232
      %v2317 = vpack.c.b16 %v2234, %v2233
      %v2318 = vpack.c.b16 %v2235, %v2235
      %v2319 = vpack.c.b16 %v2237, %v2236
      %v2320 = vpack.c.b16 %v2238, %v2238
      %v2321 = vpack.c.b16 %v2240, %v2239
      %v2322 = vpack.c.b16 %v2241, %v2241
      %v2323 = vpack.c.b16 %v2243, %v2242
      %v2324 = vpack.c.b16 %v2244, %v2244
      %v2325 = vpack.c.b16 %v2246, %v2245
      %v2326 = vpack.c.b16 %v2247, %v2247
      %v2327 = vpack.c.b16 %v2249, %v2248
      %v2328 = vpack.c.b16 %v2250, %v2250
      %v2329 = vpack.c.b16 %v2252, %v2251
      %v2330 = vpack.c.b16 %v2253, %v2253
      %v2331 = vpack.c.b16 %v2255, %v2254
      %v2332 = vpack.c.b16 %v2256, %v2256
      %v2333 = vpack.c.b16 %v2258, %v2257
      %v2334 = vpack.c.b16 %v2259, %v2259
      %v2335 = vpack.c.b16 %v2261, %v2260
      %v2336 = vpack.c.b16 %v2262, %v2262
      %v2337 = vpack.c.b16 %v2264, %v2263
      %v2338 = vpack.c.b16 %v2265, %v2265
      %v2339 = vpack.c.b16 %v2267, %v2266
      %v2340 = vpack.c.b16 %v2268, %v2268
      %v2341 = vpack.c.b16 %v2270, %v2269
      %v2342 = vpack.c.b16 %v2271, %v2271
      %v2343 = vpack.c.b16 %v2273, %v2272
      %v2344 = vpack.c.b16 %v2274, %v2274
      %v2345 = vpack.c.b16 %v2276, %v2275
      %v2346 = vpack.c.b16 %v2277, %v2277
      %v2347 = vpack.c.b16 %v2279, %v2278
      %v2348 = vpack.c.b16 %v2280, %v2280
      %v2349 = vpack.c.b16 %v2282, %v2281
      %v2350 = vpack.c.b16 %v2283, %v2283
      %v2351 = vpack.c.b16 %v2285, %v2284
      %v2352 = vpack.c.b16 %v2286, %v2286
      %v2353 = vpack.c.b16 %v2288, %v2287
      %v2354 = vpack.c.b16 %v2289, %v2289
      %v2355 = vpack.c.b16 %v2291, %v2290
      %v2356 = vpack.c.b16 %v2292, %v2292
      %2421 = vst [vmem:[#allocation3] sm:$0xff] %v2293
      %2422 = vst [vmem:[#allocation3 + $0x8] sm:$0xf] %v2294
      %2423 = vst [vmem:[#allocation3 + $0xc] sm:$0xff] %v2295
      %2424 = vst [vmem:[#allocation3 + $0x14] sm:$0xf] %v2296
      %2425 = vst [vmem:[#allocation3 + $0x18] sm:$0xff] %v2297
      %2426 = vst [vmem:[#allocation3 + $0x20] sm:$0xf] %v2298
      %2427 = vst [vmem:[#allocation3 + $0x24] sm:$0xff] %v2299
      %2428 = vst [vmem:[#allocation3 + $0x2c] sm:$0xf] %v2300
      %2429 = vst [vmem:[#allocation3 + $0x30] sm:$0xff] %v2301
      %2430 = vst [vmem:[#allocation3 + $0x38] sm:$0xf] %v2302
      %2431 = vst [vmem:[#allocation3 + $0x3c] sm:$0xff] %v2303
      %2432 = vst [vmem:[#allocation3 + $0x44] sm:$0xf] %v2304
      %2433 = vst [vmem:[#allocation3 + $0x48] sm:$0xff] %v2305
      %2434 = vst [vmem:[#allocation3 + $0x50] sm:$0xf] %v2306
      %2435 = vst [vmem:[#allocation3 + $0x54] sm:$0xff] %v2307
      %2436 = vst [vmem:[#allocation3 + $0x5c] sm:$0xf] %v2308
      %2437 = vst [vmem:[#allocation3 + $0x60] sm:$0xff] %v2309
      %2438 = vst [vmem:[#allocation3 + $0x68] sm:$0xf] %v2310
      %2439 = vst [vmem:[#allocation3 + $0x6c] sm:$0xff] %v2311
      %2440 = vst [vmem:[#allocation3 + $0x74] sm:$0xf] %v2312
      %2441 = vst [vmem:[#allocation3 + $0x78] sm:$0xff] %v2313
      %2442 = vst [vmem:[#allocation3 + $0x80] sm:$0xf] %v2314
      %2443 = vst [vmem:[#allocation3 + $0x84] sm:$0xff] %v2315
      %2444 = vst [vmem:[#allocation3 + $0x8c] sm:$0xf] %v2316
      %2445 = vst [vmem:[#allocation3 + $0x90] sm:$0xff] %v2317
      %2446 = vst [vmem:[#allocation3 + $0x98] sm:$0xf] %v2318
      %2447 = vst [vmem:[#allocation3 + $0x9c] sm:$0xff] %v2319
      %2448 = vst [vmem:[#allocation3 + $0xa4] sm:$0xf] %v2320
      %2449 = vst [vmem:[#allocation3 + $0xa8] sm:$0xff] %v2321
      %2450 = vst [vmem:[#allocation3 + $0xb0] sm:$0xf] %v2322
      %2451 = vst [vmem:[#allocation3 + $0xb4] sm:$0xff] %v2323
      %2452 = vst [vmem:[#allocation3 + $0xbc] sm:$0xf] %v2324
      %2453 = vst [vmem:[#allocation3 + $0xc0] sm:$0xff] %v2325
      %2454 = vst [vmem:[#allocation3 + $0xc8] sm:$0xf] %v2326
      %2455 = vst [vmem:[#allocation3 + $0xcc] sm:$0xff] %v2327
      %2456 = vst [vmem:[#allocation3 + $0xd4] sm:$0xf] %v2328
      %2457 = vst [vmem:[#allocation3 + $0xd8] sm:$0xff] %v2329
      %2458 = vst [vmem:[#allocation3 + $0xe0] sm:$0xf] %v2330
      %2459 = vst [vmem:[#allocation3 + $0xe4] sm:$0xff] %v2331
      %2460 = vst [vmem:[#allocation3 + $0xec] sm:$0xf] %v2332
      %2461 = vst [vmem:[#allocation3 + $0xf0] sm:$0xff] %v2333
      %2462 = vst [vmem:[#allocation3 + $0xf8] sm:$0xf] %v2334
      %2463 = vst [vmem:[#allocation3 + $0xfc] sm:$0xff] %v2335
      %2464 = vst [vmem:[#allocation3 + $0x104] sm:$0xf] %v2336
      %2465 = vst [vmem:[#allocation3 + $0x108] sm:$0xff] %v2337
      %2466 = vst [vmem:[#allocation3 + $0x110] sm:$0xf] %v2338
      %2467 = vst [vmem:[#allocation3 + $0x114] sm:$0xff] %v2339
      %2468 = vst [vmem:[#allocation3 + $0x11c] sm:$0xf] %v2340
      %2469 = vst [vmem:[#allocation3 + $0x120] sm:$0xff] %v2341
      %2470 = vst [vmem:[#allocation3 + $0x128] sm:$0xf] %v2342
      %2471 = vst [vmem:[#allocation3 + $0x12c] sm:$0xff] %v2343
      %2472 = vst [vmem:[#allocation3 + $0x134] sm:$0xf] %v2344
      %2473 = vst [vmem:[#allocation3 + $0x138] sm:$0xff] %v2345
      %2474 = vst [vmem:[#allocation3 + $0x140] sm:$0xf] %v2346
      %2475 = vst [vmem:[#allocation3 + $0x144] sm:$0xff] %v2347
      %2476 = vst [vmem:[#allocation3 + $0x14c] sm:$0xf] %v2348
      %2477 = vst [vmem:[#allocation3 + $0x150] sm:$0xff] %v2349
      %2478 = vst [vmem:[#allocation3 + $0x158] sm:$0xf] %v2350
      %2479 = vst [vmem:[#allocation3 + $0x15c] sm:$0xff] %v2351
      %2480 = vst [vmem:[#allocation3 + $0x164] sm:$0xf] %v2352
      %2481 = vst [vmem:[#allocation3 + $0x168] sm:$0xff] %v2353
      %2482 = vst [vmem:[#allocation3 + $0x170] sm:$0xf] %v2354
      %2483 = vst [vmem:[#allocation3 + $0x174] sm:$0xff] %v2355
      %2484 = vst [vmem:[#allocation3 + $0x17c] sm:$0xf] %v2356
      %v2485 = vld [vmem:[%s8] sm:$0xf]
      %v2486 = vld [vmem:[%s8 + $0x4] sm:$0xf]
      %v2487 = vld [vmem:[%s8 + $0x8] sm:$0xf]
      %v2488 = vld [vmem:[%s8 + $0xc] sm:$0xf]
      %v2489 = vld [vmem:[%s8 + $0x10] sm:$0xf]
      %v2490 = vld [vmem:[%s8 + $0x14] sm:$0xf]
      %v2491 = vld [vmem:[%s8 + $0x18] sm:$0xf]
      %v2492 = vld [vmem:[%s8 + $0x1c] sm:$0xf]
      %v2493 = vld [vmem:[%s8 + $0x20] sm:$0xf]
      %v2494 = vld [vmem:[%s8 + $0x24] sm:$0xf]
      %v2495 = vld [vmem:[%s8 + $0x28] sm:$0xf]
      %v2496 = vld [vmem:[%s8 + $0x2c] sm:$0xf]
      %v2497 = vld [vmem:[%s8 + $0x30] sm:$0xf]
      %v2498 = vld [vmem:[%s8 + $0x34] sm:$0xf]
      %v2499 = vld [vmem:[%s8 + $0x38] sm:$0xf]
      %v2500 = vld [vmem:[%s8 + $0x3c] sm:$0xf]
      %v2501 = vld [vmem:[%s9] sm:$0x1]
      loop: start=0, step=1, limit=8
      $region101: #{vit_forward.1} parent=99 // loop_pre_header
        _
      $region102: #{vit_forward.1} parent=99 // loop_header
        %s2503 = sphi 0, %s2507
        %p2504 = scmp.ge.s32.totalorder %s2503, 8
      $region103: #{vit_forward.1} parent=99 // loop_header_branch
        %2506 = sbr.rel (%p2504) target = $region107
      $region104: #{vit_forward.1} parent=99 // loop_body
        %s2508 = smul.u32 %s2503, 32
        %s2509 = sshra.s32 %s2508, 3
        %s2510 = sand.u32 %s2508, 7
        %s2511 = smul.u32 %s2509, 3
        %s2512 = smul.addr %s2511, 4
        %s2513 = scalar_lea.vmem [#allocation3], %s2512
        %v2514 = vld [vmem:[%s2513] sm:$0xff]
        %v2515 = vld [vmem:[%s2513 + $0x8] sm:$0xf]
        %v2516 = vld [vmem:[%s2513 + $0xc] sm:$0xff]
        %v2517 = vld [vmem:[%s2513 + $0x14] sm:$0xf]
        %v2518 = vld [vmem:[%s2513 + $0x18] sm:$0xff]
        %v2519 = vld [vmem:[%s2513 + $0x20] sm:$0xf]
        %v2520 = vld [vmem:[%s2513 + $0x24] sm:$0xff]
        %v2521 = vld [vmem:[%s2513 + $0x2c] sm:$0xf]
        %v2526 = vunpack.c.l.b16 %v2514
        %v2527 = vunpack.c.l.b16 %v2516
        %v2528 = vunpack.c.l.b16 %v2518
        %v2529 = vunpack.c.l.b16 %v2520
        %v2530 = vpack.c.b16 %v2527, %v2526
        %v2531 = vpack.c.b16 %v2529, %v2528
        %v2532 = vunpack.c.h.b16 %v2514
        %v2533 = vunpack.c.h.b16 %v2516
        %v2534 = vunpack.c.h.b16 %v2518
        %v2535 = vunpack.c.h.b16 %v2520
        %v2536 = vpack.c.b16 %v2533, %v2532
        %v2537 = vpack.c.b16 %v2535, %v2534
        %vm2538 = vcmask 261120
        %v2540 = vsel %vm2538, %v2530, 0
        %v2543 = vsel %vm2538, %v2531, 0
        %v2546 = vsel %vm2538, %v2536, 0
        %v2549 = vsel %vm2538, %v2537, 0
        %2551 = vmatprep.subr.bf16.mxu0 0
        %2552 = vmatpush1.bf16.xpose.msra.mxu0 0
        %2553 = vmatprep.subr.bf16.mxu0 0
        %2554 = vmatpush1.bf16.xpose.msra.mxu0 0
        %2555 = vmatprep.subr.bf16.mxu0 0
        %2556 = vmatpush1.bf16.xpose.msra.mxu0 0
        %2557 = vmatprep.subr.bf16.mxu0 0
        %2558 = vmatpush1.bf16.xpose.msra.mxu0 0
        %2559 = vmatprep.subr.bf16.mxu0 0
        %2560 = vmatpush1.bf16.xpose.msra.mxu0 0
        %2561 = vmatprep.subr.bf16.mxu0 0
        %2562 = vmatpush1.bf16.xpose.msra.mxu0 0
        %2563 = vmatprep.subr.bf16.mxu0 0
        %2564 = vmatpush1.bf16.xpose.msra.mxu0 %v2549
        %2565 = vmatprep.subr.bf16.mxu0 0
        %2566 = vmatpush1.bf16.xpose.msra.mxu0 %v2546
        %2567 = vmatprep.subr.bf16.mxu0 0
        %2568 = vmatpush2.bf16.xpose.msra.mxu0 0
        %2569 = vmatprep.subr.bf16.mxu0 0
        %2570 = vmatpush2.bf16.xpose.msra.mxu0 0
        %2571 = vmatprep.subr.bf16.mxu0 0
        %2572 = vmatpush2.bf16.xpose.msra.mxu0 0
        %2573 = vmatprep.subr.bf16.mxu0 0
        %2574 = vmatpush2.bf16.xpose.msra.mxu0 0
        %2575 = vmatprep.subr.bf16.mxu0 0
        %2576 = vmatpush2.bf16.xpose.msra.mxu0 0
        %2577 = vmatprep.subr.bf16.mxu0 0
        %2578 = vmatpush2.bf16.xpose.msra.mxu0 0
        %2579 = vmatprep.subr.bf16.mxu0 0
        %2580 = vmatpush2.bf16.xpose.msra.mxu0 0
        %2581 = vmatprep.subr.bf16.mxu0 0
        %2582 = vmatpush2.bf16.xpose.msra.mxu0 0
        %2583 = vmatprep.mubr.bf16.mxu0 0
        %2584 = vmatmul.mubr.bf16.gmra.mxu0 %v2540
        %v2585 = vpop.f32.mrf.mxu0
        %v2586 = vadd.f32 %v1090, %v2585
        %v2587 = vpop.f32.mrf.mxu0
        %v2588 = vpop.f32.mrf.mxu0
        %v2589 = vadd.f32 %v1090, %v2588
        %v2590 = vpop.f32.mrf.mxu0
        %2591 = vmatprep.mubr.bf16.mxu0 0
        %2592 = vmatmul.mubr.bf16.gmra.mxu0 %v2543
        %v2593 = vpop.f32.mrf.mxu0
        %v2594 = vadd.f32 %v1090, %v2593
        %v2595 = vpop.f32.mrf.mxu0
        %v2596 = vpop.f32.mrf.mxu0
        %v2597 = vadd.f32 %v1090, %v2596
        %v2598 = vpop.f32.mrf.mxu0
        %2599 = vdwg.mxu0
        %v2600 = vsel %vm2538, %v2586, -inf
        %2601 = vmax.xlane.f32.xlu0 %v2600
        %v2602 = vpop.xlane.xlu0 %2601
        %v2603 = vsel %vm2538, %v2589, -inf
        %2604 = vmax.xlane.f32.xlu0 %v2603
        %v2605 = vpop.xlane.xlu0 %2604
        %v2606 = vsel %vm2538, %v2594, -inf
        %2607 = vmax.xlane.f32.xlu0 %v2606
        %v2608 = vpop.xlane.xlu0 %2607
        %v2609 = vsel %vm2538, %v2597, -inf
        %2610 = vmax.xlane.f32.xlu0 %v2609
        %v2611 = vpop.xlane.xlu0 %2610
        %v2612 = vsub.f32 %v2586, %v2602
        %v2613 = vsub.f32 %v2589, %v2605
        %v2614 = vsub.f32 %v2594, %v2608
        %v2615 = vsub.f32 %v2597, %v2611
        %v2616 = vmul.f32 %v2612, 1.442695
        %v2617 = vpow.pop %v2616
        %v2618 = vmul.f32 %v2613, 1.442695
        %v2619 = vpow.pop %v2618
        %v2620 = vmul.f32 %v2614, 1.442695
        %v2621 = vpow.pop %v2620
        %v2622 = vmul.f32 %v2615, 1.442695
        %v2623 = vpow.pop %v2622
        %v2624 = vsel %vm2538, %v2617, 0.0
        %2625 = vadd.xlane.f32.xlu0 %v2624
        %v2626 = vpop.xlane.xlu0 %2625
        %v2627 = vsel %vm2538, %v2619, 0.0
        %2628 = vadd.xlane.f32.xlu0 %v2627
        %v2629 = vpop.xlane.xlu0 %2628
        %v2630 = vsel %vm2538, %v2621, 0.0
        %2631 = vadd.xlane.f32.xlu0 %v2630
        %v2632 = vpop.xlane.xlu0 %2631
        %v2633 = vsel %vm2538, %v2623, 0.0
        %2634 = vadd.xlane.f32.xlu0 %v2633
        %v2635 = vpop.xlane.xlu0 %2634
        %v2636 = vrcp.pop %v2626
        %v2637 = vrcp.pop %v2629
        %v2638 = vrcp.pop %v2632
        %v2639 = vrcp.pop %v2635
        %v2640 = vmul.f32 %v2617, %v2636
        %v2641 = vmul.f32 %v2619, %v2637
        %v2642 = vmul.f32 %v2621, %v2638
        %v2643 = vmul.f32 %v2623, %v2639
        %v2644 = vpack.c.bf16 %v2641, %v2640
        %v2645 = vpack.c.bf16 %v2643, %v2642
        %v2650 = vunpack.c.l.b16 %v2515
        %v2651 = vunpack.c.l.b16 %v2517
        %v2652 = vunpack.c.l.b16 %v2519
        %v2653 = vunpack.c.l.b16 %v2521
        %v2654 = vpack.c.b16 %v2651, %v2650
        %v2655 = vpack.c.b16 %v2653, %v2652
        %v2659 = vsel %vm2538, %v2644, 0
        %v2662 = vsel %vm2538, %v2645, 0
        %2664 = vmatprep.subr.bf16.mxu0 0
        %2665 = vmatpush1.bf16.msra.mxu0 0
        %2666 = vmatprep.subr.bf16.mxu0 0
        %2667 = vmatpush1.bf16.msra.mxu0 0
        %2668 = vmatprep.subr.bf16.mxu0 0
        %2669 = vmatpush1.bf16.msra.mxu0 0
        %2670 = vmatprep.subr.bf16.mxu0 0
        %2671 = vmatpush1.bf16.msra.mxu0 0
        %2672 = vmatprep.subr.bf16.mxu0 0
        %2673 = vmatpush1.bf16.msra.mxu0 0
        %2674 = vmatprep.subr.bf16.mxu0 0
        %2675 = vmatpush1.bf16.msra.mxu0 0
        %2676 = vmatprep.subr.bf16.mxu0 0
        %2677 = vmatpush1.bf16.msra.mxu0 %v2655
        %2678 = vmatprep.subr.bf16.mxu0 0
        %2679 = vmatpush1.bf16.msra.mxu0 %v2654
        %2680 = vmatprep.subr.bf16.mxu0 0
        %2681 = vmatpush2.bf16.msra.mxu0 0
        %2682 = vmatprep.subr.bf16.mxu0 0
        %2683 = vmatpush2.bf16.msra.mxu0 0
        %2684 = vmatprep.subr.bf16.mxu0 0
        %2685 = vmatpush2.bf16.msra.mxu0 0
        %2686 = vmatprep.subr.bf16.mxu0 0
        %2687 = vmatpush2.bf16.msra.mxu0 0
        %2688 = vmatprep.subr.bf16.mxu0 0
        %2689 = vmatpush2.bf16.msra.mxu0 0
        %2690 = vmatprep.subr.bf16.mxu0 0
        %2691 = vmatpush2.bf16.msra.mxu0 0
        %2692 = vmatprep.subr.bf16.mxu0 0
        %2693 = vmatpush2.bf16.msra.mxu0 0
        %2694 = vmatprep.subr.bf16.mxu0 0
        %2695 = vmatpush2.bf16.msra.mxu0 0
        %2696 = vmatprep.mubr.bf16.mxu0 0
        %2697 = vmatmul.mubr.bf16.gmra.mxu0 %v2659
        %v2698 = vpop.f32.mrf.mxu0
        %v2699 = vadd.f32 0.0, %v2698
        %v2700 = vpop.f32.mrf.mxu0
        %v2701 = vpop.f32.mrf.mxu0
        %v2702 = vadd.f32 0.0, %v2701
        %v2703 = vpop.f32.mrf.mxu0
        %2704 = vmatprep.mubr.bf16.mxu0 0
        %2705 = vmatmul.mubr.bf16.gmra.mxu0 %v2662
        %v2706 = vpop.f32.mrf.mxu0
        %v2707 = vadd.f32 0.0, %v2706
        %v2708 = vpop.f32.mrf.mxu0
        %v2709 = vpop.f32.mrf.mxu0
        %v2710 = vadd.f32 0.0, %v2709
        %v2711 = vpop.f32.mrf.mxu0
        %2712 = vdwg.mxu0
        %v2713 = vpack.c.bf16 %v2702, %v2699
        %v2714 = vpack.c.bf16 %v2710, %v2707
        %2715 = vrot.lane.b32.xlu0 %v2530, 96
        %v2716 = vpop.permute.xlu0 %2715
        %2717 = vrot.lane.b32.xlu0 %v2531, 96
        %v2718 = vpop.permute.xlu0 %2717
        %2719 = vrot.lane.b32.xlu0 %v2536, 96
        %v2720 = vpop.permute.xlu0 %2719
        %2721 = vrot.lane.b32.xlu0 %v2537, 96
        %v2722 = vpop.permute.xlu0 %2721
        %v2724 = vsel %vm2538, %v2716, 0
        %v2727 = vsel %vm2538, %v2718, 0
        %v2730 = vsel %vm2538, %v2720, 0
        %v2733 = vsel %vm2538, %v2722, 0
        %2735 = vmatprep.subr.bf16.mxu0 0
        %2736 = vmatpush1.bf16.xpose.msra.mxu0 0
        %2737 = vmatprep.subr.bf16.mxu0 0
        %2738 = vmatpush1.bf16.xpose.msra.mxu0 0
        %2739 = vmatprep.subr.bf16.mxu0 0
        %2740 = vmatpush1.bf16.xpose.msra.mxu0 0
        %2741 = vmatprep.subr.bf16.mxu0 0
        %2742 = vmatpush1.bf16.xpose.msra.mxu0 0
        %2743 = vmatprep.subr.bf16.mxu0 0
        %2744 = vmatpush1.bf16.xpose.msra.mxu0 0
        %2745 = vmatprep.subr.bf16.mxu0 0
        %2746 = vmatpush1.bf16.xpose.msra.mxu0 0
        %2747 = vmatprep.subr.bf16.mxu0 0
        %2748 = vmatpush1.bf16.xpose.msra.mxu0 %v2733
        %2749 = vmatprep.subr.bf16.mxu0 0
        %2750 = vmatpush1.bf16.xpose.msra.mxu0 %v2730
        %2751 = vmatprep.subr.bf16.mxu0 0
        %2752 = vmatpush2.bf16.xpose.msra.mxu0 0
        %2753 = vmatprep.subr.bf16.mxu0 0
        %2754 = vmatpush2.bf16.xpose.msra.mxu0 0
        %2755 = vmatprep.subr.bf16.mxu0 0
        %2756 = vmatpush2.bf16.xpose.msra.mxu0 0
        %2757 = vmatprep.subr.bf16.mxu0 0
        %2758 = vmatpush2.bf16.xpose.msra.mxu0 0
        %2759 = vmatprep.subr.bf16.mxu0 0
        %2760 = vmatpush2.bf16.xpose.msra.mxu0 0
        %2761 = vmatprep.subr.bf16.mxu0 0
        %2762 = vmatpush2.bf16.xpose.msra.mxu0 0
        %2763 = vmatprep.subr.bf16.mxu0 0
        %2764 = vmatpush2.bf16.xpose.msra.mxu0 0
        %2765 = vmatprep.subr.bf16.mxu0 0
        %2766 = vmatpush2.bf16.xpose.msra.mxu0 0
        %2767 = vmatprep.mubr.bf16.mxu0 0
        %2768 = vmatmul.mubr.bf16.gmra.mxu0 %v2724
        %v2769 = vpop.f32.mrf.mxu0
        %v2770 = vadd.f32 %v1090, %v2769
        %v2771 = vpop.f32.mrf.mxu0
        %v2772 = vpop.f32.mrf.mxu0
        %v2773 = vadd.f32 %v1090, %v2772
        %v2774 = vpop.f32.mrf.mxu0
        %2775 = vmatprep.mubr.bf16.mxu0 0
        %2776 = vmatmul.mubr.bf16.gmra.mxu0 %v2727
        %v2777 = vpop.f32.mrf.mxu0
        %v2778 = vadd.f32 %v1090, %v2777
        %v2779 = vpop.f32.mrf.mxu0
        %v2780 = vpop.f32.mrf.mxu0
        %v2781 = vadd.f32 %v1090, %v2780
        %v2782 = vpop.f32.mrf.mxu0
        %2783 = vdwg.mxu0
        %v2784 = vsel %vm2538, %v2770, -inf
        %2785 = vmax.xlane.f32.xlu0 %v2784
        %v2786 = vpop.xlane.xlu0 %2785
        %v2787 = vsel %vm2538, %v2773, -inf
        %2788 = vmax.xlane.f32.xlu0 %v2787
        %v2789 = vpop.xlane.xlu0 %2788
        %v2790 = vsel %vm2538, %v2778, -inf
        %2791 = vmax.xlane.f32.xlu0 %v2790
        %v2792 = vpop.xlane.xlu0 %2791
        %v2793 = vsel %vm2538, %v2781, -inf
        %2794 = vmax.xlane.f32.xlu0 %v2793
        %v2795 = vpop.xlane.xlu0 %2794
        %v2796 = vsub.f32 %v2770, %v2786
        %v2797 = vsub.f32 %v2773, %v2789
        %v2798 = vsub.f32 %v2778, %v2792
        %v2799 = vsub.f32 %v2781, %v2795
        %v2800 = vmul.f32 %v2796, 1.442695
        %v2801 = vpow.pop %v2800
        %v2802 = vmul.f32 %v2797, 1.442695
        %v2803 = vpow.pop %v2802
        %v2804 = vmul.f32 %v2798, 1.442695
        %v2805 = vpow.pop %v2804
        %v2806 = vmul.f32 %v2799, 1.442695
        %v2807 = vpow.pop %v2806
        %v2808 = vsel %vm2538, %v2801, 0.0
        %2809 = vadd.xlane.f32.xlu0 %v2808
        %v2810 = vpop.xlane.xlu0 %2809
        %v2811 = vsel %vm2538, %v2803, 0.0
        %2812 = vadd.xlane.f32.xlu0 %v2811
        %v2813 = vpop.xlane.xlu0 %2812
        %v2814 = vsel %vm2538, %v2805, 0.0
        %2815 = vadd.xlane.f32.xlu0 %v2814
        %v2816 = vpop.xlane.xlu0 %2815
        %v2817 = vsel %vm2538, %v2807, 0.0
        %2818 = vadd.xlane.f32.xlu0 %v2817
        %v2819 = vpop.xlane.xlu0 %2818
        %v2820 = vrcp.pop %v2810
        %v2821 = vrcp.pop %v2813
        %v2822 = vrcp.pop %v2816
        %v2823 = vrcp.pop %v2819
        %v2824 = vmul.f32 %v2801, %v2820
        %v2825 = vmul.f32 %v2803, %v2821
        %v2826 = vmul.f32 %v2805, %v2822
        %v2827 = vmul.f32 %v2807, %v2823
        %v2828 = vpack.c.bf16 %v2825, %v2824
        %v2829 = vpack.c.bf16 %v2827, %v2826
        %2830 = vrot.lane.b32.xlu0 %v2654, 96
        %v2831 = vpop.permute.xlu0 %2830
        %2832 = vrot.lane.b32.xlu0 %v2655, 96
        %v2833 = vpop.permute.xlu0 %2832
        %v2837 = vsel %vm2538, %v2828, 0
        %v2840 = vsel %vm2538, %v2829, 0
        %2842 = vmatprep.subr.bf16.mxu0 0
        %2843 = vmatpush1.bf16.msra.mxu0 0
        %2844 = vmatprep.subr.bf16.mxu0 0
        %2845 = vmatpush1.bf16.msra.mxu0 0
        %2846 = vmatprep.subr.bf16.mxu0 0
        %2847 = vmatpush1.bf16.msra.mxu0 0
        %2848 = vmatprep.subr.bf16.mxu0 0
        %2849 = vmatpush1.bf16.msra.mxu0 0
        %2850 = vmatprep.subr.bf16.mxu0 0
        %2851 = vmatpush1.bf16.msra.mxu0 0
        %2852 = vmatprep.subr.bf16.mxu0 0
        %2853 = vmatpush1.bf16.msra.mxu0 0
        %2854 = vmatprep.subr.bf16.mxu0 0
        %2855 = vmatpush1.bf16.msra.mxu0 %v2833
        %2856 = vmatprep.subr.bf16.mxu0 0
        %2857 = vmatpush1.bf16.msra.mxu0 %v2831
        %2858 = vmatprep.subr.bf16.mxu0 0
        %2859 = vmatpush2.bf16.msra.mxu0 0
        %2860 = vmatprep.subr.bf16.mxu0 0
        %2861 = vmatpush2.bf16.msra.mxu0 0
        %2862 = vmatprep.subr.bf16.mxu0 0
        %2863 = vmatpush2.bf16.msra.mxu0 0
        %2864 = vmatprep.subr.bf16.mxu0 0
        %2865 = vmatpush2.bf16.msra.mxu0 0
        %2866 = vmatprep.subr.bf16.mxu0 0
        %2867 = vmatpush2.bf16.msra.mxu0 0
        %2868 = vmatprep.subr.bf16.mxu0 0
        %2869 = vmatpush2.bf16.msra.mxu0 0
        %2870 = vmatprep.subr.bf16.mxu0 0
        %2871 = vmatpush2.bf16.msra.mxu0 0
        %2872 = vmatprep.subr.bf16.mxu0 0
        %2873 = vmatpush2.bf16.msra.mxu0 0
        %2874 = vmatprep.mubr.bf16.mxu0 0
        %2875 = vmatmul.mubr.bf16.gmra.mxu0 %v2837
        %v2876 = vpop.f32.mrf.mxu0
        %v2877 = vadd.f32 0.0, %v2876
        %v2878 = vpop.f32.mrf.mxu0
        %v2879 = vpop.f32.mrf.mxu0
        %v2880 = vadd.f32 0.0, %v2879
        %v2881 = vpop.f32.mrf.mxu0
        %2882 = vmatprep.mubr.bf16.mxu0 0
        %2883 = vmatmul.mubr.bf16.gmra.mxu0 %v2840
        %v2884 = vpop.f32.mrf.mxu0
        %v2885 = vadd.f32 0.0, %v2884
        %v2886 = vpop.f32.mrf.mxu0
        %v2887 = vpop.f32.mrf.mxu0
        %v2888 = vadd.f32 0.0, %v2887
        %v2889 = vpop.f32.mrf.mxu0
        %2890 = vdwg.mxu0
        %v2891 = vpack.c.bf16 %v2880, %v2877
        %v2892 = vpack.c.bf16 %v2888, %v2885
        %v2897 = vunpack.c.l.b16 %v2489
        %v2898 = vunpack.c.l.b16 %v2490
        %v2899 = vunpack.c.l.b16 %v2491
        %v2900 = vunpack.c.l.b16 %v2492
        %v2901 = vpack.c.b16 %v2898, %v2897
        %v2902 = vpack.c.b16 %v2900, %v2899
        %v2906 = vsel %vm2538, %v2891, 0
        %v2909 = vsel %vm2538, %v2892, 0
        %2911 = vmatprep.subr.bf16.mxu0 0
        %2912 = vmatpush1.bf16.msra.mxu0 0
        %2913 = vmatprep.subr.bf16.mxu0 0
        %2914 = vmatpush1.bf16.msra.mxu0 0
        %2915 = vmatprep.subr.bf16.mxu0 0
        %2916 = vmatpush1.bf16.msra.mxu0 0
        %2917 = vmatprep.subr.bf16.mxu0 0
        %2918 = vmatpush1.bf16.msra.mxu0 0
        %2919 = vmatprep.subr.bf16.mxu0 0
        %2920 = vmatpush1.bf16.msra.mxu0 0
        %2921 = vmatprep.subr.bf16.mxu0 0
        %2922 = vmatpush1.bf16.msra.mxu0 0
        %2923 = vmatprep.subr.bf16.mxu0 0
        %2924 = vmatpush1.bf16.msra.mxu0 %v2902
        %2925 = vmatprep.subr.bf16.mxu0 0
        %2926 = vmatpush1.bf16.msra.mxu0 %v2901
        %2927 = vmatprep.subr.bf16.mxu0 0
        %2928 = vmatpush2.bf16.msra.mxu0 0
        %2929 = vmatprep.subr.bf16.mxu0 0
        %2930 = vmatpush2.bf16.msra.mxu0 0
        %2931 = vmatprep.subr.bf16.mxu0 0
        %2932 = vmatpush2.bf16.msra.mxu0 0
        %2933 = vmatprep.subr.bf16.mxu0 0
        %2934 = vmatpush2.bf16.msra.mxu0 0
        %2935 = vmatprep.subr.bf16.mxu0 0
        %2936 = vmatpush2.bf16.msra.mxu0 0
        %2937 = vmatprep.subr.bf16.mxu0 0
        %2938 = vmatpush2.bf16.msra.mxu0 0
        %2939 = vmatprep.subr.bf16.mxu0 0
        %2940 = vmatpush2.bf16.msra.mxu0 0
        %2941 = vmatprep.subr.bf16.mxu0 0
        %2942 = vmatpush2.bf16.msra.mxu0 0
        %2943 = vmatprep.mubr.bf16.mxu0 0
        %2944 = vmatmul.mubr.bf16.gmra.mxu0 %v2906
        %v2945 = vpop.f32.mrf.mxu0
        %v2946 = vadd.f32 0.0, %v2945
        %v2947 = vpop.f32.mrf.mxu0
        %v2948 = vpop.f32.mrf.mxu0
        %v2949 = vadd.f32 0.0, %v2948
        %v2950 = vpop.f32.mrf.mxu0
        %2951 = vmatprep.mubr.bf16.mxu0 0
        %2952 = vmatmul.mubr.bf16.gmra.mxu0 %v2909
        %v2953 = vpop.f32.mrf.mxu0
        %v2954 = vadd.f32 0.0, %v2953
        %v2955 = vpop.f32.mrf.mxu0
        %v2956 = vpop.f32.mrf.mxu0
        %v2957 = vadd.f32 0.0, %v2956
        %v2958 = vpop.f32.mrf.mxu0
        %2959 = vdwg.mxu0
        %v2964 = vunpack.c.l.b16 %v2485
        %v2965 = vunpack.c.l.b16 %v2486
        %v2966 = vunpack.c.l.b16 %v2487
        %v2967 = vunpack.c.l.b16 %v2488
        %v2968 = vpack.c.b16 %v2965, %v2964
        %v2969 = vpack.c.b16 %v2967, %v2966
        %v2973 = vsel %vm2538, %v2713, 0
        %v2976 = vsel %vm2538, %v2714, 0
        %2978 = vmatprep.subr.bf16.mxu0 0
        %2979 = vmatpush1.bf16.msra.mxu0 0
        %2980 = vmatprep.subr.bf16.mxu0 0
        %2981 = vmatpush1.bf16.msra.mxu0 0
        %2982 = vmatprep.subr.bf16.mxu0 0
        %2983 = vmatpush1.bf16.msra.mxu0 0
        %2984 = vmatprep.subr.bf16.mxu0 0
        %2985 = vmatpush1.bf16.msra.mxu0 0
        %2986 = vmatprep.subr.bf16.mxu0 0
        %2987 = vmatpush1.bf16.msra.mxu0 0
        %2988 = vmatprep.subr.bf16.mxu0 0
        %2989 = vmatpush1.bf16.msra.mxu0 0
        %2990 = vmatprep.subr.bf16.mxu0 0
        %2991 = vmatpush1.bf16.msra.mxu0 %v2969
        %2992 = vmatprep.subr.bf16.mxu0 0
        %2993 = vmatpush1.bf16.msra.mxu0 %v2968
        %2994 = vmatprep.subr.bf16.mxu0 0
        %2995 = vmatpush2.bf16.msra.mxu0 0
        %2996 = vmatprep.subr.bf16.mxu0 0
        %2997 = vmatpush2.bf16.msra.mxu0 0
        %2998 = vmatprep.subr.bf16.mxu0 0
        %2999 = vmatpush2.bf16.msra.mxu0 0
        %3000 = vmatprep.subr.bf16.mxu0 0
        %3001 = vmatpush2.bf16.msra.mxu0 0
        %3002 = vmatprep.subr.bf16.mxu0 0
        %3003 = vmatpush2.bf16.msra.mxu0 0
        %3004 = vmatprep.subr.bf16.mxu0 0
        %3005 = vmatpush2.bf16.msra.mxu0 0
        %3006 = vmatprep.subr.bf16.mxu0 0
        %3007 = vmatpush2.bf16.msra.mxu0 0
        %3008 = vmatprep.subr.bf16.mxu0 0
        %3009 = vmatpush2.bf16.msra.mxu0 0
        %3010 = vmatprep.mubr.bf16.mxu0 0
        %3011 = vmatmul.mubr.bf16.gmra.mxu0 %v2973
        %v3012 = vpop.f32.mrf.mxu0
        %v3013 = vadd.f32 %v2946, %v3012
        %v3014 = vpop.f32.mrf.mxu0
        %v3015 = vpop.f32.mrf.mxu0
        %v3016 = vadd.f32 %v2949, %v3015
        %v3017 = vpop.f32.mrf.mxu0
        %3018 = vmatprep.mubr.bf16.mxu0 0
        %3019 = vmatmul.mubr.bf16.gmra.mxu0 %v2976
        %v3020 = vpop.f32.mrf.mxu0
        %v3021 = vadd.f32 %v2954, %v3020
        %v3022 = vpop.f32.mrf.mxu0
        %v3023 = vpop.f32.mrf.mxu0
        %v3024 = vadd.f32 %v2957, %v3023
        %v3025 = vpop.f32.mrf.mxu0
        %3026 = vdwg.mxu0
        %3027 = vrot.lane.b32.xlu0 %v2530, 64
        %v3028 = vpop.permute.xlu0 %3027
        %3029 = vrot.lane.b32.xlu0 %v2531, 64
        %v3030 = vpop.permute.xlu0 %3029
        %3031 = vrot.lane.b32.xlu0 %v2536, 64
        %v3032 = vpop.permute.xlu0 %3031
        %3033 = vrot.lane.b32.xlu0 %v2537, 64
        %v3034 = vpop.permute.xlu0 %3033
        %v3036 = vsel %vm2538, %v3028, 0
        %v3039 = vsel %vm2538, %v3030, 0
        %v3042 = vsel %vm2538, %v3032, 0
        %v3045 = vsel %vm2538, %v3034, 0
        %3047 = vmatprep.subr.bf16.mxu0 0
        %3048 = vmatpush1.bf16.xpose.msra.mxu0 0
        %3049 = vmatprep.subr.bf16.mxu0 0
        %3050 = vmatpush1.bf16.xpose.msra.mxu0 0
        %3051 = vmatprep.subr.bf16.mxu0 0
        %3052 = vmatpush1.bf16.xpose.msra.mxu0 0
        %3053 = vmatprep.subr.bf16.mxu0 0
        %3054 = vmatpush1.bf16.xpose.msra.mxu0 0
        %3055 = vmatprep.subr.bf16.mxu0 0
        %3056 = vmatpush1.bf16.xpose.msra.mxu0 0
        %3057 = vmatprep.subr.bf16.mxu0 0
        %3058 = vmatpush1.bf16.xpose.msra.mxu0 0
        %3059 = vmatprep.subr.bf16.mxu0 0
        %3060 = vmatpush1.bf16.xpose.msra.mxu0 %v3045
        %3061 = vmatprep.subr.bf16.mxu0 0
        %3062 = vmatpush1.bf16.xpose.msra.mxu0 %v3042
        %3063 = vmatprep.subr.bf16.mxu0 0
        %3064 = vmatpush2.bf16.xpose.msra.mxu0 0
        %3065 = vmatprep.subr.bf16.mxu0 0
        %3066 = vmatpush2.bf16.xpose.msra.mxu0 0
        %3067 = vmatprep.subr.bf16.mxu0 0
        %3068 = vmatpush2.bf16.xpose.msra.mxu0 0
        %3069 = vmatprep.subr.bf16.mxu0 0
        %3070 = vmatpush2.bf16.xpose.msra.mxu0 0
        %3071 = vmatprep.subr.bf16.mxu0 0
        %3072 = vmatpush2.bf16.xpose.msra.mxu0 0
        %3073 = vmatprep.subr.bf16.mxu0 0
        %3074 = vmatpush2.bf16.xpose.msra.mxu0 0
        %3075 = vmatprep.subr.bf16.mxu0 0
        %3076 = vmatpush2.bf16.xpose.msra.mxu0 0
        %3077 = vmatprep.subr.bf16.mxu0 0
        %3078 = vmatpush2.bf16.xpose.msra.mxu0 0
        %3079 = vmatprep.mubr.bf16.mxu0 0
        %3080 = vmatmul.mubr.bf16.gmra.mxu0 %v3036
        %v3081 = vpop.f32.mrf.mxu0
        %v3082 = vadd.f32 %v1090, %v3081
        %v3083 = vpop.f32.mrf.mxu0
        %v3084 = vpop.f32.mrf.mxu0
        %v3085 = vadd.f32 %v1090, %v3084
        %v3086 = vpop.f32.mrf.mxu0
        %3087 = vmatprep.mubr.bf16.mxu0 0
        %3088 = vmatmul.mubr.bf16.gmra.mxu0 %v3039
        %v3089 = vpop.f32.mrf.mxu0
        %v3090 = vadd.f32 %v1090, %v3089
        %v3091 = vpop.f32.mrf.mxu0
        %v3092 = vpop.f32.mrf.mxu0
        %v3093 = vadd.f32 %v1090, %v3092
        %v3094 = vpop.f32.mrf.mxu0
        %3095 = vdwg.mxu0
        %v3096 = vsel %vm2538, %v3082, -inf
        %3097 = vmax.xlane.f32.xlu0 %v3096
        %v3098 = vpop.xlane.xlu0 %3097
        %v3099 = vsel %vm2538, %v3085, -inf
        %3100 = vmax.xlane.f32.xlu0 %v3099
        %v3101 = vpop.xlane.xlu0 %3100
        %v3102 = vsel %vm2538, %v3090, -inf
        %3103 = vmax.xlane.f32.xlu0 %v3102
        %v3104 = vpop.xlane.xlu0 %3103
        %v3105 = vsel %vm2538, %v3093, -inf
        %3106 = vmax.xlane.f32.xlu0 %v3105
        %v3107 = vpop.xlane.xlu0 %3106
        %v3108 = vsub.f32 %v3082, %v3098
        %v3109 = vsub.f32 %v3085, %v3101
        %v3110 = vsub.f32 %v3090, %v3104
        %v3111 = vsub.f32 %v3093, %v3107
        %v3112 = vmul.f32 %v3108, 1.442695
        %v3113 = vpow.pop %v3112
        %v3114 = vmul.f32 %v3109, 1.442695
        %v3115 = vpow.pop %v3114
        %v3116 = vmul.f32 %v3110, 1.442695
        %v3117 = vpow.pop %v3116
        %v3118 = vmul.f32 %v3111, 1.442695
        %v3119 = vpow.pop %v3118
        %v3120 = vsel %vm2538, %v3113, 0.0
        %3121 = vadd.xlane.f32.xlu0 %v3120
        %v3122 = vpop.xlane.xlu0 %3121
        %v3123 = vsel %vm2538, %v3115, 0.0
        %3124 = vadd.xlane.f32.xlu0 %v3123
        %v3125 = vpop.xlane.xlu0 %3124
        %v3126 = vsel %vm2538, %v3117, 0.0
        %3127 = vadd.xlane.f32.xlu0 %v3126
        %v3128 = vpop.xlane.xlu0 %3127
        %v3129 = vsel %vm2538, %v3119, 0.0
        %3130 = vadd.xlane.f32.xlu0 %v3129
        %v3131 = vpop.xlane.xlu0 %3130
        %v3132 = vrcp.pop %v3122
        %v3133 = vrcp.pop %v3125
        %v3134 = vrcp.pop %v3128
        %v3135 = vrcp.pop %v3131
        %v3136 = vmul.f32 %v3113, %v3132
        %v3137 = vmul.f32 %v3115, %v3133
        %v3138 = vmul.f32 %v3117, %v3134
        %v3139 = vmul.f32 %v3119, %v3135
        %v3140 = vpack.c.bf16 %v3137, %v3136
        %v3141 = vpack.c.bf16 %v3139, %v3138
        %3142 = vrot.lane.b32.xlu0 %v2654, 64
        %v3143 = vpop.permute.xlu0 %3142
        %3144 = vrot.lane.b32.xlu0 %v2655, 64
        %v3145 = vpop.permute.xlu0 %3144
        %v3149 = vsel %vm2538, %v3140, 0
        %v3152 = vsel %vm2538, %v3141, 0
        %3154 = vmatprep.subr.bf16.mxu0 0
        %3155 = vmatpush1.bf16.msra.mxu0 0
        %3156 = vmatprep.subr.bf16.mxu0 0
        %3157 = vmatpush1.bf16.msra.mxu0 0
        %3158 = vmatprep.subr.bf16.mxu0 0
        %3159 = vmatpush1.bf16.msra.mxu0 0
        %3160 = vmatprep.subr.bf16.mxu0 0
        %3161 = vmatpush1.bf16.msra.mxu0 0
        %3162 = vmatprep.subr.bf16.mxu0 0
        %3163 = vmatpush1.bf16.msra.mxu0 0
        %3164 = vmatprep.subr.bf16.mxu0 0
        %3165 = vmatpush1.bf16.msra.mxu0 0
        %3166 = vmatprep.subr.bf16.mxu0 0
        %3167 = vmatpush1.bf16.msra.mxu0 %v3145
        %3168 = vmatprep.subr.bf16.mxu0 0
        %3169 = vmatpush1.bf16.msra.mxu0 %v3143
        %3170 = vmatprep.subr.bf16.mxu0 0
        %3171 = vmatpush2.bf16.msra.mxu0 0
        %3172 = vmatprep.subr.bf16.mxu0 0
        %3173 = vmatpush2.bf16.msra.mxu0 0
        %3174 = vmatprep.subr.bf16.mxu0 0
        %3175 = vmatpush2.bf16.msra.mxu0 0
        %3176 = vmatprep.subr.bf16.mxu0 0
        %3177 = vmatpush2.bf16.msra.mxu0 0
        %3178 = vmatprep.subr.bf16.mxu0 0
        %3179 = vmatpush2.bf16.msra.mxu0 0
        %3180 = vmatprep.subr.bf16.mxu0 0
        %3181 = vmatpush2.bf16.msra.mxu0 0
        %3182 = vmatprep.subr.bf16.mxu0 0
        %3183 = vmatpush2.bf16.msra.mxu0 0
        %3184 = vmatprep.subr.bf16.mxu0 0
        %3185 = vmatpush2.bf16.msra.mxu0 0
        %3186 = vmatprep.mubr.bf16.mxu0 0
        %3187 = vmatmul.mubr.bf16.gmra.mxu0 %v3149
        %v3188 = vpop.f32.mrf.mxu0
        %v3189 = vadd.f32 0.0, %v3188
        %v3190 = vpop.f32.mrf.mxu0
        %v3191 = vpop.f32.mrf.mxu0
        %v3192 = vadd.f32 0.0, %v3191
        %v3193 = vpop.f32.mrf.mxu0
        %3194 = vmatprep.mubr.bf16.mxu0 0
        %3195 = vmatmul.mubr.bf16.gmra.mxu0 %v3152
        %v3196 = vpop.f32.mrf.mxu0
        %v3197 = vadd.f32 0.0, %v3196
        %v3198 = vpop.f32.mrf.mxu0
        %v3199 = vpop.f32.mrf.mxu0
        %v3200 = vadd.f32 0.0, %v3199
        %v3201 = vpop.f32.mrf.mxu0
        %3202 = vdwg.mxu0
        %v3203 = vpack.c.bf16 %v3192, %v3189
        %v3204 = vpack.c.bf16 %v3200, %v3197
        %v3209 = vunpack.c.l.b16 %v2493
        %v3210 = vunpack.c.l.b16 %v2494
        %v3211 = vunpack.c.l.b16 %v2495
        %v3212 = vunpack.c.l.b16 %v2496
        %v3213 = vpack.c.b16 %v3210, %v3209
        %v3214 = vpack.c.b16 %v3212, %v3211
        %v3218 = vsel %vm2538, %v3203, 0
        %v3221 = vsel %vm2538, %v3204, 0
        %3223 = vmatprep.subr.bf16.mxu0 0
        %3224 = vmatpush1.bf16.msra.mxu0 0
        %3225 = vmatprep.subr.bf16.mxu0 0
        %3226 = vmatpush1.bf16.msra.mxu0 0
        %3227 = vmatprep.subr.bf16.mxu0 0
        %3228 = vmatpush1.bf16.msra.mxu0 0
        %3229 = vmatprep.subr.bf16.mxu0 0
        %3230 = vmatpush1.bf16.msra.mxu0 0
        %3231 = vmatprep.subr.bf16.mxu0 0
        %3232 = vmatpush1.bf16.msra.mxu0 0
        %3233 = vmatprep.subr.bf16.mxu0 0
        %3234 = vmatpush1.bf16.msra.mxu0 0
        %3235 = vmatprep.subr.bf16.mxu0 0
        %3236 = vmatpush1.bf16.msra.mxu0 %v3214
        %3237 = vmatprep.subr.bf16.mxu0 0
        %3238 = vmatpush1.bf16.msra.mxu0 %v3213
        %3239 = vmatprep.subr.bf16.mxu0 0
        %3240 = vmatpush2.bf16.msra.mxu0 0
        %3241 = vmatprep.subr.bf16.mxu0 0
        %3242 = vmatpush2.bf16.msra.mxu0 0
        %3243 = vmatprep.subr.bf16.mxu0 0
        %3244 = vmatpush2.bf16.msra.mxu0 0
        %3245 = vmatprep.subr.bf16.mxu0 0
        %3246 = vmatpush2.bf16.msra.mxu0 0
        %3247 = vmatprep.subr.bf16.mxu0 0
        %3248 = vmatpush2.bf16.msra.mxu0 0
        %3249 = vmatprep.subr.bf16.mxu0 0
        %3250 = vmatpush2.bf16.msra.mxu0 0
        %3251 = vmatprep.subr.bf16.mxu0 0
        %3252 = vmatpush2.bf16.msra.mxu0 0
        %3253 = vmatprep.subr.bf16.mxu0 0
        %3254 = vmatpush2.bf16.msra.mxu0 0
        %3255 = vmatprep.mubr.bf16.mxu0 0
        %3256 = vmatmul.mubr.bf16.gmra.mxu0 %v3218
        %v3257 = vpop.f32.mrf.mxu0
        %v3258 = vadd.f32 0.0, %v3257
        %v3259 = vpop.f32.mrf.mxu0
        %v3260 = vpop.f32.mrf.mxu0
        %v3261 = vadd.f32 0.0, %v3260
        %v3262 = vpop.f32.mrf.mxu0
        %3263 = vmatprep.mubr.bf16.mxu0 0
        %3264 = vmatmul.mubr.bf16.gmra.mxu0 %v3221
        %v3265 = vpop.f32.mrf.mxu0
        %v3266 = vadd.f32 0.0, %v3265
        %v3267 = vpop.f32.mrf.mxu0
        %v3268 = vpop.f32.mrf.mxu0
        %v3269 = vadd.f32 0.0, %v3268
        %v3270 = vpop.f32.mrf.mxu0
        %3271 = vdwg.mxu0
        %v3272 = vadd.f32 %v3013, %v3258
        %v3273 = vadd.f32 %v3016, %v3261
        %v3274 = vadd.f32 %v3021, %v3266
        %v3275 = vadd.f32 %v3024, %v3269
        %3276 = vrot.lane.b32.xlu0 %v2530, 32
        %v3277 = vpop.permute.xlu0 %3276
        %3278 = vrot.lane.b32.xlu0 %v2531, 32
        %v3279 = vpop.permute.xlu0 %3278
        %3280 = vrot.lane.b32.xlu0 %v2536, 32
        %v3281 = vpop.permute.xlu0 %3280
        %3282 = vrot.lane.b32.xlu0 %v2537, 32
        %v3283 = vpop.permute.xlu0 %3282
        %v3285 = vsel %vm2538, %v3277, 0
        %v3288 = vsel %vm2538, %v3279, 0
        %v3291 = vsel %vm2538, %v3281, 0
        %v3294 = vsel %vm2538, %v3283, 0
        %3296 = vmatprep.subr.bf16.mxu0 0
        %3297 = vmatpush1.bf16.xpose.msra.mxu0 0
        %3298 = vmatprep.subr.bf16.mxu0 0
        %3299 = vmatpush1.bf16.xpose.msra.mxu0 0
        %3300 = vmatprep.subr.bf16.mxu0 0
        %3301 = vmatpush1.bf16.xpose.msra.mxu0 0
        %3302 = vmatprep.subr.bf16.mxu0 0
        %3303 = vmatpush1.bf16.xpose.msra.mxu0 0
        %3304 = vmatprep.subr.bf16.mxu0 0
        %3305 = vmatpush1.bf16.xpose.msra.mxu0 0
        %3306 = vmatprep.subr.bf16.mxu0 0
        %3307 = vmatpush1.bf16.xpose.msra.mxu0 0
        %3308 = vmatprep.subr.bf16.mxu0 0
        %3309 = vmatpush1.bf16.xpose.msra.mxu0 %v3294
        %3310 = vmatprep.subr.bf16.mxu0 0
        %3311 = vmatpush1.bf16.xpose.msra.mxu0 %v3291
        %3312 = vmatprep.subr.bf16.mxu0 0
        %3313 = vmatpush2.bf16.xpose.msra.mxu0 0
        %3314 = vmatprep.subr.bf16.mxu0 0
        %3315 = vmatpush2.bf16.xpose.msra.mxu0 0
        %3316 = vmatprep.subr.bf16.mxu0 0
        %3317 = vmatpush2.bf16.xpose.msra.mxu0 0
        %3318 = vmatprep.subr.bf16.mxu0 0
        %3319 = vmatpush2.bf16.xpose.msra.mxu0 0
        %3320 = vmatprep.subr.bf16.mxu0 0
        %3321 = vmatpush2.bf16.xpose.msra.mxu0 0
        %3322 = vmatprep.subr.bf16.mxu0 0
        %3323 = vmatpush2.bf16.xpose.msra.mxu0 0
        %3324 = vmatprep.subr.bf16.mxu0 0
        %3325 = vmatpush2.bf16.xpose.msra.mxu0 0
        %3326 = vmatprep.subr.bf16.mxu0 0
        %3327 = vmatpush2.bf16.xpose.msra.mxu0 0
        %3328 = vmatprep.mubr.bf16.mxu0 0
        %3329 = vmatmul.mubr.bf16.gmra.mxu0 %v3285
        %v3330 = vpop.f32.mrf.mxu0
        %v3331 = vadd.f32 %v1090, %v3330
        %v3332 = vpop.f32.mrf.mxu0
        %v3333 = vpop.f32.mrf.mxu0
        %v3334 = vadd.f32 %v1090, %v3333
        %v3335 = vpop.f32.mrf.mxu0
        %3336 = vmatprep.mubr.bf16.mxu0 0
        %3337 = vmatmul.mubr.bf16.gmra.mxu0 %v3288
        %v3338 = vpop.f32.mrf.mxu0
        %v3339 = vadd.f32 %v1090, %v3338
        %v3340 = vpop.f32.mrf.mxu0
        %v3341 = vpop.f32.mrf.mxu0
        %v3342 = vadd.f32 %v1090, %v3341
        %v3343 = vpop.f32.mrf.mxu0
        %3344 = vdwg.mxu0
        %v3345 = vsel %vm2538, %v3331, -inf
        %3346 = vmax.xlane.f32.xlu0 %v3345
        %v3347 = vpop.xlane.xlu0 %3346
        %v3348 = vsel %vm2538, %v3334, -inf
        %3349 = vmax.xlane.f32.xlu0 %v3348
        %v3350 = vpop.xlane.xlu0 %3349
        %v3351 = vsel %vm2538, %v3339, -inf
        %3352 = vmax.xlane.f32.xlu0 %v3351
        %v3353 = vpop.xlane.xlu0 %3352
        %v3354 = vsel %vm2538, %v3342, -inf
        %3355 = vmax.xlane.f32.xlu0 %v3354
        %v3356 = vpop.xlane.xlu0 %3355
        %v3357 = vsub.f32 %v3331, %v3347
        %v3358 = vsub.f32 %v3334, %v3350
        %v3359 = vsub.f32 %v3339, %v3353
        %v3360 = vsub.f32 %v3342, %v3356
        %v3361 = vmul.f32 %v3357, 1.442695
        %v3362 = vpow.pop %v3361
        %v3363 = vmul.f32 %v3358, 1.442695
        %v3364 = vpow.pop %v3363
        %v3365 = vmul.f32 %v3359, 1.442695
        %v3366 = vpow.pop %v3365
        %v3367 = vmul.f32 %v3360, 1.442695
        %v3368 = vpow.pop %v3367
        %v3369 = vsel %vm2538, %v3362, 0.0
        %3370 = vadd.xlane.f32.xlu0 %v3369
        %v3371 = vpop.xlane.xlu0 %3370
        %v3372 = vsel %vm2538, %v3364, 0.0
        %3373 = vadd.xlane.f32.xlu0 %v3372
        %v3374 = vpop.xlane.xlu0 %3373
        %v3375 = vsel %vm2538, %v3366, 0.0
        %3376 = vadd.xlane.f32.xlu0 %v3375
        %v3377 = vpop.xlane.xlu0 %3376
        %v3378 = vsel %vm2538, %v3368, 0.0
        %3379 = vadd.xlane.f32.xlu0 %v3378
        %v3380 = vpop.xlane.xlu0 %3379
        %v3381 = vrcp.pop %v3371
        %v3382 = vrcp.pop %v3374
        %v3383 = vrcp.pop %v3377
        %v3384 = vrcp.pop %v3380
        %v3385 = vmul.f32 %v3362, %v3381
        %v3386 = vmul.f32 %v3364, %v3382
        %v3387 = vmul.f32 %v3366, %v3383
        %v3388 = vmul.f32 %v3368, %v3384
        %v3389 = vpack.c.bf16 %v3386, %v3385
        %v3390 = vpack.c.bf16 %v3388, %v3387
        %3391 = vrot.lane.b32.xlu0 %v2654, 32
        %v3392 = vpop.permute.xlu0 %3391
        %3393 = vrot.lane.b32.xlu0 %v2655, 32
        %v3394 = vpop.permute.xlu0 %3393
        %v3398 = vsel %vm2538, %v3389, 0
        %v3401 = vsel %vm2538, %v3390, 0
        %3403 = vmatprep.subr.bf16.mxu0 0
        %3404 = vmatpush1.bf16.msra.mxu0 0
        %3405 = vmatprep.subr.bf16.mxu0 0
        %3406 = vmatpush1.bf16.msra.mxu0 0
        %3407 = vmatprep.subr.bf16.mxu0 0
        %3408 = vmatpush1.bf16.msra.mxu0 0
        %3409 = vmatprep.subr.bf16.mxu0 0
        %3410 = vmatpush1.bf16.msra.mxu0 0
        %3411 = vmatprep.subr.bf16.mxu0 0
        %3412 = vmatpush1.bf16.msra.mxu0 0
        %3413 = vmatprep.subr.bf16.mxu0 0
        %3414 = vmatpush1.bf16.msra.mxu0 0
        %3415 = vmatprep.subr.bf16.mxu0 0
        %3416 = vmatpush1.bf16.msra.mxu0 %v3394
        %3417 = vmatprep.subr.bf16.mxu0 0
        %3418 = vmatpush1.bf16.msra.mxu0 %v3392
        %3419 = vmatprep.subr.bf16.mxu0 0
        %3420 = vmatpush2.bf16.msra.mxu0 0
        %3421 = vmatprep.subr.bf16.mxu0 0
        %3422 = vmatpush2.bf16.msra.mxu0 0
        %3423 = vmatprep.subr.bf16.mxu0 0
        %3424 = vmatpush2.bf16.msra.mxu0 0
        %3425 = vmatprep.subr.bf16.mxu0 0
        %3426 = vmatpush2.bf16.msra.mxu0 0
        %3427 = vmatprep.subr.bf16.mxu0 0
        %3428 = vmatpush2.bf16.msra.mxu0 0
        %3429 = vmatprep.subr.bf16.mxu0 0
        %3430 = vmatpush2.bf16.msra.mxu0 0
        %3431 = vmatprep.subr.bf16.mxu0 0
        %3432 = vmatpush2.bf16.msra.mxu0 0
        %3433 = vmatprep.subr.bf16.mxu0 0
        %3434 = vmatpush2.bf16.msra.mxu0 0
        %3435 = vmatprep.mubr.bf16.mxu0 0
        %3436 = vmatmul.mubr.bf16.gmra.mxu0 %v3398
        %v3437 = vpop.f32.mrf.mxu0
        %v3438 = vadd.f32 0.0, %v3437
        %v3439 = vpop.f32.mrf.mxu0
        %v3440 = vpop.f32.mrf.mxu0
        %v3441 = vadd.f32 0.0, %v3440
        %v3442 = vpop.f32.mrf.mxu0
        %3443 = vmatprep.mubr.bf16.mxu0 0
        %3444 = vmatmul.mubr.bf16.gmra.mxu0 %v3401
        %v3445 = vpop.f32.mrf.mxu0
        %v3446 = vadd.f32 0.0, %v3445
        %v3447 = vpop.f32.mrf.mxu0
        %v3448 = vpop.f32.mrf.mxu0
        %v3449 = vadd.f32 0.0, %v3448
        %v3450 = vpop.f32.mrf.mxu0
        %3451 = vdwg.mxu0
        %v3452 = vpack.c.bf16 %v3441, %v3438
        %v3453 = vpack.c.bf16 %v3449, %v3446
        %v3458 = vunpack.c.l.b16 %v2497
        %v3459 = vunpack.c.l.b16 %v2498
        %v3460 = vunpack.c.l.b16 %v2499
        %v3461 = vunpack.c.l.b16 %v2500
        %v3462 = vpack.c.b16 %v3459, %v3458
        %v3463 = vpack.c.b16 %v3461, %v3460
        %v3467 = vsel %vm2538, %v3452, 0
        %v3470 = vsel %vm2538, %v3453, 0
        %3472 = vmatprep.subr.bf16.mxu0 0
        %3473 = vmatpush1.bf16.msra.mxu0 0
        %3474 = vmatprep.subr.bf16.mxu0 0
        %3475 = vmatpush1.bf16.msra.mxu0 0
        %3476 = vmatprep.subr.bf16.mxu0 0
        %3477 = vmatpush1.bf16.msra.mxu0 0
        %3478 = vmatprep.subr.bf16.mxu0 0
        %3479 = vmatpush1.bf16.msra.mxu0 0
        %3480 = vmatprep.subr.bf16.mxu0 0
        %3481 = vmatpush1.bf16.msra.mxu0 0
        %3482 = vmatprep.subr.bf16.mxu0 0
        %3483 = vmatpush1.bf16.msra.mxu0 0
        %3484 = vmatprep.subr.bf16.mxu0 0
        %3485 = vmatpush1.bf16.msra.mxu0 %v3463
        %3486 = vmatprep.subr.bf16.mxu0 0
        %3487 = vmatpush1.bf16.msra.mxu0 %v3462
        %3488 = vmatprep.subr.bf16.mxu0 0
        %3489 = vmatpush2.bf16.msra.mxu0 0
        %3490 = vmatprep.subr.bf16.mxu0 0
        %3491 = vmatpush2.bf16.msra.mxu0 0
        %3492 = vmatprep.subr.bf16.mxu0 0
        %3493 = vmatpush2.bf16.msra.mxu0 0
        %3494 = vmatprep.subr.bf16.mxu0 0
        %3495 = vmatpush2.bf16.msra.mxu0 0
        %3496 = vmatprep.subr.bf16.mxu0 0
        %3497 = vmatpush2.bf16.msra.mxu0 0
        %3498 = vmatprep.subr.bf16.mxu0 0
        %3499 = vmatpush2.bf16.msra.mxu0 0
        %3500 = vmatprep.subr.bf16.mxu0 0
        %3501 = vmatpush2.bf16.msra.mxu0 0
        %3502 = vmatprep.subr.bf16.mxu0 0
        %3503 = vmatpush2.bf16.msra.mxu0 0
        %3504 = vmatprep.mubr.bf16.mxu0 0
        %3505 = vmatmul.mubr.bf16.gmra.mxu0 %v3467
        %v3506 = vpop.f32.mrf.mxu0
        %v3507 = vadd.f32 0.0, %v3506
        %v3508 = vpop.f32.mrf.mxu0
        %v3509 = vpop.f32.mrf.mxu0
        %v3510 = vadd.f32 0.0, %v3509
        %v3511 = vpop.f32.mrf.mxu0
        %3512 = vmatprep.mubr.bf16.mxu0 0
        %3513 = vmatmul.mubr.bf16.gmra.mxu0 %v3470
        %v3514 = vpop.f32.mrf.mxu0
        %v3515 = vadd.f32 0.0, %v3514
        %v3516 = vpop.f32.mrf.mxu0
        %v3517 = vpop.f32.mrf.mxu0
        %v3518 = vadd.f32 0.0, %v3517
        %v3519 = vpop.f32.mrf.mxu0
        %3520 = vdwg.mxu0
        %v3521 = vadd.f32 %v3272, %v3507
        %v3522 = vadd.f32 %v3273, %v3510
        %v3523 = vadd.f32 %v3274, %v3515
        %v3524 = vadd.f32 %v3275, %v3518
        %s3525 = scalar_lea.vmem [#allocation2], %s2508
        %v3526 = vld [vmem:[%s3525] sm:$0xff]
        %v3527 = vld [vmem:[%s3525 + $0x8] sm:$0xff]
        %v3528 = vld [vmem:[%s3525 + $0x10] sm:$0xff]
        %v3529 = vld [vmem:[%s3525 + $0x18] sm:$0xff]
        %v3530 = vadd.f32 %v3526, %v3521
        %v3531 = vadd.f32 %v3527, %v3522
        %v3532 = vadd.f32 %v3528, %v3523
        %v3533 = vadd.f32 %v3529, %v3524
        %v3535 = vlaneseq
        %v3536 = vshrl.u32 %v3535, 7
        %v3537 = vsub.s32 0, %v3536
        %v3538 = vrot.slane %v2501, %v3537
        %v3540 = vadd.f32 %v3530, %v3538
        %v3541 = vadd.f32 %v3531, %v3538
        %v3542 = vadd.f32 %v3532, %v3538
        %v3543 = vadd.f32 %v3533, %v3538
        %3544 = vst [vmem:[%s3525] sm:$0xff] %v3540
        %3545 = vst [vmem:[%s3525 + $0x8] sm:$0xff] %v3541
        %3546 = vst [vmem:[%s3525 + $0x10] sm:$0xff] %v3542
        %3547 = vst [vmem:[%s3525 + $0x18] sm:$0xff] %v3543
      $region105: #{vit_forward.1} parent=99 // loop_footer
        %s2507 = sadd.s32 1, %s2503
      $region106: #{vit_forward.1} parent=99 // loop_footer_branch
        %2502 = sbr.rel target = $region102
      $region107: #{vit_forward.1} parent=99 // loop_exit
        _
      %v3548 = vld [vmem:[#allocation2] sm:$0xff]
      %v3549 = vld [vmem:[#allocation2 + $0x8] sm:$0xff]
      %v3550 = vld [vmem:[#allocation2 + $0x10] sm:$0xff]
      %v3551 = vld [vmem:[#allocation2 + $0x18] sm:$0xff]
      %v3552 = vld [vmem:[#allocation2 + $0x20] sm:$0xff]
      %v3553 = vld [vmem:[#allocation2 + $0x28] sm:$0xff]
      %v3554 = vld [vmem:[#allocation2 + $0x30] sm:$0xff]
      %v3555 = vld [vmem:[#allocation2 + $0x38] sm:$0xff]
      %v3556 = vld [vmem:[#allocation2 + $0x40] sm:$0xff]
      %v3557 = vld [vmem:[#allocation2 + $0x48] sm:$0xff]
      %v3558 = vld [vmem:[#allocation2 + $0x50] sm:$0xff]
      %v3559 = vld [vmem:[#allocation2 + $0x58] sm:$0xff]
      %v3560 = vld [vmem:[#allocation2 + $0x60] sm:$0xff]
      %v3561 = vld [vmem:[#allocation2 + $0x68] sm:$0xff]
      %v3562 = vld [vmem:[#allocation2 + $0x70] sm:$0xff]
      %v3563 = vld [vmem:[#allocation2 + $0x78] sm:$0xff]
      %v3564 = vld [vmem:[#allocation2 + $0x80] sm:$0xff]
      %v3565 = vld [vmem:[#allocation2 + $0x88] sm:$0xff]
      %v3566 = vld [vmem:[#allocation2 + $0x90] sm:$0xff]
      %v3567 = vld [vmem:[#allocation2 + $0x98] sm:$0xff]
      %v3568 = vld [vmem:[#allocation2 + $0xa0] sm:$0xff]
      %v3569 = vld [vmem:[#allocation2 + $0xa8] sm:$0xff]
      %v3570 = vld [vmem:[#allocation2 + $0xb0] sm:$0xff]
      %v3571 = vld [vmem:[#allocation2 + $0xb8] sm:$0xff]
      %v3572 = vld [vmem:[#allocation2 + $0xc0] sm:$0xff]
      %v3573 = vld [vmem:[#allocation2 + $0xc8] sm:$0xff]
      %v3574 = vld [vmem:[#allocation2 + $0xd0] sm:$0xff]
      %v3575 = vld [vmem:[#allocation2 + $0xd8] sm:$0xff]
      %v3576 = vld [vmem:[#allocation2 + $0xe0] sm:$0xff]
      %v3577 = vld [vmem:[#allocation2 + $0xe8] sm:$0xff]
      %v3578 = vld [vmem:[#allocation2 + $0xf0] sm:$0xff]
      %v3579 = vld [vmem:[#allocation2 + $0xf8] sm:$0xff]
      %v3580 = vld [vmem:[%s10] sm:$0x1]
      %v3581 = vld [vmem:[%s11] sm:$0x1]
      %3582 = vadd.xlane.f32.xlu0 %v3548
      %v3583 = vpop.xlane.xlu0 %3582
      %3584 = vadd.xlane.f32.xlu0 %v3549
      %v3585 = vpop.xlane.xlu0 %3584
      %3586 = vadd.xlane.f32.xlu0 %v3550
      %v3587 = vpop.xlane.xlu0 %3586
      %3588 = vadd.xlane.f32.xlu0 %v3551
      %v3589 = vpop.xlane.xlu0 %3588
      %3590 = vadd.xlane.f32.xlu0 %v3552
      %v3591 = vpop.xlane.xlu0 %3590
      %3592 = vadd.xlane.f32.xlu0 %v3553
      %v3593 = vpop.xlane.xlu0 %3592
      %3594 = vadd.xlane.f32.xlu0 %v3554
      %v3595 = vpop.xlane.xlu0 %3594
      %3596 = vadd.xlane.f32.xlu0 %v3555
      %v3597 = vpop.xlane.xlu0 %3596
      %3598 = vadd.xlane.f32.xlu0 %v3556
      %v3599 = vpop.xlane.xlu0 %3598
      %3600 = vadd.xlane.f32.xlu0 %v3557
      %v3601 = vpop.xlane.xlu0 %3600
      %3602 = vadd.xlane.f32.xlu0 %v3558
      %v3603 = vpop.xlane.xlu0 %3602
      %3604 = vadd.xlane.f32.xlu0 %v3559
      %v3605 = vpop.xlane.xlu0 %3604
      %3606 = vadd.xlane.f32.xlu0 %v3560
      %v3607 = vpop.xlane.xlu0 %3606
      %3608 = vadd.xlane.f32.xlu0 %v3561
      %v3609 = vpop.xlane.xlu0 %3608
      %3610 = vadd.xlane.f32.xlu0 %v3562
      %v3611 = vpop.xlane.xlu0 %3610
      %3612 = vadd.xlane.f32.xlu0 %v3563
      %v3613 = vpop.xlane.xlu0 %3612
      %3614 = vadd.xlane.f32.xlu0 %v3564
      %v3615 = vpop.xlane.xlu0 %3614
      %3616 = vadd.xlane.f32.xlu0 %v3565
      %v3617 = vpop.xlane.xlu0 %3616
      %3618 = vadd.xlane.f32.xlu0 %v3566
      %v3619 = vpop.xlane.xlu0 %3618
      %3620 = vadd.xlane.f32.xlu0 %v3567
      %v3621 = vpop.xlane.xlu0 %3620
      %3622 = vadd.xlane.f32.xlu0 %v3568
      %v3623 = vpop.xlane.xlu0 %3622
      %3624 = vadd.xlane.f32.xlu0 %v3569
      %v3625 = vpop.xlane.xlu0 %3624
      %3626 = vadd.xlane.f32.xlu0 %v3570
      %v3627 = vpop.xlane.xlu0 %3626
      %3628 = vadd.xlane.f32.xlu0 %v3571
      %v3629 = vpop.xlane.xlu0 %3628
      %3630 = vadd.xlane.f32.xlu0 %v3572
      %v3631 = vpop.xlane.xlu0 %3630
      %3632 = vadd.xlane.f32.xlu0 %v3573
      %v3633 = vpop.xlane.xlu0 %3632
      %3634 = vadd.xlane.f32.xlu0 %v3574
      %v3635 = vpop.xlane.xlu0 %3634
      %3636 = vadd.xlane.f32.xlu0 %v3575
      %v3637 = vpop.xlane.xlu0 %3636
      %3638 = vadd.xlane.f32.xlu0 %v3576
      %v3639 = vpop.xlane.xlu0 %3638
      %3640 = vadd.xlane.f32.xlu0 %v3577
      %v3641 = vpop.xlane.xlu0 %3640
      %3642 = vadd.xlane.f32.xlu0 %v3578
      %v3643 = vpop.xlane.xlu0 %3642
      %3644 = vadd.xlane.f32.xlu0 %v3579
      %v3645 = vpop.xlane.xlu0 %3644
      %v3646 = vmul.f32 %v3583, %v1189
      %v3647 = vmul.f32 %v3585, %v1189
      %v3648 = vmul.f32 %v3587, %v1189
      %v3649 = vmul.f32 %v3589, %v1189
      %v3650 = vmul.f32 %v3591, %v1189
      %v3651 = vmul.f32 %v3593, %v1189
      %v3652 = vmul.f32 %v3595, %v1189
      %v3653 = vmul.f32 %v3597, %v1189
      %v3654 = vmul.f32 %v3599, %v1189
      %v3655 = vmul.f32 %v3601, %v1189
      %v3656 = vmul.f32 %v3603, %v1189
      %v3657 = vmul.f32 %v3605, %v1189
      %v3658 = vmul.f32 %v3607, %v1189
      %v3659 = vmul.f32 %v3609, %v1189
      %v3660 = vmul.f32 %v3611, %v1189
      %v3661 = vmul.f32 %v3613, %v1189
      %v3662 = vmul.f32 %v3615, %v1189
      %v3663 = vmul.f32 %v3617, %v1189
      %v3664 = vmul.f32 %v3619, %v1189
      %v3665 = vmul.f32 %v3621, %v1189
      %v3666 = vmul.f32 %v3623, %v1189
      %v3667 = vmul.f32 %v3625, %v1189
      %v3668 = vmul.f32 %v3627, %v1189
      %v3669 = vmul.f32 %v3629, %v1189
      %v3670 = vmul.f32 %v3631, %v1189
      %v3671 = vmul.f32 %v3633, %v1189
      %v3672 = vmul.f32 %v3635, %v1189
      %v3673 = vmul.f32 %v3637, %v1189
      %v3674 = vmul.f32 %v3639, %v1189
      %v3675 = vmul.f32 %v3641, %v1189
      %v3676 = vmul.f32 %v3643, %v1189
      %v3677 = vmul.f32 %v3645, %v1189
      %v3678 = vsub.f32 %v3548, %v3646
      %v3679 = vsub.f32 %v3549, %v3647
      %v3680 = vsub.f32 %v3550, %v3648
      %v3681 = vsub.f32 %v3551, %v3649
      %v3682 = vsub.f32 %v3552, %v3650
      %v3683 = vsub.f32 %v3553, %v3651
      %v3684 = vsub.f32 %v3554, %v3652
      %v3685 = vsub.f32 %v3555, %v3653
      %v3686 = vsub.f32 %v3556, %v3654
      %v3687 = vsub.f32 %v3557, %v3655
      %v3688 = vsub.f32 %v3558, %v3656
      %v3689 = vsub.f32 %v3559, %v3657
      %v3690 = vsub.f32 %v3560, %v3658
      %v3691 = vsub.f32 %v3561, %v3659
      %v3692 = vsub.f32 %v3562, %v3660
      %v3693 = vsub.f32 %v3563, %v3661
      %v3694 = vsub.f32 %v3564, %v3662
      %v3695 = vsub.f32 %v3565, %v3663
      %v3696 = vsub.f32 %v3566, %v3664
      %v3697 = vsub.f32 %v3567, %v3665
      %v3698 = vsub.f32 %v3568, %v3666
      %v3699 = vsub.f32 %v3569, %v3667
      %v3700 = vsub.f32 %v3570, %v3668
      %v3701 = vsub.f32 %v3571, %v3669
      %v3702 = vsub.f32 %v3572, %v3670
      %v3703 = vsub.f32 %v3573, %v3671
      %v3704 = vsub.f32 %v3574, %v3672
      %v3705 = vsub.f32 %v3575, %v3673
      %v3706 = vsub.f32 %v3576, %v3674
      %v3707 = vsub.f32 %v3577, %v3675
      %v3708 = vsub.f32 %v3578, %v3676
      %v3709 = vsub.f32 %v3579, %v3677
      %v3710 = vmul.f32 %v3678, %v3678
      %v3711 = vmul.f32 %v3679, %v3679
      %v3712 = vmul.f32 %v3680, %v3680
      %v3713 = vmul.f32 %v3681, %v3681
      %v3714 = vmul.f32 %v3682, %v3682
      %v3715 = vmul.f32 %v3683, %v3683
      %v3716 = vmul.f32 %v3684, %v3684
      %v3717 = vmul.f32 %v3685, %v3685
      %v3718 = vmul.f32 %v3686, %v3686
      %v3719 = vmul.f32 %v3687, %v3687
      %v3720 = vmul.f32 %v3688, %v3688
      %v3721 = vmul.f32 %v3689, %v3689
      %v3722 = vmul.f32 %v3690, %v3690
      %v3723 = vmul.f32 %v3691, %v3691
      %v3724 = vmul.f32 %v3692, %v3692
      %v3725 = vmul.f32 %v3693, %v3693
      %v3726 = vmul.f32 %v3694, %v3694
      %v3727 = vmul.f32 %v3695, %v3695
      %v3728 = vmul.f32 %v3696, %v3696
      %v3729 = vmul.f32 %v3697, %v3697
      %v3730 = vmul.f32 %v3698, %v3698
      %v3731 = vmul.f32 %v3699, %v3699
      %v3732 = vmul.f32 %v3700, %v3700
      %v3733 = vmul.f32 %v3701, %v3701
      %v3734 = vmul.f32 %v3702, %v3702
      %v3735 = vmul.f32 %v3703, %v3703
      %v3736 = vmul.f32 %v3704, %v3704
      %v3737 = vmul.f32 %v3705, %v3705
      %v3738 = vmul.f32 %v3706, %v3706
      %v3739 = vmul.f32 %v3707, %v3707
      %v3740 = vmul.f32 %v3708, %v3708
      %v3741 = vmul.f32 %v3709, %v3709
      %3742 = vadd.xlane.f32.xlu0 %v3710
      %v3743 = vpop.xlane.xlu0 %3742
      %3744 = vadd.xlane.f32.xlu0 %v3711
      %v3745 = vpop.xlane.xlu0 %3744
      %3746 = vadd.xlane.f32.xlu0 %v3712
      %v3747 = vpop.xlane.xlu0 %3746
      %3748 = vadd.xlane.f32.xlu0 %v3713
      %v3749 = vpop.xlane.xlu0 %3748
      %3750 = vadd.xlane.f32.xlu0 %v3714
      %v3751 = vpop.xlane.xlu0 %3750
      %3752 = vadd.xlane.f32.xlu0 %v3715
      %v3753 = vpop.xlane.xlu0 %3752
      %3754 = vadd.xlane.f32.xlu0 %v3716
      %v3755 = vpop.xlane.xlu0 %3754
      %3756 = vadd.xlane.f32.xlu0 %v3717
      %v3757 = vpop.xlane.xlu0 %3756
      %3758 = vadd.xlane.f32.xlu0 %v3718
      %v3759 = vpop.xlane.xlu0 %3758
      %3760 = vadd.xlane.f32.xlu0 %v3719
      %v3761 = vpop.xlane.xlu0 %3760
      %3762 = vadd.xlane.f32.xlu0 %v3720
      %v3763 = vpop.xlane.xlu0 %3762
      %3764 = vadd.xlane.f32.xlu0 %v3721
      %v3765 = vpop.xlane.xlu0 %3764
      %3766 = vadd.xlane.f32.xlu0 %v3722
      %v3767 = vpop.xlane.xlu0 %3766
      %3768 = vadd.xlane.f32.xlu0 %v3723
      %v3769 = vpop.xlane.xlu0 %3768
      %3770 = vadd.xlane.f32.xlu0 %v3724
      %v3771 = vpop.xlane.xlu0 %3770
      %3772 = vadd.xlane.f32.xlu0 %v3725
      %v3773 = vpop.xlane.xlu0 %3772
      %3774 = vadd.xlane.f32.xlu0 %v3726
      %v3775 = vpop.xlane.xlu0 %3774
      %3776 = vadd.xlane.f32.xlu0 %v3727
      %v3777 = vpop.xlane.xlu0 %3776
      %3778 = vadd.xlane.f32.xlu0 %v3728
      %v3779 = vpop.xlane.xlu0 %3778
      %3780 = vadd.xlane.f32.xlu0 %v3729
      %v3781 = vpop.xlane.xlu0 %3780
      %3782 = vadd.xlane.f32.xlu0 %v3730
      %v3783 = vpop.xlane.xlu0 %3782
      %3784 = vadd.xlane.f32.xlu0 %v3731
      %v3785 = vpop.xlane.xlu0 %3784
      %3786 = vadd.xlane.f32.xlu0 %v3732
      %v3787 = vpop.xlane.xlu0 %3786
      %3788 = vadd.xlane.f32.xlu0 %v3733
      %v3789 = vpop.xlane.xlu0 %3788
      %3790 = vadd.xlane.f32.xlu0 %v3734
      %v3791 = vpop.xlane.xlu0 %3790
      %3792 = vadd.xlane.f32.xlu0 %v3735
      %v3793 = vpop.xlane.xlu0 %3792
      %3794 = vadd.xlane.f32.xlu0 %v3736
      %v3795 = vpop.xlane.xlu0 %3794
      %3796 = vadd.xlane.f32.xlu0 %v3737
      %v3797 = vpop.xlane.xlu0 %3796
      %3798 = vadd.xlane.f32.xlu0 %v3738
      %v3799 = vpop.xlane.xlu0 %3798
      %3800 = vadd.xlane.f32.xlu0 %v3739
      %v3801 = vpop.xlane.xlu0 %3800
      %3802 = vadd.xlane.f32.xlu0 %v3740
      %v3803 = vpop.xlane.xlu0 %3802
      %3804 = vadd.xlane.f32.xlu0 %v3741
      %v3805 = vpop.xlane.xlu0 %3804
      %v3806 = vmul.f32 %v3743, %v1189
      %v3807 = vmul.f32 %v3745, %v1189
      %v3808 = vmul.f32 %v3747, %v1189
      %v3809 = vmul.f32 %v3749, %v1189
      %v3810 = vmul.f32 %v3751, %v1189
      %v3811 = vmul.f32 %v3753, %v1189
      %v3812 = vmul.f32 %v3755, %v1189
      %v3813 = vmul.f32 %v3757, %v1189
      %v3814 = vmul.f32 %v3759, %v1189
      %v3815 = vmul.f32 %v3761, %v1189
      %v3816 = vmul.f32 %v3763, %v1189
      %v3817 = vmul.f32 %v3765, %v1189
      %v3818 = vmul.f32 %v3767, %v1189
      %v3819 = vmul.f32 %v3769, %v1189
      %v3820 = vmul.f32 %v3771, %v1189
      %v3821 = vmul.f32 %v3773, %v1189
      %v3822 = vmul.f32 %v3775, %v1189
      %v3823 = vmul.f32 %v3777, %v1189
      %v3824 = vmul.f32 %v3779, %v1189
      %v3825 = vmul.f32 %v3781, %v1189
      %v3826 = vmul.f32 %v3783, %v1189
      %v3827 = vmul.f32 %v3785, %v1189
      %v3828 = vmul.f32 %v3787, %v1189
      %v3829 = vmul.f32 %v3789, %v1189
      %v3830 = vmul.f32 %v3791, %v1189
      %v3831 = vmul.f32 %v3793, %v1189
      %v3832 = vmul.f32 %v3795, %v1189
      %v3833 = vmul.f32 %v3797, %v1189
      %v3834 = vmul.f32 %v3799, %v1189
      %v3835 = vmul.f32 %v3801, %v1189
      %v3836 = vmul.f32 %v3803, %v1189
      %v3837 = vmul.f32 %v3805, %v1189
      %v3838 = vadd.f32 %v3806, 1e-06
      %v3839 = vadd.f32 %v3807, 1e-06
      %v3840 = vadd.f32 %v3808, 1e-06
      %v3841 = vadd.f32 %v3809, 1e-06
      %v3842 = vadd.f32 %v3810, 1e-06
      %v3843 = vadd.f32 %v3811, 1e-06
      %v3844 = vadd.f32 %v3812, 1e-06
      %v3845 = vadd.f32 %v3813, 1e-06
      %v3846 = vadd.f32 %v3814, 1e-06
      %v3847 = vadd.f32 %v3815, 1e-06
      %v3848 = vadd.f32 %v3816, 1e-06
      %v3849 = vadd.f32 %v3817, 1e-06
      %v3850 = vadd.f32 %v3818, 1e-06
      %v3851 = vadd.f32 %v3819, 1e-06
      %v3852 = vadd.f32 %v3820, 1e-06
      %v3853 = vadd.f32 %v3821, 1e-06
      %v3854 = vadd.f32 %v3822, 1e-06
      %v3855 = vadd.f32 %v3823, 1e-06
      %v3856 = vadd.f32 %v3824, 1e-06
      %v3857 = vadd.f32 %v3825, 1e-06
      %v3858 = vadd.f32 %v3826, 1e-06
      %v3859 = vadd.f32 %v3827, 1e-06
      %v3860 = vadd.f32 %v3828, 1e-06
      %v3861 = vadd.f32 %v3829, 1e-06
      %v3862 = vadd.f32 %v3830, 1e-06
      %v3863 = vadd.f32 %v3831, 1e-06
      %v3864 = vadd.f32 %v3832, 1e-06
      %v3865 = vadd.f32 %v3833, 1e-06
      %v3866 = vadd.f32 %v3834, 1e-06
      %v3867 = vadd.f32 %v3835, 1e-06
      %v3868 = vadd.f32 %v3836, 1e-06
      %v3869 = vadd.f32 %v3837, 1e-06
      %v3870 = vrsqrt.pop %v3838
      %v3871 = vrsqrt.pop %v3839
      %v3872 = vrsqrt.pop %v3840
      %v3873 = vrsqrt.pop %v3841
      %v3874 = vrsqrt.pop %v3842
      %v3875 = vrsqrt.pop %v3843
      %v3876 = vrsqrt.pop %v3844
      %v3877 = vrsqrt.pop %v3845
      %v3878 = vrsqrt.pop %v3846
      %v3879 = vrsqrt.pop %v3847
      %v3880 = vrsqrt.pop %v3848
      %v3881 = vrsqrt.pop %v3849
      %v3882 = vrsqrt.pop %v3850
      %v3883 = vrsqrt.pop %v3851
      %v3884 = vrsqrt.pop %v3852
      %v3885 = vrsqrt.pop %v3853
      %v3886 = vrsqrt.pop %v3854
      %v3887 = vrsqrt.pop %v3855
      %v3888 = vrsqrt.pop %v3856
      %v3889 = vrsqrt.pop %v3857
      %v3890 = vrsqrt.pop %v3858
      %v3891 = vrsqrt.pop %v3859
      %v3892 = vrsqrt.pop %v3860
      %v3893 = vrsqrt.pop %v3861
      %v3894 = vrsqrt.pop %v3862
      %v3895 = vrsqrt.pop %v3863
      %v3896 = vrsqrt.pop %v3864
      %v3897 = vrsqrt.pop %v3865
      %v3898 = vrsqrt.pop %v3866
      %v3899 = vrsqrt.pop %v3867
      %v3900 = vrsqrt.pop %v3868
      %v3901 = vrsqrt.pop %v3869
      %v3902 = vmul.f32 %v3678, %v3870
      %v3903 = vmul.f32 %v3679, %v3871
      %v3904 = vmul.f32 %v3680, %v3872
      %v3905 = vmul.f32 %v3681, %v3873
      %v3906 = vmul.f32 %v3682, %v3874
      %v3907 = vmul.f32 %v3683, %v3875
      %v3908 = vmul.f32 %v3684, %v3876
      %v3909 = vmul.f32 %v3685, %v3877
      %v3910 = vmul.f32 %v3686, %v3878
      %v3911 = vmul.f32 %v3687, %v3879
      %v3912 = vmul.f32 %v3688, %v3880
      %v3913 = vmul.f32 %v3689, %v3881
      %v3914 = vmul.f32 %v3690, %v3882
      %v3915 = vmul.f32 %v3691, %v3883
      %v3916 = vmul.f32 %v3692, %v3884
      %v3917 = vmul.f32 %v3693, %v3885
      %v3918 = vmul.f32 %v3694, %v3886
      %v3919 = vmul.f32 %v3695, %v3887
      %v3920 = vmul.f32 %v3696, %v3888
      %v3921 = vmul.f32 %v3697, %v3889
      %v3922 = vmul.f32 %v3698, %v3890
      %v3923 = vmul.f32 %v3699, %v3891
      %v3924 = vmul.f32 %v3700, %v3892
      %v3925 = vmul.f32 %v3701, %v3893
      %v3926 = vmul.f32 %v3702, %v3894
      %v3927 = vmul.f32 %v3703, %v3895
      %v3928 = vmul.f32 %v3704, %v3896
      %v3929 = vmul.f32 %v3705, %v3897
      %v3930 = vmul.f32 %v3706, %v3898
      %v3931 = vmul.f32 %v3707, %v3899
      %v3932 = vmul.f32 %v3708, %v3900
      %v3933 = vmul.f32 %v3709, %v3901
      %v3935 = vlaneseq
      %v3936 = vshrl.u32 %v3935, 7
      %v3937 = vsub.s32 0, %v3936
      %v3938 = vrot.slane %v3580, %v3937
      %v3940 = vmul.f32 %v3902, %v3938
      %v3941 = vmul.f32 %v3903, %v3938
      %v3942 = vmul.f32 %v3904, %v3938
      %v3943 = vmul.f32 %v3905, %v3938
      %v3944 = vmul.f32 %v3906, %v3938
      %v3945 = vmul.f32 %v3907, %v3938
      %v3946 = vmul.f32 %v3908, %v3938
      %v3947 = vmul.f32 %v3909, %v3938
      %v3948 = vmul.f32 %v3910, %v3938
      %v3949 = vmul.f32 %v3911, %v3938
      %v3950 = vmul.f32 %v3912, %v3938
      %v3951 = vmul.f32 %v3913, %v3938
      %v3952 = vmul.f32 %v3914, %v3938
      %v3953 = vmul.f32 %v3915, %v3938
      %v3954 = vmul.f32 %v3916, %v3938
      %v3955 = vmul.f32 %v3917, %v3938
      %v3956 = vmul.f32 %v3918, %v3938
      %v3957 = vmul.f32 %v3919, %v3938
      %v3958 = vmul.f32 %v3920, %v3938
      %v3959 = vmul.f32 %v3921, %v3938
      %v3960 = vmul.f32 %v3922, %v3938
      %v3961 = vmul.f32 %v3923, %v3938
      %v3962 = vmul.f32 %v3924, %v3938
      %v3963 = vmul.f32 %v3925, %v3938
      %v3964 = vmul.f32 %v3926, %v3938
      %v3965 = vmul.f32 %v3927, %v3938
      %v3966 = vmul.f32 %v3928, %v3938
      %v3967 = vmul.f32 %v3929, %v3938
      %v3968 = vmul.f32 %v3930, %v3938
      %v3969 = vmul.f32 %v3931, %v3938
      %v3970 = vmul.f32 %v3932, %v3938
      %v3971 = vmul.f32 %v3933, %v3938
      %v3973 = vlaneseq
      %v3974 = vshrl.u32 %v3973, 7
      %v3975 = vsub.s32 0, %v3974
      %v3976 = vrot.slane %v3581, %v3975
      %v3978 = vadd.f32 %v3940, %v3976
      %v3979 = vadd.f32 %v3941, %v3976
      %v3980 = vadd.f32 %v3942, %v3976
      %v3981 = vadd.f32 %v3943, %v3976
      %v3982 = vadd.f32 %v3944, %v3976
      %v3983 = vadd.f32 %v3945, %v3976
      %v3984 = vadd.f32 %v3946, %v3976
      %v3985 = vadd.f32 %v3947, %v3976
      %v3986 = vadd.f32 %v3948, %v3976
      %v3987 = vadd.f32 %v3949, %v3976
      %v3988 = vadd.f32 %v3950, %v3976
      %v3989 = vadd.f32 %v3951, %v3976
      %v3990 = vadd.f32 %v3952, %v3976
      %v3991 = vadd.f32 %v3953, %v3976
      %v3992 = vadd.f32 %v3954, %v3976
      %v3993 = vadd.f32 %v3955, %v3976
      %v3994 = vadd.f32 %v3956, %v3976
      %v3995 = vadd.f32 %v3957, %v3976
      %v3996 = vadd.f32 %v3958, %v3976
      %v3997 = vadd.f32 %v3959, %v3976
      %v3998 = vadd.f32 %v3960, %v3976
      %v3999 = vadd.f32 %v3961, %v3976
      %v4000 = vadd.f32 %v3962, %v3976
      %v4001 = vadd.f32 %v3963, %v3976
      %v4002 = vadd.f32 %v3964, %v3976
      %v4003 = vadd.f32 %v3965, %v3976
      %v4004 = vadd.f32 %v3966, %v3976
      %v4005 = vadd.f32 %v3967, %v3976
      %v4006 = vadd.f32 %v3968, %v3976
      %v4007 = vadd.f32 %v3969, %v3976
      %v4008 = vadd.f32 %v3970, %v3976
      %v4009 = vadd.f32 %v3971, %v3976
      %v4010 = vpack.c.bf16 %v3979, %v3978
      %v4011 = vpack.c.bf16 %v3981, %v3980
      %v4012 = vpack.c.bf16 %v3983, %v3982
      %v4013 = vpack.c.bf16 %v3985, %v3984
      %v4014 = vpack.c.bf16 %v3987, %v3986
      %v4015 = vpack.c.bf16 %v3989, %v3988
      %v4016 = vpack.c.bf16 %v3991, %v3990
      %v4017 = vpack.c.bf16 %v3993, %v3992
      %v4018 = vpack.c.bf16 %v3995, %v3994
      %v4019 = vpack.c.bf16 %v3997, %v3996
      %v4020 = vpack.c.bf16 %v3999, %v3998
      %v4021 = vpack.c.bf16 %v4001, %v4000
      %v4022 = vpack.c.bf16 %v4003, %v4002
      %v4023 = vpack.c.bf16 %v4005, %v4004
      %v4024 = vpack.c.bf16 %v4007, %v4006
      %v4025 = vpack.c.bf16 %v4009, %v4008
      %v4026 = vld [vmem:[%s12] sm:$0xff]
      %v4027 = vld [vmem:[%s12 + $0x8] sm:$0xff]
      %v4028 = vld [vmem:[%s12 + $0x10] sm:$0xff]
      %v4029 = vld [vmem:[%s12 + $0x18] sm:$0xff]
      %v4030 = vld [vmem:[%s12 + $0x20] sm:$0xff]
      %v4031 = vld [vmem:[%s12 + $0x28] sm:$0xff]
      %v4032 = vld [vmem:[%s12 + $0x30] sm:$0xff]
      %v4033 = vld [vmem:[%s12 + $0x38] sm:$0xff]
      %v4034 = vld [vmem:[%s12 + $0x40] sm:$0xff]
      %v4035 = vld [vmem:[%s12 + $0x48] sm:$0xff]
      %v4036 = vld [vmem:[%s12 + $0x50] sm:$0xff]
      %v4037 = vld [vmem:[%s12 + $0x58] sm:$0xff]
      %v4038 = vld [vmem:[%s12 + $0x60] sm:$0xff]
      %v4039 = vld [vmem:[%s12 + $0x68] sm:$0xff]
      %v4040 = vld [vmem:[%s12 + $0x70] sm:$0xff]
      %v4041 = vld [vmem:[%s12 + $0x78] sm:$0xff]
      %v4042 = vld [vmem:[%s13] sm:$0x3]
      %v4044 = vlaneseq
      %v4045 = vshrl.u32 %v4044, 7
      %v4046 = vsub.s32 0, %v4045
      %v4047 = vrot.slane %v4042, %v4046
      %v4048 = vlaneseq
      %v4049 = vshrl.u32 %v4048, 7
      %v4050 = vsub.s32 1, %v4049
      %v4051 = vrot.slane %v4042, %v4050
      %v4070 = vunpack.c.l.b16 %v4026
      %v4071 = vunpack.c.h.b16 %v4026
      %v4072 = vunpack.c.l.b16 %v4027
      %v4073 = vunpack.c.h.b16 %v4027
      %v4074 = vunpack.c.l.b16 %v4028
      %v4075 = vunpack.c.h.b16 %v4028
      %v4076 = vunpack.c.l.b16 %v4029
      %v4077 = vunpack.c.h.b16 %v4029
      %v4078 = vunpack.c.l.b16 %v4030
      %v4079 = vunpack.c.h.b16 %v4030
      %v4080 = vunpack.c.l.b16 %v4031
      %v4081 = vunpack.c.h.b16 %v4031
      %v4082 = vunpack.c.l.b16 %v4032
      %v4083 = vunpack.c.h.b16 %v4032
      %v4084 = vunpack.c.l.b16 %v4033
      %v4085 = vunpack.c.h.b16 %v4033
      %v4086 = vunpack.c.l.b16 %v4034
      %v4087 = vunpack.c.h.b16 %v4034
      %v4088 = vunpack.c.l.b16 %v4035
      %v4089 = vunpack.c.h.b16 %v4035
      %v4090 = vunpack.c.l.b16 %v4036
      %v4091 = vunpack.c.h.b16 %v4036
      %v4092 = vunpack.c.l.b16 %v4037
      %v4093 = vunpack.c.h.b16 %v4037
      %v4094 = vunpack.c.l.b16 %v4038
      %v4095 = vunpack.c.h.b16 %v4038
      %v4096 = vunpack.c.l.b16 %v4039
      %v4097 = vunpack.c.h.b16 %v4039
      %v4098 = vunpack.c.l.b16 %v4040
      %v4099 = vunpack.c.h.b16 %v4040
      %v4100 = vunpack.c.l.b16 %v4041
      %v4101 = vunpack.c.h.b16 %v4041
      %v4102 = vpack.c.b16 %v4072, %v4070
      %v4103 = vpack.c.b16 %v4073, %v4071
      %v4104 = vpack.c.b16 %v4076, %v4074
      %v4105 = vpack.c.b16 %v4077, %v4075
      %v4106 = vpack.c.b16 %v4080, %v4078
      %v4107 = vpack.c.b16 %v4081, %v4079
      %v4108 = vpack.c.b16 %v4084, %v4082
      %v4109 = vpack.c.b16 %v4085, %v4083
      %v4110 = vpack.c.b16 %v4088, %v4086
      %v4111 = vpack.c.b16 %v4089, %v4087
      %v4112 = vpack.c.b16 %v4092, %v4090
      %v4113 = vpack.c.b16 %v4093, %v4091
      %v4114 = vpack.c.b16 %v4096, %v4094
      %v4115 = vpack.c.b16 %v4097, %v4095
      %v4116 = vpack.c.b16 %v4100, %v4098
      %v4117 = vpack.c.b16 %v4101, %v4099
      %4134 = vmatprep.subr.bf16.mxu0 %v4117
      %4135 = vmatpush1.bf16.msra.mxu0 %v4116
      %4136 = vmatprep.subr.bf16.mxu0 %v4115
      %4137 = vmatpush1.bf16.msra.mxu0 %v4114
      %4138 = vmatprep.subr.bf16.mxu0 %v4113
      %4139 = vmatpush1.bf16.msra.mxu0 %v4112
      %4140 = vmatprep.subr.bf16.mxu0 %v4111
      %4141 = vmatpush1.bf16.msra.mxu0 %v4110
      %4142 = vmatprep.subr.bf16.mxu0 %v4109
      %4143 = vmatpush1.bf16.msra.mxu0 %v4108
      %4144 = vmatprep.subr.bf16.mxu0 %v4107
      %4145 = vmatpush1.bf16.msra.mxu0 %v4106
      %4146 = vmatprep.subr.bf16.mxu0 %v4105
      %4147 = vmatpush1.bf16.msra.mxu0 %v4104
      %4148 = vmatprep.subr.bf16.mxu0 %v4103
      %4149 = vmatpush1.bf16.msra.mxu0 %v4102
      %4150 = vmatprep.subr.bf16.mxu0 0
      %4151 = vmatpush2.bf16.msra.mxu0 0
      %4152 = vmatprep.subr.bf16.mxu0 0
      %4153 = vmatpush2.bf16.msra.mxu0 0
      %4154 = vmatprep.subr.bf16.mxu0 0
      %4155 = vmatpush2.bf16.msra.mxu0 0
      %4156 = vmatprep.subr.bf16.mxu0 0
      %4157 = vmatpush2.bf16.msra.mxu0 0
      %4158 = vmatprep.subr.bf16.mxu0 0
      %4159 = vmatpush2.bf16.msra.mxu0 0
      %4160 = vmatprep.subr.bf16.mxu0 0
      %4161 = vmatpush2.bf16.msra.mxu0 0
      %4162 = vmatprep.subr.bf16.mxu0 0
      %4163 = vmatpush2.bf16.msra.mxu0 0
      %4164 = vmatprep.subr.bf16.mxu0 0
      %4165 = vmatpush2.bf16.msra.mxu0 0
      %4166 = vmatprep.mubr.bf16.mxu0 0
      %4167 = vmatmul.mubr.bf16.gmra.mxu0 %v4010
      %v4168 = vpop.f32.mrf.mxu0
      %v4169 = vadd.f32 %v4047, %v4168
      %v4170 = vpop.f32.mrf.mxu0
      %v4171 = vadd.f32 %v4051, %v4170
      %v4172 = vpop.f32.mrf.mxu0
      %v4173 = vadd.f32 %v4047, %v4172
      %v4174 = vpop.f32.mrf.mxu0
      %v4175 = vadd.f32 %v4051, %v4174
      %4176 = vmatprep.mubr.bf16.mxu0 0
      %4177 = vmatmul.mubr.bf16.gmra.mxu0 %v4011
      %v4178 = vpop.f32.mrf.mxu0
      %v4179 = vadd.f32 %v4047, %v4178
      %v4180 = vpop.f32.mrf.mxu0
      %v4181 = vadd.f32 %v4051, %v4180
      %v4182 = vpop.f32.mrf.mxu0
      %v4183 = vadd.f32 %v4047, %v4182
      %v4184 = vpop.f32.mrf.mxu0
      %v4185 = vadd.f32 %v4051, %v4184
      %4186 = vmatprep.mubr.bf16.mxu0 0
      %4187 = vmatmul.mubr.bf16.gmra.mxu0 %v4012
      %v4188 = vpop.f32.mrf.mxu0
      %v4189 = vadd.f32 %v4047, %v4188
      %v4190 = vpop.f32.mrf.mxu0
      %v4191 = vadd.f32 %v4051, %v4190
      %v4192 = vpop.f32.mrf.mxu0
      %v4193 = vadd.f32 %v4047, %v4192
      %v4194 = vpop.f32.mrf.mxu0
      %v4195 = vadd.f32 %v4051, %v4194
      %4196 = vmatprep.mubr.bf16.mxu0 0
      %4197 = vmatmul.mubr.bf16.gmra.mxu0 %v4013
      %v4198 = vpop.f32.mrf.mxu0
      %v4199 = vadd.f32 %v4047, %v4198
      %v4200 = vpop.f32.mrf.mxu0
      %v4201 = vadd.f32 %v4051, %v4200
      %v4202 = vpop.f32.mrf.mxu0
      %v4203 = vadd.f32 %v4047, %v4202
      %v4204 = vpop.f32.mrf.mxu0
      %v4205 = vadd.f32 %v4051, %v4204
      %4206 = vmatprep.mubr.bf16.mxu0 0
      %4207 = vmatmul.mubr.bf16.gmra.mxu0 %v4014
      %v4208 = vpop.f32.mrf.mxu0
      %v4209 = vadd.f32 %v4047, %v4208
      %v4210 = vpop.f32.mrf.mxu0
      %v4211 = vadd.f32 %v4051, %v4210
      %v4212 = vpop.f32.mrf.mxu0
      %v4213 = vadd.f32 %v4047, %v4212
      %v4214 = vpop.f32.mrf.mxu0
      %v4215 = vadd.f32 %v4051, %v4214
      %4216 = vmatprep.mubr.bf16.mxu0 0
      %4217 = vmatmul.mubr.bf16.gmra.mxu0 %v4015
      %v4218 = vpop.f32.mrf.mxu0
      %v4219 = vadd.f32 %v4047, %v4218
      %v4220 = vpop.f32.mrf.mxu0
      %v4221 = vadd.f32 %v4051, %v4220
      %v4222 = vpop.f32.mrf.mxu0
      %v4223 = vadd.f32 %v4047, %v4222
      %v4224 = vpop.f32.mrf.mxu0
      %v4225 = vadd.f32 %v4051, %v4224
      %4226 = vmatprep.mubr.bf16.mxu0 0
      %4227 = vmatmul.mubr.bf16.gmra.mxu0 %v4016
      %v4228 = vpop.f32.mrf.mxu0
      %v4229 = vadd.f32 %v4047, %v4228
      %v4230 = vpop.f32.mrf.mxu0
      %v4231 = vadd.f32 %v4051, %v4230
      %v4232 = vpop.f32.mrf.mxu0
      %v4233 = vadd.f32 %v4047, %v4232
      %v4234 = vpop.f32.mrf.mxu0
      %v4235 = vadd.f32 %v4051, %v4234
      %4236 = vmatprep.mubr.bf16.mxu0 0
      %4237 = vmatmul.mubr.bf16.gmra.mxu0 %v4017
      %v4238 = vpop.f32.mrf.mxu0
      %v4239 = vadd.f32 %v4047, %v4238
      %v4240 = vpop.f32.mrf.mxu0
      %v4241 = vadd.f32 %v4051, %v4240
      %v4242 = vpop.f32.mrf.mxu0
      %v4243 = vadd.f32 %v4047, %v4242
      %v4244 = vpop.f32.mrf.mxu0
      %v4245 = vadd.f32 %v4051, %v4244
      %4246 = vmatprep.mubr.bf16.mxu0 0
      %4247 = vmatmul.mubr.bf16.gmra.mxu0 %v4018
      %v4248 = vpop.f32.mrf.mxu0
      %v4249 = vadd.f32 %v4047, %v4248
      %v4250 = vpop.f32.mrf.mxu0
      %v4251 = vadd.f32 %v4051, %v4250
      %v4252 = vpop.f32.mrf.mxu0
      %v4253 = vadd.f32 %v4047, %v4252
      %v4254 = vpop.f32.mrf.mxu0
      %v4255 = vadd.f32 %v4051, %v4254
      %4256 = vmatprep.mubr.bf16.mxu0 0
      %4257 = vmatmul.mubr.bf16.gmra.mxu0 %v4019
      %v4258 = vpop.f32.mrf.mxu0
      %v4259 = vadd.f32 %v4047, %v4258
      %v4260 = vpop.f32.mrf.mxu0
      %v4261 = vadd.f32 %v4051, %v4260
      %v4262 = vpop.f32.mrf.mxu0
      %v4263 = vadd.f32 %v4047, %v4262
      %v4264 = vpop.f32.mrf.mxu0
      %v4265 = vadd.f32 %v4051, %v4264
      %4266 = vmatprep.mubr.bf16.mxu0 0
      %4267 = vmatmul.mubr.bf16.gmra.mxu0 %v4020
      %v4268 = vpop.f32.mrf.mxu0
      %v4269 = vadd.f32 %v4047, %v4268
      %v4270 = vpop.f32.mrf.mxu0
      %v4271 = vadd.f32 %v4051, %v4270
      %v4272 = vpop.f32.mrf.mxu0
      %v4273 = vadd.f32 %v4047, %v4272
      %v4274 = vpop.f32.mrf.mxu0
      %v4275 = vadd.f32 %v4051, %v4274
      %4276 = vmatprep.mubr.bf16.mxu0 0
      %4277 = vmatmul.mubr.bf16.gmra.mxu0 %v4021
      %v4278 = vpop.f32.mrf.mxu0
      %v4279 = vadd.f32 %v4047, %v4278
      %v4280 = vpop.f32.mrf.mxu0
      %v4281 = vadd.f32 %v4051, %v4280
      %v4282 = vpop.f32.mrf.mxu0
      %v4283 = vadd.f32 %v4047, %v4282
      %v4284 = vpop.f32.mrf.mxu0
      %v4285 = vadd.f32 %v4051, %v4284
      %4286 = vmatprep.mubr.bf16.mxu0 0
      %4287 = vmatmul.mubr.bf16.gmra.mxu0 %v4022
      %v4288 = vpop.f32.mrf.mxu0
      %v4289 = vadd.f32 %v4047, %v4288
      %v4290 = vpop.f32.mrf.mxu0
      %v4291 = vadd.f32 %v4051, %v4290
      %v4292 = vpop.f32.mrf.mxu0
      %v4293 = vadd.f32 %v4047, %v4292
      %v4294 = vpop.f32.mrf.mxu0
      %v4295 = vadd.f32 %v4051, %v4294
      %4296 = vmatprep.mubr.bf16.mxu0 0
      %4297 = vmatmul.mubr.bf16.gmra.mxu0 %v4023
      %v4298 = vpop.f32.mrf.mxu0
      %v4299 = vadd.f32 %v4047, %v4298
      %v4300 = vpop.f32.mrf.mxu0
      %v4301 = vadd.f32 %v4051, %v4300
      %v4302 = vpop.f32.mrf.mxu0
      %v4303 = vadd.f32 %v4047, %v4302
      %v4304 = vpop.f32.mrf.mxu0
      %v4305 = vadd.f32 %v4051, %v4304
      %4306 = vmatprep.mubr.bf16.mxu0 0
      %4307 = vmatmul.mubr.bf16.gmra.mxu0 %v4024
      %v4308 = vpop.f32.mrf.mxu0
      %v4309 = vadd.f32 %v4047, %v4308
      %v4310 = vpop.f32.mrf.mxu0
      %v4311 = vadd.f32 %v4051, %v4310
      %v4312 = vpop.f32.mrf.mxu0
      %v4313 = vadd.f32 %v4047, %v4312
      %v4314 = vpop.f32.mrf.mxu0
      %v4315 = vadd.f32 %v4051, %v4314
      %4316 = vmatprep.mubr.bf16.mxu0 0
      %4317 = vmatmul.mubr.bf16.gmra.mxu0 %v4025
      %v4318 = vpop.f32.mrf.mxu0
      %v4319 = vadd.f32 %v4047, %v4318
      %v4320 = vpop.f32.mrf.mxu0
      %v4321 = vadd.f32 %v4051, %v4320
      %v4322 = vpop.f32.mrf.mxu0
      %v4323 = vadd.f32 %v4047, %v4322
      %v4324 = vpop.f32.mrf.mxu0
      %v4325 = vadd.f32 %v4051, %v4324
      %4326 = vdwg.mxu0
      %v4327 = vmul.f32 %v4169, %v4169
      %v4328 = vmul.f32 %v4171, %v4171
      %v4329 = vmul.f32 %v4173, %v4173
      %v4330 = vmul.f32 %v4175, %v4175
      %v4331 = vmul.f32 %v4179, %v4179
      %v4332 = vmul.f32 %v4181, %v4181
      %v4333 = vmul.f32 %v4183, %v4183
      %v4334 = vmul.f32 %v4185, %v4185
      %v4335 = vmul.f32 %v4189, %v4189
      %v4336 = vmul.f32 %v4191, %v4191
      %v4337 = vmul.f32 %v4193, %v4193
      %v4338 = vmul.f32 %v4195, %v4195
      %v4339 = vmul.f32 %v4199, %v4199
      %v4340 = vmul.f32 %v4201, %v4201
      %v4341 = vmul.f32 %v4203, %v4203
      %v4342 = vmul.f32 %v4205, %v4205
      %v4343 = vmul.f32 %v4209, %v4209
      %v4344 = vmul.f32 %v4211, %v4211
      %v4345 = vmul.f32 %v4213, %v4213
      %v4346 = vmul.f32 %v4215, %v4215
      %v4347 = vmul.f32 %v4219, %v4219
      %v4348 = vmul.f32 %v4221, %v4221
      %v4349 = vmul.f32 %v4223, %v4223
      %v4350 = vmul.f32 %v4225, %v4225
      %v4351 = vmul.f32 %v4229, %v4229
      %v4352 = vmul.f32 %v4231, %v4231
      %v4353 = vmul.f32 %v4233, %v4233
      %v4354 = vmul.f32 %v4235, %v4235
      %v4355 = vmul.f32 %v4239, %v4239
      %v4356 = vmul.f32 %v4241, %v4241
      %v4357 = vmul.f32 %v4243, %v4243
      %v4358 = vmul.f32 %v4245, %v4245
      %v4359 = vmul.f32 %v4249, %v4249
      %v4360 = vmul.f32 %v4251, %v4251
      %v4361 = vmul.f32 %v4253, %v4253
      %v4362 = vmul.f32 %v4255, %v4255
      %v4363 = vmul.f32 %v4259, %v4259
      %v4364 = vmul.f32 %v4261, %v4261
      %v4365 = vmul.f32 %v4263, %v4263
      %v4366 = vmul.f32 %v4265, %v4265
      %v4367 = vmul.f32 %v4269, %v4269
      %v4368 = vmul.f32 %v4271, %v4271
      %v4369 = vmul.f32 %v4273, %v4273
      %v4370 = vmul.f32 %v4275, %v4275
      %v4371 = vmul.f32 %v4279, %v4279
      %v4372 = vmul.f32 %v4281, %v4281
      %v4373 = vmul.f32 %v4283, %v4283
      %v4374 = vmul.f32 %v4285, %v4285
      %v4375 = vmul.f32 %v4289, %v4289
      %v4376 = vmul.f32 %v4291, %v4291
      %v4377 = vmul.f32 %v4293, %v4293
      %v4378 = vmul.f32 %v4295, %v4295
      %v4379 = vmul.f32 %v4299, %v4299
      %v4380 = vmul.f32 %v4301, %v4301
      %v4381 = vmul.f32 %v4303, %v4303
      %v4382 = vmul.f32 %v4305, %v4305
      %v4383 = vmul.f32 %v4309, %v4309
      %v4384 = vmul.f32 %v4311, %v4311
      %v4385 = vmul.f32 %v4313, %v4313
      %v4386 = vmul.f32 %v4315, %v4315
      %v4387 = vmul.f32 %v4319, %v4319
      %v4388 = vmul.f32 %v4321, %v4321
      %v4389 = vmul.f32 %v4323, %v4323
      %v4390 = vmul.f32 %v4325, %v4325
      %v4391 = vmul.f32 %v4169, %v4327
      %v4392 = vmul.f32 %v4171, %v4328
      %v4393 = vmul.f32 %v4173, %v4329
      %v4394 = vmul.f32 %v4175, %v4330
      %v4395 = vmul.f32 %v4179, %v4331
      %v4396 = vmul.f32 %v4181, %v4332
      %v4397 = vmul.f32 %v4183, %v4333
      %v4398 = vmul.f32 %v4185, %v4334
      %v4399 = vmul.f32 %v4189, %v4335
      %v4400 = vmul.f32 %v4191, %v4336
      %v4401 = vmul.f32 %v4193, %v4337
      %v4402 = vmul.f32 %v4195, %v4338
      %v4403 = vmul.f32 %v4199, %v4339
      %v4404 = vmul.f32 %v4201, %v4340
      %v4405 = vmul.f32 %v4203, %v4341
      %v4406 = vmul.f32 %v4205, %v4342
      %v4407 = vmul.f32 %v4209, %v4343
      %v4408 = vmul.f32 %v4211, %v4344
      %v4409 = vmul.f32 %v4213, %v4345
      %v4410 = vmul.f32 %v4215, %v4346
      %v4411 = vmul.f32 %v4219, %v4347
      %v4412 = vmul.f32 %v4221, %v4348
      %v4413 = vmul.f32 %v4223, %v4349
      %v4414 = vmul.f32 %v4225, %v4350
      %v4415 = vmul.f32 %v4229, %v4351
      %v4416 = vmul.f32 %v4231, %v4352
      %v4417 = vmul.f32 %v4233, %v4353
      %v4418 = vmul.f32 %v4235, %v4354
      %v4419 = vmul.f32 %v4239, %v4355
      %v4420 = vmul.f32 %v4241, %v4356
      %v4421 = vmul.f32 %v4243, %v4357
      %v4422 = vmul.f32 %v4245, %v4358
      %v4423 = vmul.f32 %v4249, %v4359
      %v4424 = vmul.f32 %v4251, %v4360
      %v4425 = vmul.f32 %v4253, %v4361
      %v4426 = vmul.f32 %v4255, %v4362
      %v4427 = vmul.f32 %v4259, %v4363
      %v4428 = vmul.f32 %v4261, %v4364
      %v4429 = vmul.f32 %v4263, %v4365
      %v4430 = vmul.f32 %v4265, %v4366
      %v4431 = vmul.f32 %v4269, %v4367
      %v4432 = vmul.f32 %v4271, %v4368
      %v4433 = vmul.f32 %v4273, %v4369
      %v4434 = vmul.f32 %v4275, %v4370
      %v4435 = vmul.f32 %v4279, %v4371
      %v4436 = vmul.f32 %v4281, %v4372
      %v4437 = vmul.f32 %v4283, %v4373
      %v4438 = vmul.f32 %v4285, %v4374
      %v4439 = vmul.f32 %v4289, %v4375
      %v4440 = vmul.f32 %v4291, %v4376
      %v4441 = vmul.f32 %v4293, %v4377
      %v4442 = vmul.f32 %v4295, %v4378
      %v4443 = vmul.f32 %v4299, %v4379
      %v4444 = vmul.f32 %v4301, %v4380
      %v4445 = vmul.f32 %v4303, %v4381
      %v4446 = vmul.f32 %v4305, %v4382
      %v4447 = vmul.f32 %v4309, %v4383
      %v4448 = vmul.f32 %v4311, %v4384
      %v4449 = vmul.f32 %v4313, %v4385
      %v4450 = vmul.f32 %v4315, %v4386
      %v4451 = vmul.f32 %v4319, %v4387
      %v4452 = vmul.f32 %v4321, %v4388
      %v4453 = vmul.f32 %v4323, %v4389
      %v4454 = vmul.f32 %v4325, %v4390
      %v4455 = vmul.f32 %v4391, 0.044715
      %v4456 = vmul.f32 %v4392, 0.044715
      %v4457 = vmul.f32 %v4393, 0.044715
      %v4458 = vmul.f32 %v4394, 0.044715
      %v4459 = vmul.f32 %v4395, 0.044715
      %v4460 = vmul.f32 %v4396, 0.044715
      %v4461 = vmul.f32 %v4397, 0.044715
      %v4462 = vmul.f32 %v4398, 0.044715
      %v4463 = vmul.f32 %v4399, 0.044715
      %v4464 = vmul.f32 %v4400, 0.044715
      %v4465 = vmul.f32 %v4401, 0.044715
      %v4466 = vmul.f32 %v4402, 0.044715
      %v4467 = vmul.f32 %v4403, 0.044715
      %v4468 = vmul.f32 %v4404, 0.044715
      %v4469 = vmul.f32 %v4405, 0.044715
      %v4470 = vmul.f32 %v4406, 0.044715
      %v4471 = vmul.f32 %v4407, 0.044715
      %v4472 = vmul.f32 %v4408, 0.044715
      %v4473 = vmul.f32 %v4409, 0.044715
      %v4474 = vmul.f32 %v4410, 0.044715
      %v4475 = vmul.f32 %v4411, 0.044715
      %v4476 = vmul.f32 %v4412, 0.044715
      %v4477 = vmul.f32 %v4413, 0.044715
      %v4478 = vmul.f32 %v4414, 0.044715
      %v4479 = vmul.f32 %v4415, 0.044715
      %v4480 = vmul.f32 %v4416, 0.044715
      %v4481 = vmul.f32 %v4417, 0.044715
      %v4482 = vmul.f32 %v4418, 0.044715
      %v4483 = vmul.f32 %v4419, 0.044715
      %v4484 = vmul.f32 %v4420, 0.044715
      %v4485 = vmul.f32 %v4421, 0.044715
      %v4486 = vmul.f32 %v4422, 0.044715
      %v4487 = vmul.f32 %v4423, 0.044715
      %v4488 = vmul.f32 %v4424, 0.044715
      %v4489 = vmul.f32 %v4425, 0.044715
      %v4490 = vmul.f32 %v4426, 0.044715
      %v4491 = vmul.f32 %v4427, 0.044715
      %v4492 = vmul.f32 %v4428, 0.044715
      %v4493 = vmul.f32 %v4429, 0.044715
      %v4494 = vmul.f32 %v4430, 0.044715
      %v4495 = vmul.f32 %v4431, 0.044715
      %v4496 = vmul.f32 %v4432, 0.044715
      %v4497 = vmul.f32 %v4433, 0.044715
      %v4498 = vmul.f32 %v4434, 0.044715
      %v4499 = vmul.f32 %v4435, 0.044715
      %v4500 = vmul.f32 %v4436, 0.044715
      %v4501 = vmul.f32 %v4437, 0.044715
      %v4502 = vmul.f32 %v4438, 0.044715
      %v4503 = vmul.f32 %v4439, 0.044715
      %v4504 = vmul.f32 %v4440, 0.044715
      %v4505 = vmul.f32 %v4441, 0.044715
      %v4506 = vmul.f32 %v4442, 0.044715
      %v4507 = vmul.f32 %v4443, 0.044715
      %v4508 = vmul.f32 %v4444, 0.044715
      %v4509 = vmul.f32 %v4445, 0.044715
      %v4510 = vmul.f32 %v4446, 0.044715
      %v4511 = vmul.f32 %v4447, 0.044715
      %v4512 = vmul.f32 %v4448, 0.044715
      %v4513 = vmul.f32 %v4449, 0.044715
      %v4514 = vmul.f32 %v4450, 0.044715
      %v4515 = vmul.f32 %v4451, 0.044715
      %v4516 = vmul.f32 %v4452, 0.044715
      %v4517 = vmul.f32 %v4453, 0.044715
      %v4518 = vmul.f32 %v4454, 0.044715
      %v4519 = vadd.f32 %v4169, %v4455
      %v4520 = vadd.f32 %v4171, %v4456
      %v4521 = vadd.f32 %v4173, %v4457
      %v4522 = vadd.f32 %v4175, %v4458
      %v4523 = vadd.f32 %v4179, %v4459
      %v4524 = vadd.f32 %v4181, %v4460
      %v4525 = vadd.f32 %v4183, %v4461
      %v4526 = vadd.f32 %v4185, %v4462
      %v4527 = vadd.f32 %v4189, %v4463
      %v4528 = vadd.f32 %v4191, %v4464
      %v4529 = vadd.f32 %v4193, %v4465
      %v4530 = vadd.f32 %v4195, %v4466
      %v4531 = vadd.f32 %v4199, %v4467
      %v4532 = vadd.f32 %v4201, %v4468
      %v4533 = vadd.f32 %v4203, %v4469
      %v4534 = vadd.f32 %v4205, %v4470
      %v4535 = vadd.f32 %v4209, %v4471
      %v4536 = vadd.f32 %v4211, %v4472
      %v4537 = vadd.f32 %v4213, %v4473
      %v4538 = vadd.f32 %v4215, %v4474
      %v4539 = vadd.f32 %v4219, %v4475
      %v4540 = vadd.f32 %v4221, %v4476
      %v4541 = vadd.f32 %v4223, %v4477
      %v4542 = vadd.f32 %v4225, %v4478
      %v4543 = vadd.f32 %v4229, %v4479
      %v4544 = vadd.f32 %v4231, %v4480
      %v4545 = vadd.f32 %v4233, %v4481
      %v4546 = vadd.f32 %v4235, %v4482
      %v4547 = vadd.f32 %v4239, %v4483
      %v4548 = vadd.f32 %v4241, %v4484
      %v4549 = vadd.f32 %v4243, %v4485
      %v4550 = vadd.f32 %v4245, %v4486
      %v4551 = vadd.f32 %v4249, %v4487
      %v4552 = vadd.f32 %v4251, %v4488
      %v4553 = vadd.f32 %v4253, %v4489
      %v4554 = vadd.f32 %v4255, %v4490
      %v4555 = vadd.f32 %v4259, %v4491
      %v4556 = vadd.f32 %v4261, %v4492
      %v4557 = vadd.f32 %v4263, %v4493
      %v4558 = vadd.f32 %v4265, %v4494
      %v4559 = vadd.f32 %v4269, %v4495
      %v4560 = vadd.f32 %v4271, %v4496
      %v4561 = vadd.f32 %v4273, %v4497
      %v4562 = vadd.f32 %v4275, %v4498
      %v4563 = vadd.f32 %v4279, %v4499
      %v4564 = vadd.f32 %v4281, %v4500
      %v4565 = vadd.f32 %v4283, %v4501
      %v4566 = vadd.f32 %v4285, %v4502
      %v4567 = vadd.f32 %v4289, %v4503
      %v4568 = vadd.f32 %v4291, %v4504
      %v4569 = vadd.f32 %v4293, %v4505
      %v4570 = vadd.f32 %v4295, %v4506
      %v4571 = vadd.f32 %v4299, %v4507
      %v4572 = vadd.f32 %v4301, %v4508
      %v4573 = vadd.f32 %v4303, %v4509
      %v4574 = vadd.f32 %v4305, %v4510
      %v4575 = vadd.f32 %v4309, %v4511
      %v4576 = vadd.f32 %v4311, %v4512
      %v4577 = vadd.f32 %v4313, %v4513
      %v4578 = vadd.f32 %v4315, %v4514
      %v4579 = vadd.f32 %v4319, %v4515
      %v4580 = vadd.f32 %v4321, %v4516
      %v4581 = vadd.f32 %v4323, %v4517
      %v4582 = vadd.f32 %v4325, %v4518
      %v4583 = vmul.f32 %v4519, 0.7978846
      %v4584 = vmul.f32 %v4520, 0.7978846
      %v4585 = vmul.f32 %v4521, 0.7978846
      %v4586 = vmul.f32 %v4522, 0.7978846
      %v4587 = vmul.f32 %v4523, 0.7978846
      %v4588 = vmul.f32 %v4524, 0.7978846
      %v4589 = vmul.f32 %v4525, 0.7978846
      %v4590 = vmul.f32 %v4526, 0.7978846
      %v4591 = vmul.f32 %v4527, 0.7978846
      %v4592 = vmul.f32 %v4528, 0.7978846
      %v4593 = vmul.f32 %v4529, 0.7978846
      %v4594 = vmul.f32 %v4530, 0.7978846
      %v4595 = vmul.f32 %v4531, 0.7978846
      %v4596 = vmul.f32 %v4532, 0.7978846
      %v4597 = vmul.f32 %v4533, 0.7978846
      %v4598 = vmul.f32 %v4534, 0.7978846
      %v4599 = vmul.f32 %v4535, 0.7978846
      %v4600 = vmul.f32 %v4536, 0.7978846
      %v4601 = vmul.f32 %v4537, 0.7978846
      %v4602 = vmul.f32 %v4538, 0.7978846
      %v4603 = vmul.f32 %v4539, 0.7978846
      %v4604 = vmul.f32 %v4540, 0.7978846
      %v4605 = vmul.f32 %v4541, 0.7978846
      %v4606 = vmul.f32 %v4542, 0.7978846
      %v4607 = vmul.f32 %v4543, 0.7978846
      %v4608 = vmul.f32 %v4544, 0.7978846
      %v4609 = vmul.f32 %v4545, 0.7978846
      %v4610 = vmul.f32 %v4546, 0.7978846
      %v4611 = vmul.f32 %v4547, 0.7978846
      %v4612 = vmul.f32 %v4548, 0.7978846
      %v4613 = vmul.f32 %v4549, 0.7978846
      %v4614 = vmul.f32 %v4550, 0.7978846
      %v4615 = vmul.f32 %v4551, 0.7978846
      %v4616 = vmul.f32 %v4552, 0.7978846
      %v4617 = vmul.f32 %v4553, 0.7978846
      %v4618 = vmul.f32 %v4554, 0.7978846
      %v4619 = vmul.f32 %v4555, 0.7978846
      %v4620 = vmul.f32 %v4556, 0.7978846
      %v4621 = vmul.f32 %v4557, 0.7978846
      %v4622 = vmul.f32 %v4558, 0.7978846
      %v4623 = vmul.f32 %v4559, 0.7978846
      %v4624 = vmul.f32 %v4560, 0.7978846
      %v4625 = vmul.f32 %v4561, 0.7978846
      %v4626 = vmul.f32 %v4562, 0.7978846
      %v4627 = vmul.f32 %v4563, 0.7978846
      %v4628 = vmul.f32 %v4564, 0.7978846
      %v4629 = vmul.f32 %v4565, 0.7978846
      %v4630 = vmul.f32 %v4566, 0.7978846
      %v4631 = vmul.f32 %v4567, 0.7978846
      %v4632 = vmul.f32 %v4568, 0.7978846
      %v4633 = vmul.f32 %v4569, 0.7978846
      %v4634 = vmul.f32 %v4570, 0.7978846
      %v4635 = vmul.f32 %v4571, 0.7978846
      %v4636 = vmul.f32 %v4572, 0.7978846
      %v4637 = vmul.f32 %v4573, 0.7978846
      %v4638 = vmul.f32 %v4574, 0.7978846
      %v4639 = vmul.f32 %v4575, 0.7978846
      %v4640 = vmul.f32 %v4576, 0.7978846
      %v4641 = vmul.f32 %v4577, 0.7978846
      %v4642 = vmul.f32 %v4578, 0.7978846
      %v4643 = vmul.f32 %v4579, 0.7978846
      %v4644 = vmul.f32 %v4580, 0.7978846
      %v4645 = vmul.f32 %v4581, 0.7978846
      %v4646 = vmul.f32 %v4582, 0.7978846
      %v4647 = vtanh.pop %v4583
      %v4648 = vtanh.pop %v4584
      %v4649 = vtanh.pop %v4585
      %v4650 = vtanh.pop %v4586
      %v4651 = vtanh.pop %v4587
      %v4652 = vtanh.pop %v4588
      %v4653 = vtanh.pop %v4589
      %v4654 = vtanh.pop %v4590
      %v4655 = vtanh.pop %v4591
      %v4656 = vtanh.pop %v4592
      %v4657 = vtanh.pop %v4593
      %v4658 = vtanh.pop %v4594
      %v4659 = vtanh.pop %v4595
      %v4660 = vtanh.pop %v4596
      %v4661 = vtanh.pop %v4597
      %v4662 = vtanh.pop %v4598
      %v4663 = vtanh.pop %v4599
      %v4664 = vtanh.pop %v4600
      %v4665 = vtanh.pop %v4601
      %v4666 = vtanh.pop %v4602
      %v4667 = vtanh.pop %v4603
      %v4668 = vtanh.pop %v4604
      %v4669 = vtanh.pop %v4605
      %v4670 = vtanh.pop %v4606
      %v4671 = vtanh.pop %v4607
      %v4672 = vtanh.pop %v4608
      %v4673 = vtanh.pop %v4609
      %v4674 = vtanh.pop %v4610
      %v4675 = vtanh.pop %v4611
      %v4676 = vtanh.pop %v4612
      %v4677 = vtanh.pop %v4613
      %v4678 = vtanh.pop %v4614
      %v4679 = vtanh.pop %v4615
      %v4680 = vtanh.pop %v4616
      %v4681 = vtanh.pop %v4617
      %v4682 = vtanh.pop %v4618
      %v4683 = vtanh.pop %v4619
      %v4684 = vtanh.pop %v4620
      %v4685 = vtanh.pop %v4621
      %v4686 = vtanh.pop %v4622
      %v4687 = vtanh.pop %v4623
      %v4688 = vtanh.pop %v4624
      %v4689 = vtanh.pop %v4625
      %v4690 = vtanh.pop %v4626
      %v4691 = vtanh.pop %v4627
      %v4692 = vtanh.pop %v4628
      %v4693 = vtanh.pop %v4629
      %v4694 = vtanh.pop %v4630
      %v4695 = vtanh.pop %v4631
      %v4696 = vtanh.pop %v4632
      %v4697 = vtanh.pop %v4633
      %v4698 = vtanh.pop %v4634
      %v4699 = vtanh.pop %v4635
      %v4700 = vtanh.pop %v4636
      %v4701 = vtanh.pop %v4637
      %v4702 = vtanh.pop %v4638
      %v4703 = vtanh.pop %v4639
      %v4704 = vtanh.pop %v4640
      %v4705 = vtanh.pop %v4641
      %v4706 = vtanh.pop %v4642
      %v4707 = vtanh.pop %v4643
      %v4708 = vtanh.pop %v4644
      %v4709 = vtanh.pop %v4645
      %v4710 = vtanh.pop %v4646
      %v4711 = vadd.f32 %v4647, 1.0
      %v4712 = vadd.f32 %v4648, 1.0
      %v4713 = vadd.f32 %v4649, 1.0
      %v4714 = vadd.f32 %v4650, 1.0
      %v4715 = vadd.f32 %v4651, 1.0
      %v4716 = vadd.f32 %v4652, 1.0
      %v4717 = vadd.f32 %v4653, 1.0
      %v4718 = vadd.f32 %v4654, 1.0
      %v4719 = vadd.f32 %v4655, 1.0
      %v4720 = vadd.f32 %v4656, 1.0
      %v4721 = vadd.f32 %v4657, 1.0
      %v4722 = vadd.f32 %v4658, 1.0
      %v4723 = vadd.f32 %v4659, 1.0
      %v4724 = vadd.f32 %v4660, 1.0
      %v4725 = vadd.f32 %v4661, 1.0
      %v4726 = vadd.f32 %v4662, 1.0
      %v4727 = vadd.f32 %v4663, 1.0
      %v4728 = vadd.f32 %v4664, 1.0
      %v4729 = vadd.f32 %v4665, 1.0
      %v4730 = vadd.f32 %v4666, 1.0
      %v4731 = vadd.f32 %v4667, 1.0
      %v4732 = vadd.f32 %v4668, 1.0
      %v4733 = vadd.f32 %v4669, 1.0
      %v4734 = vadd.f32 %v4670, 1.0
      %v4735 = vadd.f32 %v4671, 1.0
      %v4736 = vadd.f32 %v4672, 1.0
      %v4737 = vadd.f32 %v4673, 1.0
      %v4738 = vadd.f32 %v4674, 1.0
      %v4739 = vadd.f32 %v4675, 1.0
      %v4740 = vadd.f32 %v4676, 1.0
      %v4741 = vadd.f32 %v4677, 1.0
      %v4742 = vadd.f32 %v4678, 1.0
      %v4743 = vadd.f32 %v4679, 1.0
      %v4744 = vadd.f32 %v4680, 1.0
      %v4745 = vadd.f32 %v4681, 1.0
      %v4746 = vadd.f32 %v4682, 1.0
      %v4747 = vadd.f32 %v4683, 1.0
      %v4748 = vadd.f32 %v4684, 1.0
      %v4749 = vadd.f32 %v4685, 1.0
      %v4750 = vadd.f32 %v4686, 1.0
      %v4751 = vadd.f32 %v4687, 1.0
      %v4752 = vadd.f32 %v4688, 1.0
      %v4753 = vadd.f32 %v4689, 1.0
      %v4754 = vadd.f32 %v4690, 1.0
      %v4755 = vadd.f32 %v4691, 1.0
      %v4756 = vadd.f32 %v4692, 1.0
      %v4757 = vadd.f32 %v4693, 1.0
      %v4758 = vadd.f32 %v4694, 1.0
      %v4759 = vadd.f32 %v4695, 1.0
      %v4760 = vadd.f32 %v4696, 1.0
      %v4761 = vadd.f32 %v4697, 1.0
      %v4762 = vadd.f32 %v4698, 1.0
      %v4763 = vadd.f32 %v4699, 1.0
      %v4764 = vadd.f32 %v4700, 1.0
      %v4765 = vadd.f32 %v4701, 1.0
      %v4766 = vadd.f32 %v4702, 1.0
      %v4767 = vadd.f32 %v4703, 1.0
      %v4768 = vadd.f32 %v4704, 1.0
      %v4769 = vadd.f32 %v4705, 1.0
      %v4770 = vadd.f32 %v4706, 1.0
      %v4771 = vadd.f32 %v4707, 1.0
      %v4772 = vadd.f32 %v4708, 1.0
      %v4773 = vadd.f32 %v4709, 1.0
      %v4774 = vadd.f32 %v4710, 1.0
      %v4775 = vmul.f32 %v4711, 0.5
      %v4776 = vmul.f32 %v4712, 0.5
      %v4777 = vmul.f32 %v4713, 0.5
      %v4778 = vmul.f32 %v4714, 0.5
      %v4779 = vmul.f32 %v4715, 0.5
      %v4780 = vmul.f32 %v4716, 0.5
      %v4781 = vmul.f32 %v4717, 0.5
      %v4782 = vmul.f32 %v4718, 0.5
      %v4783 = vmul.f32 %v4719, 0.5
      %v4784 = vmul.f32 %v4720, 0.5
      %v4785 = vmul.f32 %v4721, 0.5
      %v4786 = vmul.f32 %v4722, 0.5
      %v4787 = vmul.f32 %v4723, 0.5
      %v4788 = vmul.f32 %v4724, 0.5
      %v4789 = vmul.f32 %v4725, 0.5
      %v4790 = vmul.f32 %v4726, 0.5
      %v4791 = vmul.f32 %v4727, 0.5
      %v4792 = vmul.f32 %v4728, 0.5
      %v4793 = vmul.f32 %v4729, 0.5
      %v4794 = vmul.f32 %v4730, 0.5
      %v4795 = vmul.f32 %v4731, 0.5
      %v4796 = vmul.f32 %v4732, 0.5
      %v4797 = vmul.f32 %v4733, 0.5
      %v4798 = vmul.f32 %v4734, 0.5
      %v4799 = vmul.f32 %v4735, 0.5
      %v4800 = vmul.f32 %v4736, 0.5
      %v4801 = vmul.f32 %v4737, 0.5
      %v4802 = vmul.f32 %v4738, 0.5
      %v4803 = vmul.f32 %v4739, 0.5
      %v4804 = vmul.f32 %v4740, 0.5
      %v4805 = vmul.f32 %v4741, 0.5
      %v4806 = vmul.f32 %v4742, 0.5
      %v4807 = vmul.f32 %v4743, 0.5
      %v4808 = vmul.f32 %v4744, 0.5
      %v4809 = vmul.f32 %v4745, 0.5
      %v4810 = vmul.f32 %v4746, 0.5
      %v4811 = vmul.f32 %v4747, 0.5
      %v4812 = vmul.f32 %v4748, 0.5
      %v4813 = vmul.f32 %v4749, 0.5
      %v4814 = vmul.f32 %v4750, 0.5
      %v4815 = vmul.f32 %v4751, 0.5
      %v4816 = vmul.f32 %v4752, 0.5
      %v4817 = vmul.f32 %v4753, 0.5
      %v4818 = vmul.f32 %v4754, 0.5
      %v4819 = vmul.f32 %v4755, 0.5
      %v4820 = vmul.f32 %v4756, 0.5
      %v4821 = vmul.f32 %v4757, 0.5
      %v4822 = vmul.f32 %v4758, 0.5
      %v4823 = vmul.f32 %v4759, 0.5
      %v4824 = vmul.f32 %v4760, 0.5
      %v4825 = vmul.f32 %v4761, 0.5
      %v4826 = vmul.f32 %v4762, 0.5
      %v4827 = vmul.f32 %v4763, 0.5
      %v4828 = vmul.f32 %v4764, 0.5
      %v4829 = vmul.f32 %v4765, 0.5
      %v4830 = vmul.f32 %v4766, 0.5
      %v4831 = vmul.f32 %v4767, 0.5
      %v4832 = vmul.f32 %v4768, 0.5
      %v4833 = vmul.f32 %v4769, 0.5
      %v4834 = vmul.f32 %v4770, 0.5
      %v4835 = vmul.f32 %v4771, 0.5
      %v4836 = vmul.f32 %v4772, 0.5
      %v4837 = vmul.f32 %v4773, 0.5
      %v4838 = vmul.f32 %v4774, 0.5
      %v4839 = vmul.f32 %v4169, %v4775
      %v4840 = vmul.f32 %v4171, %v4776
      %v4841 = vmul.f32 %v4173, %v4777
      %v4842 = vmul.f32 %v4175, %v4778
      %v4843 = vmul.f32 %v4179, %v4779
      %v4844 = vmul.f32 %v4181, %v4780
      %v4845 = vmul.f32 %v4183, %v4781
      %v4846 = vmul.f32 %v4185, %v4782
      %v4847 = vmul.f32 %v4189, %v4783
      %v4848 = vmul.f32 %v4191, %v4784
      %v4849 = vmul.f32 %v4193, %v4785
      %v4850 = vmul.f32 %v4195, %v4786
      %v4851 = vmul.f32 %v4199, %v4787
      %v4852 = vmul.f32 %v4201, %v4788
      %v4853 = vmul.f32 %v4203, %v4789
      %v4854 = vmul.f32 %v4205, %v4790
      %v4855 = vmul.f32 %v4209, %v4791
      %v4856 = vmul.f32 %v4211, %v4792
      %v4857 = vmul.f32 %v4213, %v4793
      %v4858 = vmul.f32 %v4215, %v4794
      %v4859 = vmul.f32 %v4219, %v4795
      %v4860 = vmul.f32 %v4221, %v4796
      %v4861 = vmul.f32 %v4223, %v4797
      %v4862 = vmul.f32 %v4225, %v4798
      %v4863 = vmul.f32 %v4229, %v4799
      %v4864 = vmul.f32 %v4231, %v4800
      %v4865 = vmul.f32 %v4233, %v4801
      %v4866 = vmul.f32 %v4235, %v4802
      %v4867 = vmul.f32 %v4239, %v4803
      %v4868 = vmul.f32 %v4241, %v4804
      %v4869 = vmul.f32 %v4243, %v4805
      %v4870 = vmul.f32 %v4245, %v4806
      %v4871 = vmul.f32 %v4249, %v4807
      %v4872 = vmul.f32 %v4251, %v4808
      %v4873 = vmul.f32 %v4253, %v4809
      %v4874 = vmul.f32 %v4255, %v4810
      %v4875 = vmul.f32 %v4259, %v4811
      %v4876 = vmul.f32 %v4261, %v4812
      %v4877 = vmul.f32 %v4263, %v4813
      %v4878 = vmul.f32 %v4265, %v4814
      %v4879 = vmul.f32 %v4269, %v4815
      %v4880 = vmul.f32 %v4271, %v4816
      %v4881 = vmul.f32 %v4273, %v4817
      %v4882 = vmul.f32 %v4275, %v4818
      %v4883 = vmul.f32 %v4279, %v4819
      %v4884 = vmul.f32 %v4281, %v4820
      %v4885 = vmul.f32 %v4283, %v4821
      %v4886 = vmul.f32 %v4285, %v4822
      %v4887 = vmul.f32 %v4289, %v4823
      %v4888 = vmul.f32 %v4291, %v4824
      %v4889 = vmul.f32 %v4293, %v4825
      %v4890 = vmul.f32 %v4295, %v4826
      %v4891 = vmul.f32 %v4299, %v4827
      %v4892 = vmul.f32 %v4301, %v4828
      %v4893 = vmul.f32 %v4303, %v4829
      %v4894 = vmul.f32 %v4305, %v4830
      %v4895 = vmul.f32 %v4309, %v4831
      %v4896 = vmul.f32 %v4311, %v4832
      %v4897 = vmul.f32 %v4313, %v4833
      %v4898 = vmul.f32 %v4315, %v4834
      %v4899 = vmul.f32 %v4319, %v4835
      %v4900 = vmul.f32 %v4321, %v4836
      %v4901 = vmul.f32 %v4323, %v4837
      %v4902 = vmul.f32 %v4325, %v4838
      %v4903 = vpack.c.bf16 %v4841, %v4839
      %v4904 = vpack.c.bf16 %v4842, %v4840
      %v4905 = vpack.c.bf16 %v4845, %v4843
      %v4906 = vpack.c.bf16 %v4846, %v4844
      %v4907 = vpack.c.bf16 %v4849, %v4847
      %v4908 = vpack.c.bf16 %v4850, %v4848
      %v4909 = vpack.c.bf16 %v4853, %v4851
      %v4910 = vpack.c.bf16 %v4854, %v4852
      %v4911 = vpack.c.bf16 %v4857, %v4855
      %v4912 = vpack.c.bf16 %v4858, %v4856
      %v4913 = vpack.c.bf16 %v4861, %v4859
      %v4914 = vpack.c.bf16 %v4862, %v4860
      %v4915 = vpack.c.bf16 %v4865, %v4863
      %v4916 = vpack.c.bf16 %v4866, %v4864
      %v4917 = vpack.c.bf16 %v4869, %v4867
      %v4918 = vpack.c.bf16 %v4870, %v4868
      %v4919 = vpack.c.bf16 %v4873, %v4871
      %v4920 = vpack.c.bf16 %v4874, %v4872
      %v4921 = vpack.c.bf16 %v4877, %v4875
      %v4922 = vpack.c.bf16 %v4878, %v4876
      %v4923 = vpack.c.bf16 %v4881, %v4879
      %v4924 = vpack.c.bf16 %v4882, %v4880
      %v4925 = vpack.c.bf16 %v4885, %v4883
      %v4926 = vpack.c.bf16 %v4886, %v4884
      %v4927 = vpack.c.bf16 %v4889, %v4887
      %v4928 = vpack.c.bf16 %v4890, %v4888
      %v4929 = vpack.c.bf16 %v4893, %v4891
      %v4930 = vpack.c.bf16 %v4894, %v4892
      %v4931 = vpack.c.bf16 %v4897, %v4895
      %v4932 = vpack.c.bf16 %v4898, %v4896
      %v4933 = vpack.c.bf16 %v4901, %v4899
      %v4934 = vpack.c.bf16 %v4902, %v4900
      %v4935 = vld [vmem:[%s14] sm:$0xf]
      %v4936 = vld [vmem:[%s14 + $0x4] sm:$0xf]
      %v4937 = vld [vmem:[%s14 + $0x8] sm:$0xf]
      %v4938 = vld [vmem:[%s14 + $0xc] sm:$0xf]
      %v4939 = vld [vmem:[%s14 + $0x10] sm:$0xf]
      %v4940 = vld [vmem:[%s14 + $0x14] sm:$0xf]
      %v4941 = vld [vmem:[%s14 + $0x18] sm:$0xf]
      %v4942 = vld [vmem:[%s14 + $0x1c] sm:$0xf]
      %v4943 = vld [vmem:[%s14 + $0x20] sm:$0xf]
      %v4944 = vld [vmem:[%s14 + $0x24] sm:$0xf]
      %v4945 = vld [vmem:[%s14 + $0x28] sm:$0xf]
      %v4946 = vld [vmem:[%s14 + $0x2c] sm:$0xf]
      %v4947 = vld [vmem:[%s14 + $0x30] sm:$0xf]
      %v4948 = vld [vmem:[%s14 + $0x34] sm:$0xf]
      %v4949 = vld [vmem:[%s14 + $0x38] sm:$0xf]
      %v4950 = vld [vmem:[%s14 + $0x3c] sm:$0xf]
      %v4951 = vld [vmem:[%s14 + $0x40] sm:$0xf]
      %v4952 = vld [vmem:[%s14 + $0x44] sm:$0xf]
      %v4953 = vld [vmem:[%s14 + $0x48] sm:$0xf]
      %v4954 = vld [vmem:[%s14 + $0x4c] sm:$0xf]
      %v4955 = vld [vmem:[%s14 + $0x50] sm:$0xf]
      %v4956 = vld [vmem:[%s14 + $0x54] sm:$0xf]
      %v4957 = vld [vmem:[%s14 + $0x58] sm:$0xf]
      %v4958 = vld [vmem:[%s14 + $0x5c] sm:$0xf]
      %v4959 = vld [vmem:[%s14 + $0x60] sm:$0xf]
      %v4960 = vld [vmem:[%s14 + $0x64] sm:$0xf]
      %v4961 = vld [vmem:[%s14 + $0x68] sm:$0xf]
      %v4962 = vld [vmem:[%s14 + $0x6c] sm:$0xf]
      %v4963 = vld [vmem:[%s14 + $0x70] sm:$0xf]
      %v4964 = vld [vmem:[%s14 + $0x74] sm:$0xf]
      %v4965 = vld [vmem:[%s14 + $0x78] sm:$0xf]
      %v4966 = vld [vmem:[%s14 + $0x7c] sm:$0xf]
      %v4967 = vld [vmem:[%s15] sm:$0x1]
      %v4969 = vlaneseq
      %v4970 = vshrl.u32 %v4969, 7
      %v4971 = vsub.s32 0, %v4970
      %v4972 = vrot.slane %v4967, %v4971
      %v5006 = vunpack.c.l.b16 %v4935
      %v5007 = vunpack.c.l.b16 %v4936
      %v5008 = vunpack.c.l.b16 %v4937
      %v5009 = vunpack.c.l.b16 %v4938
      %v5010 = vunpack.c.l.b16 %v4939
      %v5011 = vunpack.c.l.b16 %v4940
      %v5012 = vunpack.c.l.b16 %v4941
      %v5013 = vunpack.c.l.b16 %v4942
      %v5014 = vunpack.c.l.b16 %v4943
      %v5015 = vunpack.c.l.b16 %v4944
      %v5016 = vunpack.c.l.b16 %v4945
      %v5017 = vunpack.c.l.b16 %v4946
      %v5018 = vunpack.c.l.b16 %v4947
      %v5019 = vunpack.c.l.b16 %v4948
      %v5020 = vunpack.c.l.b16 %v4949
      %v5021 = vunpack.c.l.b16 %v4950
      %v5022 = vunpack.c.l.b16 %v4951
      %v5023 = vunpack.c.l.b16 %v4952
      %v5024 = vunpack.c.l.b16 %v4953
      %v5025 = vunpack.c.l.b16 %v4954
      %v5026 = vunpack.c.l.b16 %v4955
      %v5027 = vunpack.c.l.b16 %v4956
      %v5028 = vunpack.c.l.b16 %v4957
      %v5029 = vunpack.c.l.b16 %v4958
      %v5030 = vunpack.c.l.b16 %v4959
      %v5031 = vunpack.c.l.b16 %v4960
      %v5032 = vunpack.c.l.b16 %v4961
      %v5033 = vunpack.c.l.b16 %v4962
      %v5034 = vunpack.c.l.b16 %v4963
      %v5035 = vunpack.c.l.b16 %v4964
      %v5036 = vunpack.c.l.b16 %v4965
      %v5037 = vunpack.c.l.b16 %v4966
      %v5038 = vpack.c.b16 %v5007, %v5006
      %v5039 = vpack.c.b16 %v5009, %v5008
      %v5040 = vpack.c.b16 %v5011, %v5010
      %v5041 = vpack.c.b16 %v5013, %v5012
      %v5042 = vpack.c.b16 %v5015, %v5014
      %v5043 = vpack.c.b16 %v5017, %v5016
      %v5044 = vpack.c.b16 %v5019, %v5018
      %v5045 = vpack.c.b16 %v5021, %v5020
      %v5046 = vpack.c.b16 %v5023, %v5022
      %v5047 = vpack.c.b16 %v5025, %v5024
      %v5048 = vpack.c.b16 %v5027, %v5026
      %v5049 = vpack.c.b16 %v5029, %v5028
      %v5050 = vpack.c.b16 %v5031, %v5030
      %v5051 = vpack.c.b16 %v5033, %v5032
      %v5052 = vpack.c.b16 %v5035, %v5034
      %v5053 = vpack.c.b16 %v5037, %v5036
      %5070 = vmatprep.subr.bf16.mxu0 0
      %5071 = vmatpush1.bf16.msra.mxu0 %v5045
      %5072 = vmatprep.subr.bf16.mxu0 0
      %5073 = vmatpush1.bf16.msra.mxu0 %v5044
      %5074 = vmatprep.subr.bf16.mxu0 0
      %5075 = vmatpush1.bf16.msra.mxu0 %v5043
      %5076 = vmatprep.subr.bf16.mxu0 0
      %5077 = vmatpush1.bf16.msra.mxu0 %v5042
      %5078 = vmatprep.subr.bf16.mxu0 0
      %5079 = vmatpush1.bf16.msra.mxu0 %v5041
      %5080 = vmatprep.subr.bf16.mxu0 0
      %5081 = vmatpush1.bf16.msra.mxu0 %v5040
      %5082 = vmatprep.subr.bf16.mxu0 0
      %5083 = vmatpush1.bf16.msra.mxu0 %v5039
      %5084 = vmatprep.subr.bf16.mxu0 0
      %5085 = vmatpush1.bf16.msra.mxu0 %v5038
      %5086 = vmatprep.subr.bf16.mxu0 0
      %5087 = vmatpush2.bf16.msra.mxu0 %v5053
      %5088 = vmatprep.subr.bf16.mxu0 0
      %5089 = vmatpush2.bf16.msra.mxu0 %v5052
      %5090 = vmatprep.subr.bf16.mxu0 0
      %5091 = vmatpush2.bf16.msra.mxu0 %v5051
      %5092 = vmatprep.subr.bf16.mxu0 0
      %5093 = vmatpush2.bf16.msra.mxu0 %v5050
      %5094 = vmatprep.subr.bf16.mxu0 0
      %5095 = vmatpush2.bf16.msra.mxu0 %v5049
      %5096 = vmatprep.subr.bf16.mxu0 0
      %5097 = vmatpush2.bf16.msra.mxu0 %v5048
      %5098 = vmatprep.subr.bf16.mxu0 0
      %5099 = vmatpush2.bf16.msra.mxu0 %v5047
      %5100 = vmatprep.subr.bf16.mxu0 0
      %5101 = vmatpush2.bf16.msra.mxu0 %v5046
      %5102 = vmatprep.mubr.bf16.mxu0 %v4904
      %5103 = vmatmul.mubr.bf16.gmra.mxu0 %v4903
      %v5104 = vpop.f32.mrf.mxu0
      %v5105 = vadd.f32 %v4972, %v5104
      %v5106 = vpop.f32.mrf.mxu0
      %v5107 = vpop.f32.mrf.mxu0
      %v5108 = vadd.f32 %v4972, %v5107
      %v5109 = vpop.f32.mrf.mxu0
      %5110 = vmatprep.mubr.bf16.mxu0 %v4906
      %5111 = vmatmul.mubr.bf16.gmra.mxu0 %v4905
      %v5112 = vpop.f32.mrf.mxu0
      %v5113 = vadd.f32 %v4972, %v5112
      %v5114 = vpop.f32.mrf.mxu0
      %v5115 = vpop.f32.mrf.mxu0
      %v5116 = vadd.f32 %v4972, %v5115
      %v5117 = vpop.f32.mrf.mxu0
      %5118 = vmatprep.mubr.bf16.mxu0 %v4908
      %5119 = vmatmul.mubr.bf16.gmra.mxu0 %v4907
      %v5120 = vpop.f32.mrf.mxu0
      %v5121 = vadd.f32 %v4972, %v5120
      %v5122 = vpop.f32.mrf.mxu0
      %v5123 = vpop.f32.mrf.mxu0
      %v5124 = vadd.f32 %v4972, %v5123
      %v5125 = vpop.f32.mrf.mxu0
      %5126 = vmatprep.mubr.bf16.mxu0 %v4910
      %5127 = vmatmul.mubr.bf16.gmra.mxu0 %v4909
      %v5128 = vpop.f32.mrf.mxu0
      %v5129 = vadd.f32 %v4972, %v5128
      %v5130 = vpop.f32.mrf.mxu0
      %v5131 = vpop.f32.mrf.mxu0
      %v5132 = vadd.f32 %v4972, %v5131
      %v5133 = vpop.f32.mrf.mxu0
      %5134 = vmatprep.mubr.bf16.mxu0 %v4912
      %5135 = vmatmul.mubr.bf16.gmra.mxu0 %v4911
      %v5136 = vpop.f32.mrf.mxu0
      %v5137 = vadd.f32 %v4972, %v5136
      %v5138 = vpop.f32.mrf.mxu0
      %v5139 = vpop.f32.mrf.mxu0
      %v5140 = vadd.f32 %v4972, %v5139
      %v5141 = vpop.f32.mrf.mxu0
      %5142 = vmatprep.mubr.bf16.mxu0 %v4914
      %5143 = vmatmul.mubr.bf16.gmra.mxu0 %v4913
      %v5144 = vpop.f32.mrf.mxu0
      %v5145 = vadd.f32 %v4972, %v5144
      %v5146 = vpop.f32.mrf.mxu0
      %v5147 = vpop.f32.mrf.mxu0
      %v5148 = vadd.f32 %v4972, %v5147
      %v5149 = vpop.f32.mrf.mxu0
      %5150 = vmatprep.mubr.bf16.mxu0 %v4916
      %5151 = vmatmul.mubr.bf16.gmra.mxu0 %v4915
      %v5152 = vpop.f32.mrf.mxu0
      %v5153 = vadd.f32 %v4972, %v5152
      %v5154 = vpop.f32.mrf.mxu0
      %v5155 = vpop.f32.mrf.mxu0
      %v5156 = vadd.f32 %v4972, %v5155
      %v5157 = vpop.f32.mrf.mxu0
      %5158 = vmatprep.mubr.bf16.mxu0 %v4918
      %5159 = vmatmul.mubr.bf16.gmra.mxu0 %v4917
      %v5160 = vpop.f32.mrf.mxu0
      %v5161 = vadd.f32 %v4972, %v5160
      %v5162 = vpop.f32.mrf.mxu0
      %v5163 = vpop.f32.mrf.mxu0
      %v5164 = vadd.f32 %v4972, %v5163
      %v5165 = vpop.f32.mrf.mxu0
      %5166 = vmatprep.mubr.bf16.mxu0 %v4920
      %5167 = vmatmul.mubr.bf16.gmra.mxu0 %v4919
      %v5168 = vpop.f32.mrf.mxu0
      %v5169 = vadd.f32 %v4972, %v5168
      %v5170 = vpop.f32.mrf.mxu0
      %v5171 = vpop.f32.mrf.mxu0
      %v5172 = vadd.f32 %v4972, %v5171
      %v5173 = vpop.f32.mrf.mxu0
      %5174 = vmatprep.mubr.bf16.mxu0 %v4922
      %5175 = vmatmul.mubr.bf16.gmra.mxu0 %v4921
      %v5176 = vpop.f32.mrf.mxu0
      %v5177 = vadd.f32 %v4972, %v5176
      %v5178 = vpop.f32.mrf.mxu0
      %v5179 = vpop.f32.mrf.mxu0
      %v5180 = vadd.f32 %v4972, %v5179
      %v5181 = vpop.f32.mrf.mxu0
      %5182 = vmatprep.mubr.bf16.mxu0 %v4924
      %5183 = vmatmul.mubr.bf16.gmra.mxu0 %v4923
      %v5184 = vpop.f32.mrf.mxu0
      %v5185 = vadd.f32 %v4972, %v5184
      %v5186 = vpop.f32.mrf.mxu0
      %v5187 = vpop.f32.mrf.mxu0
      %v5188 = vadd.f32 %v4972, %v5187
      %v5189 = vpop.f32.mrf.mxu0
      %5190 = vmatprep.mubr.bf16.mxu0 %v4926
      %5191 = vmatmul.mubr.bf16.gmra.mxu0 %v4925
      %v5192 = vpop.f32.mrf.mxu0
      %v5193 = vadd.f32 %v4972, %v5192
      %v5194 = vpop.f32.mrf.mxu0
      %v5195 = vpop.f32.mrf.mxu0
      %v5196 = vadd.f32 %v4972, %v5195
      %v5197 = vpop.f32.mrf.mxu0
      %5198 = vmatprep.mubr.bf16.mxu0 %v4928
      %5199 = vmatmul.mubr.bf16.gmra.mxu0 %v4927
      %v5200 = vpop.f32.mrf.mxu0
      %v5201 = vadd.f32 %v4972, %v5200
      %v5202 = vpop.f32.mrf.mxu0
      %v5203 = vpop.f32.mrf.mxu0
      %v5204 = vadd.f32 %v4972, %v5203
      %v5205 = vpop.f32.mrf.mxu0
      %5206 = vmatprep.mubr.bf16.mxu0 %v4930
      %5207 = vmatmul.mubr.bf16.gmra.mxu0 %v4929
      %v5208 = vpop.f32.mrf.mxu0
      %v5209 = vadd.f32 %v4972, %v5208
      %v5210 = vpop.f32.mrf.mxu0
      %v5211 = vpop.f32.mrf.mxu0
      %v5212 = vadd.f32 %v4972, %v5211
      %v5213 = vpop.f32.mrf.mxu0
      %5214 = vmatprep.mubr.bf16.mxu0 %v4932
      %5215 = vmatmul.mubr.bf16.gmra.mxu0 %v4931
      %v5216 = vpop.f32.mrf.mxu0
      %v5217 = vadd.f32 %v4972, %v5216
      %v5218 = vpop.f32.mrf.mxu0
      %v5219 = vpop.f32.mrf.mxu0
      %v5220 = vadd.f32 %v4972, %v5219
      %v5221 = vpop.f32.mrf.mxu0
      %5222 = vmatprep.mubr.bf16.mxu0 %v4934
      %5223 = vmatmul.mubr.bf16.gmra.mxu0 %v4933
      %v5224 = vpop.f32.mrf.mxu0
      %v5225 = vadd.f32 %v4972, %v5224
      %v5226 = vpop.f32.mrf.mxu0
      %v5227 = vpop.f32.mrf.mxu0
      %v5228 = vadd.f32 %v4972, %v5227
      %v5229 = vpop.f32.mrf.mxu0
      %5230 = vdwg.mxu0
      %v5231 = vadd.f32 %v3548, %v5105
      %v5232 = vadd.f32 %v3549, %v5108
      %v5233 = vadd.f32 %v3550, %v5113
      %v5234 = vadd.f32 %v3551, %v5116
      %v5235 = vadd.f32 %v3552, %v5121
      %v5236 = vadd.f32 %v3553, %v5124
      %v5237 = vadd.f32 %v3554, %v5129
      %v5238 = vadd.f32 %v3555, %v5132
      %v5239 = vadd.f32 %v3556, %v5137
      %v5240 = vadd.f32 %v3557, %v5140
      %v5241 = vadd.f32 %v3558, %v5145
      %v5242 = vadd.f32 %v3559, %v5148
      %v5243 = vadd.f32 %v3560, %v5153
      %v5244 = vadd.f32 %v3561, %v5156
      %v5245 = vadd.f32 %v3562, %v5161
      %v5246 = vadd.f32 %v3563, %v5164
      %v5247 = vadd.f32 %v3564, %v5169
      %v5248 = vadd.f32 %v3565, %v5172
      %v5249 = vadd.f32 %v3566, %v5177
      %v5250 = vadd.f32 %v3567, %v5180
      %v5251 = vadd.f32 %v3568, %v5185
      %v5252 = vadd.f32 %v3569, %v5188
      %v5253 = vadd.f32 %v3570, %v5193
      %v5254 = vadd.f32 %v3571, %v5196
      %v5255 = vadd.f32 %v3572, %v5201
      %v5256 = vadd.f32 %v3573, %v5204
      %v5257 = vadd.f32 %v3574, %v5209
      %v5258 = vadd.f32 %v3575, %v5212
      %v5259 = vadd.f32 %v3576, %v5217
      %v5260 = vadd.f32 %v3577, %v5220
      %v5261 = vadd.f32 %v3578, %v5225
      %v5262 = vadd.f32 %v3579, %v5228
      %5263 = vst [vmem:[#allocation2] sm:$0xff] %v5231
      %5264 = vst [vmem:[#allocation2 + $0x8] sm:$0xff] %v5232
      %5265 = vst [vmem:[#allocation2 + $0x10] sm:$0xff] %v5233
      %5266 = vst [vmem:[#allocation2 + $0x18] sm:$0xff] %v5234
      %5267 = vst [vmem:[#allocation2 + $0x20] sm:$0xff] %v5235
      %5268 = vst [vmem:[#allocation2 + $0x28] sm:$0xff] %v5236
      %5269 = vst [vmem:[#allocation2 + $0x30] sm:$0xff] %v5237
      %5270 = vst [vmem:[#allocation2 + $0x38] sm:$0xff] %v5238
      %5271 = vst [vmem:[#allocation2 + $0x40] sm:$0xff] %v5239
      %5272 = vst [vmem:[#allocation2 + $0x48] sm:$0xff] %v5240
      %5273 = vst [vmem:[#allocation2 + $0x50] sm:$0xff] %v5241
      %5274 = vst [vmem:[#allocation2 + $0x58] sm:$0xff] %v5242
      %5275 = vst [vmem:[#allocation2 + $0x60] sm:$0xff] %v5243
      %5276 = vst [vmem:[#allocation2 + $0x68] sm:$0xff] %v5244
      %5277 = vst [vmem:[#allocation2 + $0x70] sm:$0xff] %v5245
      %5278 = vst [vmem:[#allocation2 + $0x78] sm:$0xff] %v5246
      %5279 = vst [vmem:[#allocation2 + $0x80] sm:$0xff] %v5247
      %5280 = vst [vmem:[#allocation2 + $0x88] sm:$0xff] %v5248
      %5281 = vst [vmem:[#allocation2 + $0x90] sm:$0xff] %v5249
      %5282 = vst [vmem:[#allocation2 + $0x98] sm:$0xff] %v5250
      %5283 = vst [vmem:[#allocation2 + $0xa0] sm:$0xff] %v5251
      %5284 = vst [vmem:[#allocation2 + $0xa8] sm:$0xff] %v5252
      %5285 = vst [vmem:[#allocation2 + $0xb0] sm:$0xff] %v5253
      %5286 = vst [vmem:[#allocation2 + $0xb8] sm:$0xff] %v5254
      %5287 = vst [vmem:[#allocation2 + $0xc0] sm:$0xff] %v5255
      %5288 = vst [vmem:[#allocation2 + $0xc8] sm:$0xff] %v5256
      %5289 = vst [vmem:[#allocation2 + $0xd0] sm:$0xff] %v5257
      %5290 = vst [vmem:[#allocation2 + $0xd8] sm:$0xff] %v5258
      %5291 = vst [vmem:[#allocation2 + $0xe0] sm:$0xff] %v5259
      %5292 = vst [vmem:[#allocation2 + $0xe8] sm:$0xff] %v5260
      %5293 = vst [vmem:[#allocation2 + $0xf0] sm:$0xff] %v5261
      %5294 = vst [vmem:[#allocation2 + $0xf8] sm:$0xff] %v5262
      %v5295 = vld [vmem:[#allocation2] sm:$0xff]
      %v5296 = vld [vmem:[#allocation2 + $0x8] sm:$0xff]
      %v5297 = vld [vmem:[#allocation2 + $0x10] sm:$0xff]
      %v5298 = vld [vmem:[#allocation2 + $0x18] sm:$0xff]
      %v5299 = vld [vmem:[#allocation2 + $0x20] sm:$0xff]
      %v5300 = vld [vmem:[#allocation2 + $0x28] sm:$0xff]
      %v5301 = vld [vmem:[#allocation2 + $0x30] sm:$0xff]
      %v5302 = vld [vmem:[#allocation2 + $0x38] sm:$0xff]
      %v5303 = vld [vmem:[#allocation2 + $0x40] sm:$0xff]
      %v5304 = vld [vmem:[#allocation2 + $0x48] sm:$0xff]
      %v5305 = vld [vmem:[#allocation2 + $0x50] sm:$0xff]
      %v5306 = vld [vmem:[#allocation2 + $0x58] sm:$0xff]
      %v5307 = vld [vmem:[#allocation2 + $0x60] sm:$0xff]
      %v5308 = vld [vmem:[#allocation2 + $0x68] sm:$0xff]
      %v5309 = vld [vmem:[#allocation2 + $0x70] sm:$0xff]
      %v5310 = vld [vmem:[#allocation2 + $0x78] sm:$0xff]
      %v5311 = vld [vmem:[#allocation2 + $0x80] sm:$0xff]
      %v5312 = vld [vmem:[#allocation2 + $0x88] sm:$0xff]
      %v5313 = vld [vmem:[#allocation2 + $0x90] sm:$0xff]
      %v5314 = vld [vmem:[#allocation2 + $0x98] sm:$0xff]
      %v5315 = vld [vmem:[#allocation2 + $0xa0] sm:$0xff]
      %v5316 = vld [vmem:[#allocation2 + $0xa8] sm:$0xff]
      %v5317 = vld [vmem:[#allocation2 + $0xb0] sm:$0xff]
      %v5318 = vld [vmem:[#allocation2 + $0xb8] sm:$0xff]
      %v5319 = vld [vmem:[#allocation2 + $0xc0] sm:$0xff]
      %v5320 = vld [vmem:[#allocation2 + $0xc8] sm:$0xff]
      %v5321 = vld [vmem:[#allocation2 + $0xd0] sm:$0xff]
      %v5322 = vld [vmem:[#allocation2 + $0xd8] sm:$0xff]
      %v5323 = vld [vmem:[#allocation2 + $0xe0] sm:$0xff]
      %v5324 = vld [vmem:[#allocation2 + $0xe8] sm:$0xff]
      %v5325 = vld [vmem:[#allocation2 + $0xf0] sm:$0xff]
      %v5326 = vld [vmem:[#allocation2 + $0xf8] sm:$0xff]
      %s5327 = scalar_lea.vmem %s4, 1
      %v5328 = vld [vmem:[%s5327] sm:$0x1]
      %s5329 = scalar_lea.vmem %s5, 1
      %v5330 = vld [vmem:[%s5329] sm:$0x1]
      %5331 = vadd.xlane.f32.xlu0 %v5295
      %v5332 = vpop.xlane.xlu0 %5331
      %5333 = vadd.xlane.f32.xlu0 %v5296
      %v5334 = vpop.xlane.xlu0 %5333
      %5335 = vadd.xlane.f32.xlu0 %v5297
      %v5336 = vpop.xlane.xlu0 %5335
      %5337 = vadd.xlane.f32.xlu0 %v5298
      %v5338 = vpop.xlane.xlu0 %5337
      %5339 = vadd.xlane.f32.xlu0 %v5299
      %v5340 = vpop.xlane.xlu0 %5339
      %5341 = vadd.xlane.f32.xlu0 %v5300
      %v5342 = vpop.xlane.xlu0 %5341
      %5343 = vadd.xlane.f32.xlu0 %v5301
      %v5344 = vpop.xlane.xlu0 %5343
      %5345 = vadd.xlane.f32.xlu0 %v5302
      %v5346 = vpop.xlane.xlu0 %5345
      %5347 = vadd.xlane.f32.xlu0 %v5303
      %v5348 = vpop.xlane.xlu0 %5347
      %5349 = vadd.xlane.f32.xlu0 %v5304
      %v5350 = vpop.xlane.xlu0 %5349
      %5351 = vadd.xlane.f32.xlu0 %v5305
      %v5352 = vpop.xlane.xlu0 %5351
      %5353 = vadd.xlane.f32.xlu0 %v5306
      %v5354 = vpop.xlane.xlu0 %5353
      %5355 = vadd.xlane.f32.xlu0 %v5307
      %v5356 = vpop.xlane.xlu0 %5355
      %5357 = vadd.xlane.f32.xlu0 %v5308
      %v5358 = vpop.xlane.xlu0 %5357
      %5359 = vadd.xlane.f32.xlu0 %v5309
      %v5360 = vpop.xlane.xlu0 %5359
      %5361 = vadd.xlane.f32.xlu0 %v5310
      %v5362 = vpop.xlane.xlu0 %5361
      %5363 = vadd.xlane.f32.xlu0 %v5311
      %v5364 = vpop.xlane.xlu0 %5363
      %5365 = vadd.xlane.f32.xlu0 %v5312
      %v5366 = vpop.xlane.xlu0 %5365
      %5367 = vadd.xlane.f32.xlu0 %v5313
      %v5368 = vpop.xlane.xlu0 %5367
      %5369 = vadd.xlane.f32.xlu0 %v5314
      %v5370 = vpop.xlane.xlu0 %5369
      %5371 = vadd.xlane.f32.xlu0 %v5315
      %v5372 = vpop.xlane.xlu0 %5371
      %5373 = vadd.xlane.f32.xlu0 %v5316
      %v5374 = vpop.xlane.xlu0 %5373
      %5375 = vadd.xlane.f32.xlu0 %v5317
      %v5376 = vpop.xlane.xlu0 %5375
      %5377 = vadd.xlane.f32.xlu0 %v5318
      %v5378 = vpop.xlane.xlu0 %5377
      %5379 = vadd.xlane.f32.xlu0 %v5319
      %v5380 = vpop.xlane.xlu0 %5379
      %5381 = vadd.xlane.f32.xlu0 %v5320
      %v5382 = vpop.xlane.xlu0 %5381
      %5383 = vadd.xlane.f32.xlu0 %v5321
      %v5384 = vpop.xlane.xlu0 %5383
      %5385 = vadd.xlane.f32.xlu0 %v5322
      %v5386 = vpop.xlane.xlu0 %5385
      %5387 = vadd.xlane.f32.xlu0 %v5323
      %v5388 = vpop.xlane.xlu0 %5387
      %5389 = vadd.xlane.f32.xlu0 %v5324
      %v5390 = vpop.xlane.xlu0 %5389
      %5391 = vadd.xlane.f32.xlu0 %v5325
      %v5392 = vpop.xlane.xlu0 %5391
      %5393 = vadd.xlane.f32.xlu0 %v5326
      %v5394 = vpop.xlane.xlu0 %5393
      %v5395 = vmul.f32 %v5332, %v1189
      %v5396 = vmul.f32 %v5334, %v1189
      %v5397 = vmul.f32 %v5336, %v1189
      %v5398 = vmul.f32 %v5338, %v1189
      %v5399 = vmul.f32 %v5340, %v1189
      %v5400 = vmul.f32 %v5342, %v1189
      %v5401 = vmul.f32 %v5344, %v1189
      %v5402 = vmul.f32 %v5346, %v1189
      %v5403 = vmul.f32 %v5348, %v1189
      %v5404 = vmul.f32 %v5350, %v1189
      %v5405 = vmul.f32 %v5352, %v1189
      %v5406 = vmul.f32 %v5354, %v1189
      %v5407 = vmul.f32 %v5356, %v1189
      %v5408 = vmul.f32 %v5358, %v1189
      %v5409 = vmul.f32 %v5360, %v1189
      %v5410 = vmul.f32 %v5362, %v1189
      %v5411 = vmul.f32 %v5364, %v1189
      %v5412 = vmul.f32 %v5366, %v1189
      %v5413 = vmul.f32 %v5368, %v1189
      %v5414 = vmul.f32 %v5370, %v1189
      %v5415 = vmul.f32 %v5372, %v1189
      %v5416 = vmul.f32 %v5374, %v1189
      %v5417 = vmul.f32 %v5376, %v1189
      %v5418 = vmul.f32 %v5378, %v1189
      %v5419 = vmul.f32 %v5380, %v1189
      %v5420 = vmul.f32 %v5382, %v1189
      %v5421 = vmul.f32 %v5384, %v1189
      %v5422 = vmul.f32 %v5386, %v1189
      %v5423 = vmul.f32 %v5388, %v1189
      %v5424 = vmul.f32 %v5390, %v1189
      %v5425 = vmul.f32 %v5392, %v1189
      %v5426 = vmul.f32 %v5394, %v1189
      %v5427 = vsub.f32 %v5295, %v5395
      %v5428 = vsub.f32 %v5296, %v5396
      %v5429 = vsub.f32 %v5297, %v5397
      %v5430 = vsub.f32 %v5298, %v5398
      %v5431 = vsub.f32 %v5299, %v5399
      %v5432 = vsub.f32 %v5300, %v5400
      %v5433 = vsub.f32 %v5301, %v5401
      %v5434 = vsub.f32 %v5302, %v5402
      %v5435 = vsub.f32 %v5303, %v5403
      %v5436 = vsub.f32 %v5304, %v5404
      %v5437 = vsub.f32 %v5305, %v5405
      %v5438 = vsub.f32 %v5306, %v5406
      %v5439 = vsub.f32 %v5307, %v5407
      %v5440 = vsub.f32 %v5308, %v5408
      %v5441 = vsub.f32 %v5309, %v5409
      %v5442 = vsub.f32 %v5310, %v5410
      %v5443 = vsub.f32 %v5311, %v5411
      %v5444 = vsub.f32 %v5312, %v5412
      %v5445 = vsub.f32 %v5313, %v5413
      %v5446 = vsub.f32 %v5314, %v5414
      %v5447 = vsub.f32 %v5315, %v5415
      %v5448 = vsub.f32 %v5316, %v5416
      %v5449 = vsub.f32 %v5317, %v5417
      %v5450 = vsub.f32 %v5318, %v5418
      %v5451 = vsub.f32 %v5319, %v5419
      %v5452 = vsub.f32 %v5320, %v5420
      %v5453 = vsub.f32 %v5321, %v5421
      %v5454 = vsub.f32 %v5322, %v5422
      %v5455 = vsub.f32 %v5323, %v5423
      %v5456 = vsub.f32 %v5324, %v5424
      %v5457 = vsub.f32 %v5325, %v5425
      %v5458 = vsub.f32 %v5326, %v5426
      %v5459 = vmul.f32 %v5427, %v5427
      %v5460 = vmul.f32 %v5428, %v5428
      %v5461 = vmul.f32 %v5429, %v5429
      %v5462 = vmul.f32 %v5430, %v5430
      %v5463 = vmul.f32 %v5431, %v5431
      %v5464 = vmul.f32 %v5432, %v5432
      %v5465 = vmul.f32 %v5433, %v5433
      %v5466 = vmul.f32 %v5434, %v5434
      %v5467 = vmul.f32 %v5435, %v5435
      %v5468 = vmul.f32 %v5436, %v5436
      %v5469 = vmul.f32 %v5437, %v5437
      %v5470 = vmul.f32 %v5438, %v5438
      %v5471 = vmul.f32 %v5439, %v5439
      %v5472 = vmul.f32 %v5440, %v5440
      %v5473 = vmul.f32 %v5441, %v5441
      %v5474 = vmul.f32 %v5442, %v5442
      %v5475 = vmul.f32 %v5443, %v5443
      %v5476 = vmul.f32 %v5444, %v5444
      %v5477 = vmul.f32 %v5445, %v5445
      %v5478 = vmul.f32 %v5446, %v5446
      %v5479 = vmul.f32 %v5447, %v5447
      %v5480 = vmul.f32 %v5448, %v5448
      %v5481 = vmul.f32 %v5449, %v5449
      %v5482 = vmul.f32 %v5450, %v5450
      %v5483 = vmul.f32 %v5451, %v5451
      %v5484 = vmul.f32 %v5452, %v5452
      %v5485 = vmul.f32 %v5453, %v5453
      %v5486 = vmul.f32 %v5454, %v5454
      %v5487 = vmul.f32 %v5455, %v5455
      %v5488 = vmul.f32 %v5456, %v5456
      %v5489 = vmul.f32 %v5457, %v5457
      %v5490 = vmul.f32 %v5458, %v5458
      %5491 = vadd.xlane.f32.xlu0 %v5459
      %v5492 = vpop.xlane.xlu0 %5491
      %5493 = vadd.xlane.f32.xlu0 %v5460
      %v5494 = vpop.xlane.xlu0 %5493
      %5495 = vadd.xlane.f32.xlu0 %v5461
      %v5496 = vpop.xlane.xlu0 %5495
      %5497 = vadd.xlane.f32.xlu0 %v5462
      %v5498 = vpop.xlane.xlu0 %5497
      %5499 = vadd.xlane.f32.xlu0 %v5463
      %v5500 = vpop.xlane.xlu0 %5499
      %5501 = vadd.xlane.f32.xlu0 %v5464
      %v5502 = vpop.xlane.xlu0 %5501
      %5503 = vadd.xlane.f32.xlu0 %v5465
      %v5504 = vpop.xlane.xlu0 %5503
      %5505 = vadd.xlane.f32.xlu0 %v5466
      %v5506 = vpop.xlane.xlu0 %5505
      %5507 = vadd.xlane.f32.xlu0 %v5467
      %v5508 = vpop.xlane.xlu0 %5507
      %5509 = vadd.xlane.f32.xlu0 %v5468
      %v5510 = vpop.xlane.xlu0 %5509
      %5511 = vadd.xlane.f32.xlu0 %v5469
      %v5512 = vpop.xlane.xlu0 %5511
      %5513 = vadd.xlane.f32.xlu0 %v5470
      %v5514 = vpop.xlane.xlu0 %5513
      %5515 = vadd.xlane.f32.xlu0 %v5471
      %v5516 = vpop.xlane.xlu0 %5515
      %5517 = vadd.xlane.f32.xlu0 %v5472
      %v5518 = vpop.xlane.xlu0 %5517
      %5519 = vadd.xlane.f32.xlu0 %v5473
      %v5520 = vpop.xlane.xlu0 %5519
      %5521 = vadd.xlane.f32.xlu0 %v5474
      %v5522 = vpop.xlane.xlu0 %5521
      %5523 = vadd.xlane.f32.xlu0 %v5475
      %v5524 = vpop.xlane.xlu0 %5523
      %5525 = vadd.xlane.f32.xlu0 %v5476
      %v5526 = vpop.xlane.xlu0 %5525
      %5527 = vadd.xlane.f32.xlu0 %v5477
      %v5528 = vpop.xlane.xlu0 %5527
      %5529 = vadd.xlane.f32.xlu0 %v5478
      %v5530 = vpop.xlane.xlu0 %5529
      %5531 = vadd.xlane.f32.xlu0 %v5479
      %v5532 = vpop.xlane.xlu0 %5531
      %5533 = vadd.xlane.f32.xlu0 %v5480
      %v5534 = vpop.xlane.xlu0 %5533
      %5535 = vadd.xlane.f32.xlu0 %v5481
      %v5536 = vpop.xlane.xlu0 %5535
      %5537 = vadd.xlane.f32.xlu0 %v5482
      %v5538 = vpop.xlane.xlu0 %5537
      %5539 = vadd.xlane.f32.xlu0 %v5483
      %v5540 = vpop.xlane.xlu0 %5539
      %5541 = vadd.xlane.f32.xlu0 %v5484
      %v5542 = vpop.xlane.xlu0 %5541
      %5543 = vadd.xlane.f32.xlu0 %v5485
      %v5544 = vpop.xlane.xlu0 %5543
      %5545 = vadd.xlane.f32.xlu0 %v5486
      %v5546 = vpop.xlane.xlu0 %5545
      %5547 = vadd.xlane.f32.xlu0 %v5487
      %v5548 = vpop.xlane.xlu0 %5547
      %5549 = vadd.xlane.f32.xlu0 %v5488
      %v5550 = vpop.xlane.xlu0 %5549
      %5551 = vadd.xlane.f32.xlu0 %v5489
      %v5552 = vpop.xlane.xlu0 %5551
      %5553 = vadd.xlane.f32.xlu0 %v5490
      %v5554 = vpop.xlane.xlu0 %5553
      %v5555 = vmul.f32 %v5492, %v1189
      %v5556 = vmul.f32 %v5494, %v1189
      %v5557 = vmul.f32 %v5496, %v1189
      %v5558 = vmul.f32 %v5498, %v1189
      %v5559 = vmul.f32 %v5500, %v1189
      %v5560 = vmul.f32 %v5502, %v1189
      %v5561 = vmul.f32 %v5504, %v1189
      %v5562 = vmul.f32 %v5506, %v1189
      %v5563 = vmul.f32 %v5508, %v1189
      %v5564 = vmul.f32 %v5510, %v1189
      %v5565 = vmul.f32 %v5512, %v1189
      %v5566 = vmul.f32 %v5514, %v1189
      %v5567 = vmul.f32 %v5516, %v1189
      %v5568 = vmul.f32 %v5518, %v1189
      %v5569 = vmul.f32 %v5520, %v1189
      %v5570 = vmul.f32 %v5522, %v1189
      %v5571 = vmul.f32 %v5524, %v1189
      %v5572 = vmul.f32 %v5526, %v1189
      %v5573 = vmul.f32 %v5528, %v1189
      %v5574 = vmul.f32 %v5530, %v1189
      %v5575 = vmul.f32 %v5532, %v1189
      %v5576 = vmul.f32 %v5534, %v1189
      %v5577 = vmul.f32 %v5536, %v1189
      %v5578 = vmul.f32 %v5538, %v1189
      %v5579 = vmul.f32 %v5540, %v1189
      %v5580 = vmul.f32 %v5542, %v1189
      %v5581 = vmul.f32 %v5544, %v1189
      %v5582 = vmul.f32 %v5546, %v1189
      %v5583 = vmul.f32 %v5548, %v1189
      %v5584 = vmul.f32 %v5550, %v1189
      %v5585 = vmul.f32 %v5552, %v1189
      %v5586 = vmul.f32 %v5554, %v1189
      %v5587 = vadd.f32 %v5555, 1e-06
      %v5588 = vadd.f32 %v5556, 1e-06
      %v5589 = vadd.f32 %v5557, 1e-06
      %v5590 = vadd.f32 %v5558, 1e-06
      %v5591 = vadd.f32 %v5559, 1e-06
      %v5592 = vadd.f32 %v5560, 1e-06
      %v5593 = vadd.f32 %v5561, 1e-06
      %v5594 = vadd.f32 %v5562, 1e-06
      %v5595 = vadd.f32 %v5563, 1e-06
      %v5596 = vadd.f32 %v5564, 1e-06
      %v5597 = vadd.f32 %v5565, 1e-06
      %v5598 = vadd.f32 %v5566, 1e-06
      %v5599 = vadd.f32 %v5567, 1e-06
      %v5600 = vadd.f32 %v5568, 1e-06
      %v5601 = vadd.f32 %v5569, 1e-06
      %v5602 = vadd.f32 %v5570, 1e-06
      %v5603 = vadd.f32 %v5571, 1e-06
      %v5604 = vadd.f32 %v5572, 1e-06
      %v5605 = vadd.f32 %v5573, 1e-06
      %v5606 = vadd.f32 %v5574, 1e-06
      %v5607 = vadd.f32 %v5575, 1e-06
      %v5608 = vadd.f32 %v5576, 1e-06
      %v5609 = vadd.f32 %v5577, 1e-06
      %v5610 = vadd.f32 %v5578, 1e-06
      %v5611 = vadd.f32 %v5579, 1e-06
      %v5612 = vadd.f32 %v5580, 1e-06
      %v5613 = vadd.f32 %v5581, 1e-06
      %v5614 = vadd.f32 %v5582, 1e-06
      %v5615 = vadd.f32 %v5583, 1e-06
      %v5616 = vadd.f32 %v5584, 1e-06
      %v5617 = vadd.f32 %v5585, 1e-06
      %v5618 = vadd.f32 %v5586, 1e-06
      %v5619 = vrsqrt.pop %v5587
      %v5620 = vrsqrt.pop %v5588
      %v5621 = vrsqrt.pop %v5589
      %v5622 = vrsqrt.pop %v5590
      %v5623 = vrsqrt.pop %v5591
      %v5624 = vrsqrt.pop %v5592
      %v5625 = vrsqrt.pop %v5593
      %v5626 = vrsqrt.pop %v5594
      %v5627 = vrsqrt.pop %v5595
      %v5628 = vrsqrt.pop %v5596
      %v5629 = vrsqrt.pop %v5597
      %v5630 = vrsqrt.pop %v5598
      %v5631 = vrsqrt.pop %v5599
      %v5632 = vrsqrt.pop %v5600
      %v5633 = vrsqrt.pop %v5601
      %v5634 = vrsqrt.pop %v5602
      %v5635 = vrsqrt.pop %v5603
      %v5636 = vrsqrt.pop %v5604
      %v5637 = vrsqrt.pop %v5605
      %v5638 = vrsqrt.pop %v5606
      %v5639 = vrsqrt.pop %v5607
      %v5640 = vrsqrt.pop %v5608
      %v5641 = vrsqrt.pop %v5609
      %v5642 = vrsqrt.pop %v5610
      %v5643 = vrsqrt.pop %v5611
      %v5644 = vrsqrt.pop %v5612
      %v5645 = vrsqrt.pop %v5613
      %v5646 = vrsqrt.pop %v5614
      %v5647 = vrsqrt.pop %v5615
      %v5648 = vrsqrt.pop %v5616
      %v5649 = vrsqrt.pop %v5617
      %v5650 = vrsqrt.pop %v5618
      %v5651 = vmul.f32 %v5427, %v5619
      %v5652 = vmul.f32 %v5428, %v5620
      %v5653 = vmul.f32 %v5429, %v5621
      %v5654 = vmul.f32 %v5430, %v5622
      %v5655 = vmul.f32 %v5431, %v5623
      %v5656 = vmul.f32 %v5432, %v5624
      %v5657 = vmul.f32 %v5433, %v5625
      %v5658 = vmul.f32 %v5434, %v5626
      %v5659 = vmul.f32 %v5435, %v5627
      %v5660 = vmul.f32 %v5436, %v5628
      %v5661 = vmul.f32 %v5437, %v5629
      %v5662 = vmul.f32 %v5438, %v5630
      %v5663 = vmul.f32 %v5439, %v5631
      %v5664 = vmul.f32 %v5440, %v5632
      %v5665 = vmul.f32 %v5441, %v5633
      %v5666 = vmul.f32 %v5442, %v5634
      %v5667 = vmul.f32 %v5443, %v5635
      %v5668 = vmul.f32 %v5444, %v5636
      %v5669 = vmul.f32 %v5445, %v5637
      %v5670 = vmul.f32 %v5446, %v5638
      %v5671 = vmul.f32 %v5447, %v5639
      %v5672 = vmul.f32 %v5448, %v5640
      %v5673 = vmul.f32 %v5449, %v5641
      %v5674 = vmul.f32 %v5450, %v5642
      %v5675 = vmul.f32 %v5451, %v5643
      %v5676 = vmul.f32 %v5452, %v5644
      %v5677 = vmul.f32 %v5453, %v5645
      %v5678 = vmul.f32 %v5454, %v5646
      %v5679 = vmul.f32 %v5455, %v5647
      %v5680 = vmul.f32 %v5456, %v5648
      %v5681 = vmul.f32 %v5457, %v5649
      %v5682 = vmul.f32 %v5458, %v5650
      %v5684 = vlaneseq
      %v5685 = vshrl.u32 %v5684, 7
      %v5686 = vsub.s32 0, %v5685
      %v5687 = vrot.slane %v5328, %v5686
      %v5689 = vmul.f32 %v5651, %v5687
      %v5690 = vmul.f32 %v5652, %v5687
      %v5691 = vmul.f32 %v5653, %v5687
      %v5692 = vmul.f32 %v5654, %v5687
      %v5693 = vmul.f32 %v5655, %v5687
      %v5694 = vmul.f32 %v5656, %v5687
      %v5695 = vmul.f32 %v5657, %v5687
      %v5696 = vmul.f32 %v5658, %v5687
      %v5697 = vmul.f32 %v5659, %v5687
      %v5698 = vmul.f32 %v5660, %v5687
      %v5699 = vmul.f32 %v5661, %v5687
      %v5700 = vmul.f32 %v5662, %v5687
      %v5701 = vmul.f32 %v5663, %v5687
      %v5702 = vmul.f32 %v5664, %v5687
      %v5703 = vmul.f32 %v5665, %v5687
      %v5704 = vmul.f32 %v5666, %v5687
      %v5705 = vmul.f32 %v5667, %v5687
      %v5706 = vmul.f32 %v5668, %v5687
      %v5707 = vmul.f32 %v5669, %v5687
      %v5708 = vmul.f32 %v5670, %v5687
      %v5709 = vmul.f32 %v5671, %v5687
      %v5710 = vmul.f32 %v5672, %v5687
      %v5711 = vmul.f32 %v5673, %v5687
      %v5712 = vmul.f32 %v5674, %v5687
      %v5713 = vmul.f32 %v5675, %v5687
      %v5714 = vmul.f32 %v5676, %v5687
      %v5715 = vmul.f32 %v5677, %v5687
      %v5716 = vmul.f32 %v5678, %v5687
      %v5717 = vmul.f32 %v5679, %v5687
      %v5718 = vmul.f32 %v5680, %v5687
      %v5719 = vmul.f32 %v5681, %v5687
      %v5720 = vmul.f32 %v5682, %v5687
      %v5722 = vlaneseq
      %v5723 = vshrl.u32 %v5722, 7
      %v5724 = vsub.s32 0, %v5723
      %v5725 = vrot.slane %v5330, %v5724
      %v5727 = vadd.f32 %v5689, %v5725
      %v5728 = vadd.f32 %v5690, %v5725
      %v5729 = vadd.f32 %v5691, %v5725
      %v5730 = vadd.f32 %v5692, %v5725
      %v5731 = vadd.f32 %v5693, %v5725
      %v5732 = vadd.f32 %v5694, %v5725
      %v5733 = vadd.f32 %v5695, %v5725
      %v5734 = vadd.f32 %v5696, %v5725
      %v5735 = vadd.f32 %v5697, %v5725
      %v5736 = vadd.f32 %v5698, %v5725
      %v5737 = vadd.f32 %v5699, %v5725
      %v5738 = vadd.f32 %v5700, %v5725
      %v5739 = vadd.f32 %v5701, %v5725
      %v5740 = vadd.f32 %v5702, %v5725
      %v5741 = vadd.f32 %v5703, %v5725
      %v5742 = vadd.f32 %v5704, %v5725
      %v5743 = vadd.f32 %v5705, %v5725
      %v5744 = vadd.f32 %v5706, %v5725
      %v5745 = vadd.f32 %v5707, %v5725
      %v5746 = vadd.f32 %v5708, %v5725
      %v5747 = vadd.f32 %v5709, %v5725
      %v5748 = vadd.f32 %v5710, %v5725
      %v5749 = vadd.f32 %v5711, %v5725
      %v5750 = vadd.f32 %v5712, %v5725
      %v5751 = vadd.f32 %v5713, %v5725
      %v5752 = vadd.f32 %v5714, %v5725
      %v5753 = vadd.f32 %v5715, %v5725
      %v5754 = vadd.f32 %v5716, %v5725
      %v5755 = vadd.f32 %v5717, %v5725
      %v5756 = vadd.f32 %v5718, %v5725
      %v5757 = vadd.f32 %v5719, %v5725
      %v5758 = vadd.f32 %v5720, %v5725
      %v5759 = vpack.c.bf16 %v5728, %v5727
      %v5760 = vpack.c.bf16 %v5730, %v5729
      %v5761 = vpack.c.bf16 %v5732, %v5731
      %v5762 = vpack.c.bf16 %v5734, %v5733
      %v5763 = vpack.c.bf16 %v5736, %v5735
      %v5764 = vpack.c.bf16 %v5738, %v5737
      %v5765 = vpack.c.bf16 %v5740, %v5739
      %v5766 = vpack.c.bf16 %v5742, %v5741
      %v5767 = vpack.c.bf16 %v5744, %v5743
      %v5768 = vpack.c.bf16 %v5746, %v5745
      %v5769 = vpack.c.bf16 %v5748, %v5747
      %v5770 = vpack.c.bf16 %v5750, %v5749
      %v5771 = vpack.c.bf16 %v5752, %v5751
      %v5772 = vpack.c.bf16 %v5754, %v5753
      %v5773 = vpack.c.bf16 %v5756, %v5755
      %v5774 = vpack.c.bf16 %v5758, %v5757
      %s5775 = scalar_lea.vmem %s6, 192
      %v5776 = vld [vmem:[%s5775] sm:$0xff]
      %v5777 = vld [vmem:[%s5775 + $0x8] sm:$0xf]
      %v5778 = vld [vmem:[%s5775 + $0xc] sm:$0xff]
      %v5779 = vld [vmem:[%s5775 + $0x14] sm:$0xf]
      %v5780 = vld [vmem:[%s5775 + $0x18] sm:$0xff]
      %v5781 = vld [vmem:[%s5775 + $0x20] sm:$0xf]
      %v5782 = vld [vmem:[%s5775 + $0x24] sm:$0xff]
      %v5783 = vld [vmem:[%s5775 + $0x2c] sm:$0xf]
      %v5784 = vld [vmem:[%s5775 + $0x30] sm:$0xff]
      %v5785 = vld [vmem:[%s5775 + $0x38] sm:$0xf]
      %v5786 = vld [vmem:[%s5775 + $0x3c] sm:$0xff]
      %v5787 = vld [vmem:[%s5775 + $0x44] sm:$0xf]
      %v5788 = vld [vmem:[%s5775 + $0x48] sm:$0xff]
      %v5789 = vld [vmem:[%s5775 + $0x50] sm:$0xf]
      %v5790 = vld [vmem:[%s5775 + $0x54] sm:$0xff]
      %v5791 = vld [vmem:[%s5775 + $0x5c] sm:$0xf]
      %v5792 = vld [vmem:[%s5775 + $0x60] sm:$0xff]
      %v5793 = vld [vmem:[%s5775 + $0x68] sm:$0xf]
      %v5794 = vld [vmem:[%s5775 + $0x6c] sm:$0xff]
      %v5795 = vld [vmem:[%s5775 + $0x74] sm:$0xf]
      %v5796 = vld [vmem:[%s5775 + $0x78] sm:$0xff]
      %v5797 = vld [vmem:[%s5775 + $0x80] sm:$0xf]
      %v5798 = vld [vmem:[%s5775 + $0x84] sm:$0xff]
      %v5799 = vld [vmem:[%s5775 + $0x8c] sm:$0xf]
      %v5800 = vld [vmem:[%s5775 + $0x90] sm:$0xff]
      %v5801 = vld [vmem:[%s5775 + $0x98] sm:$0xf]
      %v5802 = vld [vmem:[%s5775 + $0x9c] sm:$0xff]
      %v5803 = vld [vmem:[%s5775 + $0xa4] sm:$0xf]
      %v5804 = vld [vmem:[%s5775 + $0xa8] sm:$0xff]
      %v5805 = vld [vmem:[%s5775 + $0xb0] sm:$0xf]
      %v5806 = vld [vmem:[%s5775 + $0xb4] sm:$0xff]
      %v5807 = vld [vmem:[%s5775 + $0xbc] sm:$0xf]
      %s5808 = scalar_lea.vmem %s7, 3
      %v5809 = vld [vmem:[%s5808] sm:$0x7]
      %v5811 = vlaneseq
      %v5812 = vshrl.u32 %v5811, 7
      %v5813 = vsub.s32 0, %v5812
      %v5814 = vrot.slane %v5809, %v5813
      %v5815 = vlaneseq
      %v5816 = vshrl.u32 %v5815, 7
      %v5817 = vsub.s32 1, %v5816
      %v5818 = vrot.slane %v5809, %v5817
      %v5819 = vlaneseq
      %v5820 = vshrl.u32 %v5819, 7
      %v5821 = vsub.s32 2, %v5820
      %v5822 = vrot.slane %v5809, %v5821
      %v5858 = vunpack.c.l.b16 %v5776
      %v5859 = vunpack.c.h.b16 %v5776
      %v5860 = vunpack.c.l.b16 %v5777
      %v5861 = vunpack.c.l.b16 %v5778
      %v5862 = vunpack.c.h.b16 %v5778
      %v5863 = vunpack.c.l.b16 %v5779
      %v5864 = vunpack.c.l.b16 %v5780
      %v5865 = vunpack.c.h.b16 %v5780
      %v5866 = vunpack.c.l.b16 %v5781
      %v5867 = vunpack.c.l.b16 %v5782
      %v5868 = vunpack.c.h.b16 %v5782
      %v5869 = vunpack.c.l.b16 %v5783
      %v5870 = vunpack.c.l.b16 %v5784
      %v5871 = vunpack.c.h.b16 %v5784
      %v5872 = vunpack.c.l.b16 %v5785
      %v5873 = vunpack.c.l.b16 %v5786
      %v5874 = vunpack.c.h.b16 %v5786
      %v5875 = vunpack.c.l.b16 %v5787
      %v5876 = vunpack.c.l.b16 %v5788
      %v5877 = vunpack.c.h.b16 %v5788
      %v5878 = vunpack.c.l.b16 %v5789
      %v5879 = vunpack.c.l.b16 %v5790
      %v5880 = vunpack.c.h.b16 %v5790
      %v5881 = vunpack.c.l.b16 %v5791
      %v5882 = vunpack.c.l.b16 %v5792
      %v5883 = vunpack.c.h.b16 %v5792
      %v5884 = vunpack.c.l.b16 %v5793
      %v5885 = vunpack.c.l.b16 %v5794
      %v5886 = vunpack.c.h.b16 %v5794
      %v5887 = vunpack.c.l.b16 %v5795
      %v5888 = vunpack.c.l.b16 %v5796
      %v5889 = vunpack.c.h.b16 %v5796
      %v5890 = vunpack.c.l.b16 %v5797
      %v5891 = vunpack.c.l.b16 %v5798
      %v5892 = vunpack.c.h.b16 %v5798
      %v5893 = vunpack.c.l.b16 %v5799
      %v5894 = vunpack.c.l.b16 %v5800
      %v5895 = vunpack.c.h.b16 %v5800
      %v5896 = vunpack.c.l.b16 %v5801
      %v5897 = vunpack.c.l.b16 %v5802
      %v5898 = vunpack.c.h.b16 %v5802
      %v5899 = vunpack.c.l.b16 %v5803
      %v5900 = vunpack.c.l.b16 %v5804
      %v5901 = vunpack.c.h.b16 %v5804
      %v5902 = vunpack.c.l.b16 %v5805
      %v5903 = vunpack.c.l.b16 %v5806
      %v5904 = vunpack.c.h.b16 %v5806
      %v5905 = vunpack.c.l.b16 %v5807
      %v5906 = vpack.c.b16 %v5861, %v5858
      %v5907 = vpack.c.b16 %v5862, %v5859
      %v5908 = vpack.c.b16 %v5863, %v5860
      %v5909 = vpack.c.b16 %v5867, %v5864
      %v5910 = vpack.c.b16 %v5868, %v5865
      %v5911 = vpack.c.b16 %v5869, %v5866
      %v5912 = vpack.c.b16 %v5873, %v5870
      %v5913 = vpack.c.b16 %v5874, %v5871
      %v5914 = vpack.c.b16 %v5875, %v5872
      %v5915 = vpack.c.b16 %v5879, %v5876
      %v5916 = vpack.c.b16 %v5880, %v5877
      %v5917 = vpack.c.b16 %v5881, %v5878
      %v5918 = vpack.c.b16 %v5885, %v5882
      %v5919 = vpack.c.b16 %v5886, %v5883
      %v5920 = vpack.c.b16 %v5887, %v5884
      %v5921 = vpack.c.b16 %v5891, %v5888
      %v5922 = vpack.c.b16 %v5892, %v5889
      %v5923 = vpack.c.b16 %v5893, %v5890
      %v5924 = vpack.c.b16 %v5897, %v5894
      %v5925 = vpack.c.b16 %v5898, %v5895
      %v5926 = vpack.c.b16 %v5899, %v5896
      %v5927 = vpack.c.b16 %v5903, %v5900
      %v5928 = vpack.c.b16 %v5904, %v5901
      %v5929 = vpack.c.b16 %v5905, %v5902
      %5954 = vmatprep.subr.bf16.mxu0 %v5928
      %5955 = vmatpush1.bf16.msra.mxu0 %v5927
      %5956 = vmatprep.subr.bf16.mxu0 %v5925
      %5957 = vmatpush1.bf16.msra.mxu0 %v5924
      %5958 = vmatprep.subr.bf16.mxu0 %v5922
      %5959 = vmatpush1.bf16.msra.mxu0 %v5921
      %5960 = vmatprep.subr.bf16.mxu0 %v5919
      %5961 = vmatpush1.bf16.msra.mxu0 %v5918
      %5962 = vmatprep.subr.bf16.mxu0 %v5916
      %5963 = vmatpush1.bf16.msra.mxu0 %v5915
      %5964 = vmatprep.subr.bf16.mxu0 %v5913
      %5965 = vmatpush1.bf16.msra.mxu0 %v5912
      %5966 = vmatprep.subr.bf16.mxu0 %v5910
      %5967 = vmatpush1.bf16.msra.mxu0 %v5909
      %5968 = vmatprep.subr.bf16.mxu0 %v5907
      %5969 = vmatpush1.bf16.msra.mxu0 %v5906
      %5970 = vmatprep.subr.bf16.mxu0 0
      %5971 = vmatpush2.bf16.msra.mxu0 0
      %5972 = vmatprep.subr.bf16.mxu0 0
      %5973 = vmatpush2.bf16.msra.mxu0 0
      %5974 = vmatprep.subr.bf16.mxu0 0
      %5975 = vmatpush2.bf16.msra.mxu0 0
      %5976 = vmatprep.subr.bf16.mxu0 0
      %5977 = vmatpush2.bf16.msra.mxu0 0
      %5978 = vmatprep.subr.bf16.mxu0 0
      %5979 = vmatpush2.bf16.msra.mxu0 0
      %5980 = vmatprep.subr.bf16.mxu0 0
      %5981 = vmatpush2.bf16.msra.mxu0 0
      %5982 = vmatprep.subr.bf16.mxu0 0
      %5983 = vmatpush2.bf16.msra.mxu0 0
      %5984 = vmatprep.subr.bf16.mxu0 0
      %5985 = vmatpush2.bf16.msra.mxu0 0
      %5986 = vmatprep.mubr.bf16.mxu0 0
      %5987 = vmatmul.mubr.bf16.gmra.mxu0 %v5759
      %v5988 = vpop.f32.mrf.mxu0
      %v5989 = vadd.f32 %v5814, %v5988
      %v5990 = vpop.f32.mrf.mxu0
      %v5991 = vadd.f32 %v5818, %v5990
      %v5992 = vpop.f32.mrf.mxu0
      %v5993 = vadd.f32 %v5814, %v5992
      %v5994 = vpop.f32.mrf.mxu0
      %v5995 = vadd.f32 %v5818, %v5994
      %5996 = vmatprep.mubr.bf16.mxu0 0
      %5997 = vmatmul.mubr.bf16.gmra.mxu0 %v5760
      %v5998 = vpop.f32.mrf.mxu0
      %v5999 = vadd.f32 %v5814, %v5998
      %v6000 = vpop.f32.mrf.mxu0
      %v6001 = vadd.f32 %v5818, %v6000
      %v6002 = vpop.f32.mrf.mxu0
      %v6003 = vadd.f32 %v5814, %v6002
      %v6004 = vpop.f32.mrf.mxu0
      %v6005 = vadd.f32 %v5818, %v6004
      %6006 = vmatprep.mubr.bf16.mxu0 0
      %6007 = vmatmul.mubr.bf16.gmra.mxu0 %v5761
      %v6008 = vpop.f32.mrf.mxu0
      %v6009 = vadd.f32 %v5814, %v6008
      %v6010 = vpop.f32.mrf.mxu0
      %v6011 = vadd.f32 %v5818, %v6010
      %v6012 = vpop.f32.mrf.mxu0
      %v6013 = vadd.f32 %v5814, %v6012
      %v6014 = vpop.f32.mrf.mxu0
      %v6015 = vadd.f32 %v5818, %v6014
      %6016 = vmatprep.mubr.bf16.mxu0 0
      %6017 = vmatmul.mubr.bf16.gmra.mxu0 %v5762
      %v6018 = vpop.f32.mrf.mxu0
      %v6019 = vadd.f32 %v5814, %v6018
      %v6020 = vpop.f32.mrf.mxu0
      %v6021 = vadd.f32 %v5818, %v6020
      %v6022 = vpop.f32.mrf.mxu0
      %v6023 = vadd.f32 %v5814, %v6022
      %v6024 = vpop.f32.mrf.mxu0
      %v6025 = vadd.f32 %v5818, %v6024
      %6026 = vmatprep.mubr.bf16.mxu0 0
      %6027 = vmatmul.mubr.bf16.gmra.mxu0 %v5763
      %v6028 = vpop.f32.mrf.mxu0
      %v6029 = vadd.f32 %v5814, %v6028
      %v6030 = vpop.f32.mrf.mxu0
      %v6031 = vadd.f32 %v5818, %v6030
      %v6032 = vpop.f32.mrf.mxu0
      %v6033 = vadd.f32 %v5814, %v6032
      %v6034 = vpop.f32.mrf.mxu0
      %v6035 = vadd.f32 %v5818, %v6034
      %6036 = vmatprep.mubr.bf16.mxu0 0
      %6037 = vmatmul.mubr.bf16.gmra.mxu0 %v5764
      %v6038 = vpop.f32.mrf.mxu0
      %v6039 = vadd.f32 %v5814, %v6038
      %v6040 = vpop.f32.mrf.mxu0
      %v6041 = vadd.f32 %v5818, %v6040
      %v6042 = vpop.f32.mrf.mxu0
      %v6043 = vadd.f32 %v5814, %v6042
      %v6044 = vpop.f32.mrf.mxu0
      %v6045 = vadd.f32 %v5818, %v6044
      %6046 = vmatprep.mubr.bf16.mxu0 0
      %6047 = vmatmul.mubr.bf16.gmra.mxu0 %v5765
      %v6048 = vpop.f32.mrf.mxu0
      %v6049 = vadd.f32 %v5814, %v6048
      %v6050 = vpop.f32.mrf.mxu0
      %v6051 = vadd.f32 %v5818, %v6050
      %v6052 = vpop.f32.mrf.mxu0
      %v6053 = vadd.f32 %v5814, %v6052
      %v6054 = vpop.f32.mrf.mxu0
      %v6055 = vadd.f32 %v5818, %v6054
      %6056 = vmatprep.mubr.bf16.mxu0 0
      %6057 = vmatmul.mubr.bf16.gmra.mxu0 %v5766
      %v6058 = vpop.f32.mrf.mxu0
      %v6059 = vadd.f32 %v5814, %v6058
      %v6060 = vpop.f32.mrf.mxu0
      %v6061 = vadd.f32 %v5818, %v6060
      %v6062 = vpop.f32.mrf.mxu0
      %v6063 = vadd.f32 %v5814, %v6062
      %v6064 = vpop.f32.mrf.mxu0
      %v6065 = vadd.f32 %v5818, %v6064
      %6066 = vmatprep.mubr.bf16.mxu0 0
      %6067 = vmatmul.mubr.bf16.gmra.mxu0 %v5767
      %v6068 = vpop.f32.mrf.mxu0
      %v6069 = vadd.f32 %v5814, %v6068
      %v6070 = vpop.f32.mrf.mxu0
      %v6071 = vadd.f32 %v5818, %v6070
      %v6072 = vpop.f32.mrf.mxu0
      %v6073 = vadd.f32 %v5814, %v6072
      %v6074 = vpop.f32.mrf.mxu0
      %v6075 = vadd.f32 %v5818, %v6074
      %6076 = vmatprep.mubr.bf16.mxu0 0
      %6077 = vmatmul.mubr.bf16.gmra.mxu0 %v5768
      %v6078 = vpop.f32.mrf.mxu0
      %v6079 = vadd.f32 %v5814, %v6078
      %v6080 = vpop.f32.mrf.mxu0
      %v6081 = vadd.f32 %v5818, %v6080
      %v6082 = vpop.f32.mrf.mxu0
      %v6083 = vadd.f32 %v5814, %v6082
      %v6084 = vpop.f32.mrf.mxu0
      %v6085 = vadd.f32 %v5818, %v6084
      %6086 = vmatprep.mubr.bf16.mxu0 0
      %6087 = vmatmul.mubr.bf16.gmra.mxu0 %v5769
      %v6088 = vpop.f32.mrf.mxu0
      %v6089 = vadd.f32 %v5814, %v6088
      %v6090 = vpop.f32.mrf.mxu0
      %v6091 = vadd.f32 %v5818, %v6090
      %v6092 = vpop.f32.mrf.mxu0
      %v6093 = vadd.f32 %v5814, %v6092
      %v6094 = vpop.f32.mrf.mxu0
      %v6095 = vadd.f32 %v5818, %v6094
      %6096 = vmatprep.mubr.bf16.mxu0 0
      %6097 = vmatmul.mubr.bf16.gmra.mxu0 %v5770
      %v6098 = vpop.f32.mrf.mxu0
      %v6099 = vadd.f32 %v5814, %v6098
      %v6100 = vpop.f32.mrf.mxu0
      %v6101 = vadd.f32 %v5818, %v6100
      %v6102 = vpop.f32.mrf.mxu0
      %v6103 = vadd.f32 %v5814, %v6102
      %v6104 = vpop.f32.mrf.mxu0
      %v6105 = vadd.f32 %v5818, %v6104
      %6106 = vmatprep.mubr.bf16.mxu0 0
      %6107 = vmatmul.mubr.bf16.gmra.mxu0 %v5771
      %v6108 = vpop.f32.mrf.mxu0
      %v6109 = vadd.f32 %v5814, %v6108
      %v6110 = vpop.f32.mrf.mxu0
      %v6111 = vadd.f32 %v5818, %v6110
      %v6112 = vpop.f32.mrf.mxu0
      %v6113 = vadd.f32 %v5814, %v6112
      %v6114 = vpop.f32.mrf.mxu0
      %v6115 = vadd.f32 %v5818, %v6114
      %6116 = vmatprep.mubr.bf16.mxu0 0
      %6117 = vmatmul.mubr.bf16.gmra.mxu0 %v5772
      %v6118 = vpop.f32.mrf.mxu0
      %v6119 = vadd.f32 %v5814, %v6118
      %v6120 = vpop.f32.mrf.mxu0
      %v6121 = vadd.f32 %v5818, %v6120
      %v6122 = vpop.f32.mrf.mxu0
      %v6123 = vadd.f32 %v5814, %v6122
      %v6124 = vpop.f32.mrf.mxu0
      %v6125 = vadd.f32 %v5818, %v6124
      %6126 = vmatprep.mubr.bf16.mxu0 0
      %6127 = vmatmul.mubr.bf16.gmra.mxu0 %v5773
      %v6128 = vpop.f32.mrf.mxu0
      %v6129 = vadd.f32 %v5814, %v6128
      %v6130 = vpop.f32.mrf.mxu0
      %v6131 = vadd.f32 %v5818, %v6130
      %v6132 = vpop.f32.mrf.mxu0
      %v6133 = vadd.f32 %v5814, %v6132
      %v6134 = vpop.f32.mrf.mxu0
      %v6135 = vadd.f32 %v5818, %v6134
      %6136 = vmatprep.mubr.bf16.mxu0 0
      %6137 = vmatmul.mubr.bf16.gmra.mxu0 %v5774
      %v6138 = vpop.f32.mrf.mxu0
      %v6139 = vadd.f32 %v5814, %v6138
      %v6140 = vpop.f32.mrf.mxu0
      %v6141 = vadd.f32 %v5818, %v6140
      %v6142 = vpop.f32.mrf.mxu0
      %v6143 = vadd.f32 %v5814, %v6142
      %v6144 = vpop.f32.mrf.mxu0
      %v6145 = vadd.f32 %v5818, %v6144
      %6146 = vdwg.mxu0
      %6147 = vmatprep.subr.bf16.mxu0 0
      %6148 = vmatpush1.bf16.msra.mxu0 %v5929
      %6149 = vmatprep.subr.bf16.mxu0 0
      %6150 = vmatpush1.bf16.msra.mxu0 %v5926
      %6151 = vmatprep.subr.bf16.mxu0 0
      %6152 = vmatpush1.bf16.msra.mxu0 %v5923
      %6153 = vmatprep.subr.bf16.mxu0 0
      %6154 = vmatpush1.bf16.msra.mxu0 %v5920
      %6155 = vmatprep.subr.bf16.mxu0 0
      %6156 = vmatpush1.bf16.msra.mxu0 %v5917
      %6157 = vmatprep.subr.bf16.mxu0 0
      %6158 = vmatpush1.bf16.msra.mxu0 %v5914
      %6159 = vmatprep.subr.bf16.mxu0 0
      %6160 = vmatpush1.bf16.msra.mxu0 %v5911
      %6161 = vmatprep.subr.bf16.mxu0 0
      %6162 = vmatpush1.bf16.msra.mxu0 %v5908
      %6163 = vmatprep.subr.bf16.mxu0 0
      %6164 = vmatpush2.bf16.msra.mxu0 0
      %6165 = vmatprep.subr.bf16.mxu0 0
      %6166 = vmatpush2.bf16.msra.mxu0 0
      %6167 = vmatprep.subr.bf16.mxu0 0
      %6168 = vmatpush2.bf16.msra.mxu0 0
      %6169 = vmatprep.subr.bf16.mxu0 0
      %6170 = vmatpush2.bf16.msra.mxu0 0
      %6171 = vmatprep.subr.bf16.mxu0 0
      %6172 = vmatpush2.bf16.msra.mxu0 0
      %6173 = vmatprep.subr.bf16.mxu0 0
      %6174 = vmatpush2.bf16.msra.mxu0 0
      %6175 = vmatprep.subr.bf16.mxu0 0
      %6176 = vmatpush2.bf16.msra.mxu0 0
      %6177 = vmatprep.subr.bf16.mxu0 0
      %6178 = vmatpush2.bf16.msra.mxu0 0
      %6179 = vmatprep.mubr.bf16.mxu0 0
      %6180 = vmatmul.mubr.bf16.gmra.mxu0 %v5759
      %v6181 = vpop.f32.mrf.mxu0
      %v6182 = vadd.f32 %v5822, %v6181
      %v6183 = vpop.f32.mrf.mxu0
      %v6184 = vpop.f32.mrf.mxu0
      %v6185 = vadd.f32 %v5822, %v6184
      %v6186 = vpop.f32.mrf.mxu0
      %6187 = vmatprep.mubr.bf16.mxu0 0
      %6188 = vmatmul.mubr.bf16.gmra.mxu0 %v5760
      %v6189 = vpop.f32.mrf.mxu0
      %v6190 = vadd.f32 %v5822, %v6189
      %v6191 = vpop.f32.mrf.mxu0
      %v6192 = vpop.f32.mrf.mxu0
      %v6193 = vadd.f32 %v5822, %v6192
      %v6194 = vpop.f32.mrf.mxu0
      %6195 = vmatprep.mubr.bf16.mxu0 0
      %6196 = vmatmul.mubr.bf16.gmra.mxu0 %v5761
      %v6197 = vpop.f32.mrf.mxu0
      %v6198 = vadd.f32 %v5822, %v6197
      %v6199 = vpop.f32.mrf.mxu0
      %v6200 = vpop.f32.mrf.mxu0
      %v6201 = vadd.f32 %v5822, %v6200
      %v6202 = vpop.f32.mrf.mxu0
      %6203 = vmatprep.mubr.bf16.mxu0 0
      %6204 = vmatmul.mubr.bf16.gmra.mxu0 %v5762
      %v6205 = vpop.f32.mrf.mxu0
      %v6206 = vadd.f32 %v5822, %v6205
      %v6207 = vpop.f32.mrf.mxu0
      %v6208 = vpop.f32.mrf.mxu0
      %v6209 = vadd.f32 %v5822, %v6208
      %v6210 = vpop.f32.mrf.mxu0
      %6211 = vmatprep.mubr.bf16.mxu0 0
      %6212 = vmatmul.mubr.bf16.gmra.mxu0 %v5763
      %v6213 = vpop.f32.mrf.mxu0
      %v6214 = vadd.f32 %v5822, %v6213
      %v6215 = vpop.f32.mrf.mxu0
      %v6216 = vpop.f32.mrf.mxu0
      %v6217 = vadd.f32 %v5822, %v6216
      %v6218 = vpop.f32.mrf.mxu0
      %6219 = vmatprep.mubr.bf16.mxu0 0
      %6220 = vmatmul.mubr.bf16.gmra.mxu0 %v5764
      %v6221 = vpop.f32.mrf.mxu0
      %v6222 = vadd.f32 %v5822, %v6221
      %v6223 = vpop.f32.mrf.mxu0
      %v6224 = vpop.f32.mrf.mxu0
      %v6225 = vadd.f32 %v5822, %v6224
      %v6226 = vpop.f32.mrf.mxu0
      %6227 = vmatprep.mubr.bf16.mxu0 0
      %6228 = vmatmul.mubr.bf16.gmra.mxu0 %v5765
      %v6229 = vpop.f32.mrf.mxu0
      %v6230 = vadd.f32 %v5822, %v6229
      %v6231 = vpop.f32.mrf.mxu0
      %v6232 = vpop.f32.mrf.mxu0
      %v6233 = vadd.f32 %v5822, %v6232
      %v6234 = vpop.f32.mrf.mxu0
      %6235 = vmatprep.mubr.bf16.mxu0 0
      %6236 = vmatmul.mubr.bf16.gmra.mxu0 %v5766
      %v6237 = vpop.f32.mrf.mxu0
      %v6238 = vadd.f32 %v5822, %v6237
      %v6239 = vpop.f32.mrf.mxu0
      %v6240 = vpop.f32.mrf.mxu0
      %v6241 = vadd.f32 %v5822, %v6240
      %v6242 = vpop.f32.mrf.mxu0
      %6243 = vmatprep.mubr.bf16.mxu0 0
      %6244 = vmatmul.mubr.bf16.gmra.mxu0 %v5767
      %v6245 = vpop.f32.mrf.mxu0
      %v6246 = vadd.f32 %v5822, %v6245
      %v6247 = vpop.f32.mrf.mxu0
      %v6248 = vpop.f32.mrf.mxu0
      %v6249 = vadd.f32 %v5822, %v6248
      %v6250 = vpop.f32.mrf.mxu0
      %6251 = vmatprep.mubr.bf16.mxu0 0
      %6252 = vmatmul.mubr.bf16.gmra.mxu0 %v5768
      %v6253 = vpop.f32.mrf.mxu0
      %v6254 = vadd.f32 %v5822, %v6253
      %v6255 = vpop.f32.mrf.mxu0
      %v6256 = vpop.f32.mrf.mxu0
      %v6257 = vadd.f32 %v5822, %v6256
      %v6258 = vpop.f32.mrf.mxu0
      %6259 = vmatprep.mubr.bf16.mxu0 0
      %6260 = vmatmul.mubr.bf16.gmra.mxu0 %v5769
      %v6261 = vpop.f32.mrf.mxu0
      %v6262 = vadd.f32 %v5822, %v6261
      %v6263 = vpop.f32.mrf.mxu0
      %v6264 = vpop.f32.mrf.mxu0
      %v6265 = vadd.f32 %v5822, %v6264
      %v6266 = vpop.f32.mrf.mxu0
      %6267 = vmatprep.mubr.bf16.mxu0 0
      %6268 = vmatmul.mubr.bf16.gmra.mxu0 %v5770
      %v6269 = vpop.f32.mrf.mxu0
      %v6270 = vadd.f32 %v5822, %v6269
      %v6271 = vpop.f32.mrf.mxu0
      %v6272 = vpop.f32.mrf.mxu0
      %v6273 = vadd.f32 %v5822, %v6272
      %v6274 = vpop.f32.mrf.mxu0
      %6275 = vmatprep.mubr.bf16.mxu0 0
      %6276 = vmatmul.mubr.bf16.gmra.mxu0 %v5771
      %v6277 = vpop.f32.mrf.mxu0
      %v6278 = vadd.f32 %v5822, %v6277
      %v6279 = vpop.f32.mrf.mxu0
      %v6280 = vpop.f32.mrf.mxu0
      %v6281 = vadd.f32 %v5822, %v6280
      %v6282 = vpop.f32.mrf.mxu0
      %6283 = vmatprep.mubr.bf16.mxu0 0
      %6284 = vmatmul.mubr.bf16.gmra.mxu0 %v5772
      %v6285 = vpop.f32.mrf.mxu0
      %v6286 = vadd.f32 %v5822, %v6285
      %v6287 = vpop.f32.mrf.mxu0
      %v6288 = vpop.f32.mrf.mxu0
      %v6289 = vadd.f32 %v5822, %v6288
      %v6290 = vpop.f32.mrf.mxu0
      %6291 = vmatprep.mubr.bf16.mxu0 0
      %6292 = vmatmul.mubr.bf16.gmra.mxu0 %v5773
      %v6293 = vpop.f32.mrf.mxu0
      %v6294 = vadd.f32 %v5822, %v6293
      %v6295 = vpop.f32.mrf.mxu0
      %v6296 = vpop.f32.mrf.mxu0
      %v6297 = vadd.f32 %v5822, %v6296
      %v6298 = vpop.f32.mrf.mxu0
      %6299 = vmatprep.mubr.bf16.mxu0 0
      %6300 = vmatmul.mubr.bf16.gmra.mxu0 %v5774
      %v6301 = vpop.f32.mrf.mxu0
      %v6302 = vadd.f32 %v5822, %v6301
      %v6303 = vpop.f32.mrf.mxu0
      %v6304 = vpop.f32.mrf.mxu0
      %v6305 = vadd.f32 %v5822, %v6304
      %v6306 = vpop.f32.mrf.mxu0
      %6307 = vdwg.mxu0
      %v6308 = vpack.c.bf16 %v5993, %v5989
      %v6309 = vpack.c.bf16 %v5995, %v5991
      %v6310 = vpack.c.bf16 %v6185, %v6182
      %v6311 = vpack.c.bf16 %v6003, %v5999
      %v6312 = vpack.c.bf16 %v6005, %v6001
      %v6313 = vpack.c.bf16 %v6193, %v6190
      %v6314 = vpack.c.bf16 %v6013, %v6009
      %v6315 = vpack.c.bf16 %v6015, %v6011
      %v6316 = vpack.c.bf16 %v6201, %v6198
      %v6317 = vpack.c.bf16 %v6023, %v6019
      %v6318 = vpack.c.bf16 %v6025, %v6021
      %v6319 = vpack.c.bf16 %v6209, %v6206
      %v6320 = vpack.c.bf16 %v6033, %v6029
      %v6321 = vpack.c.bf16 %v6035, %v6031
      %v6322 = vpack.c.bf16 %v6217, %v6214
      %v6323 = vpack.c.bf16 %v6043, %v6039
      %v6324 = vpack.c.bf16 %v6045, %v6041
      %v6325 = vpack.c.bf16 %v6225, %v6222
      %v6326 = vpack.c.bf16 %v6053, %v6049
      %v6327 = vpack.c.bf16 %v6055, %v6051
      %v6328 = vpack.c.bf16 %v6233, %v6230
      %v6329 = vpack.c.bf16 %v6063, %v6059
      %v6330 = vpack.c.bf16 %v6065, %v6061
      %v6331 = vpack.c.bf16 %v6241, %v6238
      %v6332 = vpack.c.bf16 %v6073, %v6069
      %v6333 = vpack.c.bf16 %v6075, %v6071
      %v6334 = vpack.c.bf16 %v6249, %v6246
      %v6335 = vpack.c.bf16 %v6083, %v6079
      %v6336 = vpack.c.bf16 %v6085, %v6081
      %v6337 = vpack.c.bf16 %v6257, %v6254
      %v6338 = vpack.c.bf16 %v6093, %v6089
      %v6339 = vpack.c.bf16 %v6095, %v6091
      %v6340 = vpack.c.bf16 %v6265, %v6262
      %v6341 = vpack.c.bf16 %v6103, %v6099
      %v6342 = vpack.c.bf16 %v6105, %v6101
      %v6343 = vpack.c.bf16 %v6273, %v6270
      %v6344 = vpack.c.bf16 %v6113, %v6109
      %v6345 = vpack.c.bf16 %v6115, %v6111
      %v6346 = vpack.c.bf16 %v6281, %v6278
      %v6347 = vpack.c.bf16 %v6123, %v6119
      %v6348 = vpack.c.bf16 %v6125, %v6121
      %v6349 = vpack.c.bf16 %v6289, %v6286
      %v6350 = vpack.c.bf16 %v6133, %v6129
      %v6351 = vpack.c.bf16 %v6135, %v6131
      %v6352 = vpack.c.bf16 %v6297, %v6294
      %v6353 = vpack.c.bf16 %v6143, %v6139
      %v6354 = vpack.c.bf16 %v6145, %v6141
      %v6355 = vpack.c.bf16 %v6305, %v6302
      %v6404 = vunpack.c.l.b16 %v6308
      %v6405 = vunpack.c.l.b16 %v6309
      %v6406 = vunpack.c.l.b16 %v6310
      %v6407 = vunpack.c.h.b16 %v6308
      %v6408 = vunpack.c.h.b16 %v6309
      %v6409 = vunpack.c.h.b16 %v6310
      %v6410 = vunpack.c.l.b16 %v6311
      %v6411 = vunpack.c.l.b16 %v6312
      %v6412 = vunpack.c.l.b16 %v6313
      %v6413 = vunpack.c.h.b16 %v6311
      %v6414 = vunpack.c.h.b16 %v6312
      %v6415 = vunpack.c.h.b16 %v6313
      %v6416 = vunpack.c.l.b16 %v6314
      %v6417 = vunpack.c.l.b16 %v6315
      %v6418 = vunpack.c.l.b16 %v6316
      %v6419 = vunpack.c.h.b16 %v6314
      %v6420 = vunpack.c.h.b16 %v6315
      %v6421 = vunpack.c.h.b16 %v6316
      %v6422 = vunpack.c.l.b16 %v6317
      %v6423 = vunpack.c.l.b16 %v6318
      %v6424 = vunpack.c.l.b16 %v6319
      %v6425 = vunpack.c.h.b16 %v6317
      %v6426 = vunpack.c.h.b16 %v6318
      %v6427 = vunpack.c.h.b16 %v6319
      %v6428 = vunpack.c.l.b16 %v6320
      %v6429 = vunpack.c.l.b16 %v6321
      %v6430 = vunpack.c.l.b16 %v6322
      %v6431 = vunpack.c.h.b16 %v6320
      %v6432 = vunpack.c.h.b16 %v6321
      %v6433 = vunpack.c.h.b16 %v6322
      %v6434 = vunpack.c.l.b16 %v6323
      %v6435 = vunpack.c.l.b16 %v6324
      %v6436 = vunpack.c.l.b16 %v6325
      %v6437 = vunpack.c.h.b16 %v6323
      %v6438 = vunpack.c.h.b16 %v6324
      %v6439 = vunpack.c.h.b16 %v6325
      %v6440 = vunpack.c.l.b16 %v6326
      %v6441 = vunpack.c.l.b16 %v6327
      %v6442 = vunpack.c.l.b16 %v6328
      %v6443 = vunpack.c.h.b16 %v6326
      %v6444 = vunpack.c.h.b16 %v6327
      %v6445 = vunpack.c.h.b16 %v6328
      %v6446 = vunpack.c.l.b16 %v6329
      %v6447 = vunpack.c.l.b16 %v6330
      %v6448 = vunpack.c.l.b16 %v6331
      %v6449 = vunpack.c.h.b16 %v6329
      %v6450 = vunpack.c.h.b16 %v6330
      %v6451 = vunpack.c.h.b16 %v6331
      %v6452 = vunpack.c.l.b16 %v6332
      %v6453 = vunpack.c.l.b16 %v6333
      %v6454 = vunpack.c.l.b16 %v6334
      %v6455 = vunpack.c.h.b16 %v6332
      %v6456 = vunpack.c.h.b16 %v6333
      %v6457 = vunpack.c.h.b16 %v6334
      %v6458 = vunpack.c.l.b16 %v6335
      %v6459 = vunpack.c.l.b16 %v6336
      %v6460 = vunpack.c.l.b16 %v6337
      %v6461 = vunpack.c.h.b16 %v6335
      %v6462 = vunpack.c.h.b16 %v6336
      %v6463 = vunpack.c.h.b16 %v6337
      %v6464 = vunpack.c.l.b16 %v6338
      %v6465 = vunpack.c.l.b16 %v6339
      %v6466 = vunpack.c.l.b16 %v6340
      %v6467 = vunpack.c.h.b16 %v6338
      %v6468 = vunpack.c.h.b16 %v6339
      %v6469 = vunpack.c.h.b16 %v6340
      %v6470 = vunpack.c.l.b16 %v6341
      %v6471 = vunpack.c.l.b16 %v6342
      %v6472 = vunpack.c.l.b16 %v6343
      %v6473 = vunpack.c.h.b16 %v6341
      %v6474 = vunpack.c.h.b16 %v6342
      %v6475 = vunpack.c.h.b16 %v6343
      %v6476 = vunpack.c.l.b16 %v6344
      %v6477 = vunpack.c.l.b16 %v6345
      %v6478 = vunpack.c.l.b16 %v6346
      %v6479 = vunpack.c.h.b16 %v6344
      %v6480 = vunpack.c.h.b16 %v6345
      %v6481 = vunpack.c.h.b16 %v6346
      %v6482 = vunpack.c.l.b16 %v6347
      %v6483 = vunpack.c.l.b16 %v6348
      %v6484 = vunpack.c.l.b16 %v6349
      %v6485 = vunpack.c.h.b16 %v6347
      %v6486 = vunpack.c.h.b16 %v6348
      %v6487 = vunpack.c.h.b16 %v6349
      %v6488 = vunpack.c.l.b16 %v6350
      %v6489 = vunpack.c.l.b16 %v6351
      %v6490 = vunpack.c.l.b16 %v6352
      %v6491 = vunpack.c.h.b16 %v6350
      %v6492 = vunpack.c.h.b16 %v6351
      %v6493 = vunpack.c.h.b16 %v6352
      %v6494 = vunpack.c.l.b16 %v6353
      %v6495 = vunpack.c.l.b16 %v6354
      %v6496 = vunpack.c.l.b16 %v6355
      %v6497 = vunpack.c.h.b16 %v6353
      %v6498 = vunpack.c.h.b16 %v6354
      %v6499 = vunpack.c.h.b16 %v6355
      %v6500 = vpack.c.b16 %v6405, %v6404
      %v6501 = vpack.c.b16 %v6406, %v6406
      %v6502 = vpack.c.b16 %v6408, %v6407
      %v6503 = vpack.c.b16 %v6409, %v6409
      %v6504 = vpack.c.b16 %v6411, %v6410
      %v6505 = vpack.c.b16 %v6412, %v6412
      %v6506 = vpack.c.b16 %v6414, %v6413
      %v6507 = vpack.c.b16 %v6415, %v6415
      %v6508 = vpack.c.b16 %v6417, %v6416
      %v6509 = vpack.c.b16 %v6418, %v6418
      %v6510 = vpack.c.b16 %v6420, %v6419
      %v6511 = vpack.c.b16 %v6421, %v6421
      %v6512 = vpack.c.b16 %v6423, %v6422
      %v6513 = vpack.c.b16 %v6424, %v6424
      %v6514 = vpack.c.b16 %v6426, %v6425
      %v6515 = vpack.c.b16 %v6427, %v6427
      %v6516 = vpack.c.b16 %v6429, %v6428
      %v6517 = vpack.c.b16 %v6430, %v6430
      %v6518 = vpack.c.b16 %v6432, %v6431
      %v6519 = vpack.c.b16 %v6433, %v6433
      %v6520 = vpack.c.b16 %v6435, %v6434
      %v6521 = vpack.c.b16 %v6436, %v6436
      %v6522 = vpack.c.b16 %v6438, %v6437
      %v6523 = vpack.c.b16 %v6439, %v6439
      %v6524 = vpack.c.b16 %v6441, %v6440
      %v6525 = vpack.c.b16 %v6442, %v6442
      %v6526 = vpack.c.b16 %v6444, %v6443
      %v6527 = vpack.c.b16 %v6445, %v6445
      %v6528 = vpack.c.b16 %v6447, %v6446
      %v6529 = vpack.c.b16 %v6448, %v6448
      %v6530 = vpack.c.b16 %v6450, %v6449
      %v6531 = vpack.c.b16 %v6451, %v6451
      %v6532 = vpack.c.b16 %v6453, %v6452
      %v6533 = vpack.c.b16 %v6454, %v6454
      %v6534 = vpack.c.b16 %v6456, %v6455
      %v6535 = vpack.c.b16 %v6457, %v6457
      %v6536 = vpack.c.b16 %v6459, %v6458
      %v6537 = vpack.c.b16 %v6460, %v6460
      %v6538 = vpack.c.b16 %v6462, %v6461
      %v6539 = vpack.c.b16 %v6463, %v6463
      %v6540 = vpack.c.b16 %v6465, %v6464
      %v6541 = vpack.c.b16 %v6466, %v6466
      %v6542 = vpack.c.b16 %v6468, %v6467
      %v6543 = vpack.c.b16 %v6469, %v6469
      %v6544 = vpack.c.b16 %v6471, %v6470
      %v6545 = vpack.c.b16 %v6472, %v6472
      %v6546 = vpack.c.b16 %v6474, %v6473
      %v6547 = vpack.c.b16 %v6475, %v6475
      %v6548 = vpack.c.b16 %v6477, %v6476
      %v6549 = vpack.c.b16 %v6478, %v6478
      %v6550 = vpack.c.b16 %v6480, %v6479
      %v6551 = vpack.c.b16 %v6481, %v6481
      %v6552 = vpack.c.b16 %v6483, %v6482
      %v6553 = vpack.c.b16 %v6484, %v6484
      %v6554 = vpack.c.b16 %v6486, %v6485
      %v6555 = vpack.c.b16 %v6487, %v6487
      %v6556 = vpack.c.b16 %v6489, %v6488
      %v6557 = vpack.c.b16 %v6490, %v6490
      %v6558 = vpack.c.b16 %v6492, %v6491
      %v6559 = vpack.c.b16 %v6493, %v6493
      %v6560 = vpack.c.b16 %v6495, %v6494
      %v6561 = vpack.c.b16 %v6496, %v6496
      %v6562 = vpack.c.b16 %v6498, %v6497
      %v6563 = vpack.c.b16 %v6499, %v6499
      %6628 = vst [vmem:[#allocation3] sm:$0xff] %v6500
      %6629 = vst [vmem:[#allocation3 + $0x8] sm:$0xf] %v6501
      %6630 = vst [vmem:[#allocation3 + $0xc] sm:$0xff] %v6502
      %6631 = vst [vmem:[#allocation3 + $0x14] sm:$0xf] %v6503
      %6632 = vst [vmem:[#allocation3 + $0x18] sm:$0xff] %v6504
      %6633 = vst [vmem:[#allocation3 + $0x20] sm:$0xf] %v6505
      %6634 = vst [vmem:[#allocation3 + $0x24] sm:$0xff] %v6506
      %6635 = vst [vmem:[#allocation3 + $0x2c] sm:$0xf] %v6507
      %6636 = vst [vmem:[#allocation3 + $0x30] sm:$0xff] %v6508
      %6637 = vst [vmem:[#allocation3 + $0x38] sm:$0xf] %v6509
      %6638 = vst [vmem:[#allocation3 + $0x3c] sm:$0xff] %v6510
      %6639 = vst [vmem:[#allocation3 + $0x44] sm:$0xf] %v6511
      %6640 = vst [vmem:[#allocation3 + $0x48] sm:$0xff] %v6512
      %6641 = vst [vmem:[#allocation3 + $0x50] sm:$0xf] %v6513
      %6642 = vst [vmem:[#allocation3 + $0x54] sm:$0xff] %v6514
      %6643 = vst [vmem:[#allocation3 + $0x5c] sm:$0xf] %v6515
      %6644 = vst [vmem:[#allocation3 + $0x60] sm:$0xff] %v6516
      %6645 = vst [vmem:[#allocation3 + $0x68] sm:$0xf] %v6517
      %6646 = vst [vmem:[#allocation3 + $0x6c] sm:$0xff] %v6518
      %6647 = vst [vmem:[#allocation3 + $0x74] sm:$0xf] %v6519
      %6648 = vst [vmem:[#allocation3 + $0x78] sm:$0xff] %v6520
      %6649 = vst [vmem:[#allocation3 + $0x80] sm:$0xf] %v6521
      %6650 = vst [vmem:[#allocation3 + $0x84] sm:$0xff] %v6522
      %6651 = vst [vmem:[#allocation3 + $0x8c] sm:$0xf] %v6523
      %6652 = vst [vmem:[#allocation3 + $0x90] sm:$0xff] %v6524
      %6653 = vst [vmem:[#allocation3 + $0x98] sm:$0xf] %v6525
      %6654 = vst [vmem:[#allocation3 + $0x9c] sm:$0xff] %v6526
      %6655 = vst [vmem:[#allocation3 + $0xa4] sm:$0xf] %v6527
      %6656 = vst [vmem:[#allocation3 + $0xa8] sm:$0xff] %v6528
      %6657 = vst [vmem:[#allocation3 + $0xb0] sm:$0xf] %v6529
      %6658 = vst [vmem:[#allocation3 + $0xb4] sm:$0xff] %v6530
      %6659 = vst [vmem:[#allocation3 + $0xbc] sm:$0xf] %v6531
      %6660 = vst [vmem:[#allocation3 + $0xc0] sm:$0xff] %v6532
      %6661 = vst [vmem:[#allocation3 + $0xc8] sm:$0xf] %v6533
      %6662 = vst [vmem:[#allocation3 + $0xcc] sm:$0xff] %v6534
      %6663 = vst [vmem:[#allocation3 + $0xd4] sm:$0xf] %v6535
      %6664 = vst [vmem:[#allocation3 + $0xd8] sm:$0xff] %v6536
      %6665 = vst [vmem:[#allocation3 + $0xe0] sm:$0xf] %v6537
      %6666 = vst [vmem:[#allocation3 + $0xe4] sm:$0xff] %v6538
      %6667 = vst [vmem:[#allocation3 + $0xec] sm:$0xf] %v6539
      %6668 = vst [vmem:[#allocation3 + $0xf0] sm:$0xff] %v6540
      %6669 = vst [vmem:[#allocation3 + $0xf8] sm:$0xf] %v6541
      %6670 = vst [vmem:[#allocation3 + $0xfc] sm:$0xff] %v6542
      %6671 = vst [vmem:[#allocation3 + $0x104] sm:$0xf] %v6543
      %6672 = vst [vmem:[#allocation3 + $0x108] sm:$0xff] %v6544
      %6673 = vst [vmem:[#allocation3 + $0x110] sm:$0xf] %v6545
      %6674 = vst [vmem:[#allocation3 + $0x114] sm:$0xff] %v6546
      %6675 = vst [vmem:[#allocation3 + $0x11c] sm:$0xf] %v6547
      %6676 = vst [vmem:[#allocation3 + $0x120] sm:$0xff] %v6548
      %6677 = vst [vmem:[#allocation3 + $0x128] sm:$0xf] %v6549
      %6678 = vst [vmem:[#allocation3 + $0x12c] sm:$0xff] %v6550
      %6679 = vst [vmem:[#allocation3 + $0x134] sm:$0xf] %v6551
      %6680 = vst [vmem:[#allocation3 + $0x138] sm:$0xff] %v6552
      %6681 = vst [vmem:[#allocation3 + $0x140] sm:$0xf] %v6553
      %6682 = vst [vmem:[#allocation3 + $0x144] sm:$0xff] %v6554
      %6683 = vst [vmem:[#allocation3 + $0x14c] sm:$0xf] %v6555
      %6684 = vst [vmem:[#allocation3 + $0x150] sm:$0xff] %v6556
      %6685 = vst [vmem:[#allocation3 + $0x158] sm:$0xf] %v6557
      %6686 = vst [vmem:[#allocation3 + $0x15c] sm:$0xff] %v6558
      %6687 = vst [vmem:[#allocation3 + $0x164] sm:$0xf] %v6559
      %6688 = vst [vmem:[#allocation3 + $0x168] sm:$0xff] %v6560
      %6689 = vst [vmem:[#allocation3 + $0x170] sm:$0xf] %v6561
      %6690 = vst [vmem:[#allocation3 + $0x174] sm:$0xff] %v6562
      %6691 = vst [vmem:[#allocation3 + $0x17c] sm:$0xf] %v6563
      %s6692 = scalar_lea.vmem %s8, 64
      %v6693 = vld [vmem:[%s6692] sm:$0xf]
      %v6694 = vld [vmem:[%s6692 + $0x4] sm:$0xf]
      %v6695 = vld [vmem:[%s6692 + $0x8] sm:$0xf]
      %v6696 = vld [vmem:[%s6692 + $0xc] sm:$0xf]
      %v6697 = vld [vmem:[%s6692 + $0x10] sm:$0xf]
      %v6698 = vld [vmem:[%s6692 + $0x14] sm:$0xf]
      %v6699 = vld [vmem:[%s6692 + $0x18] sm:$0xf]
      %v6700 = vld [vmem:[%s6692 + $0x1c] sm:$0xf]
      %v6701 = vld [vmem:[%s6692 + $0x20] sm:$0xf]
      %v6702 = vld [vmem:[%s6692 + $0x24] sm:$0xf]
      %v6703 = vld [vmem:[%s6692 + $0x28] sm:$0xf]
      %v6704 = vld [vmem:[%s6692 + $0x2c] sm:$0xf]
      %v6705 = vld [vmem:[%s6692 + $0x30] sm:$0xf]
      %v6706 = vld [vmem:[%s6692 + $0x34] sm:$0xf]
      %v6707 = vld [vmem:[%s6692 + $0x38] sm:$0xf]
      %v6708 = vld [vmem:[%s6692 + $0x3c] sm:$0xf]
      %s6709 = scalar_lea.vmem %s9, 1
      %v6710 = vld [vmem:[%s6709] sm:$0x1]
      loop: start=0, step=1, limit=8
      $region108: #{vit_forward.1} parent=99 // loop_pre_header
        _
      $region109: #{vit_forward.1} parent=99 // loop_header
        %s6712 = sphi 0, %s6716
        %p6713 = scmp.ge.s32.totalorder %s6712, 8
      $region110: #{vit_forward.1} parent=99 // loop_header_branch
        %6715 = sbr.rel (%p6713) target = $region114
      $region111: #{vit_forward.1} parent=99 // loop_body
        %s6717 = smul.u32 %s6712, 32
        %s6718 = sshra.s32 %s6717, 3
        %s6719 = sand.u32 %s6717, 7
        %s6720 = smul.u32 %s6718, 3
        %s6721 = smul.addr %s6720, 4
        %s6722 = scalar_lea.vmem [#allocation3], %s6721
        %v6723 = vld [vmem:[%s6722] sm:$0xff]
        %v6724 = vld [vmem:[%s6722 + $0x8] sm:$0xf]
        %v6725 = vld [vmem:[%s6722 + $0xc] sm:$0xff]
        %v6726 = vld [vmem:[%s6722 + $0x14] sm:$0xf]
        %v6727 = vld [vmem:[%s6722 + $0x18] sm:$0xff]
        %v6728 = vld [vmem:[%s6722 + $0x20] sm:$0xf]
        %v6729 = vld [vmem:[%s6722 + $0x24] sm:$0xff]
        %v6730 = vld [vmem:[%s6722 + $0x2c] sm:$0xf]
        %v6735 = vunpack.c.l.b16 %v6723
        %v6736 = vunpack.c.l.b16 %v6725
        %v6737 = vunpack.c.l.b16 %v6727
        %v6738 = vunpack.c.l.b16 %v6729
        %v6739 = vpack.c.b16 %v6736, %v6735
        %v6740 = vpack.c.b16 %v6738, %v6737
        %v6741 = vunpack.c.h.b16 %v6723
        %v6742 = vunpack.c.h.b16 %v6725
        %v6743 = vunpack.c.h.b16 %v6727
        %v6744 = vunpack.c.h.b16 %v6729
        %v6745 = vpack.c.b16 %v6742, %v6741
        %v6746 = vpack.c.b16 %v6744, %v6743
        %vm6747 = vcmask 261120
        %v6749 = vsel %vm6747, %v6739, 0
        %v6752 = vsel %vm6747, %v6740, 0
        %v6755 = vsel %vm6747, %v6745, 0
        %v6758 = vsel %vm6747, %v6746, 0
        %6760 = vmatprep.subr.bf16.mxu0 0
        %6761 = vmatpush1.bf16.xpose.msra.mxu0 0
        %6762 = vmatprep.subr.bf16.mxu0 0
        %6763 = vmatpush1.bf16.xpose.msra.mxu0 0
        %6764 = vmatprep.subr.bf16.mxu0 0
        %6765 = vmatpush1.bf16.xpose.msra.mxu0 0
        %6766 = vmatprep.subr.bf16.mxu0 0
        %6767 = vmatpush1.bf16.xpose.msra.mxu0 0
        %6768 = vmatprep.subr.bf16.mxu0 0
        %6769 = vmatpush1.bf16.xpose.msra.mxu0 0
        %6770 = vmatprep.subr.bf16.mxu0 0
        %6771 = vmatpush1.bf16.xpose.msra.mxu0 0
        %6772 = vmatprep.subr.bf16.mxu0 0
        %6773 = vmatpush1.bf16.xpose.msra.mxu0 %v6758
        %6774 = vmatprep.subr.bf16.mxu0 0
        %6775 = vmatpush1.bf16.xpose.msra.mxu0 %v6755
        %6776 = vmatprep.subr.bf16.mxu0 0
        %6777 = vmatpush2.bf16.xpose.msra.mxu0 0
        %6778 = vmatprep.subr.bf16.mxu0 0
        %6779 = vmatpush2.bf16.xpose.msra.mxu0 0
        %6780 = vmatprep.subr.bf16.mxu0 0
        %6781 = vmatpush2.bf16.xpose.msra.mxu0 0
        %6782 = vmatprep.subr.bf16.mxu0 0
        %6783 = vmatpush2.bf16.xpose.msra.mxu0 0
        %6784 = vmatprep.subr.bf16.mxu0 0
        %6785 = vmatpush2.bf16.xpose.msra.mxu0 0
        %6786 = vmatprep.subr.bf16.mxu0 0
        %6787 = vmatpush2.bf16.xpose.msra.mxu0 0
        %6788 = vmatprep.subr.bf16.mxu0 0
        %6789 = vmatpush2.bf16.xpose.msra.mxu0 0
        %6790 = vmatprep.subr.bf16.mxu0 0
        %6791 = vmatpush2.bf16.xpose.msra.mxu0 0
        %6792 = vmatprep.mubr.bf16.mxu0 0
        %6793 = vmatmul.mubr.bf16.gmra.mxu0 %v6749
        %v6794 = vpop.f32.mrf.mxu0
        %v6795 = vadd.f32 %v1090, %v6794
        %v6796 = vpop.f32.mrf.mxu0
        %v6797 = vpop.f32.mrf.mxu0
        %v6798 = vadd.f32 %v1090, %v6797
        %v6799 = vpop.f32.mrf.mxu0
        %6800 = vmatprep.mubr.bf16.mxu0 0
        %6801 = vmatmul.mubr.bf16.gmra.mxu0 %v6752
        %v6802 = vpop.f32.mrf.mxu0
        %v6803 = vadd.f32 %v1090, %v6802
        %v6804 = vpop.f32.mrf.mxu0
        %v6805 = vpop.f32.mrf.mxu0
        %v6806 = vadd.f32 %v1090, %v6805
        %v6807 = vpop.f32.mrf.mxu0
        %6808 = vdwg.mxu0
        %v6809 = vsel %vm6747, %v6795, -inf
        %6810 = vmax.xlane.f32.xlu0 %v6809
        %v6811 = vpop.xlane.xlu0 %6810
        %v6812 = vsel %vm6747, %v6798, -inf
        %6813 = vmax.xlane.f32.xlu0 %v6812
        %v6814 = vpop.xlane.xlu0 %6813
        %v6815 = vsel %vm6747, %v6803, -inf
        %6816 = vmax.xlane.f32.xlu0 %v6815
        %v6817 = vpop.xlane.xlu0 %6816
        %v6818 = vsel %vm6747, %v6806, -inf
        %6819 = vmax.xlane.f32.xlu0 %v6818
        %v6820 = vpop.xlane.xlu0 %6819
        %v6821 = vsub.f32 %v6795, %v6811
        %v6822 = vsub.f32 %v6798, %v6814
        %v6823 = vsub.f32 %v6803, %v6817
        %v6824 = vsub.f32 %v6806, %v6820
        %v6825 = vmul.f32 %v6821, 1.442695
        %v6826 = vpow.pop %v6825
        %v6827 = vmul.f32 %v6822, 1.442695
        %v6828 = vpow.pop %v6827
        %v6829 = vmul.f32 %v6823, 1.442695
        %v6830 = vpow.pop %v6829
        %v6831 = vmul.f32 %v6824, 1.442695
        %v6832 = vpow.pop %v6831
        %v6833 = vsel %vm6747, %v6826, 0.0
        %6834 = vadd.xlane.f32.xlu0 %v6833
        %v6835 = vpop.xlane.xlu0 %6834
        %v6836 = vsel %vm6747, %v6828, 0.0
        %6837 = vadd.xlane.f32.xlu0 %v6836
        %v6838 = vpop.xlane.xlu0 %6837
        %v6839 = vsel %vm6747, %v6830, 0.0
        %6840 = vadd.xlane.f32.xlu0 %v6839
        %v6841 = vpop.xlane.xlu0 %6840
        %v6842 = vsel %vm6747, %v6832, 0.0
        %6843 = vadd.xlane.f32.xlu0 %v6842
        %v6844 = vpop.xlane.xlu0 %6843
        %v6845 = vrcp.pop %v6835
        %v6846 = vrcp.pop %v6838
        %v6847 = vrcp.pop %v6841
        %v6848 = vrcp.pop %v6844
        %v6849 = vmul.f32 %v6826, %v6845
        %v6850 = vmul.f32 %v6828, %v6846
        %v6851 = vmul.f32 %v6830, %v6847
        %v6852 = vmul.f32 %v6832, %v6848
        %v6853 = vpack.c.bf16 %v6850, %v6849
        %v6854 = vpack.c.bf16 %v6852, %v6851
        %v6859 = vunpack.c.l.b16 %v6724
        %v6860 = vunpack.c.l.b16 %v6726
        %v6861 = vunpack.c.l.b16 %v6728
        %v6862 = vunpack.c.l.b16 %v6730
        %v6863 = vpack.c.b16 %v6860, %v6859
        %v6864 = vpack.c.b16 %v6862, %v6861
        %v6868 = vsel %vm6747, %v6853, 0
        %v6871 = vsel %vm6747, %v6854, 0
        %6873 = vmatprep.subr.bf16.mxu0 0
        %6874 = vmatpush1.bf16.msra.mxu0 0
        %6875 = vmatprep.subr.bf16.mxu0 0
        %6876 = vmatpush1.bf16.msra.mxu0 0
        %6877 = vmatprep.subr.bf16.mxu0 0
        %6878 = vmatpush1.bf16.msra.mxu0 0
        %6879 = vmatprep.subr.bf16.mxu0 0
        %6880 = vmatpush1.bf16.msra.mxu0 0
        %6881 = vmatprep.subr.bf16.mxu0 0
        %6882 = vmatpush1.bf16.msra.mxu0 0
        %6883 = vmatprep.subr.bf16.mxu0 0
        %6884 = vmatpush1.bf16.msra.mxu0 0
        %6885 = vmatprep.subr.bf16.mxu0 0
        %6886 = vmatpush1.bf16.msra.mxu0 %v6864
        %6887 = vmatprep.subr.bf16.mxu0 0
        %6888 = vmatpush1.bf16.msra.mxu0 %v6863
        %6889 = vmatprep.subr.bf16.mxu0 0
        %6890 = vmatpush2.bf16.msra.mxu0 0
        %6891 = vmatprep.subr.bf16.mxu0 0
        %6892 = vmatpush2.bf16.msra.mxu0 0
        %6893 = vmatprep.subr.bf16.mxu0 0
        %6894 = vmatpush2.bf16.msra.mxu0 0
        %6895 = vmatprep.subr.bf16.mxu0 0
        %6896 = vmatpush2.bf16.msra.mxu0 0
        %6897 = vmatprep.subr.bf16.mxu0 0
        %6898 = vmatpush2.bf16.msra.mxu0 0
        %6899 = vmatprep.subr.bf16.mxu0 0
        %6900 = vmatpush2.bf16.msra.mxu0 0
        %6901 = vmatprep.subr.bf16.mxu0 0
        %6902 = vmatpush2.bf16.msra.mxu0 0
        %6903 = vmatprep.subr.bf16.mxu0 0
        %6904 = vmatpush2.bf16.msra.mxu0 0
        %6905 = vmatprep.mubr.bf16.mxu0 0
        %6906 = vmatmul.mubr.bf16.gmra.mxu0 %v6868
        %v6907 = vpop.f32.mrf.mxu0
        %v6908 = vadd.f32 0.0, %v6907
        %v6909 = vpop.f32.mrf.mxu0
        %v6910 = vpop.f32.mrf.mxu0
        %v6911 = vadd.f32 0.0, %v6910
        %v6912 = vpop.f32.mrf.mxu0
        %6913 = vmatprep.mubr.bf16.mxu0 0
        %6914 = vmatmul.mubr.bf16.gmra.mxu0 %v6871
        %v6915 = vpop.f32.mrf.mxu0
        %v6916 = vadd.f32 0.0, %v6915
        %v6917 = vpop.f32.mrf.mxu0
        %v6918 = vpop.f32.mrf.mxu0
        %v6919 = vadd.f32 0.0, %v6918
        %v6920 = vpop.f32.mrf.mxu0
        %6921 = vdwg.mxu0
        %v6922 = vpack.c.bf16 %v6911, %v6908
        %v6923 = vpack.c.bf16 %v6919, %v6916
        %6924 = vrot.lane.b32.xlu0 %v6739, 96
        %v6925 = vpop.permute.xlu0 %6924
        %6926 = vrot.lane.b32.xlu0 %v6740, 96
        %v6927 = vpop.permute.xlu0 %6926
        %6928 = vrot.lane.b32.xlu0 %v6745, 96
        %v6929 = vpop.permute.xlu0 %6928
        %6930 = vrot.lane.b32.xlu0 %v6746, 96
        %v6931 = vpop.permute.xlu0 %6930
        %v6933 = vsel %vm6747, %v6925, 0
        %v6936 = vsel %vm6747, %v6927, 0
        %v6939 = vsel %vm6747, %v6929, 0
        %v6942 = vsel %vm6747, %v6931, 0
        %6944 = vmatprep.subr.bf16.mxu0 0
        %6945 = vmatpush1.bf16.xpose.msra.mxu0 0
        %6946 = vmatprep.subr.bf16.mxu0 0
        %6947 = vmatpush1.bf16.xpose.msra.mxu0 0
        %6948 = vmatprep.subr.bf16.mxu0 0
        %6949 = vmatpush1.bf16.xpose.msra.mxu0 0
        %6950 = vmatprep.subr.bf16.mxu0 0
        %6951 = vmatpush1.bf16.xpose.msra.mxu0 0
        %6952 = vmatprep.subr.bf16.mxu0 0
        %6953 = vmatpush1.bf16.xpose.msra.mxu0 0
        %6954 = vmatprep.subr.bf16.mxu0 0
        %6955 = vmatpush1.bf16.xpose.msra.mxu0 0
        %6956 = vmatprep.subr.bf16.mxu0 0
        %6957 = vmatpush1.bf16.xpose.msra.mxu0 %v6942
        %6958 = vmatprep.subr.bf16.mxu0 0
        %6959 = vmatpush1.bf16.xpose.msra.mxu0 %v6939
        %6960 = vmatprep.subr.bf16.mxu0 0
        %6961 = vmatpush2.bf16.xpose.msra.mxu0 0
        %6962 = vmatprep.subr.bf16.mxu0 0
        %6963 = vmatpush2.bf16.xpose.msra.mxu0 0
        %6964 = vmatprep.subr.bf16.mxu0 0
        %6965 = vmatpush2.bf16.xpose.msra.mxu0 0
        %6966 = vmatprep.subr.bf16.mxu0 0
        %6967 = vmatpush2.bf16.xpose.msra.mxu0 0
        %6968 = vmatprep.subr.bf16.mxu0 0
        %6969 = vmatpush2.bf16.xpose.msra.mxu0 0
        %6970 = vmatprep.subr.bf16.mxu0 0
        %6971 = vmatpush2.bf16.xpose.msra.mxu0 0
        %6972 = vmatprep.subr.bf16.mxu0 0
        %6973 = vmatpush2.bf16.xpose.msra.mxu0 0
        %6974 = vmatprep.subr.bf16.mxu0 0
        %6975 = vmatpush2.bf16.xpose.msra.mxu0 0
        %6976 = vmatprep.mubr.bf16.mxu0 0
        %6977 = vmatmul.mubr.bf16.gmra.mxu0 %v6933
        %v6978 = vpop.f32.mrf.mxu0
        %v6979 = vadd.f32 %v1090, %v6978
        %v6980 = vpop.f32.mrf.mxu0
        %v6981 = vpop.f32.mrf.mxu0
        %v6982 = vadd.f32 %v1090, %v6981
        %v6983 = vpop.f32.mrf.mxu0
        %6984 = vmatprep.mubr.bf16.mxu0 0
        %6985 = vmatmul.mubr.bf16.gmra.mxu0 %v6936
        %v6986 = vpop.f32.mrf.mxu0
        %v6987 = vadd.f32 %v1090, %v6986
        %v6988 = vpop.f32.mrf.mxu0
        %v6989 = vpop.f32.mrf.mxu0
        %v6990 = vadd.f32 %v1090, %v6989
        %v6991 = vpop.f32.mrf.mxu0
        %6992 = vdwg.mxu0
        %v6993 = vsel %vm6747, %v6979, -inf
        %6994 = vmax.xlane.f32.xlu0 %v6993
        %v6995 = vpop.xlane.xlu0 %6994
        %v6996 = vsel %vm6747, %v6982, -inf
        %6997 = vmax.xlane.f32.xlu0 %v6996
        %v6998 = vpop.xlane.xlu0 %6997
        %v6999 = vsel %vm6747, %v6987, -inf
        %7000 = vmax.xlane.f32.xlu0 %v6999
        %v7001 = vpop.xlane.xlu0 %7000
        %v7002 = vsel %vm6747, %v6990, -inf
        %7003 = vmax.xlane.f32.xlu0 %v7002
        %v7004 = vpop.xlane.xlu0 %7003
        %v7005 = vsub.f32 %v6979, %v6995
        %v7006 = vsub.f32 %v6982, %v6998
        %v7007 = vsub.f32 %v6987, %v7001
        %v7008 = vsub.f32 %v6990, %v7004
        %v7009 = vmul.f32 %v7005, 1.442695
        %v7010 = vpow.pop %v7009
        %v7011 = vmul.f32 %v7006, 1.442695
        %v7012 = vpow.pop %v7011
        %v7013 = vmul.f32 %v7007, 1.442695
        %v7014 = vpow.pop %v7013
        %v7015 = vmul.f32 %v7008, 1.442695
        %v7016 = vpow.pop %v7015
        %v7017 = vsel %vm6747, %v7010, 0.0
        %7018 = vadd.xlane.f32.xlu0 %v7017
        %v7019 = vpop.xlane.xlu0 %7018
        %v7020 = vsel %vm6747, %v7012, 0.0
        %7021 = vadd.xlane.f32.xlu0 %v7020
        %v7022 = vpop.xlane.xlu0 %7021
        %v7023 = vsel %vm6747, %v7014, 0.0
        %7024 = vadd.xlane.f32.xlu0 %v7023
        %v7025 = vpop.xlane.xlu0 %7024
        %v7026 = vsel %vm6747, %v7016, 0.0
        %7027 = vadd.xlane.f32.xlu0 %v7026
        %v7028 = vpop.xlane.xlu0 %7027
        %v7029 = vrcp.pop %v7019
        %v7030 = vrcp.pop %v7022
        %v7031 = vrcp.pop %v7025
        %v7032 = vrcp.pop %v7028
        %v7033 = vmul.f32 %v7010, %v7029
        %v7034 = vmul.f32 %v7012, %v7030
        %v7035 = vmul.f32 %v7014, %v7031
        %v7036 = vmul.f32 %v7016, %v7032
        %v7037 = vpack.c.bf16 %v7034, %v7033
        %v7038 = vpack.c.bf16 %v7036, %v7035
        %7039 = vrot.lane.b32.xlu0 %v6863, 96
        %v7040 = vpop.permute.xlu0 %7039
        %7041 = vrot.lane.b32.xlu0 %v6864, 96
        %v7042 = vpop.permute.xlu0 %7041
        %v7046 = vsel %vm6747, %v7037, 0
        %v7049 = vsel %vm6747, %v7038, 0
        %7051 = vmatprep.subr.bf16.mxu0 0
        %7052 = vmatpush1.bf16.msra.mxu0 0
        %7053 = vmatprep.subr.bf16.mxu0 0
        %7054 = vmatpush1.bf16.msra.mxu0 0
        %7055 = vmatprep.subr.bf16.mxu0 0
        %7056 = vmatpush1.bf16.msra.mxu0 0
        %7057 = vmatprep.subr.bf16.mxu0 0
        %7058 = vmatpush1.bf16.msra.mxu0 0
        %7059 = vmatprep.subr.bf16.mxu0 0
        %7060 = vmatpush1.bf16.msra.mxu0 0
        %7061 = vmatprep.subr.bf16.mxu0 0
        %7062 = vmatpush1.bf16.msra.mxu0 0
        %7063 = vmatprep.subr.bf16.mxu0 0
        %7064 = vmatpush1.bf16.msra.mxu0 %v7042
        %7065 = vmatprep.subr.bf16.mxu0 0
        %7066 = vmatpush1.bf16.msra.mxu0 %v7040
        %7067 = vmatprep.subr.bf16.mxu0 0
        %7068 = vmatpush2.bf16.msra.mxu0 0
        %7069 = vmatprep.subr.bf16.mxu0 0
        %7070 = vmatpush2.bf16.msra.mxu0 0
        %7071 = vmatprep.subr.bf16.mxu0 0
        %7072 = vmatpush2.bf16.msra.mxu0 0
        %7073 = vmatprep.subr.bf16.mxu0 0
        %7074 = vmatpush2.bf16.msra.mxu0 0
        %7075 = vmatprep.subr.bf16.mxu0 0
        %7076 = vmatpush2.bf16.msra.mxu0 0
        %7077 = vmatprep.subr.bf16.mxu0 0
        %7078 = vmatpush2.bf16.msra.mxu0 0
        %7079 = vmatprep.subr.bf16.mxu0 0
        %7080 = vmatpush2.bf16.msra.mxu0 0
        %7081 = vmatprep.subr.bf16.mxu0 0
        %7082 = vmatpush2.bf16.msra.mxu0 0
        %7083 = vmatprep.mubr.bf16.mxu0 0
        %7084 = vmatmul.mubr.bf16.gmra.mxu0 %v7046
        %v7085 = vpop.f32.mrf.mxu0
        %v7086 = vadd.f32 0.0, %v7085
        %v7087 = vpop.f32.mrf.mxu0
        %v7088 = vpop.f32.mrf.mxu0
        %v7089 = vadd.f32 0.0, %v7088
        %v7090 = vpop.f32.mrf.mxu0
        %7091 = vmatprep.mubr.bf16.mxu0 0
        %7092 = vmatmul.mubr.bf16.gmra.mxu0 %v7049
        %v7093 = vpop.f32.mrf.mxu0
        %v7094 = vadd.f32 0.0, %v7093
        %v7095 = vpop.f32.mrf.mxu0
        %v7096 = vpop.f32.mrf.mxu0
        %v7097 = vadd.f32 0.0, %v7096
        %v7098 = vpop.f32.mrf.mxu0
        %7099 = vdwg.mxu0
        %v7100 = vpack.c.bf16 %v7089, %v7086
        %v7101 = vpack.c.bf16 %v7097, %v7094
        %v7106 = vunpack.c.l.b16 %v6697
        %v7107 = vunpack.c.l.b16 %v6698
        %v7108 = vunpack.c.l.b16 %v6699
        %v7109 = vunpack.c.l.b16 %v6700
        %v7110 = vpack.c.b16 %v7107, %v7106
        %v7111 = vpack.c.b16 %v7109, %v7108
        %v7115 = vsel %vm6747, %v7100, 0
        %v7118 = vsel %vm6747, %v7101, 0
        %7120 = vmatprep.subr.bf16.mxu0 0
        %7121 = vmatpush1.bf16.msra.mxu0 0
        %7122 = vmatprep.subr.bf16.mxu0 0
        %7123 = vmatpush1.bf16.msra.mxu0 0
        %7124 = vmatprep.subr.bf16.mxu0 0
        %7125 = vmatpush1.bf16.msra.mxu0 0
        %7126 = vmatprep.subr.bf16.mxu0 0
        %7127 = vmatpush1.bf16.msra.mxu0 0
        %7128 = vmatprep.subr.bf16.mxu0 0
        %7129 = vmatpush1.bf16.msra.mxu0 0
        %7130 = vmatprep.subr.bf16.mxu0 0
        %7131 = vmatpush1.bf16.msra.mxu0 0
        %7132 = vmatprep.subr.bf16.mxu0 0
        %7133 = vmatpush1.bf16.msra.mxu0 %v7111
        %7134 = vmatprep.subr.bf16.mxu0 0
        %7135 = vmatpush1.bf16.msra.mxu0 %v7110
        %7136 = vmatprep.subr.bf16.mxu0 0
        %7137 = vmatpush2.bf16.msra.mxu0 0
        %7138 = vmatprep.subr.bf16.mxu0 0
        %7139 = vmatpush2.bf16.msra.mxu0 0
        %7140 = vmatprep.subr.bf16.mxu0 0
        %7141 = vmatpush2.bf16.msra.mxu0 0
        %7142 = vmatprep.subr.bf16.mxu0 0
        %7143 = vmatpush2.bf16.msra.mxu0 0
        %7144 = vmatprep.subr.bf16.mxu0 0
        %7145 = vmatpush2.bf16.msra.mxu0 0
        %7146 = vmatprep.subr.bf16.mxu0 0
        %7147 = vmatpush2.bf16.msra.mxu0 0
        %7148 = vmatprep.subr.bf16.mxu0 0
        %7149 = vmatpush2.bf16.msra.mxu0 0
        %7150 = vmatprep.subr.bf16.mxu0 0
        %7151 = vmatpush2.bf16.msra.mxu0 0
        %7152 = vmatprep.mubr.bf16.mxu0 0
        %7153 = vmatmul.mubr.bf16.gmra.mxu0 %v7115
        %v7154 = vpop.f32.mrf.mxu0
        %v7155 = vadd.f32 0.0, %v7154
        %v7156 = vpop.f32.mrf.mxu0
        %v7157 = vpop.f32.mrf.mxu0
        %v7158 = vadd.f32 0.0, %v7157
        %v7159 = vpop.f32.mrf.mxu0
        %7160 = vmatprep.mubr.bf16.mxu0 0
        %7161 = vmatmul.mubr.bf16.gmra.mxu0 %v7118
        %v7162 = vpop.f32.mrf.mxu0
        %v7163 = vadd.f32 0.0, %v7162
        %v7164 = vpop.f32.mrf.mxu0
        %v7165 = vpop.f32.mrf.mxu0
        %v7166 = vadd.f32 0.0, %v7165
        %v7167 = vpop.f32.mrf.mxu0
        %7168 = vdwg.mxu0
        %v7173 = vunpack.c.l.b16 %v6693
        %v7174 = vunpack.c.l.b16 %v6694
        %v7175 = vunpack.c.l.b16 %v6695
        %v7176 = vunpack.c.l.b16 %v6696
        %v7177 = vpack.c.b16 %v7174, %v7173
        %v7178 = vpack.c.b16 %v7176, %v7175
        %v7182 = vsel %vm6747, %v6922, 0
        %v7185 = vsel %vm6747, %v6923, 0
        %7187 = vmatprep.subr.bf16.mxu0 0
        %7188 = vmatpush1.bf16.msra.mxu0 0
        %7189 = vmatprep.subr.bf16.mxu0 0
        %7190 = vmatpush1.bf16.msra.mxu0 0
        %7191 = vmatprep.subr.bf16.mxu0 0
        %7192 = vmatpush1.bf16.msra.mxu0 0
        %7193 = vmatprep.subr.bf16.mxu0 0
        %7194 = vmatpush1.bf16.msra.mxu0 0
        %7195 = vmatprep.subr.bf16.mxu0 0
        %7196 = vmatpush1.bf16.msra.mxu0 0
        %7197 = vmatprep.subr.bf16.mxu0 0
        %7198 = vmatpush1.bf16.msra.mxu0 0
        %7199 = vmatprep.subr.bf16.mxu0 0
        %7200 = vmatpush1.bf16.msra.mxu0 %v7178
        %7201 = vmatprep.subr.bf16.mxu0 0
        %7202 = vmatpush1.bf16.msra.mxu0 %v7177
        %7203 = vmatprep.subr.bf16.mxu0 0
        %7204 = vmatpush2.bf16.msra.mxu0 0
        %7205 = vmatprep.subr.bf16.mxu0 0
        %7206 = vmatpush2.bf16.msra.mxu0 0
        %7207 = vmatprep.subr.bf16.mxu0 0
        %7208 = vmatpush2.bf16.msra.mxu0 0
        %7209 = vmatprep.subr.bf16.mxu0 0
        %7210 = vmatpush2.bf16.msra.mxu0 0
        %7211 = vmatprep.subr.bf16.mxu0 0
        %7212 = vmatpush2.bf16.msra.mxu0 0
        %7213 = vmatprep.subr.bf16.mxu0 0
        %7214 = vmatpush2.bf16.msra.mxu0 0
        %7215 = vmatprep.subr.bf16.mxu0 0
        %7216 = vmatpush2.bf16.msra.mxu0 0
        %7217 = vmatprep.subr.bf16.mxu0 0
        %7218 = vmatpush2.bf16.msra.mxu0 0
        %7219 = vmatprep.mubr.bf16.mxu0 0
        %7220 = vmatmul.mubr.bf16.gmra.mxu0 %v7182
        %v7221 = vpop.f32.mrf.mxu0
        %v7222 = vadd.f32 %v7155, %v7221
        %v7223 = vpop.f32.mrf.mxu0
        %v7224 = vpop.f32.mrf.mxu0
        %v7225 = vadd.f32 %v7158, %v7224
        %v7226 = vpop.f32.mrf.mxu0
        %7227 = vmatprep.mubr.bf16.mxu0 0
        %7228 = vmatmul.mubr.bf16.gmra.mxu0 %v7185
        %v7229 = vpop.f32.mrf.mxu0
        %v7230 = vadd.f32 %v7163, %v7229
        %v7231 = vpop.f32.mrf.mxu0
        %v7232 = vpop.f32.mrf.mxu0
        %v7233 = vadd.f32 %v7166, %v7232
        %v7234 = vpop.f32.mrf.mxu0
        %7235 = vdwg.mxu0
        %7236 = vrot.lane.b32.xlu0 %v6739, 64
        %v7237 = vpop.permute.xlu0 %7236
        %7238 = vrot.lane.b32.xlu0 %v6740, 64
        %v7239 = vpop.permute.xlu0 %7238
        %7240 = vrot.lane.b32.xlu0 %v6745, 64
        %v7241 = vpop.permute.xlu0 %7240
        %7242 = vrot.lane.b32.xlu0 %v6746, 64
        %v7243 = vpop.permute.xlu0 %7242
        %v7245 = vsel %vm6747, %v7237, 0
        %v7248 = vsel %vm6747, %v7239, 0
        %v7251 = vsel %vm6747, %v7241, 0
        %v7254 = vsel %vm6747, %v7243, 0
        %7256 = vmatprep.subr.bf16.mxu0 0
        %7257 = vmatpush1.bf16.xpose.msra.mxu0 0
        %7258 = vmatprep.subr.bf16.mxu0 0
        %7259 = vmatpush1.bf16.xpose.msra.mxu0 0
        %7260 = vmatprep.subr.bf16.mxu0 0
        %7261 = vmatpush1.bf16.xpose.msra.mxu0 0
        %7262 = vmatprep.subr.bf16.mxu0 0
        %7263 = vmatpush1.bf16.xpose.msra.mxu0 0
        %7264 = vmatprep.subr.bf16.mxu0 0
        %7265 = vmatpush1.bf16.xpose.msra.mxu0 0
        %7266 = vmatprep.subr.bf16.mxu0 0
        %7267 = vmatpush1.bf16.xpose.msra.mxu0 0
        %7268 = vmatprep.subr.bf16.mxu0 0
        %7269 = vmatpush1.bf16.xpose.msra.mxu0 %v7254
        %7270 = vmatprep.subr.bf16.mxu0 0
        %7271 = vmatpush1.bf16.xpose.msra.mxu0 %v7251
        %7272 = vmatprep.subr.bf16.mxu0 0
        %7273 = vmatpush2.bf16.xpose.msra.mxu0 0
        %7274 = vmatprep.subr.bf16.mxu0 0
        %7275 = vmatpush2.bf16.xpose.msra.mxu0 0
        %7276 = vmatprep.subr.bf16.mxu0 0
        %7277 = vmatpush2.bf16.xpose.msra.mxu0 0
        %7278 = vmatprep.subr.bf16.mxu0 0
        %7279 = vmatpush2.bf16.xpose.msra.mxu0 0
        %7280 = vmatprep.subr.bf16.mxu0 0
        %7281 = vmatpush2.bf16.xpose.msra.mxu0 0
        %7282 = vmatprep.subr.bf16.mxu0 0
        %7283 = vmatpush2.bf16.xpose.msra.mxu0 0
        %7284 = vmatprep.subr.bf16.mxu0 0
        %7285 = vmatpush2.bf16.xpose.msra.mxu0 0
        %7286 = vmatprep.subr.bf16.mxu0 0
        %7287 = vmatpush2.bf16.xpose.msra.mxu0 0
        %7288 = vmatprep.mubr.bf16.mxu0 0
        %7289 = vmatmul.mubr.bf16.gmra.mxu0 %v7245
        %v7290 = vpop.f32.mrf.mxu0
        %v7291 = vadd.f32 %v1090, %v7290
        %v7292 = vpop.f32.mrf.mxu0
        %v7293 = vpop.f32.mrf.mxu0
        %v7294 = vadd.f32 %v1090, %v7293
        %v7295 = vpop.f32.mrf.mxu0
        %7296 = vmatprep.mubr.bf16.mxu0 0
        %7297 = vmatmul.mubr.bf16.gmra.mxu0 %v7248
        %v7298 = vpop.f32.mrf.mxu0
        %v7299 = vadd.f32 %v1090, %v7298
        %v7300 = vpop.f32.mrf.mxu0
        %v7301 = vpop.f32.mrf.mxu0
        %v7302 = vadd.f32 %v1090, %v7301
        %v7303 = vpop.f32.mrf.mxu0
        %7304 = vdwg.mxu0
        %v7305 = vsel %vm6747, %v7291, -inf
        %7306 = vmax.xlane.f32.xlu0 %v7305
        %v7307 = vpop.xlane.xlu0 %7306
        %v7308 = vsel %vm6747, %v7294, -inf
        %7309 = vmax.xlane.f32.xlu0 %v7308
        %v7310 = vpop.xlane.xlu0 %7309
        %v7311 = vsel %vm6747, %v7299, -inf
        %7312 = vmax.xlane.f32.xlu0 %v7311
        %v7313 = vpop.xlane.xlu0 %7312
        %v7314 = vsel %vm6747, %v7302, -inf
        %7315 = vmax.xlane.f32.xlu0 %v7314
        %v7316 = vpop.xlane.xlu0 %7315
        %v7317 = vsub.f32 %v7291, %v7307
        %v7318 = vsub.f32 %v7294, %v7310
        %v7319 = vsub.f32 %v7299, %v7313
        %v7320 = vsub.f32 %v7302, %v7316
        %v7321 = vmul.f32 %v7317, 1.442695
        %v7322 = vpow.pop %v7321
        %v7323 = vmul.f32 %v7318, 1.442695
        %v7324 = vpow.pop %v7323
        %v7325 = vmul.f32 %v7319, 1.442695
        %v7326 = vpow.pop %v7325
        %v7327 = vmul.f32 %v7320, 1.442695
        %v7328 = vpow.pop %v7327
        %v7329 = vsel %vm6747, %v7322, 0.0
        %7330 = vadd.xlane.f32.xlu0 %v7329
        %v7331 = vpop.xlane.xlu0 %7330
        %v7332 = vsel %vm6747, %v7324, 0.0
        %7333 = vadd.xlane.f32.xlu0 %v7332
        %v7334 = vpop.xlane.xlu0 %7333
        %v7335 = vsel %vm6747, %v7326, 0.0
        %7336 = vadd.xlane.f32.xlu0 %v7335
        %v7337 = vpop.xlane.xlu0 %7336
        %v7338 = vsel %vm6747, %v7328, 0.0
        %7339 = vadd.xlane.f32.xlu0 %v7338
        %v7340 = vpop.xlane.xlu0 %7339
        %v7341 = vrcp.pop %v7331
        %v7342 = vrcp.pop %v7334
        %v7343 = vrcp.pop %v7337
        %v7344 = vrcp.pop %v7340
        %v7345 = vmul.f32 %v7322, %v7341
        %v7346 = vmul.f32 %v7324, %v7342
        %v7347 = vmul.f32 %v7326, %v7343
        %v7348 = vmul.f32 %v7328, %v7344
        %v7349 = vpack.c.bf16 %v7346, %v7345
        %v7350 = vpack.c.bf16 %v7348, %v7347
        %7351 = vrot.lane.b32.xlu0 %v6863, 64
        %v7352 = vpop.permute.xlu0 %7351
        %7353 = vrot.lane.b32.xlu0 %v6864, 64
        %v7354 = vpop.permute.xlu0 %7353
        %v7358 = vsel %vm6747, %v7349, 0
        %v7361 = vsel %vm6747, %v7350, 0
        %7363 = vmatprep.subr.bf16.mxu0 0
        %7364 = vmatpush1.bf16.msra.mxu0 0
        %7365 = vmatprep.subr.bf16.mxu0 0
        %7366 = vmatpush1.bf16.msra.mxu0 0
        %7367 = vmatprep.subr.bf16.mxu0 0
        %7368 = vmatpush1.bf16.msra.mxu0 0
        %7369 = vmatprep.subr.bf16.mxu0 0
        %7370 = vmatpush1.bf16.msra.mxu0 0
        %7371 = vmatprep.subr.bf16.mxu0 0
        %7372 = vmatpush1.bf16.msra.mxu0 0
        %7373 = vmatprep.subr.bf16.mxu0 0
        %7374 = vmatpush1.bf16.msra.mxu0 0
        %7375 = vmatprep.subr.bf16.mxu0 0
        %7376 = vmatpush1.bf16.msra.mxu0 %v7354
        %7377 = vmatprep.subr.bf16.mxu0 0
        %7378 = vmatpush1.bf16.msra.mxu0 %v7352
        %7379 = vmatprep.subr.bf16.mxu0 0
        %7380 = vmatpush2.bf16.msra.mxu0 0
        %7381 = vmatprep.subr.bf16.mxu0 0
        %7382 = vmatpush2.bf16.msra.mxu0 0
        %7383 = vmatprep.subr.bf16.mxu0 0
        %7384 = vmatpush2.bf16.msra.mxu0 0
        %7385 = vmatprep.subr.bf16.mxu0 0
        %7386 = vmatpush2.bf16.msra.mxu0 0
        %7387 = vmatprep.subr.bf16.mxu0 0
        %7388 = vmatpush2.bf16.msra.mxu0 0
        %7389 = vmatprep.subr.bf16.mxu0 0
        %7390 = vmatpush2.bf16.msra.mxu0 0
        %7391 = vmatprep.subr.bf16.mxu0 0
        %7392 = vmatpush2.bf16.msra.mxu0 0
        %7393 = vmatprep.subr.bf16.mxu0 0
        %7394 = vmatpush2.bf16.msra.mxu0 0
        %7395 = vmatprep.mubr.bf16.mxu0 0
        %7396 = vmatmul.mubr.bf16.gmra.mxu0 %v7358
        %v7397 = vpop.f32.mrf.mxu0
        %v7398 = vadd.f32 0.0, %v7397
        %v7399 = vpop.f32.mrf.mxu0
        %v7400 = vpop.f32.mrf.mxu0
        %v7401 = vadd.f32 0.0, %v7400
        %v7402 = vpop.f32.mrf.mxu0
        %7403 = vmatprep.mubr.bf16.mxu0 0
        %7404 = vmatmul.mubr.bf16.gmra.mxu0 %v7361
        %v7405 = vpop.f32.mrf.mxu0
        %v7406 = vadd.f32 0.0, %v7405
        %v7407 = vpop.f32.mrf.mxu0
        %v7408 = vpop.f32.mrf.mxu0
        %v7409 = vadd.f32 0.0, %v7408
        %v7410 = vpop.f32.mrf.mxu0
        %7411 = vdwg.mxu0
        %v7412 = vpack.c.bf16 %v7401, %v7398
        %v7413 = vpack.c.bf16 %v7409, %v7406
        %v7418 = vunpack.c.l.b16 %v6701
        %v7419 = vunpack.c.l.b16 %v6702
        %v7420 = vunpack.c.l.b16 %v6703
        %v7421 = vunpack.c.l.b16 %v6704
        %v7422 = vpack.c.b16 %v7419, %v7418
        %v7423 = vpack.c.b16 %v7421, %v7420
        %v7427 = vsel %vm6747, %v7412, 0
        %v7430 = vsel %vm6747, %v7413, 0
        %7432 = vmatprep.subr.bf16.mxu0 0
        %7433 = vmatpush1.bf16.msra.mxu0 0
        %7434 = vmatprep.subr.bf16.mxu0 0
        %7435 = vmatpush1.bf16.msra.mxu0 0
        %7436 = vmatprep.subr.bf16.mxu0 0
        %7437 = vmatpush1.bf16.msra.mxu0 0
        %7438 = vmatprep.subr.bf16.mxu0 0
        %7439 = vmatpush1.bf16.msra.mxu0 0
        %7440 = vmatprep.subr.bf16.mxu0 0
        %7441 = vmatpush1.bf16.msra.mxu0 0
        %7442 = vmatprep.subr.bf16.mxu0 0
        %7443 = vmatpush1.bf16.msra.mxu0 0
        %7444 = vmatprep.subr.bf16.mxu0 0
        %7445 = vmatpush1.bf16.msra.mxu0 %v7423
        %7446 = vmatprep.subr.bf16.mxu0 0
        %7447 = vmatpush1.bf16.msra.mxu0 %v7422
        %7448 = vmatprep.subr.bf16.mxu0 0
        %7449 = vmatpush2.bf16.msra.mxu0 0
        %7450 = vmatprep.subr.bf16.mxu0 0
        %7451 = vmatpush2.bf16.msra.mxu0 0
        %7452 = vmatprep.subr.bf16.mxu0 0
        %7453 = vmatpush2.bf16.msra.mxu0 0
        %7454 = vmatprep.subr.bf16.mxu0 0
        %7455 = vmatpush2.bf16.msra.mxu0 0
        %7456 = vmatprep.subr.bf16.mxu0 0
        %7457 = vmatpush2.bf16.msra.mxu0 0
        %7458 = vmatprep.subr.bf16.mxu0 0
        %7459 = vmatpush2.bf16.msra.mxu0 0
        %7460 = vmatprep.subr.bf16.mxu0 0
        %7461 = vmatpush2.bf16.msra.mxu0 0
        %7462 = vmatprep.subr.bf16.mxu0 0
        %7463 = vmatpush2.bf16.msra.mxu0 0
        %7464 = vmatprep.mubr.bf16.mxu0 0
        %7465 = vmatmul.mubr.bf16.gmra.mxu0 %v7427
        %v7466 = vpop.f32.mrf.mxu0
        %v7467 = vadd.f32 0.0, %v7466
        %v7468 = vpop.f32.mrf.mxu0
        %v7469 = vpop.f32.mrf.mxu0
        %v7470 = vadd.f32 0.0, %v7469
        %v7471 = vpop.f32.mrf.mxu0
        %7472 = vmatprep.mubr.bf16.mxu0 0
        %7473 = vmatmul.mubr.bf16.gmra.mxu0 %v7430
        %v7474 = vpop.f32.mrf.mxu0
        %v7475 = vadd.f32 0.0, %v7474
        %v7476 = vpop.f32.mrf.mxu0
        %v7477 = vpop.f32.mrf.mxu0
        %v7478 = vadd.f32 0.0, %v7477
        %v7479 = vpop.f32.mrf.mxu0
        %7480 = vdwg.mxu0
        %v7481 = vadd.f32 %v7222, %v7467
        %v7482 = vadd.f32 %v7225, %v7470
        %v7483 = vadd.f32 %v7230, %v7475
        %v7484 = vadd.f32 %v7233, %v7478
        %7485 = vrot.lane.b32.xlu0 %v6739, 32
        %v7486 = vpop.permute.xlu0 %7485
        %7487 = vrot.lane.b32.xlu0 %v6740, 32
        %v7488 = vpop.permute.xlu0 %7487
        %7489 = vrot.lane.b32.xlu0 %v6745, 32
        %v7490 = vpop.permute.xlu0 %7489
        %7491 = vrot.lane.b32.xlu0 %v6746, 32
        %v7492 = vpop.permute.xlu0 %7491
        %v7494 = vsel %vm6747, %v7486, 0
        %v7497 = vsel %vm6747, %v7488, 0
        %v7500 = vsel %vm6747, %v7490, 0
        %v7503 = vsel %vm6747, %v7492, 0
        %7505 = vmatprep.subr.bf16.mxu0 0
        %7506 = vmatpush1.bf16.xpose.msra.mxu0 0
        %7507 = vmatprep.subr.bf16.mxu0 0
        %7508 = vmatpush1.bf16.xpose.msra.mxu0 0
        %7509 = vmatprep.subr.bf16.mxu0 0
        %7510 = vmatpush1.bf16.xpose.msra.mxu0 0
        %7511 = vmatprep.subr.bf16.mxu0 0
        %7512 = vmatpush1.bf16.xpose.msra.mxu0 0
        %7513 = vmatprep.subr.bf16.mxu0 0
        %7514 = vmatpush1.bf16.xpose.msra.mxu0 0
        %7515 = vmatprep.subr.bf16.mxu0 0
        %7516 = vmatpush1.bf16.xpose.msra.mxu0 0
        %7517 = vmatprep.subr.bf16.mxu0 0
        %7518 = vmatpush1.bf16.xpose.msra.mxu0 %v7503
        %7519 = vmatprep.subr.bf16.mxu0 0
        %7520 = vmatpush1.bf16.xpose.msra.mxu0 %v7500
        %7521 = vmatprep.subr.bf16.mxu0 0
        %7522 = vmatpush2.bf16.xpose.msra.mxu0 0
        %7523 = vmatprep.subr.bf16.mxu0 0
        %7524 = vmatpush2.bf16.xpose.msra.mxu0 0
        %7525 = vmatprep.subr.bf16.mxu0 0
        %7526 = vmatpush2.bf16.xpose.msra.mxu0 0
        %7527 = vmatprep.subr.bf16.mxu0 0
        %7528 = vmatpush2.bf16.xpose.msra.mxu0 0
        %7529 = vmatprep.subr.bf16.mxu0 0
        %7530 = vmatpush2.bf16.xpose.msra.mxu0 0
        %7531 = vmatprep.subr.bf16.mxu0 0
        %7532 = vmatpush2.bf16.xpose.msra.mxu0 0
        %7533 = vmatprep.subr.bf16.mxu0 0
        %7534 = vmatpush2.bf16.xpose.msra.mxu0 0
        %7535 = vmatprep.subr.bf16.mxu0 0
        %7536 = vmatpush2.bf16.xpose.msra.mxu0 0
        %7537 = vmatprep.mubr.bf16.mxu0 0
        %7538 = vmatmul.mubr.bf16.gmra.mxu0 %v7494
        %v7539 = vpop.f32.mrf.mxu0
        %v7540 = vadd.f32 %v1090, %v7539
        %v7541 = vpop.f32.mrf.mxu0
        %v7542 = vpop.f32.mrf.mxu0
        %v7543 = vadd.f32 %v1090, %v7542
        %v7544 = vpop.f32.mrf.mxu0
        %7545 = vmatprep.mubr.bf16.mxu0 0
        %7546 = vmatmul.mubr.bf16.gmra.mxu0 %v7497
        %v7547 = vpop.f32.mrf.mxu0
        %v7548 = vadd.f32 %v1090, %v7547
        %v7549 = vpop.f32.mrf.mxu0
        %v7550 = vpop.f32.mrf.mxu0
        %v7551 = vadd.f32 %v1090, %v7550
        %v7552 = vpop.f32.mrf.mxu0
        %7553 = vdwg.mxu0
        %v7554 = vsel %vm6747, %v7540, -inf
        %7555 = vmax.xlane.f32.xlu0 %v7554
        %v7556 = vpop.xlane.xlu0 %7555
        %v7557 = vsel %vm6747, %v7543, -inf
        %7558 = vmax.xlane.f32.xlu0 %v7557
        %v7559 = vpop.xlane.xlu0 %7558
        %v7560 = vsel %vm6747, %v7548, -inf
        %7561 = vmax.xlane.f32.xlu0 %v7560
        %v7562 = vpop.xlane.xlu0 %7561
        %v7563 = vsel %vm6747, %v7551, -inf
        %7564 = vmax.xlane.f32.xlu0 %v7563
        %v7565 = vpop.xlane.xlu0 %7564
        %v7566 = vsub.f32 %v7540, %v7556
        %v7567 = vsub.f32 %v7543, %v7559
        %v7568 = vsub.f32 %v7548, %v7562
        %v7569 = vsub.f32 %v7551, %v7565
        %v7570 = vmul.f32 %v7566, 1.442695
        %v7571 = vpow.pop %v7570
        %v7572 = vmul.f32 %v7567, 1.442695
        %v7573 = vpow.pop %v7572
        %v7574 = vmul.f32 %v7568, 1.442695
        %v7575 = vpow.pop %v7574
        %v7576 = vmul.f32 %v7569, 1.442695
        %v7577 = vpow.pop %v7576
        %v7578 = vsel %vm6747, %v7571, 0.0
        %7579 = vadd.xlane.f32.xlu0 %v7578
        %v7580 = vpop.xlane.xlu0 %7579
        %v7581 = vsel %vm6747, %v7573, 0.0
        %7582 = vadd.xlane.f32.xlu0 %v7581
        %v7583 = vpop.xlane.xlu0 %7582
        %v7584 = vsel %vm6747, %v7575, 0.0
        %7585 = vadd.xlane.f32.xlu0 %v7584
        %v7586 = vpop.xlane.xlu0 %7585
        %v7587 = vsel %vm6747, %v7577, 0.0
        %7588 = vadd.xlane.f32.xlu0 %v7587
        %v7589 = vpop.xlane.xlu0 %7588
        %v7590 = vrcp.pop %v7580
        %v7591 = vrcp.pop %v7583
        %v7592 = vrcp.pop %v7586
        %v7593 = vrcp.pop %v7589
        %v7594 = vmul.f32 %v7571, %v7590
        %v7595 = vmul.f32 %v7573, %v7591
        %v7596 = vmul.f32 %v7575, %v7592
        %v7597 = vmul.f32 %v7577, %v7593
        %v7598 = vpack.c.bf16 %v7595, %v7594
        %v7599 = vpack.c.bf16 %v7597, %v7596
        %7600 = vrot.lane.b32.xlu0 %v6863, 32
        %v7601 = vpop.permute.xlu0 %7600
        %7602 = vrot.lane.b32.xlu0 %v6864, 32
        %v7603 = vpop.permute.xlu0 %7602
        %v7607 = vsel %vm6747, %v7598, 0
        %v7610 = vsel %vm6747, %v7599, 0
        %7612 = vmatprep.subr.bf16.mxu0 0
        %7613 = vmatpush1.bf16.msra.mxu0 0
        %7614 = vmatprep.subr.bf16.mxu0 0
        %7615 = vmatpush1.bf16.msra.mxu0 0
        %7616 = vmatprep.subr.bf16.mxu0 0
        %7617 = vmatpush1.bf16.msra.mxu0 0
        %7618 = vmatprep.subr.bf16.mxu0 0
        %7619 = vmatpush1.bf16.msra.mxu0 0
        %7620 = vmatprep.subr.bf16.mxu0 0
        %7621 = vmatpush1.bf16.msra.mxu0 0
        %7622 = vmatprep.subr.bf16.mxu0 0
        %7623 = vmatpush1.bf16.msra.mxu0 0
        %7624 = vmatprep.subr.bf16.mxu0 0
        %7625 = vmatpush1.bf16.msra.mxu0 %v7603
        %7626 = vmatprep.subr.bf16.mxu0 0
        %7627 = vmatpush1.bf16.msra.mxu0 %v7601
        %7628 = vmatprep.subr.bf16.mxu0 0
        %7629 = vmatpush2.bf16.msra.mxu0 0
        %7630 = vmatprep.subr.bf16.mxu0 0
        %7631 = vmatpush2.bf16.msra.mxu0 0
        %7632 = vmatprep.subr.bf16.mxu0 0
        %7633 = vmatpush2.bf16.msra.mxu0 0
        %7634 = vmatprep.subr.bf16.mxu0 0
        %7635 = vmatpush2.bf16.msra.mxu0 0
        %7636 = vmatprep.subr.bf16.mxu0 0
        %7637 = vmatpush2.bf16.msra.mxu0 0
        %7638 = vmatprep.subr.bf16.mxu0 0
        %7639 = vmatpush2.bf16.msra.mxu0 0
        %7640 = vmatprep.subr.bf16.mxu0 0
        %7641 = vmatpush2.bf16.msra.mxu0 0
        %7642 = vmatprep.subr.bf16.mxu0 0
        %7643 = vmatpush2.bf16.msra.mxu0 0
        %7644 = vmatprep.mubr.bf16.mxu0 0
        %7645 = vmatmul.mubr.bf16.gmra.mxu0 %v7607
        %v7646 = vpop.f32.mrf.mxu0
        %v7647 = vadd.f32 0.0, %v7646
        %v7648 = vpop.f32.mrf.mxu0
        %v7649 = vpop.f32.mrf.mxu0
        %v7650 = vadd.f32 0.0, %v7649
        %v7651 = vpop.f32.mrf.mxu0
        %7652 = vmatprep.mubr.bf16.mxu0 0
        %7653 = vmatmul.mubr.bf16.gmra.mxu0 %v7610
        %v7654 = vpop.f32.mrf.mxu0
        %v7655 = vadd.f32 0.0, %v7654
        %v7656 = vpop.f32.mrf.mxu0
        %v7657 = vpop.f32.mrf.mxu0
        %v7658 = vadd.f32 0.0, %v7657
        %v7659 = vpop.f32.mrf.mxu0
        %7660 = vdwg.mxu0
        %v7661 = vpack.c.bf16 %v7650, %v7647
        %v7662 = vpack.c.bf16 %v7658, %v7655
        %v7667 = vunpack.c.l.b16 %v6705
        %v7668 = vunpack.c.l.b16 %v6706
        %v7669 = vunpack.c.l.b16 %v6707
        %v7670 = vunpack.c.l.b16 %v6708
        %v7671 = vpack.c.b16 %v7668, %v7667
        %v7672 = vpack.c.b16 %v7670, %v7669
        %v7676 = vsel %vm6747, %v7661, 0
        %v7679 = vsel %vm6747, %v7662, 0
        %7681 = vmatprep.subr.bf16.mxu0 0
        %7682 = vmatpush1.bf16.msra.mxu0 0
        %7683 = vmatprep.subr.bf16.mxu0 0
        %7684 = vmatpush1.bf16.msra.mxu0 0
        %7685 = vmatprep.subr.bf16.mxu0 0
        %7686 = vmatpush1.bf16.msra.mxu0 0
        %7687 = vmatprep.subr.bf16.mxu0 0
        %7688 = vmatpush1.bf16.msra.mxu0 0
        %7689 = vmatprep.subr.bf16.mxu0 0
        %7690 = vmatpush1.bf16.msra.mxu0 0
        %7691 = vmatprep.subr.bf16.mxu0 0
        %7692 = vmatpush1.bf16.msra.mxu0 0
        %7693 = vmatprep.subr.bf16.mxu0 0
        %7694 = vmatpush1.bf16.msra.mxu0 %v7672
        %7695 = vmatprep.subr.bf16.mxu0 0
        %7696 = vmatpush1.bf16.msra.mxu0 %v7671
        %7697 = vmatprep.subr.bf16.mxu0 0
        %7698 = vmatpush2.bf16.msra.mxu0 0
        %7699 = vmatprep.subr.bf16.mxu0 0
        %7700 = vmatpush2.bf16.msra.mxu0 0
        %7701 = vmatprep.subr.bf16.mxu0 0
        %7702 = vmatpush2.bf16.msra.mxu0 0
        %7703 = vmatprep.subr.bf16.mxu0 0
        %7704 = vmatpush2.bf16.msra.mxu0 0
        %7705 = vmatprep.subr.bf16.mxu0 0
        %7706 = vmatpush2.bf16.msra.mxu0 0
        %7707 = vmatprep.subr.bf16.mxu0 0
        %7708 = vmatpush2.bf16.msra.mxu0 0
        %7709 = vmatprep.subr.bf16.mxu0 0
        %7710 = vmatpush2.bf16.msra.mxu0 0
        %7711 = vmatprep.subr.bf16.mxu0 0
        %7712 = vmatpush2.bf16.msra.mxu0 0
        %7713 = vmatprep.mubr.bf16.mxu0 0
        %7714 = vmatmul.mubr.bf16.gmra.mxu0 %v7676
        %v7715 = vpop.f32.mrf.mxu0
        %v7716 = vadd.f32 0.0, %v7715
        %v7717 = vpop.f32.mrf.mxu0
        %v7718 = vpop.f32.mrf.mxu0
        %v7719 = vadd.f32 0.0, %v7718
        %v7720 = vpop.f32.mrf.mxu0
        %7721 = vmatprep.mubr.bf16.mxu0 0
        %7722 = vmatmul.mubr.bf16.gmra.mxu0 %v7679
        %v7723 = vpop.f32.mrf.mxu0
        %v7724 = vadd.f32 0.0, %v7723
        %v7725 = vpop.f32.mrf.mxu0
        %v7726 = vpop.f32.mrf.mxu0
        %v7727 = vadd.f32 0.0, %v7726
        %v7728 = vpop.f32.mrf.mxu0
        %7729 = vdwg.mxu0
        %v7730 = vadd.f32 %v7481, %v7716
        %v7731 = vadd.f32 %v7482, %v7719
        %v7732 = vadd.f32 %v7483, %v7724
        %v7733 = vadd.f32 %v7484, %v7727
        %s7734 = scalar_lea.vmem [#allocation2], %s6717
        %v7735 = vld [vmem:[%s7734] sm:$0xff]
        %v7736 = vld [vmem:[%s7734 + $0x8] sm:$0xff]
        %v7737 = vld [vmem:[%s7734 + $0x10] sm:$0xff]
        %v7738 = vld [vmem:[%s7734 + $0x18] sm:$0xff]
        %v7739 = vadd.f32 %v7735, %v7730
        %v7740 = vadd.f32 %v7736, %v7731
        %v7741 = vadd.f32 %v7737, %v7732
        %v7742 = vadd.f32 %v7738, %v7733
        %v7744 = vlaneseq
        %v7745 = vshrl.u32 %v7744, 7
        %v7746 = vsub.s32 0, %v7745
        %v7747 = vrot.slane %v6710, %v7746
        %v7749 = vadd.f32 %v7739, %v7747
        %v7750 = vadd.f32 %v7740, %v7747
        %v7751 = vadd.f32 %v7741, %v7747
        %v7752 = vadd.f32 %v7742, %v7747
        %7753 = vst [vmem:[%s7734] sm:$0xff] %v7749
        %7754 = vst [vmem:[%s7734 + $0x8] sm:$0xff] %v7750
        %7755 = vst [vmem:[%s7734 + $0x10] sm:$0xff] %v7751
        %7756 = vst [vmem:[%s7734 + $0x18] sm:$0xff] %v7752
      $region112: #{vit_forward.1} parent=99 // loop_footer
        %s6716 = sadd.s32 1, %s6712
      $region113: #{vit_forward.1} parent=99 // loop_footer_branch
        %6711 = sbr.rel target = $region109
      $region114: #{vit_forward.1} parent=99 // loop_exit
        _
      %v7757 = vld [vmem:[#allocation2] sm:$0xff]
      %v7758 = vld [vmem:[#allocation2 + $0x8] sm:$0xff]
      %v7759 = vld [vmem:[#allocation2 + $0x10] sm:$0xff]
      %v7760 = vld [vmem:[#allocation2 + $0x18] sm:$0xff]
      %v7761 = vld [vmem:[#allocation2 + $0x20] sm:$0xff]
      %v7762 = vld [vmem:[#allocation2 + $0x28] sm:$0xff]
      %v7763 = vld [vmem:[#allocation2 + $0x30] sm:$0xff]
      %v7764 = vld [vmem:[#allocation2 + $0x38] sm:$0xff]
      %v7765 = vld [vmem:[#allocation2 + $0x40] sm:$0xff]
      %v7766 = vld [vmem:[#allocation2 + $0x48] sm:$0xff]
      %v7767 = vld [vmem:[#allocation2 + $0x50] sm:$0xff]
      %v7768 = vld [vmem:[#allocation2 + $0x58] sm:$0xff]
      %v7769 = vld [vmem:[#allocation2 + $0x60] sm:$0xff]
      %v7770 = vld [vmem:[#allocation2 + $0x68] sm:$0xff]
      %v7771 = vld [vmem:[#allocation2 + $0x70] sm:$0xff]
      %v7772 = vld [vmem:[#allocation2 + $0x78] sm:$0xff]
      %v7773 = vld [vmem:[#allocation2 + $0x80] sm:$0xff]
      %v7774 = vld [vmem:[#allocation2 + $0x88] sm:$0xff]
      %v7775 = vld [vmem:[#allocation2 + $0x90] sm:$0xff]
      %v7776 = vld [vmem:[#allocation2 + $0x98] sm:$0xff]
      %v7777 = vld [vmem:[#allocation2 + $0xa0] sm:$0xff]
      %v7778 = vld [vmem:[#allocation2 + $0xa8] sm:$0xff]
      %v7779 = vld [vmem:[#allocation2 + $0xb0] sm:$0xff]
      %v7780 = vld [vmem:[#allocation2 + $0xb8] sm:$0xff]
      %v7781 = vld [vmem:[#allocation2 + $0xc0] sm:$0xff]
      %v7782 = vld [vmem:[#allocation2 + $0xc8] sm:$0xff]
      %v7783 = vld [vmem:[#allocation2 + $0xd0] sm:$0xff]
      %v7784 = vld [vmem:[#allocation2 + $0xd8] sm:$0xff]
      %v7785 = vld [vmem:[#allocation2 + $0xe0] sm:$0xff]
      %v7786 = vld [vmem:[#allocation2 + $0xe8] sm:$0xff]
      %v7787 = vld [vmem:[#allocation2 + $0xf0] sm:$0xff]
      %v7788 = vld [vmem:[#allocation2 + $0xf8] sm:$0xff]
      %s7789 = scalar_lea.vmem %s10, 1
      %v7790 = vld [vmem:[%s7789] sm:$0x1]
      %s7791 = scalar_lea.vmem %s11, 1
      %v7792 = vld [vmem:[%s7791] sm:$0x1]
      %7793 = vadd.xlane.f32.xlu0 %v7757
      %v7794 = vpop.xlane.xlu0 %7793
      %7795 = vadd.xlane.f32.xlu0 %v7758
      %v7796 = vpop.xlane.xlu0 %7795
      %7797 = vadd.xlane.f32.xlu0 %v7759
      %v7798 = vpop.xlane.xlu0 %7797
      %7799 = vadd.xlane.f32.xlu0 %v7760
      %v7800 = vpop.xlane.xlu0 %7799
      %7801 = vadd.xlane.f32.xlu0 %v7761
      %v7802 = vpop.xlane.xlu0 %7801
      %7803 = vadd.xlane.f32.xlu0 %v7762
      %v7804 = vpop.xlane.xlu0 %7803
      %7805 = vadd.xlane.f32.xlu0 %v7763
      %v7806 = vpop.xlane.xlu0 %7805
      %7807 = vadd.xlane.f32.xlu0 %v7764
      %v7808 = vpop.xlane.xlu0 %7807
      %7809 = vadd.xlane.f32.xlu0 %v7765
      %v7810 = vpop.xlane.xlu0 %7809
      %7811 = vadd.xlane.f32.xlu0 %v7766
      %v7812 = vpop.xlane.xlu0 %7811
      %7813 = vadd.xlane.f32.xlu0 %v7767
      %v7814 = vpop.xlane.xlu0 %7813
      %7815 = vadd.xlane.f32.xlu0 %v7768
      %v7816 = vpop.xlane.xlu0 %7815
      %7817 = vadd.xlane.f32.xlu0 %v7769
      %v7818 = vpop.xlane.xlu0 %7817
      %7819 = vadd.xlane.f32.xlu0 %v7770
      %v7820 = vpop.xlane.xlu0 %7819
      %7821 = vadd.xlane.f32.xlu0 %v7771
      %v7822 = vpop.xlane.xlu0 %7821
      %7823 = vadd.xlane.f32.xlu0 %v7772
      %v7824 = vpop.xlane.xlu0 %7823
      %7825 = vadd.xlane.f32.xlu0 %v7773
      %v7826 = vpop.xlane.xlu0 %7825
      %7827 = vadd.xlane.f32.xlu0 %v7774
      %v7828 = vpop.xlane.xlu0 %7827
      %7829 = vadd.xlane.f32.xlu0 %v7775
      %v7830 = vpop.xlane.xlu0 %7829
      %7831 = vadd.xlane.f32.xlu0 %v7776
      %v7832 = vpop.xlane.xlu0 %7831
      %7833 = vadd.xlane.f32.xlu0 %v7777
      %v7834 = vpop.xlane.xlu0 %7833
      %7835 = vadd.xlane.f32.xlu0 %v7778
      %v7836 = vpop.xlane.xlu0 %7835
      %7837 = vadd.xlane.f32.xlu0 %v7779
      %v7838 = vpop.xlane.xlu0 %7837
      %7839 = vadd.xlane.f32.xlu0 %v7780
      %v7840 = vpop.xlane.xlu0 %7839
      %7841 = vadd.xlane.f32.xlu0 %v7781
      %v7842 = vpop.xlane.xlu0 %7841
      %7843 = vadd.xlane.f32.xlu0 %v7782
      %v7844 = vpop.xlane.xlu0 %7843
      %7845 = vadd.xlane.f32.xlu0 %v7783
      %v7846 = vpop.xlane.xlu0 %7845
      %7847 = vadd.xlane.f32.xlu0 %v7784
      %v7848 = vpop.xlane.xlu0 %7847
      %7849 = vadd.xlane.f32.xlu0 %v7785
      %v7850 = vpop.xlane.xlu0 %7849
      %7851 = vadd.xlane.f32.xlu0 %v7786
      %v7852 = vpop.xlane.xlu0 %7851
      %7853 = vadd.xlane.f32.xlu0 %v7787
      %v7854 = vpop.xlane.xlu0 %7853
      %7855 = vadd.xlane.f32.xlu0 %v7788
      %v7856 = vpop.xlane.xlu0 %7855
      %v7857 = vmul.f32 %v7794, %v1189
      %v7858 = vmul.f32 %v7796, %v1189
      %v7859 = vmul.f32 %v7798, %v1189
      %v7860 = vmul.f32 %v7800, %v1189
      %v7861 = vmul.f32 %v7802, %v1189
      %v7862 = vmul.f32 %v7804, %v1189
      %v7863 = vmul.f32 %v7806, %v1189
      %v7864 = vmul.f32 %v7808, %v1189
      %v7865 = vmul.f32 %v7810, %v1189
      %v7866 = vmul.f32 %v7812, %v1189
      %v7867 = vmul.f32 %v7814, %v1189
      %v7868 = vmul.f32 %v7816, %v1189
      %v7869 = vmul.f32 %v7818, %v1189
      %v7870 = vmul.f32 %v7820, %v1189
      %v7871 = vmul.f32 %v7822, %v1189
      %v7872 = vmul.f32 %v7824, %v1189
      %v7873 = vmul.f32 %v7826, %v1189
      %v7874 = vmul.f32 %v7828, %v1189
      %v7875 = vmul.f32 %v7830, %v1189
      %v7876 = vmul.f32 %v7832, %v1189
      %v7877 = vmul.f32 %v7834, %v1189
      %v7878 = vmul.f32 %v7836, %v1189
      %v7879 = vmul.f32 %v7838, %v1189
      %v7880 = vmul.f32 %v7840, %v1189
      %v7881 = vmul.f32 %v7842, %v1189
      %v7882 = vmul.f32 %v7844, %v1189
      %v7883 = vmul.f32 %v7846, %v1189
      %v7884 = vmul.f32 %v7848, %v1189
      %v7885 = vmul.f32 %v7850, %v1189
      %v7886 = vmul.f32 %v7852, %v1189
      %v7887 = vmul.f32 %v7854, %v1189
      %v7888 = vmul.f32 %v7856, %v1189
      %v7889 = vsub.f32 %v7757, %v7857
      %v7890 = vsub.f32 %v7758, %v7858
      %v7891 = vsub.f32 %v7759, %v7859
      %v7892 = vsub.f32 %v7760, %v7860
      %v7893 = vsub.f32 %v7761, %v7861
      %v7894 = vsub.f32 %v7762, %v7862
      %v7895 = vsub.f32 %v7763, %v7863
      %v7896 = vsub.f32 %v7764, %v7864
      %v7897 = vsub.f32 %v7765, %v7865
      %v7898 = vsub.f32 %v7766, %v7866
      %v7899 = vsub.f32 %v7767, %v7867
      %v7900 = vsub.f32 %v7768, %v7868
      %v7901 = vsub.f32 %v7769, %v7869
      %v7902 = vsub.f32 %v7770, %v7870
      %v7903 = vsub.f32 %v7771, %v7871
      %v7904 = vsub.f32 %v7772, %v7872
      %v7905 = vsub.f32 %v7773, %v7873
      %v7906 = vsub.f32 %v7774, %v7874
      %v7907 = vsub.f32 %v7775, %v7875
      %v7908 = vsub.f32 %v7776, %v7876
      %v7909 = vsub.f32 %v7777, %v7877
      %v7910 = vsub.f32 %v7778, %v7878
      %v7911 = vsub.f32 %v7779, %v7879
      %v7912 = vsub.f32 %v7780, %v7880
      %v7913 = vsub.f32 %v7781, %v7881
      %v7914 = vsub.f32 %v7782, %v7882
      %v7915 = vsub.f32 %v7783, %v7883
      %v7916 = vsub.f32 %v7784, %v7884
      %v7917 = vsub.f32 %v7785, %v7885
      %v7918 = vsub.f32 %v7786, %v7886
      %v7919 = vsub.f32 %v7787, %v7887
      %v7920 = vsub.f32 %v7788, %v7888
      %v7921 = vmul.f32 %v7889, %v7889
      %v7922 = vmul.f32 %v7890, %v7890
      %v7923 = vmul.f32 %v7891, %v7891
      %v7924 = vmul.f32 %v7892, %v7892
      %v7925 = vmul.f32 %v7893, %v7893
      %v7926 = vmul.f32 %v7894, %v7894
      %v7927 = vmul.f32 %v7895, %v7895
      %v7928 = vmul.f32 %v7896, %v7896
      %v7929 = vmul.f32 %v7897, %v7897
      %v7930 = vmul.f32 %v7898, %v7898
      %v7931 = vmul.f32 %v7899, %v7899
      %v7932 = vmul.f32 %v7900, %v7900
      %v7933 = vmul.f32 %v7901, %v7901
      %v7934 = vmul.f32 %v7902, %v7902
      %v7935 = vmul.f32 %v7903, %v7903
      %v7936 = vmul.f32 %v7904, %v7904
      %v7937 = vmul.f32 %v7905, %v7905
      %v7938 = vmul.f32 %v7906, %v7906
      %v7939 = vmul.f32 %v7907, %v7907
      %v7940 = vmul.f32 %v7908, %v7908
      %v7941 = vmul.f32 %v7909, %v7909
      %v7942 = vmul.f32 %v7910, %v7910
      %v7943 = vmul.f32 %v7911, %v7911
      %v7944 = vmul.f32 %v7912, %v7912
      %v7945 = vmul.f32 %v7913, %v7913
      %v7946 = vmul.f32 %v7914, %v7914
      %v7947 = vmul.f32 %v7915, %v7915
      %v7948 = vmul.f32 %v7916, %v7916
      %v7949 = vmul.f32 %v7917, %v7917
      %v7950 = vmul.f32 %v7918, %v7918
      %v7951 = vmul.f32 %v7919, %v7919
      %v7952 = vmul.f32 %v7920, %v7920
      %7953 = vadd.xlane.f32.xlu0 %v7921
      %v7954 = vpop.xlane.xlu0 %7953
      %7955 = vadd.xlane.f32.xlu0 %v7922
      %v7956 = vpop.xlane.xlu0 %7955
      %7957 = vadd.xlane.f32.xlu0 %v7923
      %v7958 = vpop.xlane.xlu0 %7957
      %7959 = vadd.xlane.f32.xlu0 %v7924
      %v7960 = vpop.xlane.xlu0 %7959
      %7961 = vadd.xlane.f32.xlu0 %v7925
      %v7962 = vpop.xlane.xlu0 %7961
      %7963 = vadd.xlane.f32.xlu0 %v7926
      %v7964 = vpop.xlane.xlu0 %7963
      %7965 = vadd.xlane.f32.xlu0 %v7927
      %v7966 = vpop.xlane.xlu0 %7965
      %7967 = vadd.xlane.f32.xlu0 %v7928
      %v7968 = vpop.xlane.xlu0 %7967
      %7969 = vadd.xlane.f32.xlu0 %v7929
      %v7970 = vpop.xlane.xlu0 %7969
      %7971 = vadd.xlane.f32.xlu0 %v7930
      %v7972 = vpop.xlane.xlu0 %7971
      %7973 = vadd.xlane.f32.xlu0 %v7931
      %v7974 = vpop.xlane.xlu0 %7973
      %7975 = vadd.xlane.f32.xlu0 %v7932
      %v7976 = vpop.xlane.xlu0 %7975
      %7977 = vadd.xlane.f32.xlu0 %v7933
      %v7978 = vpop.xlane.xlu0 %7977
      %7979 = vadd.xlane.f32.xlu0 %v7934
      %v7980 = vpop.xlane.xlu0 %7979
      %7981 = vadd.xlane.f32.xlu0 %v7935
      %v7982 = vpop.xlane.xlu0 %7981
      %7983 = vadd.xlane.f32.xlu0 %v7936
      %v7984 = vpop.xlane.xlu0 %7983
      %7985 = vadd.xlane.f32.xlu0 %v7937
      %v7986 = vpop.xlane.xlu0 %7985
      %7987 = vadd.xlane.f32.xlu0 %v7938
      %v7988 = vpop.xlane.xlu0 %7987
      %7989 = vadd.xlane.f32.xlu0 %v7939
      %v7990 = vpop.xlane.xlu0 %7989
      %7991 = vadd.xlane.f32.xlu0 %v7940
      %v7992 = vpop.xlane.xlu0 %7991
      %7993 = vadd.xlane.f32.xlu0 %v7941
      %v7994 = vpop.xlane.xlu0 %7993
      %7995 = vadd.xlane.f32.xlu0 %v7942
      %v7996 = vpop.xlane.xlu0 %7995
      %7997 = vadd.xlane.f32.xlu0 %v7943
      %v7998 = vpop.xlane.xlu0 %7997
      %7999 = vadd.xlane.f32.xlu0 %v7944
      %v8000 = vpop.xlane.xlu0 %7999
      %8001 = vadd.xlane.f32.xlu0 %v7945
      %v8002 = vpop.xlane.xlu0 %8001
      %8003 = vadd.xlane.f32.xlu0 %v7946
      %v8004 = vpop.xlane.xlu0 %8003
      %8005 = vadd.xlane.f32.xlu0 %v7947
      %v8006 = vpop.xlane.xlu0 %8005
      %8007 = vadd.xlane.f32.xlu0 %v7948
      %v8008 = vpop.xlane.xlu0 %8007
      %8009 = vadd.xlane.f32.xlu0 %v7949
      %v8010 = vpop.xlane.xlu0 %8009
      %8011 = vadd.xlane.f32.xlu0 %v7950
      %v8012 = vpop.xlane.xlu0 %8011
      %8013 = vadd.xlane.f32.xlu0 %v7951
      %v8014 = vpop.xlane.xlu0 %8013
      %8015 = vadd.xlane.f32.xlu0 %v7952
      %v8016 = vpop.xlane.xlu0 %8015
      %v8017 = vmul.f32 %v7954, %v1189
      %v8018 = vmul.f32 %v7956, %v1189
      %v8019 = vmul.f32 %v7958, %v1189
      %v8020 = vmul.f32 %v7960, %v1189
      %v8021 = vmul.f32 %v7962, %v1189
      %v8022 = vmul.f32 %v7964, %v1189
      %v8023 = vmul.f32 %v7966, %v1189
      %v8024 = vmul.f32 %v7968, %v1189
      %v8025 = vmul.f32 %v7970, %v1189
      %v8026 = vmul.f32 %v7972, %v1189
      %v8027 = vmul.f32 %v7974, %v1189
      %v8028 = vmul.f32 %v7976, %v1189
      %v8029 = vmul.f32 %v7978, %v1189
      %v8030 = vmul.f32 %v7980, %v1189
      %v8031 = vmul.f32 %v7982, %v1189
      %v8032 = vmul.f32 %v7984, %v1189
      %v8033 = vmul.f32 %v7986, %v1189
      %v8034 = vmul.f32 %v7988, %v1189
      %v8035 = vmul.f32 %v7990, %v1189
      %v8036 = vmul.f32 %v7992, %v1189
      %v8037 = vmul.f32 %v7994, %v1189
      %v8038 = vmul.f32 %v7996, %v1189
      %v8039 = vmul.f32 %v7998, %v1189
      %v8040 = vmul.f32 %v8000, %v1189
      %v8041 = vmul.f32 %v8002, %v1189
      %v8042 = vmul.f32 %v8004, %v1189
      %v8043 = vmul.f32 %v8006, %v1189
      %v8044 = vmul.f32 %v8008, %v1189
      %v8045 = vmul.f32 %v8010, %v1189
      %v8046 = vmul.f32 %v8012, %v1189
      %v8047 = vmul.f32 %v8014, %v1189
      %v8048 = vmul.f32 %v8016, %v1189
      %v8049 = vadd.f32 %v8017, 1e-06
      %v8050 = vadd.f32 %v8018, 1e-06
      %v8051 = vadd.f32 %v8019, 1e-06
      %v8052 = vadd.f32 %v8020, 1e-06
      %v8053 = vadd.f32 %v8021, 1e-06
      %v8054 = vadd.f32 %v8022, 1e-06
      %v8055 = vadd.f32 %v8023, 1e-06
      %v8056 = vadd.f32 %v8024, 1e-06
      %v8057 = vadd.f32 %v8025, 1e-06
      %v8058 = vadd.f32 %v8026, 1e-06
      %v8059 = vadd.f32 %v8027, 1e-06
      %v8060 = vadd.f32 %v8028, 1e-06
      %v8061 = vadd.f32 %v8029, 1e-06
      %v8062 = vadd.f32 %v8030, 1e-06
      %v8063 = vadd.f32 %v8031, 1e-06
      %v8064 = vadd.f32 %v8032, 1e-06
      %v8065 = vadd.f32 %v8033, 1e-06
      %v8066 = vadd.f32 %v8034, 1e-06
      %v8067 = vadd.f32 %v8035, 1e-06
      %v8068 = vadd.f32 %v8036, 1e-06
      %v8069 = vadd.f32 %v8037, 1e-06
      %v8070 = vadd.f32 %v8038, 1e-06
      %v8071 = vadd.f32 %v8039, 1e-06
      %v8072 = vadd.f32 %v8040, 1e-06
      %v8073 = vadd.f32 %v8041, 1e-06
      %v8074 = vadd.f32 %v8042, 1e-06
      %v8075 = vadd.f32 %v8043, 1e-06
      %v8076 = vadd.f32 %v8044, 1e-06
      %v8077 = vadd.f32 %v8045, 1e-06
      %v8078 = vadd.f32 %v8046, 1e-06
      %v8079 = vadd.f32 %v8047, 1e-06
      %v8080 = vadd.f32 %v8048, 1e-06
      %v8081 = vrsqrt.pop %v8049
      %v8082 = vrsqrt.pop %v8050
      %v8083 = vrsqrt.pop %v8051
      %v8084 = vrsqrt.pop %v8052
      %v8085 = vrsqrt.pop %v8053
      %v8086 = vrsqrt.pop %v8054
      %v8087 = vrsqrt.pop %v8055
      %v8088 = vrsqrt.pop %v8056
      %v8089 = vrsqrt.pop %v8057
      %v8090 = vrsqrt.pop %v8058
      %v8091 = vrsqrt.pop %v8059
      %v8092 = vrsqrt.pop %v8060
      %v8093 = vrsqrt.pop %v8061
      %v8094 = vrsqrt.pop %v8062
      %v8095 = vrsqrt.pop %v8063
      %v8096 = vrsqrt.pop %v8064
      %v8097 = vrsqrt.pop %v8065
      %v8098 = vrsqrt.pop %v8066
      %v8099 = vrsqrt.pop %v8067
      %v8100 = vrsqrt.pop %v8068
      %v8101 = vrsqrt.pop %v8069
      %v8102 = vrsqrt.pop %v8070
      %v8103 = vrsqrt.pop %v8071
      %v8104 = vrsqrt.pop %v8072
      %v8105 = vrsqrt.pop %v8073
      %v8106 = vrsqrt.pop %v8074
      %v8107 = vrsqrt.pop %v8075
      %v8108 = vrsqrt.pop %v8076
      %v8109 = vrsqrt.pop %v8077
      %v8110 = vrsqrt.pop %v8078
      %v8111 = vrsqrt.pop %v8079
      %v8112 = vrsqrt.pop %v8080
      %v8113 = vmul.f32 %v7889, %v8081
      %v8114 = vmul.f32 %v7890, %v8082
      %v8115 = vmul.f32 %v7891, %v8083
      %v8116 = vmul.f32 %v7892, %v8084
      %v8117 = vmul.f32 %v7893, %v8085
      %v8118 = vmul.f32 %v7894, %v8086
      %v8119 = vmul.f32 %v7895, %v8087
      %v8120 = vmul.f32 %v7896, %v8088
      %v8121 = vmul.f32 %v7897, %v8089
      %v8122 = vmul.f32 %v7898, %v8090
      %v8123 = vmul.f32 %v7899, %v8091
      %v8124 = vmul.f32 %v7900, %v8092
      %v8125 = vmul.f32 %v7901, %v8093
      %v8126 = vmul.f32 %v7902, %v8094
      %v8127 = vmul.f32 %v7903, %v8095
      %v8128 = vmul.f32 %v7904, %v8096
      %v8129 = vmul.f32 %v7905, %v8097
      %v8130 = vmul.f32 %v7906, %v8098
      %v8131 = vmul.f32 %v7907, %v8099
      %v8132 = vmul.f32 %v7908, %v8100
      %v8133 = vmul.f32 %v7909, %v8101
      %v8134 = vmul.f32 %v7910, %v8102
      %v8135 = vmul.f32 %v7911, %v8103
      %v8136 = vmul.f32 %v7912, %v8104
      %v8137 = vmul.f32 %v7913, %v8105
      %v8138 = vmul.f32 %v7914, %v8106
      %v8139 = vmul.f32 %v7915, %v8107
      %v8140 = vmul.f32 %v7916, %v8108
      %v8141 = vmul.f32 %v7917, %v8109
      %v8142 = vmul.f32 %v7918, %v8110
      %v8143 = vmul.f32 %v7919, %v8111
      %v8144 = vmul.f32 %v7920, %v8112
      %v8146 = vlaneseq
      %v8147 = vshrl.u32 %v8146, 7
      %v8148 = vsub.s32 0, %v8147
      %v8149 = vrot.slane %v7790, %v8148
      %v8151 = vmul.f32 %v8113, %v8149
      %v8152 = vmul.f32 %v8114, %v8149
      %v8153 = vmul.f32 %v8115, %v8149
      %v8154 = vmul.f32 %v8116, %v8149
      %v8155 = vmul.f32 %v8117, %v8149
      %v8156 = vmul.f32 %v8118, %v8149
      %v8157 = vmul.f32 %v8119, %v8149
      %v8158 = vmul.f32 %v8120, %v8149
      %v8159 = vmul.f32 %v8121, %v8149
      %v8160 = vmul.f32 %v8122, %v8149
      %v8161 = vmul.f32 %v8123, %v8149
      %v8162 = vmul.f32 %v8124, %v8149
      %v8163 = vmul.f32 %v8125, %v8149
      %v8164 = vmul.f32 %v8126, %v8149
      %v8165 = vmul.f32 %v8127, %v8149
      %v8166 = vmul.f32 %v8128, %v8149
      %v8167 = vmul.f32 %v8129, %v8149
      %v8168 = vmul.f32 %v8130, %v8149
      %v8169 = vmul.f32 %v8131, %v8149
      %v8170 = vmul.f32 %v8132, %v8149
      %v8171 = vmul.f32 %v8133, %v8149
      %v8172 = vmul.f32 %v8134, %v8149
      %v8173 = vmul.f32 %v8135, %v8149
      %v8174 = vmul.f32 %v8136, %v8149
      %v8175 = vmul.f32 %v8137, %v8149
      %v8176 = vmul.f32 %v8138, %v8149
      %v8177 = vmul.f32 %v8139, %v8149
      %v8178 = vmul.f32 %v8140, %v8149
      %v8179 = vmul.f32 %v8141, %v8149
      %v8180 = vmul.f32 %v8142, %v8149
      %v8181 = vmul.f32 %v8143, %v8149
      %v8182 = vmul.f32 %v8144, %v8149
      %v8184 = vlaneseq
      %v8185 = vshrl.u32 %v8184, 7
      %v8186 = vsub.s32 0, %v8185
      %v8187 = vrot.slane %v7792, %v8186
      %v8189 = vadd.f32 %v8151, %v8187
      %v8190 = vadd.f32 %v8152, %v8187
      %v8191 = vadd.f32 %v8153, %v8187
      %v8192 = vadd.f32 %v8154, %v8187
      %v8193 = vadd.f32 %v8155, %v8187
      %v8194 = vadd.f32 %v8156, %v8187
      %v8195 = vadd.f32 %v8157, %v8187
      %v8196 = vadd.f32 %v8158, %v8187
      %v8197 = vadd.f32 %v8159, %v8187
      %v8198 = vadd.f32 %v8160, %v8187
      %v8199 = vadd.f32 %v8161, %v8187
      %v8200 = vadd.f32 %v8162, %v8187
      %v8201 = vadd.f32 %v8163, %v8187
      %v8202 = vadd.f32 %v8164, %v8187
      %v8203 = vadd.f32 %v8165, %v8187
      %v8204 = vadd.f32 %v8166, %v8187
      %v8205 = vadd.f32 %v8167, %v8187
      %v8206 = vadd.f32 %v8168, %v8187
      %v8207 = vadd.f32 %v8169, %v8187
      %v8208 = vadd.f32 %v8170, %v8187
      %v8209 = vadd.f32 %v8171, %v8187
      %v8210 = vadd.f32 %v8172, %v8187
      %v8211 = vadd.f32 %v8173, %v8187
      %v8212 = vadd.f32 %v8174, %v8187
      %v8213 = vadd.f32 %v8175, %v8187
      %v8214 = vadd.f32 %v8176, %v8187
      %v8215 = vadd.f32 %v8177, %v8187
      %v8216 = vadd.f32 %v8178, %v8187
      %v8217 = vadd.f32 %v8179, %v8187
      %v8218 = vadd.f32 %v8180, %v8187
      %v8219 = vadd.f32 %v8181, %v8187
      %v8220 = vadd.f32 %v8182, %v8187
      %v8221 = vpack.c.bf16 %v8190, %v8189
      %v8222 = vpack.c.bf16 %v8192, %v8191
      %v8223 = vpack.c.bf16 %v8194, %v8193
      %v8224 = vpack.c.bf16 %v8196, %v8195
      %v8225 = vpack.c.bf16 %v8198, %v8197
      %v8226 = vpack.c.bf16 %v8200, %v8199
      %v8227 = vpack.c.bf16 %v8202, %v8201
      %v8228 = vpack.c.bf16 %v8204, %v8203
      %v8229 = vpack.c.bf16 %v8206, %v8205
      %v8230 = vpack.c.bf16 %v8208, %v8207
      %v8231 = vpack.c.bf16 %v8210, %v8209
      %v8232 = vpack.c.bf16 %v8212, %v8211
      %v8233 = vpack.c.bf16 %v8214, %v8213
      %v8234 = vpack.c.bf16 %v8216, %v8215
      %v8235 = vpack.c.bf16 %v8218, %v8217
      %v8236 = vpack.c.bf16 %v8220, %v8219
      %s8237 = scalar_lea.vmem %s12, 128
      %v8238 = vld [vmem:[%s8237] sm:$0xff]
      %v8239 = vld [vmem:[%s8237 + $0x8] sm:$0xff]
      %v8240 = vld [vmem:[%s8237 + $0x10] sm:$0xff]
      %v8241 = vld [vmem:[%s8237 + $0x18] sm:$0xff]
      %v8242 = vld [vmem:[%s8237 + $0x20] sm:$0xff]
      %v8243 = vld [vmem:[%s8237 + $0x28] sm:$0xff]
      %v8244 = vld [vmem:[%s8237 + $0x30] sm:$0xff]
      %v8245 = vld [vmem:[%s8237 + $0x38] sm:$0xff]
      %v8246 = vld [vmem:[%s8237 + $0x40] sm:$0xff]
      %v8247 = vld [vmem:[%s8237 + $0x48] sm:$0xff]
      %v8248 = vld [vmem:[%s8237 + $0x50] sm:$0xff]
      %v8249 = vld [vmem:[%s8237 + $0x58] sm:$0xff]
      %v8250 = vld [vmem:[%s8237 + $0x60] sm:$0xff]
      %v8251 = vld [vmem:[%s8237 + $0x68] sm:$0xff]
      %v8252 = vld [vmem:[%s8237 + $0x70] sm:$0xff]
      %v8253 = vld [vmem:[%s8237 + $0x78] sm:$0xff]
      %s8254 = scalar_lea.vmem %s13, 2
      %v8255 = vld [vmem:[%s8254] sm:$0x3]
      %v8257 = vlaneseq
      %v8258 = vshrl.u32 %v8257, 7
      %v8259 = vsub.s32 0, %v8258
      %v8260 = vrot.slane %v8255, %v8259
      %v8261 = vlaneseq
      %v8262 = vshrl.u32 %v8261, 7
      %v8263 = vsub.s32 1, %v8262
      %v8264 = vrot.slane %v8255, %v8263
      %v8283 = vunpack.c.l.b16 %v8238
      %v8284 = vunpack.c.h.b16 %v8238
      %v8285 = vunpack.c.l.b16 %v8239
      %v8286 = vunpack.c.h.b16 %v8239
      %v8287 = vunpack.c.l.b16 %v8240
      %v8288 = vunpack.c.h.b16 %v8240
      %v8289 = vunpack.c.l.b16 %v8241
      %v8290 = vunpack.c.h.b16 %v8241
      %v8291 = vunpack.c.l.b16 %v8242
      %v8292 = vunpack.c.h.b16 %v8242
      %v8293 = vunpack.c.l.b16 %v8243
      %v8294 = vunpack.c.h.b16 %v8243
      %v8295 = vunpack.c.l.b16 %v8244
      %v8296 = vunpack.c.h.b16 %v8244
      %v8297 = vunpack.c.l.b16 %v8245
      %v8298 = vunpack.c.h.b16 %v8245
      %v8299 = vunpack.c.l.b16 %v8246
      %v8300 = vunpack.c.h.b16 %v8246
      %v8301 = vunpack.c.l.b16 %v8247
      %v8302 = vunpack.c.h.b16 %v8247
      %v8303 = vunpack.c.l.b16 %v8248
      %v8304 = vunpack.c.h.b16 %v8248
      %v8305 = vunpack.c.l.b16 %v8249
      %v8306 = vunpack.c.h.b16 %v8249
      %v8307 = vunpack.c.l.b16 %v8250
      %v8308 = vunpack.c.h.b16 %v8250
      %v8309 = vunpack.c.l.b16 %v8251
      %v8310 = vunpack.c.h.b16 %v8251
      %v8311 = vunpack.c.l.b16 %v8252
      %v8312 = vunpack.c.h.b16 %v8252
      %v8313 = vunpack.c.l.b16 %v8253
      %v8314 = vunpack.c.h.b16 %v8253
      %v8315 = vpack.c.b16 %v8285, %v8283
      %v8316 = vpack.c.b16 %v8286, %v8284
      %v8317 = vpack.c.b16 %v8289, %v8287
      %v8318 = vpack.c.b16 %v8290, %v8288
      %v8319 = vpack.c.b16 %v8293, %v8291
      %v8320 = vpack.c.b16 %v8294, %v8292
      %v8321 = vpack.c.b16 %v8297, %v8295
      %v8322 = vpack.c.b16 %v8298, %v8296
      %v8323 = vpack.c.b16 %v8301, %v8299
      %v8324 = vpack.c.b16 %v8302, %v8300
      %v8325 = vpack.c.b16 %v8305, %v8303
      %v8326 = vpack.c.b16 %v8306, %v8304
      %v8327 = vpack.c.b16 %v8309, %v8307
      %v8328 = vpack.c.b16 %v8310, %v8308
      %v8329 = vpack.c.b16 %v8313, %v8311
      %v8330 = vpack.c.b16 %v8314, %v8312
      %8347 = vmatprep.subr.bf16.mxu0 %v8330
      %8348 = vmatpush1.bf16.msra.mxu0 %v8329
      %8349 = vmatprep.subr.bf16.mxu0 %v8328
      %8350 = vmatpush1.bf16.msra.mxu0 %v8327
      %8351 = vmatprep.subr.bf16.mxu0 %v8326
      %8352 = vmatpush1.bf16.msra.mxu0 %v8325
      %8353 = vmatprep.subr.bf16.mxu0 %v8324
      %8354 = vmatpush1.bf16.msra.mxu0 %v8323
      %8355 = vmatprep.subr.bf16.mxu0 %v8322
      %8356 = vmatpush1.bf16.msra.mxu0 %v8321
      %8357 = vmatprep.subr.bf16.mxu0 %v8320
      %8358 = vmatpush1.bf16.msra.mxu0 %v8319
      %8359 = vmatprep.subr.bf16.mxu0 %v8318
      %8360 = vmatpush1.bf16.msra.mxu0 %v8317
      %8361 = vmatprep.subr.bf16.mxu0 %v8316
      %8362 = vmatpush1.bf16.msra.mxu0 %v8315
      %8363 = vmatprep.subr.bf16.mxu0 0
      %8364 = vmatpush2.bf16.msra.mxu0 0
      %8365 = vmatprep.subr.bf16.mxu0 0
      %8366 = vmatpush2.bf16.msra.mxu0 0
      %8367 = vmatprep.subr.bf16.mxu0 0
      %8368 = vmatpush2.bf16.msra.mxu0 0
      %8369 = vmatprep.subr.bf16.mxu0 0
      %8370 = vmatpush2.bf16.msra.mxu0 0
      %8371 = vmatprep.subr.bf16.mxu0 0
      %8372 = vmatpush2.bf16.msra.mxu0 0
      %8373 = vmatprep.subr.bf16.mxu0 0
      %8374 = vmatpush2.bf16.msra.mxu0 0
      %8375 = vmatprep.subr.bf16.mxu0 0
      %8376 = vmatpush2.bf16.msra.mxu0 0
      %8377 = vmatprep.subr.bf16.mxu0 0
      %8378 = vmatpush2.bf16.msra.mxu0 0
      %8379 = vmatprep.mubr.bf16.mxu0 0
      %8380 = vmatmul.mubr.bf16.gmra.mxu0 %v8221
      %v8381 = vpop.f32.mrf.mxu0
      %v8382 = vadd.f32 %v8260, %v8381
      %v8383 = vpop.f32.mrf.mxu0
      %v8384 = vadd.f32 %v8264, %v8383
      %v8385 = vpop.f32.mrf.mxu0
      %v8386 = vadd.f32 %v8260, %v8385
      %v8387 = vpop.f32.mrf.mxu0
      %v8388 = vadd.f32 %v8264, %v8387
      %8389 = vmatprep.mubr.bf16.mxu0 0
      %8390 = vmatmul.mubr.bf16.gmra.mxu0 %v8222
      %v8391 = vpop.f32.mrf.mxu0
      %v8392 = vadd.f32 %v8260, %v8391
      %v8393 = vpop.f32.mrf.mxu0
      %v8394 = vadd.f32 %v8264, %v8393
      %v8395 = vpop.f32.mrf.mxu0
      %v8396 = vadd.f32 %v8260, %v8395
      %v8397 = vpop.f32.mrf.mxu0
      %v8398 = vadd.f32 %v8264, %v8397
      %8399 = vmatprep.mubr.bf16.mxu0 0
      %8400 = vmatmul.mubr.bf16.gmra.mxu0 %v8223
      %v8401 = vpop.f32.mrf.mxu0
      %v8402 = vadd.f32 %v8260, %v8401
      %v8403 = vpop.f32.mrf.mxu0
      %v8404 = vadd.f32 %v8264, %v8403
      %v8405 = vpop.f32.mrf.mxu0
      %v8406 = vadd.f32 %v8260, %v8405
      %v8407 = vpop.f32.mrf.mxu0
      %v8408 = vadd.f32 %v8264, %v8407
      %8409 = vmatprep.mubr.bf16.mxu0 0
      %8410 = vmatmul.mubr.bf16.gmra.mxu0 %v8224
      %v8411 = vpop.f32.mrf.mxu0
      %v8412 = vadd.f32 %v8260, %v8411
      %v8413 = vpop.f32.mrf.mxu0
      %v8414 = vadd.f32 %v8264, %v8413
      %v8415 = vpop.f32.mrf.mxu0
      %v8416 = vadd.f32 %v8260, %v8415
      %v8417 = vpop.f32.mrf.mxu0
      %v8418 = vadd.f32 %v8264, %v8417
      %8419 = vmatprep.mubr.bf16.mxu0 0
      %8420 = vmatmul.mubr.bf16.gmra.mxu0 %v8225
      %v8421 = vpop.f32.mrf.mxu0
      %v8422 = vadd.f32 %v8260, %v8421
      %v8423 = vpop.f32.mrf.mxu0
      %v8424 = vadd.f32 %v8264, %v8423
      %v8425 = vpop.f32.mrf.mxu0
      %v8426 = vadd.f32 %v8260, %v8425
      %v8427 = vpop.f32.mrf.mxu0
      %v8428 = vadd.f32 %v8264, %v8427
      %8429 = vmatprep.mubr.bf16.mxu0 0
      %8430 = vmatmul.mubr.bf16.gmra.mxu0 %v8226
      %v8431 = vpop.f32.mrf.mxu0
      %v8432 = vadd.f32 %v8260, %v8431
      %v8433 = vpop.f32.mrf.mxu0
      %v8434 = vadd.f32 %v8264, %v8433
      %v8435 = vpop.f32.mrf.mxu0
      %v8436 = vadd.f32 %v8260, %v8435
      %v8437 = vpop.f32.mrf.mxu0
      %v8438 = vadd.f32 %v8264, %v8437
      %8439 = vmatprep.mubr.bf16.mxu0 0
      %8440 = vmatmul.mubr.bf16.gmra.mxu0 %v8227
      %v8441 = vpop.f32.mrf.mxu0
      %v8442 = vadd.f32 %v8260, %v8441
      %v8443 = vpop.f32.mrf.mxu0
      %v8444 = vadd.f32 %v8264, %v8443
      %v8445 = vpop.f32.mrf.mxu0
      %v8446 = vadd.f32 %v8260, %v8445
      %v8447 = vpop.f32.mrf.mxu0
      %v8448 = vadd.f32 %v8264, %v8447
      %8449 = vmatprep.mubr.bf16.mxu0 0
      %8450 = vmatmul.mubr.bf16.gmra.mxu0 %v8228
      %v8451 = vpop.f32.mrf.mxu0
      %v8452 = vadd.f32 %v8260, %v8451
      %v8453 = vpop.f32.mrf.mxu0
      %v8454 = vadd.f32 %v8264, %v8453
      %v8455 = vpop.f32.mrf.mxu0
      %v8456 = vadd.f32 %v8260, %v8455
      %v8457 = vpop.f32.mrf.mxu0
      %v8458 = vadd.f32 %v8264, %v8457
      %8459 = vmatprep.mubr.bf16.mxu0 0
      %8460 = vmatmul.mubr.bf16.gmra.mxu0 %v8229
      %v8461 = vpop.f32.mrf.mxu0
      %v8462 = vadd.f32 %v8260, %v8461
      %v8463 = vpop.f32.mrf.mxu0
      %v8464 = vadd.f32 %v8264, %v8463
      %v8465 = vpop.f32.mrf.mxu0
      %v8466 = vadd.f32 %v8260, %v8465
      %v8467 = vpop.f32.mrf.mxu0
      %v8468 = vadd.f32 %v8264, %v8467
      %8469 = vmatprep.mubr.bf16.mxu0 0
      %8470 = vmatmul.mubr.bf16.gmra.mxu0 %v8230
      %v8471 = vpop.f32.mrf.mxu0
      %v8472 = vadd.f32 %v8260, %v8471
      %v8473 = vpop.f32.mrf.mxu0
      %v8474 = vadd.f32 %v8264, %v8473
      %v8475 = vpop.f32.mrf.mxu0
      %v8476 = vadd.f32 %v8260, %v8475
      %v8477 = vpop.f32.mrf.mxu0
      %v8478 = vadd.f32 %v8264, %v8477
      %8479 = vmatprep.mubr.bf16.mxu0 0
      %8480 = vmatmul.mubr.bf16.gmra.mxu0 %v8231
      %v8481 = vpop.f32.mrf.mxu0
      %v8482 = vadd.f32 %v8260, %v8481
      %v8483 = vpop.f32.mrf.mxu0
      %v8484 = vadd.f32 %v8264, %v8483
      %v8485 = vpop.f32.mrf.mxu0
      %v8486 = vadd.f32 %v8260, %v8485
      %v8487 = vpop.f32.mrf.mxu0
      %v8488 = vadd.f32 %v8264, %v8487
      %8489 = vmatprep.mubr.bf16.mxu0 0
      %8490 = vmatmul.mubr.bf16.gmra.mxu0 %v8232
      %v8491 = vpop.f32.mrf.mxu0
      %v8492 = vadd.f32 %v8260, %v8491
      %v8493 = vpop.f32.mrf.mxu0
      %v8494 = vadd.f32 %v8264, %v8493
      %v8495 = vpop.f32.mrf.mxu0
      %v8496 = vadd.f32 %v8260, %v8495
      %v8497 = vpop.f32.mrf.mxu0
      %v8498 = vadd.f32 %v8264, %v8497
      %8499 = vmatprep.mubr.bf16.mxu0 0
      %8500 = vmatmul.mubr.bf16.gmra.mxu0 %v8233
      %v8501 = vpop.f32.mrf.mxu0
      %v8502 = vadd.f32 %v8260, %v8501
      %v8503 = vpop.f32.mrf.mxu0
      %v8504 = vadd.f32 %v8264, %v8503
      %v8505 = vpop.f32.mrf.mxu0
      %v8506 = vadd.f32 %v8260, %v8505
      %v8507 = vpop.f32.mrf.mxu0
      %v8508 = vadd.f32 %v8264, %v8507
      %8509 = vmatprep.mubr.bf16.mxu0 0
      %8510 = vmatmul.mubr.bf16.gmra.mxu0 %v8234
      %v8511 = vpop.f32.mrf.mxu0
      %v8512 = vadd.f32 %v8260, %v8511
      %v8513 = vpop.f32.mrf.mxu0
      %v8514 = vadd.f32 %v8264, %v8513
      %v8515 = vpop.f32.mrf.mxu0
      %v8516 = vadd.f32 %v8260, %v8515
      %v8517 = vpop.f32.mrf.mxu0
      %v8518 = vadd.f32 %v8264, %v8517
      %8519 = vmatprep.mubr.bf16.mxu0 0
      %8520 = vmatmul.mubr.bf16.gmra.mxu0 %v8235
      %v8521 = vpop.f32.mrf.mxu0
      %v8522 = vadd.f32 %v8260, %v8521
      %v8523 = vpop.f32.mrf.mxu0
      %v8524 = vadd.f32 %v8264, %v8523
      %v8525 = vpop.f32.mrf.mxu0
      %v8526 = vadd.f32 %v8260, %v8525
      %v8527 = vpop.f32.mrf.mxu0
      %v8528 = vadd.f32 %v8264, %v8527
      %8529 = vmatprep.mubr.bf16.mxu0 0
      %8530 = vmatmul.mubr.bf16.gmra.mxu0 %v8236
      %v8531 = vpop.f32.mrf.mxu0
      %v8532 = vadd.f32 %v8260, %v8531
      %v8533 = vpop.f32.mrf.mxu0
      %v8534 = vadd.f32 %v8264, %v8533
      %v8535 = vpop.f32.mrf.mxu0
      %v8536 = vadd.f32 %v8260, %v8535
      %v8537 = vpop.f32.mrf.mxu0
      %v8538 = vadd.f32 %v8264, %v8537
      %8539 = vdwg.mxu0
      %v8540 = vmul.f32 %v8382, %v8382
      %v8541 = vmul.f32 %v8384, %v8384
      %v8542 = vmul.f32 %v8386, %v8386
      %v8543 = vmul.f32 %v8388, %v8388
      %v8544 = vmul.f32 %v8392, %v8392
      %v8545 = vmul.f32 %v8394, %v8394
      %v8546 = vmul.f32 %v8396, %v8396
      %v8547 = vmul.f32 %v8398, %v8398
      %v8548 = vmul.f32 %v8402, %v8402
      %v8549 = vmul.f32 %v8404, %v8404
      %v8550 = vmul.f32 %v8406, %v8406
      %v8551 = vmul.f32 %v8408, %v8408
      %v8552 = vmul.f32 %v8412, %v8412
      %v8553 = vmul.f32 %v8414, %v8414
      %v8554 = vmul.f32 %v8416, %v8416
      %v8555 = vmul.f32 %v8418, %v8418
      %v8556 = vmul.f32 %v8422, %v8422
      %v8557 = vmul.f32 %v8424, %v8424
      %v8558 = vmul.f32 %v8426, %v8426
      %v8559 = vmul.f32 %v8428, %v8428
      %v8560 = vmul.f32 %v8432, %v8432
      %v8561 = vmul.f32 %v8434, %v8434
      %v8562 = vmul.f32 %v8436, %v8436
      %v8563 = vmul.f32 %v8438, %v8438
      %v8564 = vmul.f32 %v8442, %v8442
      %v8565 = vmul.f32 %v8444, %v8444
      %v8566 = vmul.f32 %v8446, %v8446
      %v8567 = vmul.f32 %v8448, %v8448
      %v8568 = vmul.f32 %v8452, %v8452
      %v8569 = vmul.f32 %v8454, %v8454
      %v8570 = vmul.f32 %v8456, %v8456
      %v8571 = vmul.f32 %v8458, %v8458
      %v8572 = vmul.f32 %v8462, %v8462
      %v8573 = vmul.f32 %v8464, %v8464
      %v8574 = vmul.f32 %v8466, %v8466
      %v8575 = vmul.f32 %v8468, %v8468
      %v8576 = vmul.f32 %v8472, %v8472
      %v8577 = vmul.f32 %v8474, %v8474
      %v8578 = vmul.f32 %v8476, %v8476
      %v8579 = vmul.f32 %v8478, %v8478
      %v8580 = vmul.f32 %v8482, %v8482
      %v8581 = vmul.f32 %v8484, %v8484
      %v8582 = vmul.f32 %v8486, %v8486
      %v8583 = vmul.f32 %v8488, %v8488
      %v8584 = vmul.f32 %v8492, %v8492
      %v8585 = vmul.f32 %v8494, %v8494
      %v8586 = vmul.f32 %v8496, %v8496
      %v8587 = vmul.f32 %v8498, %v8498
      %v8588 = vmul.f32 %v8502, %v8502
      %v8589 = vmul.f32 %v8504, %v8504
      %v8590 = vmul.f32 %v8506, %v8506
      %v8591 = vmul.f32 %v8508, %v8508
      %v8592 = vmul.f32 %v8512, %v8512
      %v8593 = vmul.f32 %v8514, %v8514
      %v8594 = vmul.f32 %v8516, %v8516
      %v8595 = vmul.f32 %v8518, %v8518
      %v8596 = vmul.f32 %v8522, %v8522
      %v8597 = vmul.f32 %v8524, %v8524
      %v8598 = vmul.f32 %v8526, %v8526
      %v8599 = vmul.f32 %v8528, %v8528
      %v8600 = vmul.f32 %v8532, %v8532
      %v8601 = vmul.f32 %v8534, %v8534
      %v8602 = vmul.f32 %v8536, %v8536
      %v8603 = vmul.f32 %v8538, %v8538
      %v8604 = vmul.f32 %v8382, %v8540
      %v8605 = vmul.f32 %v8384, %v8541
      %v8606 = vmul.f32 %v8386, %v8542
      %v8607 = vmul.f32 %v8388, %v8543
      %v8608 = vmul.f32 %v8392, %v8544
      %v8609 = vmul.f32 %v8394, %v8545
      %v8610 = vmul.f32 %v8396, %v8546
      %v8611 = vmul.f32 %v8398, %v8547
      %v8612 = vmul.f32 %v8402, %v8548
      %v8613 = vmul.f32 %v8404, %v8549
      %v8614 = vmul.f32 %v8406, %v8550
      %v8615 = vmul.f32 %v8408, %v8551
      %v8616 = vmul.f32 %v8412, %v8552
      %v8617 = vmul.f32 %v8414, %v8553
      %v8618 = vmul.f32 %v8416, %v8554
      %v8619 = vmul.f32 %v8418, %v8555
      %v8620 = vmul.f32 %v8422, %v8556
      %v8621 = vmul.f32 %v8424, %v8557
      %v8622 = vmul.f32 %v8426, %v8558
      %v8623 = vmul.f32 %v8428, %v8559
      %v8624 = vmul.f32 %v8432, %v8560
      %v8625 = vmul.f32 %v8434, %v8561
      %v8626 = vmul.f32 %v8436, %v8562
      %v8627 = vmul.f32 %v8438, %v8563
      %v8628 = vmul.f32 %v8442, %v8564
      %v8629 = vmul.f32 %v8444, %v8565
      %v8630 = vmul.f32 %v8446, %v8566
      %v8631 = vmul.f32 %v8448, %v8567
      %v8632 = vmul.f32 %v8452, %v8568
      %v8633 = vmul.f32 %v8454, %v8569
      %v8634 = vmul.f32 %v8456, %v8570
      %v8635 = vmul.f32 %v8458, %v8571
      %v8636 = vmul.f32 %v8462, %v8572
      %v8637 = vmul.f32 %v8464, %v8573
      %v8638 = vmul.f32 %v8466, %v8574
      %v8639 = vmul.f32 %v8468, %v8575
      %v8640 = vmul.f32 %v8472, %v8576
      %v8641 = vmul.f32 %v8474, %v8577
      %v8642 = vmul.f32 %v8476, %v8578
      %v8643 = vmul.f32 %v8478, %v8579
      %v8644 = vmul.f32 %v8482, %v8580
      %v8645 = vmul.f32 %v8484, %v8581
      %v8646 = vmul.f32 %v8486, %v8582
      %v8647 = vmul.f32 %v8488, %v8583
      %v8648 = vmul.f32 %v8492, %v8584
      %v8649 = vmul.f32 %v8494, %v8585
      %v8650 = vmul.f32 %v8496, %v8586
      %v8651 = vmul.f32 %v8498, %v8587
      %v8652 = vmul.f32 %v8502, %v8588
      %v8653 = vmul.f32 %v8504, %v8589
      %v8654 = vmul.f32 %v8506, %v8590
      %v8655 = vmul.f32 %v8508, %v8591
      %v8656 = vmul.f32 %v8512, %v8592
      %v8657 = vmul.f32 %v8514, %v8593
      %v8658 = vmul.f32 %v8516, %v8594
      %v8659 = vmul.f32 %v8518, %v8595
      %v8660 = vmul.f32 %v8522, %v8596
      %v8661 = vmul.f32 %v8524, %v8597
      %v8662 = vmul.f32 %v8526, %v8598
      %v8663 = vmul.f32 %v8528, %v8599
      %v8664 = vmul.f32 %v8532, %v8600
      %v8665 = vmul.f32 %v8534, %v8601
      %v8666 = vmul.f32 %v8536, %v8602
      %v8667 = vmul.f32 %v8538, %v8603
      %v8668 = vmul.f32 %v8604, 0.044715
      %v8669 = vmul.f32 %v8605, 0.044715
      %v8670 = vmul.f32 %v8606, 0.044715
      %v8671 = vmul.f32 %v8607, 0.044715
      %v8672 = vmul.f32 %v8608, 0.044715
      %v8673 = vmul.f32 %v8609, 0.044715
      %v8674 = vmul.f32 %v8610, 0.044715
      %v8675 = vmul.f32 %v8611, 0.044715
      %v8676 = vmul.f32 %v8612, 0.044715
      %v8677 = vmul.f32 %v8613, 0.044715
      %v8678 = vmul.f32 %v8614, 0.044715
      %v8679 = vmul.f32 %v8615, 0.044715
      %v8680 = vmul.f32 %v8616, 0.044715
      %v8681 = vmul.f32 %v8617, 0.044715
      %v8682 = vmul.f32 %v8618, 0.044715
      %v8683 = vmul.f32 %v8619, 0.044715
      %v8684 = vmul.f32 %v8620, 0.044715
      %v8685 = vmul.f32 %v8621, 0.044715
      %v8686 = vmul.f32 %v8622, 0.044715
      %v8687 = vmul.f32 %v8623, 0.044715
      %v8688 = vmul.f32 %v8624, 0.044715
      %v8689 = vmul.f32 %v8625, 0.044715
      %v8690 = vmul.f32 %v8626, 0.044715
      %v8691 = vmul.f32 %v8627, 0.044715
      %v8692 = vmul.f32 %v8628, 0.044715
      %v8693 = vmul.f32 %v8629, 0.044715
      %v8694 = vmul.f32 %v8630, 0.044715
      %v8695 = vmul.f32 %v8631, 0.044715
      %v8696 = vmul.f32 %v8632, 0.044715
      %v8697 = vmul.f32 %v8633, 0.044715
      %v8698 = vmul.f32 %v8634, 0.044715
      %v8699 = vmul.f32 %v8635, 0.044715
      %v8700 = vmul.f32 %v8636, 0.044715
      %v8701 = vmul.f32 %v8637, 0.044715
      %v8702 = vmul.f32 %v8638, 0.044715
      %v8703 = vmul.f32 %v8639, 0.044715
      %v8704 = vmul.f32 %v8640, 0.044715
      %v8705 = vmul.f32 %v8641, 0.044715
      %v8706 = vmul.f32 %v8642, 0.044715
      %v8707 = vmul.f32 %v8643, 0.044715
      %v8708 = vmul.f32 %v8644, 0.044715
      %v8709 = vmul.f32 %v8645, 0.044715
      %v8710 = vmul.f32 %v8646, 0.044715
      %v8711 = vmul.f32 %v8647, 0.044715
      %v8712 = vmul.f32 %v8648, 0.044715
      %v8713 = vmul.f32 %v8649, 0.044715
      %v8714 = vmul.f32 %v8650, 0.044715
      %v8715 = vmul.f32 %v8651, 0.044715
      %v8716 = vmul.f32 %v8652, 0.044715
      %v8717 = vmul.f32 %v8653, 0.044715
      %v8718 = vmul.f32 %v8654, 0.044715
      %v8719 = vmul.f32 %v8655, 0.044715
      %v8720 = vmul.f32 %v8656, 0.044715
      %v8721 = vmul.f32 %v8657, 0.044715
      %v8722 = vmul.f32 %v8658, 0.044715
      %v8723 = vmul.f32 %v8659, 0.044715
      %v8724 = vmul.f32 %v8660, 0.044715
      %v8725 = vmul.f32 %v8661, 0.044715
      %v8726 = vmul.f32 %v8662, 0.044715
      %v8727 = vmul.f32 %v8663, 0.044715
      %v8728 = vmul.f32 %v8664, 0.044715
      %v8729 = vmul.f32 %v8665, 0.044715
      %v8730 = vmul.f32 %v8666, 0.044715
      %v8731 = vmul.f32 %v8667, 0.044715
      %v8732 = vadd.f32 %v8382, %v8668
      %v8733 = vadd.f32 %v8384, %v8669
      %v8734 = vadd.f32 %v8386, %v8670
      %v8735 = vadd.f32 %v8388, %v8671
      %v8736 = vadd.f32 %v8392, %v8672
      %v8737 = vadd.f32 %v8394, %v8673
      %v8738 = vadd.f32 %v8396, %v8674
      %v8739 = vadd.f32 %v8398, %v8675
      %v8740 = vadd.f32 %v8402, %v8676
      %v8741 = vadd.f32 %v8404, %v8677
      %v8742 = vadd.f32 %v8406, %v8678
      %v8743 = vadd.f32 %v8408, %v8679
      %v8744 = vadd.f32 %v8412, %v8680
      %v8745 = vadd.f32 %v8414, %v8681
      %v8746 = vadd.f32 %v8416, %v8682
      %v8747 = vadd.f32 %v8418, %v8683
      %v8748 = vadd.f32 %v8422, %v8684
      %v8749 = vadd.f32 %v8424, %v8685
      %v8750 = vadd.f32 %v8426, %v8686
      %v8751 = vadd.f32 %v8428, %v8687
      %v8752 = vadd.f32 %v8432, %v8688
      %v8753 = vadd.f32 %v8434, %v8689
      %v8754 = vadd.f32 %v8436, %v8690
      %v8755 = vadd.f32 %v8438, %v8691
      %v8756 = vadd.f32 %v8442, %v8692
      %v8757 = vadd.f32 %v8444, %v8693
      %v8758 = vadd.f32 %v8446, %v8694
      %v8759 = vadd.f32 %v8448, %v8695
      %v8760 = vadd.f32 %v8452, %v8696
      %v8761 = vadd.f32 %v8454, %v8697
      %v8762 = vadd.f32 %v8456, %v8698
      %v8763 = vadd.f32 %v8458, %v8699
      %v8764 = vadd.f32 %v8462, %v8700
      %v8765 = vadd.f32 %v8464, %v8701
      %v8766 = vadd.f32 %v8466, %v8702
      %v8767 = vadd.f32 %v8468, %v8703
      %v8768 = vadd.f32 %v8472, %v8704
      %v8769 = vadd.f32 %v8474, %v8705
      %v8770 = vadd.f32 %v8476, %v8706
      %v8771 = vadd.f32 %v8478, %v8707
      %v8772 = vadd.f32 %v8482, %v8708
      %v8773 = vadd.f32 %v8484, %v8709
      %v8774 = vadd.f32 %v8486, %v8710
      %v8775 = vadd.f32 %v8488, %v8711
      %v8776 = vadd.f32 %v8492, %v8712
      %v8777 = vadd.f32 %v8494, %v8713
      %v8778 = vadd.f32 %v8496, %v8714
      %v8779 = vadd.f32 %v8498, %v8715
      %v8780 = vadd.f32 %v8502, %v8716
      %v8781 = vadd.f32 %v8504, %v8717
      %v8782 = vadd.f32 %v8506, %v8718
      %v8783 = vadd.f32 %v8508, %v8719
      %v8784 = vadd.f32 %v8512, %v8720
      %v8785 = vadd.f32 %v8514, %v8721
      %v8786 = vadd.f32 %v8516, %v8722
      %v8787 = vadd.f32 %v8518, %v8723
      %v8788 = vadd.f32 %v8522, %v8724
      %v8789 = vadd.f32 %v8524, %v8725
      %v8790 = vadd.f32 %v8526, %v8726
      %v8791 = vadd.f32 %v8528, %v8727
      %v8792 = vadd.f32 %v8532, %v8728
      %v8793 = vadd.f32 %v8534, %v8729
      %v8794 = vadd.f32 %v8536, %v8730
      %v8795 = vadd.f32 %v8538, %v8731
      %v8796 = vmul.f32 %v8732, 0.7978846
      %v8797 = vmul.f32 %v8733, 0.7978846
      %v8798 = vmul.f32 %v8734, 0.7978846
      %v8799 = vmul.f32 %v8735, 0.7978846
      %v8800 = vmul.f32 %v8736, 0.7978846
      %v8801 = vmul.f32 %v8737, 0.7978846
      %v8802 = vmul.f32 %v8738, 0.7978846
      %v8803 = vmul.f32 %v8739, 0.7978846
      %v8804 = vmul.f32 %v8740, 0.7978846
      %v8805 = vmul.f32 %v8741, 0.7978846
      %v8806 = vmul.f32 %v8742, 0.7978846
      %v8807 = vmul.f32 %v8743, 0.7978846
      %v8808 = vmul.f32 %v8744, 0.7978846
      %v8809 = vmul.f32 %v8745, 0.7978846
      %v8810 = vmul.f32 %v8746, 0.7978846
      %v8811 = vmul.f32 %v8747, 0.7978846
      %v8812 = vmul.f32 %v8748, 0.7978846
      %v8813 = vmul.f32 %v8749, 0.7978846
      %v8814 = vmul.f32 %v8750, 0.7978846
      %v8815 = vmul.f32 %v8751, 0.7978846
      %v8816 = vmul.f32 %v8752, 0.7978846
      %v8817 = vmul.f32 %v8753, 0.7978846
      %v8818 = vmul.f32 %v8754, 0.7978846
      %v8819 = vmul.f32 %v8755, 0.7978846
      %v8820 = vmul.f32 %v8756, 0.7978846
      %v8821 = vmul.f32 %v8757, 0.7978846
      %v8822 = vmul.f32 %v8758, 0.7978846
      %v8823 = vmul.f32 %v8759, 0.7978846
      %v8824 = vmul.f32 %v8760, 0.7978846
      %v8825 = vmul.f32 %v8761, 0.7978846
      %v8826 = vmul.f32 %v8762, 0.7978846
      %v8827 = vmul.f32 %v8763, 0.7978846
      %v8828 = vmul.f32 %v8764, 0.7978846
      %v8829 = vmul.f32 %v8765, 0.7978846
      %v8830 = vmul.f32 %v8766, 0.7978846
      %v8831 = vmul.f32 %v8767, 0.7978846
      %v8832 = vmul.f32 %v8768, 0.7978846
      %v8833 = vmul.f32 %v8769, 0.7978846
      %v8834 = vmul.f32 %v8770, 0.7978846
      %v8835 = vmul.f32 %v8771, 0.7978846
      %v8836 = vmul.f32 %v8772, 0.7978846
      %v8837 = vmul.f32 %v8773, 0.7978846
      %v8838 = vmul.f32 %v8774, 0.7978846
      %v8839 = vmul.f32 %v8775, 0.7978846
      %v8840 = vmul.f32 %v8776, 0.7978846
      %v8841 = vmul.f32 %v8777, 0.7978846
      %v8842 = vmul.f32 %v8778, 0.7978846
      %v8843 = vmul.f32 %v8779, 0.7978846
      %v8844 = vmul.f32 %v8780, 0.7978846
      %v8845 = vmul.f32 %v8781, 0.7978846
      %v8846 = vmul.f32 %v8782, 0.7978846
      %v8847 = vmul.f32 %v8783, 0.7978846
      %v8848 = vmul.f32 %v8784, 0.7978846
      %v8849 = vmul.f32 %v8785, 0.7978846
      %v8850 = vmul.f32 %v8786, 0.7978846
      %v8851 = vmul.f32 %v8787, 0.7978846
      %v8852 = vmul.f32 %v8788, 0.7978846
      %v8853 = vmul.f32 %v8789, 0.7978846
      %v8854 = vmul.f32 %v8790, 0.7978846
      %v8855 = vmul.f32 %v8791, 0.7978846
      %v8856 = vmul.f32 %v8792, 0.7978846
      %v8857 = vmul.f32 %v8793, 0.7978846
      %v8858 = vmul.f32 %v8794, 0.7978846
      %v8859 = vmul.f32 %v8795, 0.7978846
      %v8860 = vtanh.pop %v8796
      %v8861 = vtanh.pop %v8797
      %v8862 = vtanh.pop %v8798
      %v8863 = vtanh.pop %v8799
      %v8864 = vtanh.pop %v8800
      %v8865 = vtanh.pop %v8801
      %v8866 = vtanh.pop %v8802
      %v8867 = vtanh.pop %v8803
      %v8868 = vtanh.pop %v8804
      %v8869 = vtanh.pop %v8805
      %v8870 = vtanh.pop %v8806
      %v8871 = vtanh.pop %v8807
      %v8872 = vtanh.pop %v8808
      %v8873 = vtanh.pop %v8809
      %v8874 = vtanh.pop %v8810
      %v8875 = vtanh.pop %v8811
      %v8876 = vtanh.pop %v8812
      %v8877 = vtanh.pop %v8813
      %v8878 = vtanh.pop %v8814
      %v8879 = vtanh.pop %v8815
      %v8880 = vtanh.pop %v8816
      %v8881 = vtanh.pop %v8817
      %v8882 = vtanh.pop %v8818
      %v8883 = vtanh.pop %v8819
      %v8884 = vtanh.pop %v8820
      %v8885 = vtanh.pop %v8821
      %v8886 = vtanh.pop %v8822
      %v8887 = vtanh.pop %v8823
      %v8888 = vtanh.pop %v8824
      %v8889 = vtanh.pop %v8825
      %v8890 = vtanh.pop %v8826
      %v8891 = vtanh.pop %v8827
      %v8892 = vtanh.pop %v8828
      %v8893 = vtanh.pop %v8829
      %v8894 = vtanh.pop %v8830
      %v8895 = vtanh.pop %v8831
      %v8896 = vtanh.pop %v8832
      %v8897 = vtanh.pop %v8833
      %v8898 = vtanh.pop %v8834
      %v8899 = vtanh.pop %v8835
      %v8900 = vtanh.pop %v8836
      %v8901 = vtanh.pop %v8837
      %v8902 = vtanh.pop %v8838
      %v8903 = vtanh.pop %v8839
      %v8904 = vtanh.pop %v8840
      %v8905 = vtanh.pop %v8841
      %v8906 = vtanh.pop %v8842
      %v8907 = vtanh.pop %v8843
      %v8908 = vtanh.pop %v8844
      %v8909 = vtanh.pop %v8845
      %v8910 = vtanh.pop %v8846
      %v8911 = vtanh.pop %v8847
      %v8912 = vtanh.pop %v8848
      %v8913 = vtanh.pop %v8849
      %v8914 = vtanh.pop %v8850
      %v8915 = vtanh.pop %v8851
      %v8916 = vtanh.pop %v8852
      %v8917 = vtanh.pop %v8853
      %v8918 = vtanh.pop %v8854
      %v8919 = vtanh.pop %v8855
      %v8920 = vtanh.pop %v8856
      %v8921 = vtanh.pop %v8857
      %v8922 = vtanh.pop %v8858
      %v8923 = vtanh.pop %v8859
      %v8924 = vadd.f32 %v8860, 1.0
      %v8925 = vadd.f32 %v8861, 1.0
      %v8926 = vadd.f32 %v8862, 1.0
      %v8927 = vadd.f32 %v8863, 1.0
      %v8928 = vadd.f32 %v8864, 1.0
      %v8929 = vadd.f32 %v8865, 1.0
      %v8930 = vadd.f32 %v8866, 1.0
      %v8931 = vadd.f32 %v8867, 1.0
      %v8932 = vadd.f32 %v8868, 1.0
      %v8933 = vadd.f32 %v8869, 1.0
      %v8934 = vadd.f32 %v8870, 1.0
      %v8935 = vadd.f32 %v8871, 1.0
      %v8936 = vadd.f32 %v8872, 1.0
      %v8937 = vadd.f32 %v8873, 1.0
      %v8938 = vadd.f32 %v8874, 1.0
      %v8939 = vadd.f32 %v8875, 1.0
      %v8940 = vadd.f32 %v8876, 1.0
      %v8941 = vadd.f32 %v8877, 1.0
      %v8942 = vadd.f32 %v8878, 1.0
      %v8943 = vadd.f32 %v8879, 1.0
      %v8944 = vadd.f32 %v8880, 1.0
      %v8945 = vadd.f32 %v8881, 1.0
      %v8946 = vadd.f32 %v8882, 1.0
      %v8947 = vadd.f32 %v8883, 1.0
      %v8948 = vadd.f32 %v8884, 1.0
      %v8949 = vadd.f32 %v8885, 1.0
      %v8950 = vadd.f32 %v8886, 1.0
      %v8951 = vadd.f32 %v8887, 1.0
      %v8952 = vadd.f32 %v8888, 1.0
      %v8953 = vadd.f32 %v8889, 1.0
      %v8954 = vadd.f32 %v8890, 1.0
      %v8955 = vadd.f32 %v8891, 1.0
      %v8956 = vadd.f32 %v8892, 1.0
      %v8957 = vadd.f32 %v8893, 1.0
      %v8958 = vadd.f32 %v8894, 1.0
      %v8959 = vadd.f32 %v8895, 1.0
      %v8960 = vadd.f32 %v8896, 1.0
      %v8961 = vadd.f32 %v8897, 1.0
      %v8962 = vadd.f32 %v8898, 1.0
      %v8963 = vadd.f32 %v8899, 1.0
      %v8964 = vadd.f32 %v8900, 1.0
      %v8965 = vadd.f32 %v8901, 1.0
      %v8966 = vadd.f32 %v8902, 1.0
      %v8967 = vadd.f32 %v8903, 1.0
      %v8968 = vadd.f32 %v8904, 1.0
      %v8969 = vadd.f32 %v8905, 1.0
      %v8970 = vadd.f32 %v8906, 1.0
      %v8971 = vadd.f32 %v8907, 1.0
      %v8972 = vadd.f32 %v8908, 1.0
      %v8973 = vadd.f32 %v8909, 1.0
      %v8974 = vadd.f32 %v8910, 1.0
      %v8975 = vadd.f32 %v8911, 1.0
      %v8976 = vadd.f32 %v8912, 1.0
      %v8977 = vadd.f32 %v8913, 1.0
      %v8978 = vadd.f32 %v8914, 1.0
      %v8979 = vadd.f32 %v8915, 1.0
      %v8980 = vadd.f32 %v8916, 1.0
      %v8981 = vadd.f32 %v8917, 1.0
      %v8982 = vadd.f32 %v8918, 1.0
      %v8983 = vadd.f32 %v8919, 1.0
      %v8984 = vadd.f32 %v8920, 1.0
      %v8985 = vadd.f32 %v8921, 1.0
      %v8986 = vadd.f32 %v8922, 1.0
      %v8987 = vadd.f32 %v8923, 1.0
      %v8988 = vmul.f32 %v8924, 0.5
      %v8989 = vmul.f32 %v8925, 0.5
      %v8990 = vmul.f32 %v8926, 0.5
      %v8991 = vmul.f32 %v8927, 0.5
      %v8992 = vmul.f32 %v8928, 0.5
      %v8993 = vmul.f32 %v8929, 0.5
      %v8994 = vmul.f32 %v8930, 0.5
      %v8995 = vmul.f32 %v8931, 0.5
      %v8996 = vmul.f32 %v8932, 0.5
      %v8997 = vmul.f32 %v8933, 0.5
      %v8998 = vmul.f32 %v8934, 0.5
      %v8999 = vmul.f32 %v8935, 0.5
      %v9000 = vmul.f32 %v8936, 0.5
      %v9001 = vmul.f32 %v8937, 0.5
      %v9002 = vmul.f32 %v8938, 0.5
      %v9003 = vmul.f32 %v8939, 0.5
      %v9004 = vmul.f32 %v8940, 0.5
      %v9005 = vmul.f32 %v8941, 0.5
      %v9006 = vmul.f32 %v8942, 0.5
      %v9007 = vmul.f32 %v8943, 0.5
      %v9008 = vmul.f32 %v8944, 0.5
      %v9009 = vmul.f32 %v8945, 0.5
      %v9010 = vmul.f32 %v8946, 0.5
      %v9011 = vmul.f32 %v8947, 0.5
      %v9012 = vmul.f32 %v8948, 0.5
      %v9013 = vmul.f32 %v8949, 0.5
      %v9014 = vmul.f32 %v8950, 0.5
      %v9015 = vmul.f32 %v8951, 0.5
      %v9016 = vmul.f32 %v8952, 0.5
      %v9017 = vmul.f32 %v8953, 0.5
      %v9018 = vmul.f32 %v8954, 0.5
      %v9019 = vmul.f32 %v8955, 0.5
      %v9020 = vmul.f32 %v8956, 0.5
      %v9021 = vmul.f32 %v8957, 0.5
      %v9022 = vmul.f32 %v8958, 0.5
      %v9023 = vmul.f32 %v8959, 0.5
      %v9024 = vmul.f32 %v8960, 0.5
      %v9025 = vmul.f32 %v8961, 0.5
      %v9026 = vmul.f32 %v8962, 0.5
      %v9027 = vmul.f32 %v8963, 0.5
      %v9028 = vmul.f32 %v8964, 0.5
      %v9029 = vmul.f32 %v8965, 0.5
      %v9030 = vmul.f32 %v8966, 0.5
      %v9031 = vmul.f32 %v8967, 0.5
      %v9032 = vmul.f32 %v8968, 0.5
      %v9033 = vmul.f32 %v8969, 0.5
      %v9034 = vmul.f32 %v8970, 0.5
      %v9035 = vmul.f32 %v8971, 0.5
      %v9036 = vmul.f32 %v8972, 0.5
      %v9037 = vmul.f32 %v8973, 0.5
      %v9038 = vmul.f32 %v8974, 0.5
      %v9039 = vmul.f32 %v8975, 0.5
      %v9040 = vmul.f32 %v8976, 0.5
      %v9041 = vmul.f32 %v8977, 0.5
      %v9042 = vmul.f32 %v8978, 0.5
      %v9043 = vmul.f32 %v8979, 0.5
      %v9044 = vmul.f32 %v8980, 0.5
      %v9045 = vmul.f32 %v8981, 0.5
      %v9046 = vmul.f32 %v8982, 0.5
      %v9047 = vmul.f32 %v8983, 0.5
      %v9048 = vmul.f32 %v8984, 0.5
      %v9049 = vmul.f32 %v8985, 0.5
      %v9050 = vmul.f32 %v8986, 0.5
      %v9051 = vmul.f32 %v8987, 0.5
      %v9052 = vmul.f32 %v8382, %v8988
      %v9053 = vmul.f32 %v8384, %v8989
      %v9054 = vmul.f32 %v8386, %v8990
      %v9055 = vmul.f32 %v8388, %v8991
      %v9056 = vmul.f32 %v8392, %v8992
      %v9057 = vmul.f32 %v8394, %v8993
      %v9058 = vmul.f32 %v8396, %v8994
      %v9059 = vmul.f32 %v8398, %v8995
      %v9060 = vmul.f32 %v8402, %v8996
      %v9061 = vmul.f32 %v8404, %v8997
      %v9062 = vmul.f32 %v8406, %v8998
      %v9063 = vmul.f32 %v8408, %v8999
      %v9064 = vmul.f32 %v8412, %v9000
      %v9065 = vmul.f32 %v8414, %v9001
      %v9066 = vmul.f32 %v8416, %v9002
      %v9067 = vmul.f32 %v8418, %v9003
      %v9068 = vmul.f32 %v8422, %v9004
      %v9069 = vmul.f32 %v8424, %v9005
      %v9070 = vmul.f32 %v8426, %v9006
      %v9071 = vmul.f32 %v8428, %v9007
      %v9072 = vmul.f32 %v8432, %v9008
      %v9073 = vmul.f32 %v8434, %v9009
      %v9074 = vmul.f32 %v8436, %v9010
      %v9075 = vmul.f32 %v8438, %v9011
      %v9076 = vmul.f32 %v8442, %v9012
      %v9077 = vmul.f32 %v8444, %v9013
      %v9078 = vmul.f32 %v8446, %v9014
      %v9079 = vmul.f32 %v8448, %v9015
      %v9080 = vmul.f32 %v8452, %v9016
      %v9081 = vmul.f32 %v8454, %v9017
      %v9082 = vmul.f32 %v8456, %v9018
      %v9083 = vmul.f32 %v8458, %v9019
      %v9084 = vmul.f32 %v8462, %v9020
      %v9085 = vmul.f32 %v8464, %v9021
      %v9086 = vmul.f32 %v8466, %v9022
      %v9087 = vmul.f32 %v8468, %v9023
      %v9088 = vmul.f32 %v8472, %v9024
      %v9089 = vmul.f32 %v8474, %v9025
      %v9090 = vmul.f32 %v8476, %v9026
      %v9091 = vmul.f32 %v8478, %v9027
      %v9092 = vmul.f32 %v8482, %v9028
      %v9093 = vmul.f32 %v8484, %v9029
      %v9094 = vmul.f32 %v8486, %v9030
      %v9095 = vmul.f32 %v8488, %v9031
      %v9096 = vmul.f32 %v8492, %v9032
      %v9097 = vmul.f32 %v8494, %v9033
      %v9098 = vmul.f32 %v8496, %v9034
      %v9099 = vmul.f32 %v8498, %v9035
      %v9100 = vmul.f32 %v8502, %v9036
      %v9101 = vmul.f32 %v8504, %v9037
      %v9102 = vmul.f32 %v8506, %v9038
      %v9103 = vmul.f32 %v8508, %v9039
      %v9104 = vmul.f32 %v8512, %v9040
      %v9105 = vmul.f32 %v8514, %v9041
      %v9106 = vmul.f32 %v8516, %v9042
      %v9107 = vmul.f32 %v8518, %v9043
      %v9108 = vmul.f32 %v8522, %v9044
      %v9109 = vmul.f32 %v8524, %v9045
      %v9110 = vmul.f32 %v8526, %v9046
      %v9111 = vmul.f32 %v8528, %v9047
      %v9112 = vmul.f32 %v8532, %v9048
      %v9113 = vmul.f32 %v8534, %v9049
      %v9114 = vmul.f32 %v8536, %v9050
      %v9115 = vmul.f32 %v8538, %v9051
      %v9116 = vpack.c.bf16 %v9054, %v9052
      %v9117 = vpack.c.bf16 %v9055, %v9053
      %v9118 = vpack.c.bf16 %v9058, %v9056
      %v9119 = vpack.c.bf16 %v9059, %v9057
      %v9120 = vpack.c.bf16 %v9062, %v9060
      %v9121 = vpack.c.bf16 %v9063, %v9061
      %v9122 = vpack.c.bf16 %v9066, %v9064
      %v9123 = vpack.c.bf16 %v9067, %v9065
      %v9124 = vpack.c.bf16 %v9070, %v9068
      %v9125 = vpack.c.bf16 %v9071, %v9069
      %v9126 = vpack.c.bf16 %v9074, %v9072
      %v9127 = vpack.c.bf16 %v9075, %v9073
      %v9128 = vpack.c.bf16 %v9078, %v9076
      %v9129 = vpack.c.bf16 %v9079, %v9077
      %v9130 = vpack.c.bf16 %v9082, %v9080
      %v9131 = vpack.c.bf16 %v9083, %v9081
      %v9132 = vpack.c.bf16 %v9086, %v9084
      %v9133 = vpack.c.bf16 %v9087, %v9085
      %v9134 = vpack.c.bf16 %v9090, %v9088
      %v9135 = vpack.c.bf16 %v9091, %v9089
      %v9136 = vpack.c.bf16 %v9094, %v9092
      %v9137 = vpack.c.bf16 %v9095, %v9093
      %v9138 = vpack.c.bf16 %v9098, %v9096
      %v9139 = vpack.c.bf16 %v9099, %v9097
      %v9140 = vpack.c.bf16 %v9102, %v9100
      %v9141 = vpack.c.bf16 %v9103, %v9101
      %v9142 = vpack.c.bf16 %v9106, %v9104
      %v9143 = vpack.c.bf16 %v9107, %v9105
      %v9144 = vpack.c.bf16 %v9110, %v9108
      %v9145 = vpack.c.bf16 %v9111, %v9109
      %v9146 = vpack.c.bf16 %v9114, %v9112
      %v9147 = vpack.c.bf16 %v9115, %v9113
      %s9148 = scalar_lea.vmem %s14, 128
      %v9149 = vld [vmem:[%s9148] sm:$0xf]
      %v9150 = vld [vmem:[%s9148 + $0x4] sm:$0xf]
      %v9151 = vld [vmem:[%s9148 + $0x8] sm:$0xf]
      %v9152 = vld [vmem:[%s9148 + $0xc] sm:$0xf]
      %v9153 = vld [vmem:[%s9148 + $0x10] sm:$0xf]
      %v9154 = vld [vmem:[%s9148 + $0x14] sm:$0xf]
      %v9155 = vld [vmem:[%s9148 + $0x18] sm:$0xf]
      %v9156 = vld [vmem:[%s9148 + $0x1c] sm:$0xf]
      %v9157 = vld [vmem:[%s9148 + $0x20] sm:$0xf]
      %v9158 = vld [vmem:[%s9148 + $0x24] sm:$0xf]
      %v9159 = vld [vmem:[%s9148 + $0x28] sm:$0xf]
      %v9160 = vld [vmem:[%s9148 + $0x2c] sm:$0xf]
      %v9161 = vld [vmem:[%s9148 + $0x30] sm:$0xf]
      %v9162 = vld [vmem:[%s9148 + $0x34] sm:$0xf]
      %v9163 = vld [vmem:[%s9148 + $0x38] sm:$0xf]
      %v9164 = vld [vmem:[%s9148 + $0x3c] sm:$0xf]
      %v9165 = vld [vmem:[%s9148 + $0x40] sm:$0xf]
      %v9166 = vld [vmem:[%s9148 + $0x44] sm:$0xf]
      %v9167 = vld [vmem:[%s9148 + $0x48] sm:$0xf]
      %v9168 = vld [vmem:[%s9148 + $0x4c] sm:$0xf]
      %v9169 = vld [vmem:[%s9148 + $0x50] sm:$0xf]
      %v9170 = vld [vmem:[%s9148 + $0x54] sm:$0xf]
      %v9171 = vld [vmem:[%s9148 + $0x58] sm:$0xf]
      %v9172 = vld [vmem:[%s9148 + $0x5c] sm:$0xf]
      %v9173 = vld [vmem:[%s9148 + $0x60] sm:$0xf]
      %v9174 = vld [vmem:[%s9148 + $0x64] sm:$0xf]
      %v9175 = vld [vmem:[%s9148 + $0x68] sm:$0xf]
      %v9176 = vld [vmem:[%s9148 + $0x6c] sm:$0xf]
      %v9177 = vld [vmem:[%s9148 + $0x70] sm:$0xf]
      %v9178 = vld [vmem:[%s9148 + $0x74] sm:$0xf]
      %v9179 = vld [vmem:[%s9148 + $0x78] sm:$0xf]
      %v9180 = vld [vmem:[%s9148 + $0x7c] sm:$0xf]
      %s9181 = scalar_lea.vmem %s15, 1
      %v9182 = vld [vmem:[%s9181] sm:$0x1]
      %v9184 = vlaneseq
      %v9185 = vshrl.u32 %v9184, 7
      %v9186 = vsub.s32 0, %v9185
      %v9187 = vrot.slane %v9182, %v9186
      %v9221 = vunpack.c.l.b16 %v9149
      %v9222 = vunpack.c.l.b16 %v9150
      %v9223 = vunpack.c.l.b16 %v9151
      %v9224 = vunpack.c.l.b16 %v9152
      %v9225 = vunpack.c.l.b16 %v9153
      %v9226 = vunpack.c.l.b16 %v9154
      %v9227 = vunpack.c.l.b16 %v9155
      %v9228 = vunpack.c.l.b16 %v9156
      %v9229 = vunpack.c.l.b16 %v9157
      %v9230 = vunpack.c.l.b16 %v9158
      %v9231 = vunpack.c.l.b16 %v9159
      %v9232 = vunpack.c.l.b16 %v9160
      %v9233 = vunpack.c.l.b16 %v9161
      %v9234 = vunpack.c.l.b16 %v9162
      %v9235 = vunpack.c.l.b16 %v9163
      %v9236 = vunpack.c.l.b16 %v9164
      %v9237 = vunpack.c.l.b16 %v9165
      %v9238 = vunpack.c.l.b16 %v9166
      %v9239 = vunpack.c.l.b16 %v9167
      %v9240 = vunpack.c.l.b16 %v9168
      %v9241 = vunpack.c.l.b16 %v9169
      %v9242 = vunpack.c.l.b16 %v9170
      %v9243 = vunpack.c.l.b16 %v9171
      %v9244 = vunpack.c.l.b16 %v9172
      %v9245 = vunpack.c.l.b16 %v9173
      %v9246 = vunpack.c.l.b16 %v9174
      %v9247 = vunpack.c.l.b16 %v9175
      %v9248 = vunpack.c.l.b16 %v9176
      %v9249 = vunpack.c.l.b16 %v9177
      %v9250 = vunpack.c.l.b16 %v9178
      %v9251 = vunpack.c.l.b16 %v9179
      %v9252 = vunpack.c.l.b16 %v9180
      %v9253 = vpack.c.b16 %v9222, %v9221
      %v9254 = vpack.c.b16 %v9224, %v9223
      %v9255 = vpack.c.b16 %v9226, %v9225
      %v9256 = vpack.c.b16 %v9228, %v9227
      %v9257 = vpack.c.b16 %v9230, %v9229
      %v9258 = vpack.c.b16 %v9232, %v9231
      %v9259 = vpack.c.b16 %v9234, %v9233
      %v9260 = vpack.c.b16 %v9236, %v9235
      %v9261 = vpack.c.b16 %v9238, %v9237
      %v9262 = vpack.c.b16 %v9240, %v9239
      %v9263 = vpack.c.b16 %v9242, %v9241
      %v9264 = vpack.c.b16 %v9244, %v9243
      %v9265 = vpack.c.b16 %v9246, %v9245
      %v9266 = vpack.c.b16 %v9248, %v9247
      %v9267 = vpack.c.b16 %v9250, %v9249
      %v9268 = vpack.c.b16 %v9252, %v9251
      %9285 = vmatprep.subr.bf16.mxu0 0
      %9286 = vmatpush1.bf16.msra.mxu0 %v9260
      %9287 = vmatprep.subr.bf16.mxu0 0
      %9288 = vmatpush1.bf16.msra.mxu0 %v9259
      %9289 = vmatprep.subr.bf16.mxu0 0
      %9290 = vmatpush1.bf16.msra.mxu0 %v9258
      %9291 = vmatprep.subr.bf16.mxu0 0
      %9292 = vmatpush1.bf16.msra.mxu0 %v9257
      %9293 = vmatprep.subr.bf16.mxu0 0
      %9294 = vmatpush1.bf16.msra.mxu0 %v9256
      %9295 = vmatprep.subr.bf16.mxu0 0
      %9296 = vmatpush1.bf16.msra.mxu0 %v9255
      %9297 = vmatprep.subr.bf16.mxu0 0
      %9298 = vmatpush1.bf16.msra.mxu0 %v9254
      %9299 = vmatprep.subr.bf16.mxu0 0
      %9300 = vmatpush1.bf16.msra.mxu0 %v9253
      %9301 = vmatprep.subr.bf16.mxu0 0
      %9302 = vmatpush2.bf16.msra.mxu0 %v9268
      %9303 = vmatprep.subr.bf16.mxu0 0
      %9304 = vmatpush2.bf16.msra.mxu0 %v9267
      %9305 = vmatprep.subr.bf16.mxu0 0
      %9306 = vmatpush2.bf16.msra.mxu0 %v9266
      %9307 = vmatprep.subr.bf16.mxu0 0
      %9308 = vmatpush2.bf16.msra.mxu0 %v9265
      %9309 = vmatprep.subr.bf16.mxu0 0
      %9310 = vmatpush2.bf16.msra.mxu0 %v9264
      %9311 = vmatprep.subr.bf16.mxu0 0
      %9312 = vmatpush2.bf16.msra.mxu0 %v9263
      %9313 = vmatprep.subr.bf16.mxu0 0
      %9314 = vmatpush2.bf16.msra.mxu0 %v9262
      %9315 = vmatprep.subr.bf16.mxu0 0
      %9316 = vmatpush2.bf16.msra.mxu0 %v9261
      %9317 = vmatprep.mubr.bf16.mxu0 %v9117
      %9318 = vmatmul.mubr.bf16.gmra.mxu0 %v9116
      %v9319 = vpop.f32.mrf.mxu0
      %v9320 = vadd.f32 %v9187, %v9319
      %v9321 = vpop.f32.mrf.mxu0
      %v9322 = vpop.f32.mrf.mxu0
      %v9323 = vadd.f32 %v9187, %v9322
      %v9324 = vpop.f32.mrf.mxu0
      %9325 = vmatprep.mubr.bf16.mxu0 %v9119
      %9326 = vmatmul.mubr.bf16.gmra.mxu0 %v9118
      %v9327 = vpop.f32.mrf.mxu0
      %v9328 = vadd.f32 %v9187, %v9327
      %v9329 = vpop.f32.mrf.mxu0
      %v9330 = vpop.f32.mrf.mxu0
      %v9331 = vadd.f32 %v9187, %v9330
      %v9332 = vpop.f32.mrf.mxu0
      %9333 = vmatprep.mubr.bf16.mxu0 %v9121
      %9334 = vmatmul.mubr.bf16.gmra.mxu0 %v9120
      %v9335 = vpop.f32.mrf.mxu0
      %v9336 = vadd.f32 %v9187, %v9335
      %v9337 = vpop.f32.mrf.mxu0
      %v9338 = vpop.f32.mrf.mxu0
      %v9339 = vadd.f32 %v9187, %v9338
      %v9340 = vpop.f32.mrf.mxu0
      %9341 = vmatprep.mubr.bf16.mxu0 %v9123
      %9342 = vmatmul.mubr.bf16.gmra.mxu0 %v9122
      %v9343 = vpop.f32.mrf.mxu0
      %v9344 = vadd.f32 %v9187, %v9343
      %v9345 = vpop.f32.mrf.mxu0
      %v9346 = vpop.f32.mrf.mxu0
      %v9347 = vadd.f32 %v9187, %v9346
      %v9348 = vpop.f32.mrf.mxu0
      %9349 = vmatprep.mubr.bf16.mxu0 %v9125
      %9350 = vmatmul.mubr.bf16.gmra.mxu0 %v9124
      %v9351 = vpop.f32.mrf.mxu0
      %v9352 = vadd.f32 %v9187, %v9351
      %v9353 = vpop.f32.mrf.mxu0
      %v9354 = vpop.f32.mrf.mxu0
      %v9355 = vadd.f32 %v9187, %v9354
      %v9356 = vpop.f32.mrf.mxu0
      %9357 = vmatprep.mubr.bf16.mxu0 %v9127
      %9358 = vmatmul.mubr.bf16.gmra.mxu0 %v9126
      %v9359 = vpop.f32.mrf.mxu0
      %v9360 = vadd.f32 %v9187, %v9359
      %v9361 = vpop.f32.mrf.mxu0
      %v9362 = vpop.f32.mrf.mxu0
      %v9363 = vadd.f32 %v9187, %v9362
      %v9364 = vpop.f32.mrf.mxu0
      %9365 = vmatprep.mubr.bf16.mxu0 %v9129
      %9366 = vmatmul.mubr.bf16.gmra.mxu0 %v9128
      %v9367 = vpop.f32.mrf.mxu0
      %v9368 = vadd.f32 %v9187, %v9367
      %v9369 = vpop.f32.mrf.mxu0
      %v9370 = vpop.f32.mrf.mxu0
      %v9371 = vadd.f32 %v9187, %v9370
      %v9372 = vpop.f32.mrf.mxu0
      %9373 = vmatprep.mubr.bf16.mxu0 %v9131
      %9374 = vmatmul.mubr.bf16.gmra.mxu0 %v9130
      %v9375 = vpop.f32.mrf.mxu0
      %v9376 = vadd.f32 %v9187, %v9375
      %v9377 = vpop.f32.mrf.mxu0
      %v9378 = vpop.f32.mrf.mxu0
      %v9379 = vadd.f32 %v9187, %v9378
      %v9380 = vpop.f32.mrf.mxu0
      %9381 = vmatprep.mubr.bf16.mxu0 %v9133
      %9382 = vmatmul.mubr.bf16.gmra.mxu0 %v9132
      %v9383 = vpop.f32.mrf.mxu0
      %v9384 = vadd.f32 %v9187, %v9383
      %v9385 = vpop.f32.mrf.mxu0
      %v9386 = vpop.f32.mrf.mxu0
      %v9387 = vadd.f32 %v9187, %v9386
      %v9388 = vpop.f32.mrf.mxu0
      %9389 = vmatprep.mubr.bf16.mxu0 %v9135
      %9390 = vmatmul.mubr.bf16.gmra.mxu0 %v9134
      %v9391 = vpop.f32.mrf.mxu0
      %v9392 = vadd.f32 %v9187, %v9391
      %v9393 = vpop.f32.mrf.mxu0
      %v9394 = vpop.f32.mrf.mxu0
      %v9395 = vadd.f32 %v9187, %v9394
      %v9396 = vpop.f32.mrf.mxu0
      %9397 = vmatprep.mubr.bf16.mxu0 %v9137
      %9398 = vmatmul.mubr.bf16.gmra.mxu0 %v9136
      %v9399 = vpop.f32.mrf.mxu0
      %v9400 = vadd.f32 %v9187, %v9399
      %v9401 = vpop.f32.mrf.mxu0
      %v9402 = vpop.f32.mrf.mxu0
      %v9403 = vadd.f32 %v9187, %v9402
      %v9404 = vpop.f32.mrf.mxu0
      %9405 = vmatprep.mubr.bf16.mxu0 %v9139
      %9406 = vmatmul.mubr.bf16.gmra.mxu0 %v9138
      %v9407 = vpop.f32.mrf.mxu0
      %v9408 = vadd.f32 %v9187, %v9407
      %v9409 = vpop.f32.mrf.mxu0
      %v9410 = vpop.f32.mrf.mxu0
      %v9411 = vadd.f32 %v9187, %v9410
      %v9412 = vpop.f32.mrf.mxu0
      %9413 = vmatprep.mubr.bf16.mxu0 %v9141
      %9414 = vmatmul.mubr.bf16.gmra.mxu0 %v9140
      %v9415 = vpop.f32.mrf.mxu0
      %v9416 = vadd.f32 %v9187, %v9415
      %v9417 = vpop.f32.mrf.mxu0
      %v9418 = vpop.f32.mrf.mxu0
      %v9419 = vadd.f32 %v9187, %v9418
      %v9420 = vpop.f32.mrf.mxu0
      %9421 = vmatprep.mubr.bf16.mxu0 %v9143
      %9422 = vmatmul.mubr.bf16.gmra.mxu0 %v9142
      %v9423 = vpop.f32.mrf.mxu0
      %v9424 = vadd.f32 %v9187, %v9423
      %v9425 = vpop.f32.mrf.mxu0
      %v9426 = vpop.f32.mrf.mxu0
      %v9427 = vadd.f32 %v9187, %v9426
      %v9428 = vpop.f32.mrf.mxu0
      %9429 = vmatprep.mubr.bf16.mxu0 %v9145
      %9430 = vmatmul.mubr.bf16.gmra.mxu0 %v9144
      %v9431 = vpop.f32.mrf.mxu0
      %v9432 = vadd.f32 %v9187, %v9431
      %v9433 = vpop.f32.mrf.mxu0
      %v9434 = vpop.f32.mrf.mxu0
      %v9435 = vadd.f32 %v9187, %v9434
      %v9436 = vpop.f32.mrf.mxu0
      %9437 = vmatprep.mubr.bf16.mxu0 %v9147
      %9438 = vmatmul.mubr.bf16.gmra.mxu0 %v9146
      %v9439 = vpop.f32.mrf.mxu0
      %v9440 = vadd.f32 %v9187, %v9439
      %v9441 = vpop.f32.mrf.mxu0
      %v9442 = vpop.f32.mrf.mxu0
      %v9443 = vadd.f32 %v9187, %v9442
      %v9444 = vpop.f32.mrf.mxu0
      %9445 = vdwg.mxu0
      %v9446 = vadd.f32 %v7757, %v9320
      %v9447 = vadd.f32 %v7758, %v9323
      %v9448 = vadd.f32 %v7759, %v9328
      %v9449 = vadd.f32 %v7760, %v9331
      %v9450 = vadd.f32 %v7761, %v9336
      %v9451 = vadd.f32 %v7762, %v9339
      %v9452 = vadd.f32 %v7763, %v9344
      %v9453 = vadd.f32 %v7764, %v9347
      %v9454 = vadd.f32 %v7765, %v9352
      %v9455 = vadd.f32 %v7766, %v9355
      %v9456 = vadd.f32 %v7767, %v9360
      %v9457 = vadd.f32 %v7768, %v9363
      %v9458 = vadd.f32 %v7769, %v9368
      %v9459 = vadd.f32 %v7770, %v9371
      %v9460 = vadd.f32 %v7771, %v9376
      %v9461 = vadd.f32 %v7772, %v9379
      %v9462 = vadd.f32 %v7773, %v9384
      %v9463 = vadd.f32 %v7774, %v9387
      %v9464 = vadd.f32 %v7775, %v9392
      %v9465 = vadd.f32 %v7776, %v9395
      %v9466 = vadd.f32 %v7777, %v9400
      %v9467 = vadd.f32 %v7778, %v9403
      %v9468 = vadd.f32 %v7779, %v9408
      %v9469 = vadd.f32 %v7780, %v9411
      %v9470 = vadd.f32 %v7781, %v9416
      %v9471 = vadd.f32 %v7782, %v9419
      %v9472 = vadd.f32 %v7783, %v9424
      %v9473 = vadd.f32 %v7784, %v9427
      %v9474 = vadd.f32 %v7785, %v9432
      %v9475 = vadd.f32 %v7786, %v9435
      %v9476 = vadd.f32 %v7787, %v9440
      %v9477 = vadd.f32 %v7788, %v9443
      %9478 = vst [vmem:[#allocation2] sm:$0xff] %v9446
      %9479 = vst [vmem:[#allocation2 + $0x8] sm:$0xff] %v9447
      %9480 = vst [vmem:[#allocation2 + $0x10] sm:$0xff] %v9448
      %9481 = vst [vmem:[#allocation2 + $0x18] sm:$0xff] %v9449
      %9482 = vst [vmem:[#allocation2 + $0x20] sm:$0xff] %v9450
      %9483 = vst [vmem:[#allocation2 + $0x28] sm:$0xff] %v9451
      %9484 = vst [vmem:[#allocation2 + $0x30] sm:$0xff] %v9452
      %9485 = vst [vmem:[#allocation2 + $0x38] sm:$0xff] %v9453
      %9486 = vst [vmem:[#allocation2 + $0x40] sm:$0xff] %v9454
      %9487 = vst [vmem:[#allocation2 + $0x48] sm:$0xff] %v9455
      %9488 = vst [vmem:[#allocation2 + $0x50] sm:$0xff] %v9456
      %9489 = vst [vmem:[#allocation2 + $0x58] sm:$0xff] %v9457
      %9490 = vst [vmem:[#allocation2 + $0x60] sm:$0xff] %v9458
      %9491 = vst [vmem:[#allocation2 + $0x68] sm:$0xff] %v9459
      %9492 = vst [vmem:[#allocation2 + $0x70] sm:$0xff] %v9460
      %9493 = vst [vmem:[#allocation2 + $0x78] sm:$0xff] %v9461
      %9494 = vst [vmem:[#allocation2 + $0x80] sm:$0xff] %v9462
      %9495 = vst [vmem:[#allocation2 + $0x88] sm:$0xff] %v9463
      %9496 = vst [vmem:[#allocation2 + $0x90] sm:$0xff] %v9464
      %9497 = vst [vmem:[#allocation2 + $0x98] sm:$0xff] %v9465
      %9498 = vst [vmem:[#allocation2 + $0xa0] sm:$0xff] %v9466
      %9499 = vst [vmem:[#allocation2 + $0xa8] sm:$0xff] %v9467
      %9500 = vst [vmem:[#allocation2 + $0xb0] sm:$0xff] %v9468
      %9501 = vst [vmem:[#allocation2 + $0xb8] sm:$0xff] %v9469
      %9502 = vst [vmem:[#allocation2 + $0xc0] sm:$0xff] %v9470
      %9503 = vst [vmem:[#allocation2 + $0xc8] sm:$0xff] %v9471
      %9504 = vst [vmem:[#allocation2 + $0xd0] sm:$0xff] %v9472
      %9505 = vst [vmem:[#allocation2 + $0xd8] sm:$0xff] %v9473
      %9506 = vst [vmem:[#allocation2 + $0xe0] sm:$0xff] %v9474
      %9507 = vst [vmem:[#allocation2 + $0xe8] sm:$0xff] %v9475
      %9508 = vst [vmem:[#allocation2 + $0xf0] sm:$0xff] %v9476
      %9509 = vst [vmem:[#allocation2 + $0xf8] sm:$0xff] %v9477
      %v9510 = vld [vmem:[#allocation2] sm:$0x1]
      %9511 = vst [vmem:[#allocation4] sm:$0x1] %v9510
      %v9512 = vld [vmem:[#allocation2 + $0x20] sm:$0x1]
      %9513 = vst [vmem:[#allocation4 + $0x1] sm:$0x1] %v9512
      %v9514 = vld [vmem:[#allocation2 + $0x40] sm:$0x1]
      %9515 = vst [vmem:[#allocation4 + $0x2] sm:$0x1] %v9514
      %v9516 = vld [vmem:[#allocation2 + $0x60] sm:$0x1]
      %9517 = vst [vmem:[#allocation4 + $0x3] sm:$0x1] %v9516
      %v9518 = vld [vmem:[#allocation2 + $0x80] sm:$0x1]
      %9519 = vst [vmem:[#allocation4 + $0x4] sm:$0x1] %v9518
      %v9520 = vld [vmem:[#allocation2 + $0xa0] sm:$0x1]
      %9521 = vst [vmem:[#allocation4 + $0x5] sm:$0x1] %v9520
      %v9522 = vld [vmem:[#allocation2 + $0xc0] sm:$0x1]
      %9523 = vst [vmem:[#allocation4 + $0x6] sm:$0x1] %v9522
      %v9524 = vld [vmem:[#allocation2 + $0xe0] sm:$0x1]
      %9525 = vst [vmem:[#allocation4 + $0x7] sm:$0x1] %v9524
      %v9526 = vld [vmem:[#allocation4] sm:$0xff]
      %v9527 = vld [vmem:[%s16] sm:$0x1]
      %v9528 = vld [vmem:[%s17] sm:$0x1]
      %9529 = vadd.xlane.f32.xlu0 %v9526
      %v9530 = vpop.xlane.xlu0 %9529
      %v9531 = vmul.f32 %v9530, %v1189
      %v9532 = vsub.f32 %v9526, %v9531
      %v9533 = vmul.f32 %v9532, %v9532
      %9534 = vadd.xlane.f32.xlu0 %v9533
      %v9535 = vpop.xlane.xlu0 %9534
      %v9536 = vmul.f32 %v9535, %v1189
      %v9537 = vadd.f32 %v9536, 1e-06
      %v9538 = vrsqrt.pop %v9537
      %v9539 = vmul.f32 %v9532, %v9538
      %v9541 = vlaneseq
      %v9542 = vshrl.u32 %v9541, 7
      %v9543 = vsub.s32 0, %v9542
      %v9544 = vrot.slane %v9527, %v9543
      %v9546 = vmul.f32 %v9539, %v9544
      %v9548 = vlaneseq
      %v9549 = vshrl.u32 %v9548, 7
      %v9550 = vsub.s32 0, %v9549
      %v9551 = vrot.slane %v9528, %v9550
      %v9553 = vadd.f32 %v9546, %v9551
      %v9554 = vpack.c.bf16 %v9553, %v9553
      %v9555 = vld [vmem:[%s18] sm:$0xf]
      %v9556 = vld [vmem:[%s18 + $0x4] sm:$0xf]
      %v9557 = vld [vmem:[%s18 + $0x8] sm:$0xf]
      %v9558 = vld [vmem:[%s18 + $0xc] sm:$0xf]
      %v9559 = vld [vmem:[%s18 + $0x10] sm:$0xf]
      %v9560 = vld [vmem:[%s18 + $0x14] sm:$0xf]
      %v9561 = vld [vmem:[%s18 + $0x18] sm:$0xf]
      %v9562 = vld [vmem:[%s18 + $0x1c] sm:$0xf]
      %v9563 = vld [vmem:[%s18 + $0x20] sm:$0xf]
      %v9564 = vld [vmem:[%s18 + $0x24] sm:$0xf]
      %v9565 = vld [vmem:[%s18 + $0x28] sm:$0xf]
      %v9566 = vld [vmem:[%s18 + $0x2c] sm:$0xf]
      %v9567 = vld [vmem:[%s18 + $0x30] sm:$0xf]
      %v9568 = vld [vmem:[%s18 + $0x34] sm:$0xf]
      %v9569 = vld [vmem:[%s18 + $0x38] sm:$0xf]
      %v9570 = vld [vmem:[%s18 + $0x3c] sm:$0xf]
      %v9571 = vld [vmem:[%s19] sm:$0x1]
      %v9573 = vlaneseq
      %v9574 = vshrl.u32 %v9573, 7
      %v9575 = vsub.s32 0, %v9574
      %v9576 = vrot.slane %v9571, %v9575
      %v9594 = vunpack.c.l.b16 %v9555
      %v9595 = vunpack.c.l.b16 %v9556
      %v9596 = vunpack.c.l.b16 %v9557
      %v9597 = vunpack.c.l.b16 %v9558
      %v9598 = vunpack.c.l.b16 %v9559
      %v9599 = vunpack.c.l.b16 %v9560
      %v9600 = vunpack.c.l.b16 %v9561
      %v9601 = vunpack.c.l.b16 %v9562
      %v9602 = vunpack.c.l.b16 %v9563
      %v9603 = vunpack.c.l.b16 %v9564
      %v9604 = vunpack.c.l.b16 %v9565
      %v9605 = vunpack.c.l.b16 %v9566
      %v9606 = vunpack.c.l.b16 %v9567
      %v9607 = vunpack.c.l.b16 %v9568
      %v9608 = vunpack.c.l.b16 %v9569
      %v9609 = vunpack.c.l.b16 %v9570
      %v9610 = vpack.c.b16 %v9595, %v9594
      %v9611 = vpack.c.b16 %v9597, %v9596
      %v9612 = vpack.c.b16 %v9599, %v9598
      %v9613 = vpack.c.b16 %v9601, %v9600
      %v9614 = vpack.c.b16 %v9603, %v9602
      %v9615 = vpack.c.b16 %v9605, %v9604
      %v9616 = vpack.c.b16 %v9607, %v9606
      %v9617 = vpack.c.b16 %v9609, %v9608
      %9626 = vmatprep.subr.bf16.mxu0 0
      %9627 = vmatpush1.bf16.msra.mxu0 %v9617
      %9628 = vmatprep.subr.bf16.mxu0 0
      %9629 = vmatpush1.bf16.msra.mxu0 %v9616
      %9630 = vmatprep.subr.bf16.mxu0 0
      %9631 = vmatpush1.bf16.msra.mxu0 %v9615
      %9632 = vmatprep.subr.bf16.mxu0 0
      %9633 = vmatpush1.bf16.msra.mxu0 %v9614
      %9634 = vmatprep.subr.bf16.mxu0 0
      %9635 = vmatpush1.bf16.msra.mxu0 %v9613
      %9636 = vmatprep.subr.bf16.mxu0 0
      %9637 = vmatpush1.bf16.msra.mxu0 %v9612
      %9638 = vmatprep.subr.bf16.mxu0 0
      %9639 = vmatpush1.bf16.msra.mxu0 %v9611
      %9640 = vmatprep.subr.bf16.mxu0 0
      %9641 = vmatpush1.bf16.msra.mxu0 %v9610
      %9642 = vmatprep.subr.bf16.mxu0 0
      %9643 = vmatpush2.bf16.msra.mxu0 0
      %9644 = vmatprep.subr.bf16.mxu0 0
      %9645 = vmatpush2.bf16.msra.mxu0 0
      %9646 = vmatprep.subr.bf16.mxu0 0
      %9647 = vmatpush2.bf16.msra.mxu0 0
      %9648 = vmatprep.subr.bf16.mxu0 0
      %9649 = vmatpush2.bf16.msra.mxu0 0
      %9650 = vmatprep.subr.bf16.mxu0 0
      %9651 = vmatpush2.bf16.msra.mxu0 0
      %9652 = vmatprep.subr.bf16.mxu0 0
      %9653 = vmatpush2.bf16.msra.mxu0 0
      %9654 = vmatprep.subr.bf16.mxu0 0
      %9655 = vmatpush2.bf16.msra.mxu0 0
      %9656 = vmatprep.subr.bf16.mxu0 0
      %9657 = vmatpush2.bf16.msra.mxu0 0
      %9658 = vmatprep.mubr.bf16.mxu0 0
      %9659 = vmatmul.mubr.bf16.gmra.mxu0 %v9554
      %v9660 = vpop.f32.mrf.mxu0
      %v9661 = vadd.f32 %v9576, %v9660
      %v9662 = vpop.f32.mrf.mxu0
      %v9663 = vpop.f32.mrf.mxu0
      %v9664 = vpop.f32.mrf.mxu0
      %9665 = vdwg.mxu0
      %9666 = vst [vmem:[%s629] sm:$0xff] %v9661
      %p9667 = scmp.lt.s32.totalorder %s31, 1
      %s9668 = scalar_select %p9667, %s31, 1
      %s9669 = smul.addr %s9668, 8
      %s9670 = scalar_lea.vmem %s20, %s9669
      // Predicated region
      $region115: #{vit_forward.1} parent=99 // pred_check
        %p9671 = pneg %p474
      $region116: #{vit_forward.1} parent=99 // pred_check_branch
        %9673 = sbr.rel (%p9671) target = $region118
      $region117: #{vit_forward.1} parent=99 // pred_region
        _
      $region118: #{vit_forward.1} parent=99 // pred_fallthru
        _
    $region100: #{vit_forward.1} parent=5 // pred_fallthru
      _
    %p9674 = scmp.le.s32.totalorder 2, %s26
    // Predicated region
    $region119: #{vit_forward.1} parent=5 // pred_check
      %p9675 = pneg %p9674
    $region120: #{vit_forward.1} parent=5 // pred_check_branch
      %9677 = sbr.rel (%p9675) target = $region122
    $region121: #{vit_forward.1} parent=5 // pred_region
      %s9678 = ssub.s32 %s26, 2
      // Predicated region
      $region123: #{vit_forward.1} parent=121 // pred_check
        %p9679 = pneg %p480
      $region124: #{vit_forward.1} parent=121 // pred_check_branch
        %9681 = sbr.rel (%p9679) target = $region126
      $region125: #{vit_forward.1} parent=121 // pred_region
        %p9682 = scmp.lt.s32.totalorder %s32, 1
        %s9683 = scalar_select %p9682, %s32, 1
        %s9684 = smul.addr %s9683, 8
        %s9685 = scalar_lea.vmem %s20, %s9684
      $region126: #{vit_forward.1} parent=121 // pred_fallthru
        _
    $region122: #{vit_forward.1} parent=5 // pred_fallthru
      _
  $region6: #{vit_forward.1} parent=0 // loop_footer
    %s30 = sadd.s32 1, %s26
  $region7: #{vit_forward.1} parent=0 // loop_footer_branch
    %25 = sbr.rel target = $region3
  $region8: #{vit_forward.1} parent=0 // loop_exit
    _

</llo_original>
